<compile_context>
chip_gen: v7x
topology: tpu7x:2x2x1
jax: 0.10.0
libtpu: 0.0.40
codegen_flags: <defaults>
</compile_context>

<pallas_src>
import jax
import jax.numpy as jnp
from jax.experimental import pallas as pl
from jax.experimental.pallas import tpu as pltpu

HIDDEN = 256
N_HEADS = 4
HEAD_DIM = HIDDEN // N_HEADS
INTERMEDIATE = 512
N_LAYERS = 2
VOCAB = 100
TYPE_VOCAB = 2
MAX_POS = 32
N_SEQ_LABELS = 9   # nn.Linear(256, 9)  -> sequence_classification
N_TOK_LABELS = 2   # nn.Linear(256, 2)  -> token_classification
LN_EPS = 1e-12


# ---------------------------------------------------------------------------
# Fused encoder + heads kernel (one grid step per batch element)
# ---------------------------------------------------------------------------
def _layernorm(x, g, b):
    mu = jnp.mean(x, axis=-1, keepdims=True)
    var = jnp.mean(jnp.square(x - mu), axis=-1, keepdims=True)
    return (x - mu) * jax.lax.rsqrt(var + LN_EPS) * g + b


def _fused_encoder_kernel(
        x_ref, mask_ref,
        emb_g_ref, emb_b_ref,
        wqkv_ref, bqkv_ref, wo_ref, bo_ref,
        ln1_g_ref, ln1_b_ref,
        w1_ref, b1_ref, w2_ref, b2_ref,
        ln2_g_ref, ln2_b_ref,
        wtok_ref, btok_ref, wseq_ref, bseq_ref,
        tok_ref, seq_ref):
    # x_ref: (S, H) summed embeddings for this batch element; mask_ref: (1, S)
    h = _layernorm(x_ref[...], emb_g_ref[...], emb_b_ref[...])           # (S, H) f32
    neg = (1.0 - mask_ref[...]) * jnp.float32(-1e9)                       # (1, S)
    scale = jnp.float32(1.0 / (HEAD_DIM ** 0.5))

    for l in range(N_LAYERS):                                             # static unroll
        # ---- fused QKV projection: one (S,256) x (256,768) MXU pass (bf16 in, f32 acc)
        qkv = jnp.dot(h.astype(jnp.bfloat16), wqkv_ref[l],
                      preferred_element_type=jnp.float32) + bqkv_ref[l]   # (S, 3H) f32

        # ---- attention: per-head 64-lane column slices, no transposes of activations
        ctx_parts = []
        for hd in range(N_HEADS):
            lo = hd * HEAD_DIM
            q = qkv[:, lo:lo + HEAD_DIM]                                  # (S, Dh)
            k = qkv[:, HIDDEN + lo:HIDDEN + lo + HEAD_DIM]
            v = qkv[:, 2 * HIDDEN + lo:2 * HIDDEN + lo + HEAD_DIM]
            # tiny in-VMEM dots kept in f32 (negligible cost, less drift)
            s = jnp.dot(q, k.T, preferred_element_type=jnp.float32) * scale + neg
            s = s - jnp.max(s, axis=-1, keepdims=True)
            p = jnp.exp(s)
            p = p * pl.reciprocal(jnp.sum(p, axis=-1, keepdims=True), approx=True)
            ctx_parts.append(jnp.dot(p, v, preferred_element_type=jnp.float32))
        ctx = jnp.concatenate(ctx_parts, axis=-1)                         # (S, H) lane-dense

        # ---- output projection + residual + LN
        attn = jnp.dot(ctx.astype(jnp.bfloat16), wo_ref[l],
                       preferred_element_type=jnp.float32) + bo_ref[l]
        h = _layernorm(attn + h, ln1_g_ref[l], ln1_b_ref[l])

        # ---- FFN (GELU) + residual + LN
        f = jnp.dot(h.astype(jnp.bfloat16), w1_ref[l],
                    preferred_element_type=jnp.float32) + b1_ref[l]
        f = jax.nn.gelu(f, approximate=True)
        f = jnp.dot(f.astype(jnp.bfloat16), w2_ref[l],
                    preferred_element_type=jnp.float32) + b2_ref[l]
        h = _layernorm(f + h, ln2_g_ref[l], ln2_b_ref[l])

    # ---- classification heads ride for free on data already in VMEM
    tok = jnp.dot(h.astype(jnp.bfloat16), wtok_ref[...],
                  preferred_element_type=jnp.float32) + btok_ref[...]     # (S, 2)
    tok_ref[...] = tok.astype(tok_ref.dtype)

    cls = h[0:1, :]                                                       # (1, H)
    seq = jnp.dot(cls.astype(jnp.bfloat16), wseq_ref[...],
                  preferred_element_type=jnp.float32) + bseq_ref[...]     # (1, 9)
    seq_ref[...] = seq.astype(seq_ref.dtype)


def _const_spec(shape):
    zeros = (0,) * len(shape)
    return pl.BlockSpec(shape, lambda b: zeros)


def _batch_spec(tail_shape):
    zeros = (0,) * len(tail_shape)
    return pl.BlockSpec((None,) + tail_shape, lambda b: (b,) + zeros)


def fused_encoder(x, mask, packed):
    """x: (B, S, H) f32 summed embeddings; mask: (B, 1, S) f32 -> (tok, seq)."""
    B, S, H = x.shape
    out_shape = (
        jax.ShapeDtypeStruct((B, S, N_TOK_LABELS), jnp.float32),
        jax.ShapeDtypeStruct((B, 1, N_SEQ_LABELS), jnp.float32),
    )
    in_specs = [
        _batch_spec((S, H)),                                   # x
        _batch_spec((1, S)),                                   # mask
        _const_spec((1, H)), _const_spec((1, H)),              # emb LN
        _const_spec((N_LAYERS, H, 3 * H)),                     # wqkv (bf16)
        _const_spec((N_LAYERS, 1, 3 * H)),                     # bqkv
        _const_spec((N_LAYERS, H, H)),                         # wo (bf16)
        _const_spec((N_LAYERS, 1, H)),                         # bo
        _const_spec((N_LAYERS, 1, H)), _const_spec((N_LAYERS, 1, H)),   # ln1 g/b
        _const_spec((N_LAYERS, H, INTERMEDIATE)),              # w1 (bf16)
        _const_spec((N_LAYERS, 1, INTERMEDIATE)),              # b1
        _const_spec((N_LAYERS, INTERMEDIATE, H)),              # w2 (bf16)
        _const_spec((N_LAYERS, 1, H)),                         # b2
        _const_spec((N_LAYERS, 1, H)), _const_spec((N_LAYERS, 1, H)),   # ln2 g/b
        _const_spec((H, N_TOK_LABELS)), _const_spec((1, N_TOK_LABELS)),  # token head
        _const_spec((H, N_SEQ_LABELS)), _const_spec((1, N_SEQ_LABELS)),  # sequence head
    ]
    out_specs = (
        pl.BlockSpec((None, S, N_TOK_LABELS), lambda b: (b, 0, 0)),
        pl.BlockSpec((None, 1, N_SEQ_LABELS), lambda b: (b, 0, 0)),
    )
    tok, seq = pl.pallas_call(
        _fused_encoder_kernel,
        out_shape=out_shape,
        grid=(B,),
        in_specs=in_specs,
        out_specs=out_specs,
        compiler_params=pltpu.CompilerParams(dimension_semantics=("parallel",)),
    )(x, mask,
      packed["emb_g"], packed["emb_b"],
      packed["wqkv"], packed["bqkv"], packed["wo"], packed["bo"],
      packed["ln1_g"], packed["ln1_b"],
      packed["w1"], packed["b1"], packed["w2"], packed["b2"],
      packed["ln2_g"], packed["ln2_b"],
      packed["wtok"], packed["btok"], packed["wseq"], packed["bseq"])
    return tok, seq.reshape(B, N_SEQ_LABELS)


# ---------------------------------------------------------------------------
# Parameter init (synthetic, stands in for AutoModel weights) and packing
# ---------------------------------------------------------------------------
def _dense_params(key, fan_in, fan_out):
    w = jax.random.normal(key, (fan_in, fan_out), jnp.float32) * 0.02
    b = jnp.zeros((fan_out,), jnp.float32)
    return {"w": w, "b": b}


def init_params(key):
    keys = jax.random.split(key, 5 + N_LAYERS)
    params = {
        "word_emb": jax.random.normal(keys[0], (VOCAB, HIDDEN), jnp.float32) * 0.02,
        "pos_emb": jax.random.normal(keys[1], (MAX_POS, HIDDEN), jnp.float32) * 0.02,
        "type_emb": jax.random.normal(keys[2], (TYPE_VOCAB, HIDDEN), jnp.float32) * 0.02,
        "emb_ln_g": jnp.ones((HIDDEN,), jnp.float32),
        "emb_ln_b": jnp.zeros((HIDDEN,), jnp.float32),
        "seq_head": _dense_params(keys[3], HIDDEN, N_SEQ_LABELS),
        "tok_head": _dense_params(keys[4], HIDDEN, N_TOK_LABELS),
        "layers": [],
    }
    for l in range(N_LAYERS):
        lk = jax.random.split(keys[5 + l], 6)
        params["layers"].append({
            "q": _dense_params(lk[0], HIDDEN, HIDDEN),
            "k": _dense_params(lk[1], HIDDEN, HIDDEN),
            "v": _dense_params(lk[2], HIDDEN, HIDDEN),
            "o": _dense_params(lk[3], HIDDEN, HIDDEN),
            "ffn1": _dense_params(lk[4], HIDDEN, INTERMEDIATE),
            "ffn2": _dense_params(lk[5], INTERMEDIATE, HIDDEN),
            "ln1_g": jnp.ones((HIDDEN,), jnp.float32),
            "ln1_b": jnp.zeros((HIDDEN,), jnp.float32),
            "ln2_g": jnp.ones((HIDDEN,), jnp.float32),
            "ln2_b": jnp.zeros((HIDDEN,), jnp.float32),
        })
    return params


def pack_params(params):
    """Stack per-layer weights, fuse QKV, cast matmul weights to bf16 (biases/LN f32)."""
    L = params["layers"]
    bf16 = jnp.bfloat16
    wqkv = jnp.stack([jnp.concatenate([l["q"]["w"], l["k"]["w"], l["v"]["w"]], axis=1)
                      for l in L]).astype(bf16)
    bqkv = jnp.stack([jnp.concatenate([l["q"]["b"], l["k"]["b"], l["v"]["b"]])[None, :]
                      for l in L])
    return {
        "emb_g": params["emb_ln_g"][None, :],
        "emb_b": params["emb_ln_b"][None, :],
        "wqkv": wqkv, "bqkv": bqkv,
        "wo": jnp.stack([l["o"]["w"] for l in L]).astype(bf16),
        "bo": jnp.stack([l["o"]["b"][None, :] for l in L]),
        "ln1_g": jnp.stack([l["ln1_g"][None, :] for l in L]),
        "ln1_b": jnp.stack([l["ln1_b"][None, :] for l in L]),
        "w1": jnp.stack([l["ffn1"]["w"] for l in L]).astype(bf16),
        "b1": jnp.stack([l["ffn1"]["b"][None, :] for l in L]),
        "w2": jnp.stack([l["ffn2"]["w"] for l in L]).astype(bf16),
        "b2": jnp.stack([l["ffn2"]["b"][None, :] for l in L]),
        "ln2_g": jnp.stack([l["ln2_g"][None, :] for l in L]),
        "ln2_b": jnp.stack([l["ln2_b"][None, :] for l in L]),
        "wtok": params["tok_head"]["w"].astype(bf16),
        "btok": params["tok_head"]["b"][None, :],
        "wseq": params["seq_head"]["w"].astype(bf16),
        "bseq": params["seq_head"]["b"][None, :],
    }


# ---------------------------------------------------------------------------
# Forward pass (embedding gathers are JAX glue, everything else one Pallas call)
# ---------------------------------------------------------------------------
def forward(params, input_ids, attention_mask, token_type_ids):
    B, S = input_ids.shape
    # TODO(synk): embedding-table gathers stay as jnp.take glue (no clean Pallas gather here).
    x = (jnp.take(params["word_emb"], input_ids, axis=0)
         + params["pos_emb"][None, :S, :]
         + jnp.take(params["type_emb"], token_type_ids, axis=0))           # (B, S, H) f32
    mask = attention_mask.astype(jnp.float32).reshape(B, 1, S)
    packed = pack_params(params)
    token_output, sequence_output = fused_encoder(x, mask, packed)
    return token_output, sequence_output


# ---------------------------------------------------------------------------
# Pure-JAX f32 reference (same math) for a sanity check
# ---------------------------------------------------------------------------
def reference_forward(params, input_ids, attention_mask, token_type_ids):
    B, S = input_ids.shape
    HI = jax.lax.Precision.HIGHEST

    def ln(x, g, b):
        mu = jnp.mean(x, axis=-1, keepdims=True)
        var = jnp.mean(jnp.square(x - mu), axis=-1, keepdims=True)
        return (x - mu) * jax.lax.rsqrt(var + LN_EPS) * g + b

    def dense(x, p):
        return jnp.dot(x, p["w"], precision=HI) + p["b"]

    x = (jnp.take(params["word_emb"], input_ids, axis=0)
         + params["pos_emb"][None, :S, :]
         + jnp.take(params["type_emb"], token_type_ids, axis=0))
    h = ln(x, params["emb_ln_g"], params["emb_ln_b"])
    mask = attention_mask.astype(jnp.float32)[:, None, None, :]
    for lp in params["layers"]:
        def sh(t):
            return t.reshape(B, S, N_HEADS, HEAD_DIM).transpose(0, 2, 1, 3)
        q, k, v = sh(dense(h, lp["q"])), sh(dense(h, lp["k"])), sh(dense(h, lp["v"]))
        scores = jnp.einsum("bhqd,bhkd->bhqk", q, k, precision=HI) / jnp.sqrt(jnp.float32(HEAD_DIM))
        scores = scores + (1.0 - mask) * jnp.float32(-1e9)
        p = jax.nn.softmax(scores, axis=-1)
        ctx = jnp.einsum("bhqk,bhkd->bhqd", p, v, precision=HI)
        ctx = ctx.transpose(0, 2, 1, 3).reshape(B, S, HIDDEN)
        h = ln(dense(ctx, lp["o"]) + h, lp["ln1_g"], lp["ln1_b"])
        f = dense(jax.nn.gelu(dense(h, lp["ffn1"]), approximate=True), lp["ffn2"])
        h = ln(f + h, lp["ln2_g"], lp["ln2_b"])
    tok = dense(h, params["tok_head"])
    seq = dense(h[:, 0, :], params["seq_head"])
    return tok, seq


if __name__ == "__main__":
    key = jax.random.PRNGKey(0)
    pkey, ikey = jax.random.split(key)
    params = init_params(pkey)

    B, S = 2, 8
    input_ids = jax.random.randint(ikey, (B, S), 0, VOCAB, dtype=jnp.int32)
    attention_mask = jnp.array([[1, 1, 1, 1, 1, 1, 1, 1],
                                [1, 1, 1, 1, 1, 1, 0, 0]], dtype=jnp.int32)
    token_type_ids = jnp.zeros((B, S), dtype=jnp.int32)

    fwd = jax.jit(forward)
    token_out, seq_out = fwd(params, input_ids, attention_mask, token_type_ids)
    token_out, seq_out = jax.block_until_ready((token_out, seq_out))

    assert token_out.shape == (B, S, N_TOK_LABELS)
    assert seq_out.shape == (B, N_SEQ_LABELS)

    tok_ref, seq_ref = reference_forward(params, input_ids, attention_mask, token_type_ids)
    # bf16 MXU operands vs f32-HIGHEST reference -> allow small numerical drift.
    assert jnp.allclose(token_out, tok_ref, atol=2e-2, rtol=2e-2)
    assert jnp.allclose(seq_out, seq_ref, atol=2e-2, rtol=2e-2)

    print("KERNEL_OK")
</pallas_src>

<mosaic_0001>
module attributes {stable_mosaic.version = 11 : i64} {
  func.func @_fused_encoder_kernel(%arg0: i32, %arg1: memref<1x8x256xf32, #tpu.memory_space<vmem>>, %arg2: memref<1x1x8xf32, #tpu.memory_space<vmem>>, %arg3: memref<1x256xf32, #tpu.memory_space<vmem>>, %arg4: memref<1x256xf32, #tpu.memory_space<vmem>>, %arg5: memref<2x256x768xbf16, #tpu.memory_space<vmem>>, %arg6: memref<2x1x768xf32, #tpu.memory_space<vmem>>, %arg7: memref<2x256x256xbf16, #tpu.memory_space<vmem>>, %arg8: memref<2x1x256xf32, #tpu.memory_space<vmem>>, %arg9: memref<2x1x256xf32, #tpu.memory_space<vmem>>, %arg10: memref<2x1x256xf32, #tpu.memory_space<vmem>>, %arg11: memref<2x256x512xbf16, #tpu.memory_space<vmem>>, %arg12: memref<2x1x512xf32, #tpu.memory_space<vmem>>, %arg13: memref<2x512x256xbf16, #tpu.memory_space<vmem>>, %arg14: memref<2x1x256xf32, #tpu.memory_space<vmem>>, %arg15: memref<2x1x256xf32, #tpu.memory_space<vmem>>, %arg16: memref<2x1x256xf32, #tpu.memory_space<vmem>>, %arg17: memref<256x2xbf16, #tpu.memory_space<vmem>>, %arg18: memref<1x2xf32, #tpu.memory_space<vmem>>, %arg19: memref<256x9xbf16, #tpu.memory_space<vmem>>, %arg20: memref<1x9xf32, #tpu.memory_space<vmem>>, %arg21: memref<1x8x2xf32, #tpu.memory_space<vmem>>, %arg22: memref<1x1x9xf32, #tpu.memory_space<vmem>>) attributes {dimension_semantics = [#tpu.dimension_semantics<parallel>], iteration_bounds = array<i64: 2>, scalar_prefetch = 0 : i64, scratch_operands = 0 : i64, tpu.core_type = #tpu.core_type<tc>, window_params = [{transform_indices = @transform_0, window_bounds = array<i64: 1, 8, 256>}, {transform_indices = @transform_1, window_bounds = array<i64: 1, 1, 8>}, {pipeline_mode = #tpu.pipeline_mode<synchronous>, transform_indices = @transform_2, window_bounds = array<i64: 1, 256>}, {pipeline_mode = #tpu.pipeline_mode<synchronous>, transform_indices = @transform_3, window_bounds = array<i64: 1, 256>}, {pipeline_mode = #tpu.pipeline_mode<synchronous>, transform_indices = @transform_4, window_bounds = array<i64: 2, 256, 768>}, {pipeline_mode = #tpu.pipeline_mode<synchronous>, transform_indices = @transform_5, window_bounds = array<i64: 2, 1, 768>}, {pipeline_mode = #tpu.pipeline_mode<synchronous>, transform_indices = @transform_6, window_bounds = array<i64: 2, 256, 256>}, {pipeline_mode = #tpu.pipeline_mode<synchronous>, transform_indices = @transform_7, window_bounds = array<i64: 2, 1, 256>}, {pipeline_mode = #tpu.pipeline_mode<synchronous>, transform_indices = @transform_8, window_bounds = array<i64: 2, 1, 256>}, {pipeline_mode = #tpu.pipeline_mode<synchronous>, transform_indices = @transform_9, window_bounds = array<i64: 2, 1, 256>}, {pipeline_mode = #tpu.pipeline_mode<synchronous>, transform_indices = @transform_10, window_bounds = array<i64: 2, 256, 512>}, {pipeline_mode = #tpu.pipeline_mode<synchronous>, transform_indices = @transform_11, window_bounds = array<i64: 2, 1, 512>}, {pipeline_mode = #tpu.pipeline_mode<synchronous>, transform_indices = @transform_12, window_bounds = array<i64: 2, 512, 256>}, {pipeline_mode = #tpu.pipeline_mode<synchronous>, transform_indices = @transform_13, window_bounds = array<i64: 2, 1, 256>}, {pipeline_mode = #tpu.pipeline_mode<synchronous>, transform_indices = @transform_14, window_bounds = array<i64: 2, 1, 256>}, {pipeline_mode = #tpu.pipeline_mode<synchronous>, transform_indices = @transform_15, window_bounds = array<i64: 2, 1, 256>}, {pipeline_mode = #tpu.pipeline_mode<synchronous>, transform_indices = @transform_16, window_bounds = array<i64: 256, 2>}, {pipeline_mode = #tpu.pipeline_mode<synchronous>, transform_indices = @transform_17, window_bounds = array<i64: 1, 2>}, {pipeline_mode = #tpu.pipeline_mode<synchronous>, transform_indices = @transform_18, window_bounds = array<i64: 256, 9>}, {pipeline_mode = #tpu.pipeline_mode<synchronous>, transform_indices = @transform_19, window_bounds = array<i64: 1, 9>}, {transform_indices = @transform_20, window_bounds = array<i64: 1, 8, 2>}, {transform_indices = @transform_21, window_bounds = array<i64: 1, 1, 9>}]} {
    %c0 = arith.constant 0 : index
    %c0_0 = arith.constant 0 : index
    %c0_1 = arith.constant 0 : index
    %0 = vector.load %arg1[%c0, %c0_0, %c0_1] : memref<1x8x256xf32, #tpu.memory_space<vmem>>, vector<1x8x256xf32>
    %1 = vector.shape_cast %0 : vector<1x8x256xf32> to vector<8x256xf32>
    %c0_2 = arith.constant 0 : index
    %c0_3 = arith.constant 0 : index
    %2 = vector.load %arg3[%c0_2, %c0_3] : memref<1x256xf32, #tpu.memory_space<vmem>>, vector<1x256xf32>
    %c0_4 = arith.constant 0 : index
    %c0_5 = arith.constant 0 : index
    %3 = vector.load %arg4[%c0_4, %c0_5] : memref<1x256xf32, #tpu.memory_space<vmem>>, vector<1x256xf32>
    %cst = arith.constant dense<0.000000e+00> : vector<8xf32>
    %4 = vector.multi_reduction <add>, %1, %cst [1] : vector<8x256xf32> to vector<8xf32>
    %5 = vector.shape_cast %4 : vector<8xf32> to vector<8x1xf32>
    %cst_6 = arith.constant 2.560000e+02 : f32
    %6 = vector.broadcast %cst_6 : f32 to vector<8x1xf32>
    %7 = arith.divf %5, %6 : vector<8x1xf32>
    %8 = vector.broadcast %7 : vector<8x1xf32> to vector<8x256xf32>
    %9 = arith.subf %1, %8 : vector<8x256xf32>
    %10 = arith.mulf %9, %9 : vector<8x256xf32>
    %cst_7 = arith.constant dense<0.000000e+00> : vector<8xf32>
    %11 = vector.multi_reduction <add>, %10, %cst_7 [1] : vector<8x256xf32> to vector<8xf32>
    %12 = vector.shape_cast %11 : vector<8xf32> to vector<8x1xf32>
    %cst_8 = arith.constant 2.560000e+02 : f32
    %13 = vector.broadcast %cst_8 : f32 to vector<8x1xf32>
    %14 = arith.divf %12, %13 : vector<8x1xf32>
    %15 = vector.broadcast %7 : vector<8x1xf32> to vector<8x256xf32>
    %16 = arith.subf %1, %15 : vector<8x256xf32>
    %cst_9 = arith.constant 9.99999996E-13 : f32
    %17 = vector.broadcast %cst_9 : f32 to vector<8x1xf32>
    %18 = arith.addf %14, %17 : vector<8x1xf32>
    %19 = math.rsqrt %18 : vector<8x1xf32>
    %20 = vector.broadcast %19 : vector<8x1xf32> to vector<8x256xf32>
    %21 = arith.mulf %16, %20 : vector<8x256xf32>
    %22 = vector.broadcast %2 : vector<1x256xf32> to vector<8x256xf32>
    %23 = arith.mulf %21, %22 : vector<8x256xf32>
    %24 = vector.broadcast %3 : vector<1x256xf32> to vector<8x256xf32>
    %25 = arith.addf %23, %24 : vector<8x256xf32>
    %c0_10 = arith.constant 0 : index
    %c0_11 = arith.constant 0 : index
    %c0_12 = arith.constant 0 : index
    %26 = vector.load %arg2[%c0_10, %c0_11, %c0_12] : memref<1x1x8xf32, #tpu.memory_space<vmem>>, vector<1x1x8xf32>
    %27 = vector.shape_cast %26 : vector<1x1x8xf32> to vector<1x8xf32>
    %cst_13 = arith.constant 1.000000e+00 : f32
    %28 = vector.broadcast %cst_13 : f32 to vector<1x8xf32>
    %29 = arith.subf %28, %27 : vector<1x8xf32>
    %cst_14 = arith.constant -1.000000e+09 : f32
    %30 = vector.broadcast %cst_14 : f32 to vector<1x8xf32>
    %31 = arith.mulf %29, %30 : vector<1x8xf32>
    %32 = arith.truncf %25 : vector<8x256xf32> to vector<8x256xbf16>
    %c0_15 = arith.constant 0 : index
    %c0_16 = arith.constant 0 : index
    %c0_17 = arith.constant 0 : index
    %33 = vector.load %arg5[%c0_15, %c0_16, %c0_17] : memref<2x256x768xbf16, #tpu.memory_space<vmem>>, vector<1x256x768xbf16>
    %34 = vector.shape_cast %33 : vector<1x256x768xbf16> to vector<256x768xbf16>
    %cst_18 = arith.constant dense<0.000000e+00> : vector<8x768xf32>
    %35 = tpu.matmul %32, %34, %cst_18 {dimension_numbers = #tpu.dot_dimension_numbers<[1], [0], [0], [1], [0, 0, 1, 1], [], []>} : vector<8x256xbf16>, vector<256x768xbf16>, vector<8x768xf32> -> vector<8x768xf32>
    %c0_19 = arith.constant 0 : index
    %c0_20 = arith.constant 0 : index
    %c0_21 = arith.constant 0 : index
    %36 = vector.load %arg6[%c0_19, %c0_20, %c0_21] : memref<2x1x768xf32, #tpu.memory_space<vmem>>, vector<1x1x768xf32>
    %37 = vector.shape_cast %36 : vector<1x1x768xf32> to vector<1x768xf32>
    %38 = vector.broadcast %37 : vector<1x768xf32> to vector<8x768xf32>
    %39 = arith.addf %35, %38 : vector<8x768xf32>
    %40 = vector.extract_strided_slice %39 {offsets = [0, 0], sizes = [8, 64], strides = [1, 1]} : vector<8x768xf32> to vector<8x64xf32>
    %41 = vector.extract_strided_slice %39 {offsets = [0, 256], sizes = [8, 64], strides = [1, 1]} : vector<8x768xf32> to vector<8x64xf32>
    %42 = vector.extract_strided_slice %39 {offsets = [0, 512], sizes = [8, 64], strides = [1, 1]} : vector<8x768xf32> to vector<8x64xf32>
    %43 = tpu.transpose %41, [1, 0] : vector<8x64xf32> -> vector<64x8xf32>
    %cst_22 = arith.constant dense<0.000000e+00> : vector<8x8xf32>
    %44 = tpu.matmul %40, %43, %cst_22 {dimension_numbers = #tpu.dot_dimension_numbers<[1], [0], [0], [1], [0, 0, 1, 1], [], []>} : vector<8x64xf32>, vector<64x8xf32>, vector<8x8xf32> -> vector<8x8xf32>
    %cst_23 = arith.constant 1.250000e-01 : f32
    %45 = vector.broadcast %cst_23 : f32 to vector<8x8xf32>
    %46 = arith.mulf %44, %45 : vector<8x8xf32>
    %47 = vector.broadcast %31 : vector<1x8xf32> to vector<8x8xf32>
    %48 = arith.addf %46, %47 : vector<8x8xf32>
    %cst_24 = arith.constant dense<0xFF800000> : vector<8xf32>
    %49 = vector.multi_reduction <maximumf>, %48, %cst_24 [1] : vector<8x8xf32> to vector<8xf32>
    %50 = vector.shape_cast %49 : vector<8xf32> to vector<8x1xf32>
    %51 = vector.broadcast %50 : vector<8x1xf32> to vector<8x8xf32>
    %52 = arith.subf %48, %51 : vector<8x8xf32>
    %53 = math.exp %52 : vector<8x8xf32>
    %cst_25 = arith.constant dense<0.000000e+00> : vector<8xf32>
    %54 = vector.multi_reduction <add>, %53, %cst_25 [1] : vector<8x8xf32> to vector<8xf32>
    %55 = vector.shape_cast %54 : vector<8xf32> to vector<8x1xf32>
    %56 = tpu.reciprocal %55 {approx = true} : vector<8x1xf32> -> vector<8x1xf32>
    %57 = vector.broadcast %56 : vector<8x1xf32> to vector<8x8xf32>
    %58 = arith.mulf %53, %57 : vector<8x8xf32>
    %cst_26 = arith.constant dense<0.000000e+00> : vector<8x64xf32>
    %59 = tpu.matmul %58, %42, %cst_26 {dimension_numbers = #tpu.dot_dimension_numbers<[1], [0], [0], [1], [0, 0, 1, 1], [], []>} : vector<8x8xf32>, vector<8x64xf32>, vector<8x64xf32> -> vector<8x64xf32>
    %60 = vector.extract_strided_slice %39 {offsets = [0, 64], sizes = [8, 64], strides = [1, 1]} : vector<8x768xf32> to vector<8x64xf32>
    %61 = vector.extract_strided_slice %39 {offsets = [0, 320], sizes = [8, 64], strides = [1, 1]} : vector<8x768xf32> to vector<8x64xf32>
    %62 = vector.extract_strided_slice %39 {offsets = [0, 576], sizes = [8, 64], strides = [1, 1]} : vector<8x768xf32> to vector<8x64xf32>
    %63 = tpu.transpose %61, [1, 0] : vector<8x64xf32> -> vector<64x8xf32>
    %cst_27 = arith.constant dense<0.000000e+00> : vector<8x8xf32>
    %64 = tpu.matmul %60, %63, %cst_27 {dimension_numbers = #tpu.dot_dimension_numbers<[1], [0], [0], [1], [0, 0, 1, 1], [], []>} : vector<8x64xf32>, vector<64x8xf32>, vector<8x8xf32> -> vector<8x8xf32>
    %cst_28 = arith.constant 1.250000e-01 : f32
    %65 = vector.broadcast %cst_28 : f32 to vector<8x8xf32>
    %66 = arith.mulf %64, %65 : vector<8x8xf32>
    %67 = vector.broadcast %31 : vector<1x8xf32> to vector<8x8xf32>
    %68 = arith.addf %66, %67 : vector<8x8xf32>
    %cst_29 = arith.constant dense<0xFF800000> : vector<8xf32>
    %69 = vector.multi_reduction <maximumf>, %68, %cst_29 [1] : vector<8x8xf32> to vector<8xf32>
    %70 = vector.shape_cast %69 : vector<8xf32> to vector<8x1xf32>
    %71 = vector.broadcast %70 : vector<8x1xf32> to vector<8x8xf32>
    %72 = arith.subf %68, %71 : vector<8x8xf32>
    %73 = math.exp %72 : vector<8x8xf32>
    %cst_30 = arith.constant dense<0.000000e+00> : vector<8xf32>
    %74 = vector.multi_reduction <add>, %73, %cst_30 [1] : vector<8x8xf32> to vector<8xf32>
    %75 = vector.shape_cast %74 : vector<8xf32> to vector<8x1xf32>
    %76 = tpu.reciprocal %75 {approx = true} : vector<8x1xf32> -> vector<8x1xf32>
    %77 = vector.broadcast %76 : vector<8x1xf32> to vector<8x8xf32>
    %78 = arith.mulf %73, %77 : vector<8x8xf32>
    %cst_31 = arith.constant dense<0.000000e+00> : vector<8x64xf32>
    %79 = tpu.matmul %78, %62, %cst_31 {dimension_numbers = #tpu.dot_dimension_numbers<[1], [0], [0], [1], [0, 0, 1, 1], [], []>} : vector<8x8xf32>, vector<8x64xf32>, vector<8x64xf32> -> vector<8x64xf32>
    %80 = vector.extract_strided_slice %39 {offsets = [0, 128], sizes = [8, 64], strides = [1, 1]} : vector<8x768xf32> to vector<8x64xf32>
    %81 = vector.extract_strided_slice %39 {offsets = [0, 384], sizes = [8, 64], strides = [1, 1]} : vector<8x768xf32> to vector<8x64xf32>
    %82 = vector.extract_strided_slice %39 {offsets = [0, 640], sizes = [8, 64], strides = [1, 1]} : vector<8x768xf32> to vector<8x64xf32>
    %83 = tpu.transpose %81, [1, 0] : vector<8x64xf32> -> vector<64x8xf32>
    %cst_32 = arith.constant dense<0.000000e+00> : vector<8x8xf32>
    %84 = tpu.matmul %80, %83, %cst_32 {dimension_numbers = #tpu.dot_dimension_numbers<[1], [0], [0], [1], [0, 0, 1, 1], [], []>} : vector<8x64xf32>, vector<64x8xf32>, vector<8x8xf32> -> vector<8x8xf32>
    %cst_33 = arith.constant 1.250000e-01 : f32
    %85 = vector.broadcast %cst_33 : f32 to vector<8x8xf32>
    %86 = arith.mulf %84, %85 : vector<8x8xf32>
    %87 = vector.broadcast %31 : vector<1x8xf32> to vector<8x8xf32>
    %88 = arith.addf %86, %87 : vector<8x8xf32>
    %cst_34 = arith.constant dense<0xFF800000> : vector<8xf32>
    %89 = vector.multi_reduction <maximumf>, %88, %cst_34 [1] : vector<8x8xf32> to vector<8xf32>
    %90 = vector.shape_cast %89 : vector<8xf32> to vector<8x1xf32>
    %91 = vector.broadcast %90 : vector<8x1xf32> to vector<8x8xf32>
    %92 = arith.subf %88, %91 : vector<8x8xf32>
    %93 = math.exp %92 : vector<8x8xf32>
    %cst_35 = arith.constant dense<0.000000e+00> : vector<8xf32>
    %94 = vector.multi_reduction <add>, %93, %cst_35 [1] : vector<8x8xf32> to vector<8xf32>
    %95 = vector.shape_cast %94 : vector<8xf32> to vector<8x1xf32>
    %96 = tpu.reciprocal %95 {approx = true} : vector<8x1xf32> -> vector<8x1xf32>
    %97 = vector.broadcast %96 : vector<8x1xf32> to vector<8x8xf32>
    %98 = arith.mulf %93, %97 : vector<8x8xf32>
    %cst_36 = arith.constant dense<0.000000e+00> : vector<8x64xf32>
    %99 = tpu.matmul %98, %82, %cst_36 {dimension_numbers = #tpu.dot_dimension_numbers<[1], [0], [0], [1], [0, 0, 1, 1], [], []>} : vector<8x8xf32>, vector<8x64xf32>, vector<8x64xf32> -> vector<8x64xf32>
    %100 = vector.extract_strided_slice %39 {offsets = [0, 192], sizes = [8, 64], strides = [1, 1]} : vector<8x768xf32> to vector<8x64xf32>
    %101 = vector.extract_strided_slice %39 {offsets = [0, 448], sizes = [8, 64], strides = [1, 1]} : vector<8x768xf32> to vector<8x64xf32>
    %102 = vector.extract_strided_slice %39 {offsets = [0, 704], sizes = [8, 64], strides = [1, 1]} : vector<8x768xf32> to vector<8x64xf32>
    %103 = tpu.transpose %101, [1, 0] : vector<8x64xf32> -> vector<64x8xf32>
    %cst_37 = arith.constant dense<0.000000e+00> : vector<8x8xf32>
    %104 = tpu.matmul %100, %103, %cst_37 {dimension_numbers = #tpu.dot_dimension_numbers<[1], [0], [0], [1], [0, 0, 1, 1], [], []>} : vector<8x64xf32>, vector<64x8xf32>, vector<8x8xf32> -> vector<8x8xf32>
    %cst_38 = arith.constant 1.250000e-01 : f32
    %105 = vector.broadcast %cst_38 : f32 to vector<8x8xf32>
    %106 = arith.mulf %104, %105 : vector<8x8xf32>
    %107 = vector.broadcast %31 : vector<1x8xf32> to vector<8x8xf32>
    %108 = arith.addf %106, %107 : vector<8x8xf32>
    %cst_39 = arith.constant dense<0xFF800000> : vector<8xf32>
    %109 = vector.multi_reduction <maximumf>, %108, %cst_39 [1] : vector<8x8xf32> to vector<8xf32>
    %110 = vector.shape_cast %109 : vector<8xf32> to vector<8x1xf32>
    %111 = vector.broadcast %110 : vector<8x1xf32> to vector<8x8xf32>
    %112 = arith.subf %108, %111 : vector<8x8xf32>
    %113 = math.exp %112 : vector<8x8xf32>
    %cst_40 = arith.constant dense<0.000000e+00> : vector<8xf32>
    %114 = vector.multi_reduction <add>, %113, %cst_40 [1] : vector<8x8xf32> to vector<8xf32>
    %115 = vector.shape_cast %114 : vector<8xf32> to vector<8x1xf32>
    %116 = tpu.reciprocal %115 {approx = true} : vector<8x1xf32> -> vector<8x1xf32>
    %117 = vector.broadcast %116 : vector<8x1xf32> to vector<8x8xf32>
    %118 = arith.mulf %113, %117 : vector<8x8xf32>
    %cst_41 = arith.constant dense<0.000000e+00> : vector<8x64xf32>
    %119 = tpu.matmul %118, %102, %cst_41 {dimension_numbers = #tpu.dot_dimension_numbers<[1], [0], [0], [1], [0, 0, 1, 1], [], []>} : vector<8x8xf32>, vector<8x64xf32>, vector<8x64xf32> -> vector<8x64xf32>
    %120 = tpu.concatenate %59, %79, %99, %119 in 1 : vector<8x64xf32>, vector<8x64xf32>, vector<8x64xf32>, vector<8x64xf32> -> vector<8x256xf32>
    %121 = arith.truncf %120 : vector<8x256xf32> to vector<8x256xbf16>
    %c0_42 = arith.constant 0 : index
    %c0_43 = arith.constant 0 : index
    %c0_44 = arith.constant 0 : index
    %122 = vector.load %arg7[%c0_42, %c0_43, %c0_44] : memref<2x256x256xbf16, #tpu.memory_space<vmem>>, vector<1x256x256xbf16>
    %123 = vector.shape_cast %122 : vector<1x256x256xbf16> to vector<256x256xbf16>
    %cst_45 = arith.constant dense<0.000000e+00> : vector<8x256xf32>
    %124 = tpu.matmul %121, %123, %cst_45 {dimension_numbers = #tpu.dot_dimension_numbers<[1], [0], [0], [1], [0, 0, 1, 1], [], []>} : vector<8x256xbf16>, vector<256x256xbf16>, vector<8x256xf32> -> vector<8x256xf32>
    %c0_46 = arith.constant 0 : index
    %c0_47 = arith.constant 0 : index
    %c0_48 = arith.constant 0 : index
    %125 = vector.load %arg8[%c0_46, %c0_47, %c0_48] : memref<2x1x256xf32, #tpu.memory_space<vmem>>, vector<1x1x256xf32>
    %126 = vector.shape_cast %125 : vector<1x1x256xf32> to vector<1x256xf32>
    %127 = vector.broadcast %126 : vector<1x256xf32> to vector<8x256xf32>
    %128 = arith.addf %124, %127 : vector<8x256xf32>
    %129 = arith.addf %128, %25 : vector<8x256xf32>
    %c0_49 = arith.constant 0 : index
    %c0_50 = arith.constant 0 : index
    %c0_51 = arith.constant 0 : index
    %130 = vector.load %arg9[%c0_49, %c0_50, %c0_51] : memref<2x1x256xf32, #tpu.memory_space<vmem>>, vector<1x1x256xf32>
    %131 = vector.shape_cast %130 : vector<1x1x256xf32> to vector<1x256xf32>
    %c0_52 = arith.constant 0 : index
    %c0_53 = arith.constant 0 : index
    %c0_54 = arith.constant 0 : index
    %132 = vector.load %arg10[%c0_52, %c0_53, %c0_54] : memref<2x1x256xf32, #tpu.memory_space<vmem>>, vector<1x1x256xf32>
    %133 = vector.shape_cast %132 : vector<1x1x256xf32> to vector<1x256xf32>
    %cst_55 = arith.constant dense<0.000000e+00> : vector<8xf32>
    %134 = vector.multi_reduction <add>, %129, %cst_55 [1] : vector<8x256xf32> to vector<8xf32>
    %135 = vector.shape_cast %134 : vector<8xf32> to vector<8x1xf32>
    %cst_56 = arith.constant 2.560000e+02 : f32
    %136 = vector.broadcast %cst_56 : f32 to vector<8x1xf32>
    %137 = arith.divf %135, %136 : vector<8x1xf32>
    %138 = vector.broadcast %137 : vector<8x1xf32> to vector<8x256xf32>
    %139 = arith.subf %129, %138 : vector<8x256xf32>
    %140 = arith.mulf %139, %139 : vector<8x256xf32>
    %cst_57 = arith.constant dense<0.000000e+00> : vector<8xf32>
    %141 = vector.multi_reduction <add>, %140, %cst_57 [1] : vector<8x256xf32> to vector<8xf32>
    %142 = vector.shape_cast %141 : vector<8xf32> to vector<8x1xf32>
    %cst_58 = arith.constant 2.560000e+02 : f32
    %143 = vector.broadcast %cst_58 : f32 to vector<8x1xf32>
    %144 = arith.divf %142, %143 : vector<8x1xf32>
    %145 = vector.broadcast %137 : vector<8x1xf32> to vector<8x256xf32>
    %146 = arith.subf %129, %145 : vector<8x256xf32>
    %cst_59 = arith.constant 9.99999996E-13 : f32
    %147 = vector.broadcast %cst_59 : f32 to vector<8x1xf32>
    %148 = arith.addf %144, %147 : vector<8x1xf32>
    %149 = math.rsqrt %148 : vector<8x1xf32>
    %150 = vector.broadcast %149 : vector<8x1xf32> to vector<8x256xf32>
    %151 = arith.mulf %146, %150 : vector<8x256xf32>
    %152 = vector.broadcast %131 : vector<1x256xf32> to vector<8x256xf32>
    %153 = arith.mulf %151, %152 : vector<8x256xf32>
    %154 = vector.broadcast %133 : vector<1x256xf32> to vector<8x256xf32>
    %155 = arith.addf %153, %154 : vector<8x256xf32>
    %156 = arith.truncf %155 : vector<8x256xf32> to vector<8x256xbf16>
    %c0_60 = arith.constant 0 : index
    %c0_61 = arith.constant 0 : index
    %c0_62 = arith.constant 0 : index
    %157 = vector.load %arg11[%c0_60, %c0_61, %c0_62] : memref<2x256x512xbf16, #tpu.memory_space<vmem>>, vector<1x256x512xbf16>
    %158 = vector.shape_cast %157 : vector<1x256x512xbf16> to vector<256x512xbf16>
    %cst_63 = arith.constant dense<0.000000e+00> : vector<8x512xf32>
    %159 = tpu.matmul %156, %158, %cst_63 {dimension_numbers = #tpu.dot_dimension_numbers<[1], [0], [0], [1], [0, 0, 1, 1], [], []>} : vector<8x256xbf16>, vector<256x512xbf16>, vector<8x512xf32> -> vector<8x512xf32>
    %c0_64 = arith.constant 0 : index
    %c0_65 = arith.constant 0 : index
    %c0_66 = arith.constant 0 : index
    %160 = vector.load %arg12[%c0_64, %c0_65, %c0_66] : memref<2x1x512xf32, #tpu.memory_space<vmem>>, vector<1x1x512xf32>
    %161 = vector.shape_cast %160 : vector<1x1x512xf32> to vector<1x512xf32>
    %162 = vector.broadcast %161 : vector<1x512xf32> to vector<8x512xf32>
    %163 = arith.addf %159, %162 : vector<8x512xf32>
    %164 = arith.mulf %163, %163 : vector<8x512xf32>
    %165 = arith.mulf %163, %164 : vector<8x512xf32>
    %cst_67 = arith.constant 4.471500e-02 : f32
    %166 = vector.broadcast %cst_67 : f32 to vector<8x512xf32>
    %167 = arith.mulf %166, %165 : vector<8x512xf32>
    %168 = arith.addf %163, %167 : vector<8x512xf32>
    %cst_68 = arith.constant 0.797884583 : f32
    %169 = vector.broadcast %cst_68 : f32 to vector<8x512xf32>
    %170 = arith.mulf %169, %168 : vector<8x512xf32>
    %171 = math.tanh %170 : vector<8x512xf32>
    %cst_69 = arith.constant 1.000000e+00 : f32
    %172 = vector.broadcast %cst_69 : f32 to vector<8x512xf32>
    %173 = arith.addf %172, %171 : vector<8x512xf32>
    %cst_70 = arith.constant 5.000000e-01 : f32
    %174 = vector.broadcast %cst_70 : f32 to vector<8x512xf32>
    %175 = arith.mulf %174, %173 : vector<8x512xf32>
    %176 = arith.mulf %163, %175 : vector<8x512xf32>
    %177 = arith.truncf %176 : vector<8x512xf32> to vector<8x512xbf16>
    %c0_71 = arith.constant 0 : index
    %c0_72 = arith.constant 0 : index
    %c0_73 = arith.constant 0 : index
    %178 = vector.load %arg13[%c0_71, %c0_72, %c0_73] : memref<2x512x256xbf16, #tpu.memory_space<vmem>>, vector<1x512x256xbf16>
    %179 = vector.shape_cast %178 : vector<1x512x256xbf16> to vector<512x256xbf16>
    %cst_74 = arith.constant dense<0.000000e+00> : vector<8x256xf32>
    %180 = tpu.matmul %177, %179, %cst_74 {dimension_numbers = #tpu.dot_dimension_numbers<[1], [0], [0], [1], [0, 0, 1, 1], [], []>} : vector<8x512xbf16>, vector<512x256xbf16>, vector<8x256xf32> -> vector<8x256xf32>
    %c0_75 = arith.constant 0 : index
    %c0_76 = arith.constant 0 : index
    %c0_77 = arith.constant 0 : index
    %181 = vector.load %arg14[%c0_75, %c0_76, %c0_77] : memref<2x1x256xf32, #tpu.memory_space<vmem>>, vector<1x1x256xf32>
    %182 = vector.shape_cast %181 : vector<1x1x256xf32> to vector<1x256xf32>
    %183 = vector.broadcast %182 : vector<1x256xf32> to vector<8x256xf32>
    %184 = arith.addf %180, %183 : vector<8x256xf32>
    %185 = arith.addf %184, %155 : vector<8x256xf32>
    %c0_78 = arith.constant 0 : index
    %c0_79 = arith.constant 0 : index
    %c0_80 = arith.constant 0 : index
    %186 = vector.load %arg15[%c0_78, %c0_79, %c0_80] : memref<2x1x256xf32, #tpu.memory_space<vmem>>, vector<1x1x256xf32>
    %187 = vector.shape_cast %186 : vector<1x1x256xf32> to vector<1x256xf32>
    %c0_81 = arith.constant 0 : index
    %c0_82 = arith.constant 0 : index
    %c0_83 = arith.constant 0 : index
    %188 = vector.load %arg16[%c0_81, %c0_82, %c0_83] : memref<2x1x256xf32, #tpu.memory_space<vmem>>, vector<1x1x256xf32>
    %189 = vector.shape_cast %188 : vector<1x1x256xf32> to vector<1x256xf32>
    %cst_84 = arith.constant dense<0.000000e+00> : vector<8xf32>
    %190 = vector.multi_reduction <add>, %185, %cst_84 [1] : vector<8x256xf32> to vector<8xf32>
    %191 = vector.shape_cast %190 : vector<8xf32> to vector<8x1xf32>
    %cst_85 = arith.constant 2.560000e+02 : f32
    %192 = vector.broadcast %cst_85 : f32 to vector<8x1xf32>
    %193 = arith.divf %191, %192 : vector<8x1xf32>
    %194 = vector.broadcast %193 : vector<8x1xf32> to vector<8x256xf32>
    %195 = arith.subf %185, %194 : vector<8x256xf32>
    %196 = arith.mulf %195, %195 : vector<8x256xf32>
    %cst_86 = arith.constant dense<0.000000e+00> : vector<8xf32>
    %197 = vector.multi_reduction <add>, %196, %cst_86 [1] : vector<8x256xf32> to vector<8xf32>
    %198 = vector.shape_cast %197 : vector<8xf32> to vector<8x1xf32>
    %cst_87 = arith.constant 2.560000e+02 : f32
    %199 = vector.broadcast %cst_87 : f32 to vector<8x1xf32>
    %200 = arith.divf %198, %199 : vector<8x1xf32>
    %201 = vector.broadcast %193 : vector<8x1xf32> to vector<8x256xf32>
    %202 = arith.subf %185, %201 : vector<8x256xf32>
    %cst_88 = arith.constant 9.99999996E-13 : f32
    %203 = vector.broadcast %cst_88 : f32 to vector<8x1xf32>
    %204 = arith.addf %200, %203 : vector<8x1xf32>
    %205 = math.rsqrt %204 : vector<8x1xf32>
    %206 = vector.broadcast %205 : vector<8x1xf32> to vector<8x256xf32>
    %207 = arith.mulf %202, %206 : vector<8x256xf32>
    %208 = vector.broadcast %187 : vector<1x256xf32> to vector<8x256xf32>
    %209 = arith.mulf %207, %208 : vector<8x256xf32>
    %210 = vector.broadcast %189 : vector<1x256xf32> to vector<8x256xf32>
    %211 = arith.addf %209, %210 : vector<8x256xf32>
    %212 = arith.truncf %211 : vector<8x256xf32> to vector<8x256xbf16>
    %c1 = arith.constant 1 : index
    %c0_89 = arith.constant 0 : index
    %c0_90 = arith.constant 0 : index
    %213 = vector.load %arg5[%c1, %c0_89, %c0_90] : memref<2x256x768xbf16, #tpu.memory_space<vmem>>, vector<1x256x768xbf16>
    %214 = vector.shape_cast %213 : vector<1x256x768xbf16> to vector<256x768xbf16>
    %cst_91 = arith.constant dense<0.000000e+00> : vector<8x768xf32>
    %215 = tpu.matmul %212, %214, %cst_91 {dimension_numbers = #tpu.dot_dimension_numbers<[1], [0], [0], [1], [0, 0, 1, 1], [], []>} : vector<8x256xbf16>, vector<256x768xbf16>, vector<8x768xf32> -> vector<8x768xf32>
    %c1_92 = arith.constant 1 : index
    %c0_93 = arith.constant 0 : index
    %c0_94 = arith.constant 0 : index
    %216 = vector.load %arg6[%c1_92, %c0_93, %c0_94] : memref<2x1x768xf32, #tpu.memory_space<vmem>>, vector<1x1x768xf32>
    %217 = vector.shape_cast %216 : vector<1x1x768xf32> to vector<1x768xf32>
    %218 = vector.broadcast %217 : vector<1x768xf32> to vector<8x768xf32>
    %219 = arith.addf %215, %218 : vector<8x768xf32>
    %220 = vector.extract_strided_slice %219 {offsets = [0, 0], sizes = [8, 64], strides = [1, 1]} : vector<8x768xf32> to vector<8x64xf32>
    %221 = vector.extract_strided_slice %219 {offsets = [0, 256], sizes = [8, 64], strides = [1, 1]} : vector<8x768xf32> to vector<8x64xf32>
    %222 = vector.extract_strided_slice %219 {offsets = [0, 512], sizes = [8, 64], strides = [1, 1]} : vector<8x768xf32> to vector<8x64xf32>
    %223 = tpu.transpose %221, [1, 0] : vector<8x64xf32> -> vector<64x8xf32>
    %cst_95 = arith.constant dense<0.000000e+00> : vector<8x8xf32>
    %224 = tpu.matmul %220, %223, %cst_95 {dimension_numbers = #tpu.dot_dimension_numbers<[1], [0], [0], [1], [0, 0, 1, 1], [], []>} : vector<8x64xf32>, vector<64x8xf32>, vector<8x8xf32> -> vector<8x8xf32>
    %cst_96 = arith.constant 1.250000e-01 : f32
    %225 = vector.broadcast %cst_96 : f32 to vector<8x8xf32>
    %226 = arith.mulf %224, %225 : vector<8x8xf32>
    %227 = vector.broadcast %31 : vector<1x8xf32> to vector<8x8xf32>
    %228 = arith.addf %226, %227 : vector<8x8xf32>
    %cst_97 = arith.constant dense<0xFF800000> : vector<8xf32>
    %229 = vector.multi_reduction <maximumf>, %228, %cst_97 [1] : vector<8x8xf32> to vector<8xf32>
    %230 = vector.shape_cast %229 : vector<8xf32> to vector<8x1xf32>
    %231 = vector.broadcast %230 : vector<8x1xf32> to vector<8x8xf32>
    %232 = arith.subf %228, %231 : vector<8x8xf32>
    %233 = math.exp %232 : vector<8x8xf32>
    %cst_98 = arith.constant dense<0.000000e+00> : vector<8xf32>
    %234 = vector.multi_reduction <add>, %233, %cst_98 [1] : vector<8x8xf32> to vector<8xf32>
    %235 = vector.shape_cast %234 : vector<8xf32> to vector<8x1xf32>
    %236 = tpu.reciprocal %235 {approx = true} : vector<8x1xf32> -> vector<8x1xf32>
    %237 = vector.broadcast %236 : vector<8x1xf32> to vector<8x8xf32>
    %238 = arith.mulf %233, %237 : vector<8x8xf32>
    %cst_99 = arith.constant dense<0.000000e+00> : vector<8x64xf32>
    %239 = tpu.matmul %238, %222, %cst_99 {dimension_numbers = #tpu.dot_dimension_numbers<[1], [0], [0], [1], [0, 0, 1, 1], [], []>} : vector<8x8xf32>, vector<8x64xf32>, vector<8x64xf32> -> vector<8x64xf32>
    %240 = vector.extract_strided_slice %219 {offsets = [0, 64], sizes = [8, 64], strides = [1, 1]} : vector<8x768xf32> to vector<8x64xf32>
    %241 = vector.extract_strided_slice %219 {offsets = [0, 320], sizes = [8, 64], strides = [1, 1]} : vector<8x768xf32> to vector<8x64xf32>
    %242 = vector.extract_strided_slice %219 {offsets = [0, 576], sizes = [8, 64], strides = [1, 1]} : vector<8x768xf32> to vector<8x64xf32>
    %243 = tpu.transpose %241, [1, 0] : vector<8x64xf32> -> vector<64x8xf32>
    %cst_100 = arith.constant dense<0.000000e+00> : vector<8x8xf32>
    %244 = tpu.matmul %240, %243, %cst_100 {dimension_numbers = #tpu.dot_dimension_numbers<[1], [0], [0], [1], [0, 0, 1, 1], [], []>} : vector<8x64xf32>, vector<64x8xf32>, vector<8x8xf32> -> vector<8x8xf32>
    %cst_101 = arith.constant 1.250000e-01 : f32
    %245 = vector.broadcast %cst_101 : f32 to vector<8x8xf32>
    %246 = arith.mulf %244, %245 : vector<8x8xf32>
    %247 = vector.broadcast %31 : vector<1x8xf32> to vector<8x8xf32>
    %248 = arith.addf %246, %247 : vector<8x8xf32>
    %cst_102 = arith.constant dense<0xFF800000> : vector<8xf32>
    %249 = vector.multi_reduction <maximumf>, %248, %cst_102 [1] : vector<8x8xf32> to vector<8xf32>
    %250 = vector.shape_cast %249 : vector<8xf32> to vector<8x1xf32>
    %251 = vector.broadcast %250 : vector<8x1xf32> to vector<8x8xf32>
    %252 = arith.subf %248, %251 : vector<8x8xf32>
    %253 = math.exp %252 : vector<8x8xf32>
    %cst_103 = arith.constant dense<0.000000e+00> : vector<8xf32>
    %254 = vector.multi_reduction <add>, %253, %cst_103 [1] : vector<8x8xf32> to vector<8xf32>
    %255 = vector.shape_cast %254 : vector<8xf32> to vector<8x1xf32>
    %256 = tpu.reciprocal %255 {approx = true} : vector<8x1xf32> -> vector<8x1xf32>
    %257 = vector.broadcast %256 : vector<8x1xf32> to vector<8x8xf32>
    %258 = arith.mulf %253, %257 : vector<8x8xf32>
    %cst_104 = arith.constant dense<0.000000e+00> : vector<8x64xf32>
    %259 = tpu.matmul %258, %242, %cst_104 {dimension_numbers = #tpu.dot_dimension_numbers<[1], [0], [0], [1], [0, 0, 1, 1], [], []>} : vector<8x8xf32>, vector<8x64xf32>, vector<8x64xf32> -> vector<8x64xf32>
    %260 = vector.extract_strided_slice %219 {offsets = [0, 128], sizes = [8, 64], strides = [1, 1]} : vector<8x768xf32> to vector<8x64xf32>
    %261 = vector.extract_strided_slice %219 {offsets = [0, 384], sizes = [8, 64], strides = [1, 1]} : vector<8x768xf32> to vector<8x64xf32>
    %262 = vector.extract_strided_slice %219 {offsets = [0, 640], sizes = [8, 64], strides = [1, 1]} : vector<8x768xf32> to vector<8x64xf32>
    %263 = tpu.transpose %261, [1, 0] : vector<8x64xf32> -> vector<64x8xf32>
    %cst_105 = arith.constant dense<0.000000e+00> : vector<8x8xf32>
    %264 = tpu.matmul %260, %263, %cst_105 {dimension_numbers = #tpu.dot_dimension_numbers<[1], [0], [0], [1], [0, 0, 1, 1], [], []>} : vector<8x64xf32>, vector<64x8xf32>, vector<8x8xf32> -> vector<8x8xf32>
    %cst_106 = arith.constant 1.250000e-01 : f32
    %265 = vector.broadcast %cst_106 : f32 to vector<8x8xf32>
    %266 = arith.mulf %264, %265 : vector<8x8xf32>
    %267 = vector.broadcast %31 : vector<1x8xf32> to vector<8x8xf32>
    %268 = arith.addf %266, %267 : vector<8x8xf32>
    %cst_107 = arith.constant dense<0xFF800000> : vector<8xf32>
    %269 = vector.multi_reduction <maximumf>, %268, %cst_107 [1] : vector<8x8xf32> to vector<8xf32>
    %270 = vector.shape_cast %269 : vector<8xf32> to vector<8x1xf32>
    %271 = vector.broadcast %270 : vector<8x1xf32> to vector<8x8xf32>
    %272 = arith.subf %268, %271 : vector<8x8xf32>
    %273 = math.exp %272 : vector<8x8xf32>
    %cst_108 = arith.constant dense<0.000000e+00> : vector<8xf32>
    %274 = vector.multi_reduction <add>, %273, %cst_108 [1] : vector<8x8xf32> to vector<8xf32>
    %275 = vector.shape_cast %274 : vector<8xf32> to vector<8x1xf32>
    %276 = tpu.reciprocal %275 {approx = true} : vector<8x1xf32> -> vector<8x1xf32>
    %277 = vector.broadcast %276 : vector<8x1xf32> to vector<8x8xf32>
    %278 = arith.mulf %273, %277 : vector<8x8xf32>
    %cst_109 = arith.constant dense<0.000000e+00> : vector<8x64xf32>
    %279 = tpu.matmul %278, %262, %cst_109 {dimension_numbers = #tpu.dot_dimension_numbers<[1], [0], [0], [1], [0, 0, 1, 1], [], []>} : vector<8x8xf32>, vector<8x64xf32>, vector<8x64xf32> -> vector<8x64xf32>
    %280 = vector.extract_strided_slice %219 {offsets = [0, 192], sizes = [8, 64], strides = [1, 1]} : vector<8x768xf32> to vector<8x64xf32>
    %281 = vector.extract_strided_slice %219 {offsets = [0, 448], sizes = [8, 64], strides = [1, 1]} : vector<8x768xf32> to vector<8x64xf32>
    %282 = vector.extract_strided_slice %219 {offsets = [0, 704], sizes = [8, 64], strides = [1, 1]} : vector<8x768xf32> to vector<8x64xf32>
    %283 = tpu.transpose %281, [1, 0] : vector<8x64xf32> -> vector<64x8xf32>
    %cst_110 = arith.constant dense<0.000000e+00> : vector<8x8xf32>
    %284 = tpu.matmul %280, %283, %cst_110 {dimension_numbers = #tpu.dot_dimension_numbers<[1], [0], [0], [1], [0, 0, 1, 1], [], []>} : vector<8x64xf32>, vector<64x8xf32>, vector<8x8xf32> -> vector<8x8xf32>
    %cst_111 = arith.constant 1.250000e-01 : f32
    %285 = vector.broadcast %cst_111 : f32 to vector<8x8xf32>
    %286 = arith.mulf %284, %285 : vector<8x8xf32>
    %287 = vector.broadcast %31 : vector<1x8xf32> to vector<8x8xf32>
    %288 = arith.addf %286, %287 : vector<8x8xf32>
    %cst_112 = arith.constant dense<0xFF800000> : vector<8xf32>
    %289 = vector.multi_reduction <maximumf>, %288, %cst_112 [1] : vector<8x8xf32> to vector<8xf32>
    %290 = vector.shape_cast %289 : vector<8xf32> to vector<8x1xf32>
    %291 = vector.broadcast %290 : vector<8x1xf32> to vector<8x8xf32>
    %292 = arith.subf %288, %291 : vector<8x8xf32>
    %293 = math.exp %292 : vector<8x8xf32>
    %cst_113 = arith.constant dense<0.000000e+00> : vector<8xf32>
    %294 = vector.multi_reduction <add>, %293, %cst_113 [1] : vector<8x8xf32> to vector<8xf32>
    %295 = vector.shape_cast %294 : vector<8xf32> to vector<8x1xf32>
    %296 = tpu.reciprocal %295 {approx = true} : vector<8x1xf32> -> vector<8x1xf32>
    %297 = vector.broadcast %296 : vector<8x1xf32> to vector<8x8xf32>
    %298 = arith.mulf %293, %297 : vector<8x8xf32>
    %cst_114 = arith.constant dense<0.000000e+00> : vector<8x64xf32>
    %299 = tpu.matmul %298, %282, %cst_114 {dimension_numbers = #tpu.dot_dimension_numbers<[1], [0], [0], [1], [0, 0, 1, 1], [], []>} : vector<8x8xf32>, vector<8x64xf32>, vector<8x64xf32> -> vector<8x64xf32>
    %300 = tpu.concatenate %239, %259, %279, %299 in 1 : vector<8x64xf32>, vector<8x64xf32>, vector<8x64xf32>, vector<8x64xf32> -> vector<8x256xf32>
    %301 = arith.truncf %300 : vector<8x256xf32> to vector<8x256xbf16>
    %c1_115 = arith.constant 1 : index
    %c0_116 = arith.constant 0 : index
    %c0_117 = arith.constant 0 : index
    %302 = vector.load %arg7[%c1_115, %c0_116, %c0_117] : memref<2x256x256xbf16, #tpu.memory_space<vmem>>, vector<1x256x256xbf16>
    %303 = vector.shape_cast %302 : vector<1x256x256xbf16> to vector<256x256xbf16>
    %cst_118 = arith.constant dense<0.000000e+00> : vector<8x256xf32>
    %304 = tpu.matmul %301, %303, %cst_118 {dimension_numbers = #tpu.dot_dimension_numbers<[1], [0], [0], [1], [0, 0, 1, 1], [], []>} : vector<8x256xbf16>, vector<256x256xbf16>, vector<8x256xf32> -> vector<8x256xf32>
    %c1_119 = arith.constant 1 : index
    %c0_120 = arith.constant 0 : index
    %c0_121 = arith.constant 0 : index
    %305 = vector.load %arg8[%c1_119, %c0_120, %c0_121] : memref<2x1x256xf32, #tpu.memory_space<vmem>>, vector<1x1x256xf32>
    %306 = vector.shape_cast %305 : vector<1x1x256xf32> to vector<1x256xf32>
    %307 = vector.broadcast %306 : vector<1x256xf32> to vector<8x256xf32>
    %308 = arith.addf %304, %307 : vector<8x256xf32>
    %309 = arith.addf %308, %211 : vector<8x256xf32>
    %c1_122 = arith.constant 1 : index
    %c0_123 = arith.constant 0 : index
    %c0_124 = arith.constant 0 : index
    %310 = vector.load %arg9[%c1_122, %c0_123, %c0_124] : memref<2x1x256xf32, #tpu.memory_space<vmem>>, vector<1x1x256xf32>
    %311 = vector.shape_cast %310 : vector<1x1x256xf32> to vector<1x256xf32>
    %c1_125 = arith.constant 1 : index
    %c0_126 = arith.constant 0 : index
    %c0_127 = arith.constant 0 : index
    %312 = vector.load %arg10[%c1_125, %c0_126, %c0_127] : memref<2x1x256xf32, #tpu.memory_space<vmem>>, vector<1x1x256xf32>
    %313 = vector.shape_cast %312 : vector<1x1x256xf32> to vector<1x256xf32>
    %cst_128 = arith.constant dense<0.000000e+00> : vector<8xf32>
    %314 = vector.multi_reduction <add>, %309, %cst_128 [1] : vector<8x256xf32> to vector<8xf32>
    %315 = vector.shape_cast %314 : vector<8xf32> to vector<8x1xf32>
    %cst_129 = arith.constant 2.560000e+02 : f32
    %316 = vector.broadcast %cst_129 : f32 to vector<8x1xf32>
    %317 = arith.divf %315, %316 : vector<8x1xf32>
    %318 = vector.broadcast %317 : vector<8x1xf32> to vector<8x256xf32>
    %319 = arith.subf %309, %318 : vector<8x256xf32>
    %320 = arith.mulf %319, %319 : vector<8x256xf32>
    %cst_130 = arith.constant dense<0.000000e+00> : vector<8xf32>
    %321 = vector.multi_reduction <add>, %320, %cst_130 [1] : vector<8x256xf32> to vector<8xf32>
    %322 = vector.shape_cast %321 : vector<8xf32> to vector<8x1xf32>
    %cst_131 = arith.constant 2.560000e+02 : f32
    %323 = vector.broadcast %cst_131 : f32 to vector<8x1xf32>
    %324 = arith.divf %322, %323 : vector<8x1xf32>
    %325 = vector.broadcast %317 : vector<8x1xf32> to vector<8x256xf32>
    %326 = arith.subf %309, %325 : vector<8x256xf32>
    %cst_132 = arith.constant 9.99999996E-13 : f32
    %327 = vector.broadcast %cst_132 : f32 to vector<8x1xf32>
    %328 = arith.addf %324, %327 : vector<8x1xf32>
    %329 = math.rsqrt %328 : vector<8x1xf32>
    %330 = vector.broadcast %329 : vector<8x1xf32> to vector<8x256xf32>
    %331 = arith.mulf %326, %330 : vector<8x256xf32>
    %332 = vector.broadcast %311 : vector<1x256xf32> to vector<8x256xf32>
    %333 = arith.mulf %331, %332 : vector<8x256xf32>
    %334 = vector.broadcast %313 : vector<1x256xf32> to vector<8x256xf32>
    %335 = arith.addf %333, %334 : vector<8x256xf32>
    %336 = arith.truncf %335 : vector<8x256xf32> to vector<8x256xbf16>
    %c1_133 = arith.constant 1 : index
    %c0_134 = arith.constant 0 : index
    %c0_135 = arith.constant 0 : index
    %337 = vector.load %arg11[%c1_133, %c0_134, %c0_135] : memref<2x256x512xbf16, #tpu.memory_space<vmem>>, vector<1x256x512xbf16>
    %338 = vector.shape_cast %337 : vector<1x256x512xbf16> to vector<256x512xbf16>
    %cst_136 = arith.constant dense<0.000000e+00> : vector<8x512xf32>
    %339 = tpu.matmul %336, %338, %cst_136 {dimension_numbers = #tpu.dot_dimension_numbers<[1], [0], [0], [1], [0, 0, 1, 1], [], []>} : vector<8x256xbf16>, vector<256x512xbf16>, vector<8x512xf32> -> vector<8x512xf32>
    %c1_137 = arith.constant 1 : index
    %c0_138 = arith.constant 0 : index
    %c0_139 = arith.constant 0 : index
    %340 = vector.load %arg12[%c1_137, %c0_138, %c0_139] : memref<2x1x512xf32, #tpu.memory_space<vmem>>, vector<1x1x512xf32>
    %341 = vector.shape_cast %340 : vector<1x1x512xf32> to vector<1x512xf32>
    %342 = vector.broadcast %341 : vector<1x512xf32> to vector<8x512xf32>
    %343 = arith.addf %339, %342 : vector<8x512xf32>
    %344 = arith.mulf %343, %343 : vector<8x512xf32>
    %345 = arith.mulf %343, %344 : vector<8x512xf32>
    %cst_140 = arith.constant 4.471500e-02 : f32
    %346 = vector.broadcast %cst_140 : f32 to vector<8x512xf32>
    %347 = arith.mulf %346, %345 : vector<8x512xf32>
    %348 = arith.addf %343, %347 : vector<8x512xf32>
    %cst_141 = arith.constant 0.797884583 : f32
    %349 = vector.broadcast %cst_141 : f32 to vector<8x512xf32>
    %350 = arith.mulf %349, %348 : vector<8x512xf32>
    %351 = math.tanh %350 : vector<8x512xf32>
    %cst_142 = arith.constant 1.000000e+00 : f32
    %352 = vector.broadcast %cst_142 : f32 to vector<8x512xf32>
    %353 = arith.addf %352, %351 : vector<8x512xf32>
    %cst_143 = arith.constant 5.000000e-01 : f32
    %354 = vector.broadcast %cst_143 : f32 to vector<8x512xf32>
    %355 = arith.mulf %354, %353 : vector<8x512xf32>
    %356 = arith.mulf %343, %355 : vector<8x512xf32>
    %357 = arith.truncf %356 : vector<8x512xf32> to vector<8x512xbf16>
    %c1_144 = arith.constant 1 : index
    %c0_145 = arith.constant 0 : index
    %c0_146 = arith.constant 0 : index
    %358 = vector.load %arg13[%c1_144, %c0_145, %c0_146] : memref<2x512x256xbf16, #tpu.memory_space<vmem>>, vector<1x512x256xbf16>
    %359 = vector.shape_cast %358 : vector<1x512x256xbf16> to vector<512x256xbf16>
    %cst_147 = arith.constant dense<0.000000e+00> : vector<8x256xf32>
    %360 = tpu.matmul %357, %359, %cst_147 {dimension_numbers = #tpu.dot_dimension_numbers<[1], [0], [0], [1], [0, 0, 1, 1], [], []>} : vector<8x512xbf16>, vector<512x256xbf16>, vector<8x256xf32> -> vector<8x256xf32>
    %c1_148 = arith.constant 1 : index
    %c0_149 = arith.constant 0 : index
    %c0_150 = arith.constant 0 : index
    %361 = vector.load %arg14[%c1_148, %c0_149, %c0_150] : memref<2x1x256xf32, #tpu.memory_space<vmem>>, vector<1x1x256xf32>
    %362 = vector.shape_cast %361 : vector<1x1x256xf32> to vector<1x256xf32>
    %363 = vector.broadcast %362 : vector<1x256xf32> to vector<8x256xf32>
    %364 = arith.addf %360, %363 : vector<8x256xf32>
    %365 = arith.addf %364, %335 : vector<8x256xf32>
    %c1_151 = arith.constant 1 : index
    %c0_152 = arith.constant 0 : index
    %c0_153 = arith.constant 0 : index
    %366 = vector.load %arg15[%c1_151, %c0_152, %c0_153] : memref<2x1x256xf32, #tpu.memory_space<vmem>>, vector<1x1x256xf32>
    %367 = vector.shape_cast %366 : vector<1x1x256xf32> to vector<1x256xf32>
    %c1_154 = arith.constant 1 : index
    %c0_155 = arith.constant 0 : index
    %c0_156 = arith.constant 0 : index
    %368 = vector.load %arg16[%c1_154, %c0_155, %c0_156] : memref<2x1x256xf32, #tpu.memory_space<vmem>>, vector<1x1x256xf32>
    %369 = vector.shape_cast %368 : vector<1x1x256xf32> to vector<1x256xf32>
    %cst_157 = arith.constant dense<0.000000e+00> : vector<8xf32>
    %370 = vector.multi_reduction <add>, %365, %cst_157 [1] : vector<8x256xf32> to vector<8xf32>
    %371 = vector.shape_cast %370 : vector<8xf32> to vector<8x1xf32>
    %cst_158 = arith.constant 2.560000e+02 : f32
    %372 = vector.broadcast %cst_158 : f32 to vector<8x1xf32>
    %373 = arith.divf %371, %372 : vector<8x1xf32>
    %374 = vector.broadcast %373 : vector<8x1xf32> to vector<8x256xf32>
    %375 = arith.subf %365, %374 : vector<8x256xf32>
    %376 = arith.mulf %375, %375 : vector<8x256xf32>
    %cst_159 = arith.constant dense<0.000000e+00> : vector<8xf32>
    %377 = vector.multi_reduction <add>, %376, %cst_159 [1] : vector<8x256xf32> to vector<8xf32>
    %378 = vector.shape_cast %377 : vector<8xf32> to vector<8x1xf32>
    %cst_160 = arith.constant 2.560000e+02 : f32
    %379 = vector.broadcast %cst_160 : f32 to vector<8x1xf32>
    %380 = arith.divf %378, %379 : vector<8x1xf32>
    %381 = vector.broadcast %373 : vector<8x1xf32> to vector<8x256xf32>
    %382 = arith.subf %365, %381 : vector<8x256xf32>
    %cst_161 = arith.constant 9.99999996E-13 : f32
    %383 = vector.broadcast %cst_161 : f32 to vector<8x1xf32>
    %384 = arith.addf %380, %383 : vector<8x1xf32>
    %385 = math.rsqrt %384 : vector<8x1xf32>
    %386 = vector.broadcast %385 : vector<8x1xf32> to vector<8x256xf32>
    %387 = arith.mulf %382, %386 : vector<8x256xf32>
    %388 = vector.broadcast %367 : vector<1x256xf32> to vector<8x256xf32>
    %389 = arith.mulf %387, %388 : vector<8x256xf32>
    %390 = vector.broadcast %369 : vector<1x256xf32> to vector<8x256xf32>
    %391 = arith.addf %389, %390 : vector<8x256xf32>
    %392 = arith.truncf %391 : vector<8x256xf32> to vector<8x256xbf16>
    %c0_162 = arith.constant 0 : index
    %c0_163 = arith.constant 0 : index
    %393 = vector.load %arg17[%c0_162, %c0_163] : memref<256x2xbf16, #tpu.memory_space<vmem>>, vector<256x2xbf16>
    %cst_164 = arith.constant dense<0.000000e+00> : vector<8x2xf32>
    %394 = tpu.matmul %392, %393, %cst_164 {dimension_numbers = #tpu.dot_dimension_numbers<[1], [0], [0], [1], [0, 0, 1, 1], [], []>} : vector<8x256xbf16>, vector<256x2xbf16>, vector<8x2xf32> -> vector<8x2xf32>
    %c0_165 = arith.constant 0 : index
    %c0_166 = arith.constant 0 : index
    %395 = vector.load %arg18[%c0_165, %c0_166] : memref<1x2xf32, #tpu.memory_space<vmem>>, vector<1x2xf32>
    %396 = vector.broadcast %395 : vector<1x2xf32> to vector<8x2xf32>
    %397 = arith.addf %394, %396 : vector<8x2xf32>
    %c0_167 = arith.constant 0 : index
    %c0_168 = arith.constant 0 : index
    %c0_169 = arith.constant 0 : index
    %398 = vector.load %arg21[%c0_167, %c0_168, %c0_169] : memref<1x8x2xf32, #tpu.memory_space<vmem>>, vector<1x8x2xf32>
    %399 = vector.shape_cast %398 : vector<1x8x2xf32> to vector<8x2xf32>
    %400 = vector.shape_cast %397 : vector<8x2xf32> to vector<1x8x2xf32>
    tpu.vector_store %arg21[%c0_167, %c0_168, %c0_169], %400 {strides = array<i32>} : memref<1x8x2xf32, #tpu.memory_space<vmem>>, vector<1x8x2xf32>,
    %401 = vector.extract_strided_slice %391 {offsets = [0, 0], sizes = [1, 256], strides = [1, 1]} : vector<8x256xf32> to vector<1x256xf32>
    %402 = arith.truncf %401 : vector<1x256xf32> to vector<1x256xbf16>
    %c0_170 = arith.constant 0 : index
    %c0_171 = arith.constant 0 : index
    %403 = vector.load %arg19[%c0_170, %c0_171] : memref<256x9xbf16, #tpu.memory_space<vmem>>, vector<256x9xbf16>
    %cst_172 = arith.constant dense<0.000000e+00> : vector<1x9xf32>
    %404 = tpu.matmul %402, %403, %cst_172 {dimension_numbers = #tpu.dot_dimension_numbers<[1], [0], [0], [1], [0, 0, 1, 1], [], []>} : vector<1x256xbf16>, vector<256x9xbf16>, vector<1x9xf32> -> vector<1x9xf32>
    %c0_173 = arith.constant 0 : index
    %c0_174 = arith.constant 0 : index
    %405 = vector.load %arg20[%c0_173, %c0_174] : memref<1x9xf32, #tpu.memory_space<vmem>>, vector<1x9xf32>
    %406 = arith.addf %404, %405 : vector<1x9xf32>
    %c0_175 = arith.constant 0 : index
    %c0_176 = arith.constant 0 : index
    %c0_177 = arith.constant 0 : index
    %407 = vector.load %arg22[%c0_175, %c0_176, %c0_177] : memref<1x1x9xf32, #tpu.memory_space<vmem>>, vector<1x1x9xf32>
    %408 = vector.shape_cast %407 : vector<1x1x9xf32> to vector<1x9xf32>
    %409 = vector.shape_cast %406 : vector<1x9xf32> to vector<1x1x9xf32>
    tpu.vector_store %arg22[%c0_175, %c0_176, %c0_177], %409 {strides = array<i32>} : memref<1x1x9xf32, #tpu.memory_space<vmem>>, vector<1x1x9xf32>,
    return
  }
  func.func @transform_0(%arg0: i32) -> (i32, i32, i32) {
    %c0_i32 = arith.constant 0 : i32
    %c0_i32_0 = arith.constant 0 : i32
    %c0_i32_1 = arith.constant 0 : i32
    return %arg0, %c0_i32, %c0_i32_0 : i32, i32, i32
  }
  func.func @transform_1(%arg0: i32) -> (i32, i32, i32) {
    %c0_i32 = arith.constant 0 : i32
    %c0_i32_0 = arith.constant 0 : i32
    %c0_i32_1 = arith.constant 0 : i32
    return %arg0, %c0_i32, %c0_i32_0 : i32, i32, i32
  }
  func.func @transform_2(%arg0: i32) -> (i32, i32) {
    %c0_i32 = arith.constant 0 : i32
    %c0_i32_0 = arith.constant 0 : i32
    %c0_i32_1 = arith.constant 0 : i32
    return %c0_i32, %c0_i32_0 : i32, i32
  }
  func.func @transform_3(%arg0: i32) -> (i32, i32) {
    %c0_i32 = arith.constant 0 : i32
    %c0_i32_0 = arith.constant 0 : i32
    %c0_i32_1 = arith.constant 0 : i32
    return %c0_i32, %c0_i32_0 : i32, i32
  }
  func.func @transform_4(%arg0: i32) -> (i32, i32, i32) {
    %c0_i32 = arith.constant 0 : i32
    %c0_i32_0 = arith.constant 0 : i32
    %c0_i32_1 = arith.constant 0 : i32
    %c0_i32_2 = arith.constant 0 : i32
    return %c0_i32, %c0_i32_0, %c0_i32_1 : i32, i32, i32
  }
  func.func @transform_5(%arg0: i32) -> (i32, i32, i32) {
    %c0_i32 = arith.constant 0 : i32
    %c0_i32_0 = arith.constant 0 : i32
    %c0_i32_1 = arith.constant 0 : i32
    %c0_i32_2 = arith.constant 0 : i32
    return %c0_i32, %c0_i32_0, %c0_i32_1 : i32, i32, i32
  }
  func.func @transform_6(%arg0: i32) -> (i32, i32, i32) {
    %c0_i32 = arith.constant 0 : i32
    %c0_i32_0 = arith.constant 0 : i32
    %c0_i32_1 = arith.constant 0 : i32
    %c0_i32_2 = arith.constant 0 : i32
    return %c0_i32, %c0_i32_0, %c0_i32_1 : i32, i32, i32
  }
  func.func @transform_7(%arg0: i32) -> (i32, i32, i32) {
    %c0_i32 = arith.constant 0 : i32
    %c0_i32_0 = arith.constant 0 : i32
    %c0_i32_1 = arith.constant 0 : i32
    %c0_i32_2 = arith.constant 0 : i32
    return %c0_i32, %c0_i32_0, %c0_i32_1 : i32, i32, i32
  }
  func.func @transform_8(%arg0: i32) -> (i32, i32, i32) {
    %c0_i32 = arith.constant 0 : i32
    %c0_i32_0 = arith.constant 0 : i32
    %c0_i32_1 = arith.constant 0 : i32
    %c0_i32_2 = arith.constant 0 : i32
    return %c0_i32, %c0_i32_0, %c0_i32_1 : i32, i32, i32
  }
  func.func @transform_9(%arg0: i32) -> (i32, i32, i32) {
    %c0_i32 = arith.constant 0 : i32
    %c0_i32_0 = arith.constant 0 : i32
    %c0_i32_1 = arith.constant 0 : i32
    %c0_i32_2 = arith.constant 0 : i32
    return %c0_i32, %c0_i32_0, %c0_i32_1 : i32, i32, i32
  }
  func.func @transform_10(%arg0: i32) -> (i32, i32, i32) {
    %c0_i32 = arith.constant 0 : i32
    %c0_i32_0 = arith.constant 0 : i32
    %c0_i32_1 = arith.constant 0 : i32
    %c0_i32_2 = arith.constant 0 : i32
    return %c0_i32, %c0_i32_0, %c0_i32_1 : i32, i32, i32
  }
  func.func @transform_11(%arg0: i32) -> (i32, i32, i32) {
    %c0_i32 = arith.constant 0 : i32
    %c0_i32_0 = arith.constant 0 : i32
    %c0_i32_1 = arith.constant 0 : i32
    %c0_i32_2 = arith.constant 0 : i32
    return %c0_i32, %c0_i32_0, %c0_i32_1 : i32, i32, i32
  }
  func.func @transform_12(%arg0: i32) -> (i32, i32, i32) {
    %c0_i32 = arith.constant 0 : i32
    %c0_i32_0 = arith.constant 0 : i32
    %c0_i32_1 = arith.constant 0 : i32
    %c0_i32_2 = arith.constant 0 : i32
    return %c0_i32, %c0_i32_0, %c0_i32_1 : i32, i32, i32
  }
  func.func @transform_13(%arg0: i32) -> (i32, i32, i32) {
    %c0_i32 = arith.constant 0 : i32
    %c0_i32_0 = arith.constant 0 : i32
    %c0_i32_1 = arith.constant 0 : i32
    %c0_i32_2 = arith.constant 0 : i32
    return %c0_i32, %c0_i32_0, %c0_i32_1 : i32, i32, i32
  }
  func.func @transform_14(%arg0: i32) -> (i32, i32, i32) {
    %c0_i32 = arith.constant 0 : i32
    %c0_i32_0 = arith.constant 0 : i32
    %c0_i32_1 = arith.constant 0 : i32
    %c0_i32_2 = arith.constant 0 : i32
    return %c0_i32, %c0_i32_0, %c0_i32_1 : i32, i32, i32
  }
  func.func @transform_15(%arg0: i32) -> (i32, i32, i32) {
    %c0_i32 = arith.constant 0 : i32
    %c0_i32_0 = arith.constant 0 : i32
    %c0_i32_1 = arith.constant 0 : i32
    %c0_i32_2 = arith.constant 0 : i32
    return %c0_i32, %c0_i32_0, %c0_i32_1 : i32, i32, i32
  }
  func.func @transform_16(%arg0: i32) -> (i32, i32) {
    %c0_i32 = arith.constant 0 : i32
    %c0_i32_0 = arith.constant 0 : i32
    %c0_i32_1 = arith.constant 0 : i32
    return %c0_i32, %c0_i32_0 : i32, i32
  }
  func.func @transform_17(%arg0: i32) -> (i32, i32) {
    %c0_i32 = arith.constant 0 : i32
    %c0_i32_0 = arith.constant 0 : i32
    %c0_i32_1 = arith.constant 0 : i32
    return %c0_i32, %c0_i32_0 : i32, i32
  }
  func.func @transform_18(%arg0: i32) -> (i32, i32) {
    %c0_i32 = arith.constant 0 : i32
    %c0_i32_0 = arith.constant 0 : i32
    %c0_i32_1 = arith.constant 0 : i32
    return %c0_i32, %c0_i32_0 : i32, i32
  }
  func.func @transform_19(%arg0: i32) -> (i32, i32) {
    %c0_i32 = arith.constant 0 : i32
    %c0_i32_0 = arith.constant 0 : i32
    %c0_i32_1 = arith.constant 0 : i32
    return %c0_i32, %c0_i32_0 : i32, i32
  }
  func.func @transform_20(%arg0: i32) -> (i32, i32, i32) {
    %c0_i32 = arith.constant 0 : i32
    %c0_i32_0 = arith.constant 0 : i32
    %c0_i32_1 = arith.constant 0 : i32
    return %arg0, %c0_i32, %c0_i32_0 : i32, i32, i32
  }
  func.func @transform_21(%arg0: i32) -> (i32, i32, i32) {
    %c0_i32 = arith.constant 0 : i32
    %c0_i32_0 = arith.constant 0 : i32
    %c0_i32_1 = arith.constant 0 : i32
    return %arg0, %c0_i32, %c0_i32_0 : i32, i32, i32
  }
}

</mosaic_0001>

<llo_original>
// kernel: forward.1
$region0: #{forward.1}
  #allocation0 [shape = 'u32[]', space=smem, size = 0x4, offset = 0x4, fixed_abs, tag = 'smem constant byte address 0x4 - core index']
  #allocation1 [shape = 'u32[144,128]{1,0:T(1,128)}', space=vmem, size = 0x12000, scoped, tag = 'internal scratch']
  %s0 = inlined_call_operand.vmem [shape: f32[2,8,256], index: 0, kind: input, shape index: {}]
  %s1 = inlined_call_operand.vmem [shape: f32[2,1,8], index: 1, kind: input, shape index: {}]
  %s2 = inlined_call_operand.vmem [shape: f32[1,256], index: 2, kind: input, shape index: {}]
  %s3 = inlined_call_operand.vmem [shape: f32[1,256], index: 3, kind: input, shape index: {}]
  %s4 = inlined_call_operand.vmem [shape: bf16[2,256,768], index: 4, kind: input, shape index: {}]
  %s5 = inlined_call_operand.vmem [shape: f32[2,1,768], index: 5, kind: input, shape index: {}]
  %s6 = inlined_call_operand.vmem [shape: bf16[2,256,256], index: 6, kind: input, shape index: {}]
  %s7 = inlined_call_operand.vmem [shape: f32[2,1,256], index: 7, kind: input, shape index: {}]
  %s8 = inlined_call_operand.vmem [shape: f32[2,1,256], index: 8, kind: input, shape index: {}]
  %s9 = inlined_call_operand.vmem [shape: f32[2,1,256], index: 9, kind: input, shape index: {}]
  %s10 = inlined_call_operand.vmem [shape: bf16[2,256,512], index: 10, kind: input, shape index: {}]
  %s11 = inlined_call_operand.vmem [shape: f32[2,1,512], index: 11, kind: input, shape index: {}]
  %s12 = inlined_call_operand.vmem [shape: bf16[2,512,256], index: 12, kind: input, shape index: {}]
  %s13 = inlined_call_operand.vmem [shape: f32[2,1,256], index: 13, kind: input, shape index: {}]
  %s14 = inlined_call_operand.vmem [shape: f32[2,1,256], index: 14, kind: input, shape index: {}]
  %s15 = inlined_call_operand.vmem [shape: f32[2,1,256], index: 15, kind: input, shape index: {}]
  %s16 = inlined_call_operand.vmem [shape: bf16[256,2], index: 16, kind: input, shape index: {}]
  %s17 = inlined_call_operand.vmem [shape: f32[1,2], index: 17, kind: input, shape index: {}]
  %s18 = inlined_call_operand.vmem [shape: bf16[256,9], index: 18, kind: input, shape index: {}]
  %s19 = inlined_call_operand.vmem [shape: f32[1,9], index: 19, kind: input, shape index: {}]
  %s20 = inlined_call_operand.vmem [shape: f32[2,8,2], index: 20, kind: output, shape index: {0}]
  %s21 = inlined_call_operand.hbm [shape: f32[2,1,9], index: 21, kind: output, shape index: {1}]
  %22 = xla_tuple %s20, %s21
  %s23 = sld [smem:[#allocation0]]
  $region121: #{forward.1} parent=0
    _
  %s25 = ssub.s32 1, %s23
  %s26 = scalar_select 0, %s25, %s23
  $region1: #{forward.1} parent=0
    #allocation2 [shape = 'u8[1024]{0}', space=vmem, size = 0x400, scoped, tag = 'output window, operand 1']
    #allocation3 [shape = 's32[2]{0}', space=sflag, size = 0x8, scoped, tag = 'scoped memory for forward.1']
    %27 = vsyncpa [#allocation3], 0
    %s28 = scalar_lea.sflag [#allocation3], 1
    %29 = vsyncpa %s28, 0
    loop: start=0, step=1, limit=4
    $region2: #{forward.1} parent=1 // loop_pre_header
      _
    $region3: #{forward.1} parent=1 // loop_header
      %s31 = sphi 0, %s35
      %p32 = scmp.ge.s32.totalorder %s31, 4
      %s41 = sphi 0, %s43
      %s44 = sphi 0, %s41
      %s45 = sphi 0, %s44
      %s61 = sphi 0, %s45
      %s67 = sphi 0, %s69
      %s70 = sphi 0, %s67
      %s71 = sphi 0, %s70
      %s87 = sphi 0, %s71
      %s91 = sphi 0, %s91
      %s93 = sphi 0, %s91
      %s94 = sphi 0, %s93
      %s108 = sphi 0, %s94
      %s112 = sphi 0, %s112
      %s114 = sphi 0, %s112
      %s115 = sphi 0, %s114
      %s129 = sphi 0, %s115
      %s133 = sphi 0, %s133
      %s135 = sphi 0, %s133
      %s136 = sphi 0, %s135
      %s150 = sphi 0, %s136
      %s154 = sphi 0, %s154
      %s156 = sphi 0, %s154
      %s157 = sphi 0, %s156
      %s171 = sphi 0, %s157
      %s175 = sphi 0, %s175
      %s177 = sphi 0, %s175
      %s178 = sphi 0, %s177
      %s192 = sphi 0, %s178
      %s196 = sphi 0, %s196
      %s198 = sphi 0, %s196
      %s199 = sphi 0, %s198
      %s213 = sphi 0, %s199
      %s217 = sphi 0, %s217
      %s219 = sphi 0, %s217
      %s220 = sphi 0, %s219
      %s234 = sphi 0, %s220
      %s238 = sphi 0, %s238
      %s240 = sphi 0, %s238
      %s241 = sphi 0, %s240
      %s255 = sphi 0, %s241
      %s259 = sphi 0, %s259
      %s261 = sphi 0, %s259
      %s262 = sphi 0, %s261
      %s276 = sphi 0, %s262
      %s280 = sphi 0, %s280
      %s282 = sphi 0, %s280
      %s283 = sphi 0, %s282
      %s297 = sphi 0, %s283
      %s301 = sphi 0, %s301
      %s303 = sphi 0, %s301
      %s304 = sphi 0, %s303
      %s318 = sphi 0, %s304
      %s322 = sphi 0, %s322
      %s324 = sphi 0, %s322
      %s325 = sphi 0, %s324
      %s339 = sphi 0, %s325
      %s343 = sphi 0, %s343
      %s345 = sphi 0, %s343
      %s346 = sphi 0, %s345
      %s360 = sphi 0, %s346
      %s364 = sphi 0, %s364
      %s366 = sphi 0, %s364
      %s367 = sphi 0, %s366
      %s381 = sphi 0, %s367
      %s385 = sphi 0, %s385
      %s387 = sphi 0, %s385
      %s388 = sphi 0, %s387
      %s402 = sphi 0, %s388
      %s406 = sphi 0, %s406
      %s408 = sphi 0, %s406
      %s409 = sphi 0, %s408
      %s423 = sphi 0, %s409
      %s427 = sphi 0, %s427
      %s429 = sphi 0, %s427
      %s430 = sphi 0, %s429
      %s444 = sphi 0, %s430
      %s448 = sphi 0, %s448
      %s450 = sphi 0, %s448
      %s451 = sphi 0, %s450
      %s465 = sphi 0, %s451
      %s471 = sphi 0, %s473
      %s474 = sphi 0, %s471
      %s475 = sphi 0, %s474
      %s491 = sphi 0, %s475
      %s497 = sphi 0, %s499
      %s500 = sphi 0, %s497
      %s501 = sphi 0, %s500
      %s517 = sphi 0, %s501
    $region4: #{forward.1} parent=1 // loop_header_branch
      %34 = sbr.rel (%p32) target = $region8
    $region5: #{forward.1} parent=1 // loop_body
      %s36 = ssub.s32 %s31, 1
      %s37 = ssub.s32 %s31, 2
      %s38 = sadd.s32 %s31, 1
      %s39 = ssub.s32 %s31, %s38
      %p40 = scmp.eq.s32.totalorder %s39, 0
      %s42 = sadd.s32 %s41, 1
      %s43 = scalar_select %p40, %s41, %s42
      %p46 = pneg %p40
      %p47 = scmp.eq.s32.totalorder %s31, 1
      %p48 = por %p46, %p47
      %p49 = scmp.ne.s32.totalorder %s41, %s44
      %p50 = scmp.eq.s32.totalorder %s31, 0
      %p51 = por %p49, %p50
      %p52 = scmp.ne.s32.totalorder %s41, %s44
      %p53 = scmp.eq.s32.totalorder %s36, 1
      %p54 = por %p52, %p53
      %p55 = scmp.ne.s32.totalorder %s44, %s45
      %p56 = scmp.eq.s32.totalorder %s36, 0
      %p57 = por %p55, %p56
      %p58 = scmp.ne.s32.totalorder %s44, %s45
      %p59 = scmp.eq.s32.totalorder %s37, 1
      %p60 = por %p58, %p59
      %p62 = scmp.ne.s32.totalorder %s45, %s61
      %p63 = scmp.eq.s32.totalorder %s37, 0
      %p64 = por %p62, %p63
      %s65 = ssub.s32 %s31, %s38
      %p66 = scmp.eq.s32.totalorder %s65, 0
      %s68 = sadd.s32 %s67, 1
      %s69 = scalar_select %p66, %s67, %s68
      %p72 = pneg %p66
      %p73 = scmp.eq.s32.totalorder %s31, 1
      %p74 = por %p72, %p73
      %p75 = scmp.ne.s32.totalorder %s67, %s70
      %p76 = scmp.eq.s32.totalorder %s31, 0
      %p77 = por %p75, %p76
      %p78 = scmp.ne.s32.totalorder %s67, %s70
      %p79 = scmp.eq.s32.totalorder %s36, 1
      %p80 = por %p78, %p79
      %p81 = scmp.ne.s32.totalorder %s70, %s71
      %p82 = scmp.eq.s32.totalorder %s36, 0
      %p83 = por %p81, %p82
      %p84 = scmp.ne.s32.totalorder %s70, %s71
      %p85 = scmp.eq.s32.totalorder %s37, 1
      %p86 = por %p84, %p85
      %p88 = scmp.ne.s32.totalorder %s71, %s87
      %p89 = scmp.eq.s32.totalorder %s37, 0
      %p90 = por %p88, %p89
      %s92 = sadd.s32 %s91, 1
      %p95 = scmp.eq.s32.totalorder %s31, 1
      %p96 = scmp.ne.s32.totalorder %s91, %s93
      %p97 = scmp.eq.s32.totalorder %s31, 0
      %p98 = por %p96, %p97
      %p99 = scmp.ne.s32.totalorder %s91, %s93
      %p100 = scmp.eq.s32.totalorder %s36, 1
      %p101 = por %p99, %p100
      %p102 = scmp.ne.s32.totalorder %s93, %s94
      %p103 = scmp.eq.s32.totalorder %s36, 0
      %p104 = por %p102, %p103
      %p105 = scmp.ne.s32.totalorder %s93, %s94
      %p106 = scmp.eq.s32.totalorder %s37, 1
      %p107 = por %p105, %p106
      %p109 = scmp.ne.s32.totalorder %s94, %s108
      %p110 = scmp.eq.s32.totalorder %s37, 0
      %p111 = por %p109, %p110
      %s113 = sadd.s32 %s112, 1
      %p116 = scmp.eq.s32.totalorder %s31, 1
      %p117 = scmp.ne.s32.totalorder %s112, %s114
      %p118 = scmp.eq.s32.totalorder %s31, 0
      %p119 = por %p117, %p118
      %p120 = scmp.ne.s32.totalorder %s112, %s114
      %p121 = scmp.eq.s32.totalorder %s36, 1
      %p122 = por %p120, %p121
      %p123 = scmp.ne.s32.totalorder %s114, %s115
      %p124 = scmp.eq.s32.totalorder %s36, 0
      %p125 = por %p123, %p124
      %p126 = scmp.ne.s32.totalorder %s114, %s115
      %p127 = scmp.eq.s32.totalorder %s37, 1
      %p128 = por %p126, %p127
      %p130 = scmp.ne.s32.totalorder %s115, %s129
      %p131 = scmp.eq.s32.totalorder %s37, 0
      %p132 = por %p130, %p131
      %s134 = sadd.s32 %s133, 1
      %p137 = scmp.eq.s32.totalorder %s31, 1
      %p138 = scmp.ne.s32.totalorder %s133, %s135
      %p139 = scmp.eq.s32.totalorder %s31, 0
      %p140 = por %p138, %p139
      %p141 = scmp.ne.s32.totalorder %s133, %s135
      %p142 = scmp.eq.s32.totalorder %s36, 1
      %p143 = por %p141, %p142
      %p144 = scmp.ne.s32.totalorder %s135, %s136
      %p145 = scmp.eq.s32.totalorder %s36, 0
      %p146 = por %p144, %p145
      %p147 = scmp.ne.s32.totalorder %s135, %s136
      %p148 = scmp.eq.s32.totalorder %s37, 1
      %p149 = por %p147, %p148
      %p151 = scmp.ne.s32.totalorder %s136, %s150
      %p152 = scmp.eq.s32.totalorder %s37, 0
      %p153 = por %p151, %p152
      %s155 = sadd.s32 %s154, 1
      %p158 = scmp.eq.s32.totalorder %s31, 1
      %p159 = scmp.ne.s32.totalorder %s154, %s156
      %p160 = scmp.eq.s32.totalorder %s31, 0
      %p161 = por %p159, %p160
      %p162 = scmp.ne.s32.totalorder %s154, %s156
      %p163 = scmp.eq.s32.totalorder %s36, 1
      %p164 = por %p162, %p163
      %p165 = scmp.ne.s32.totalorder %s156, %s157
      %p166 = scmp.eq.s32.totalorder %s36, 0
      %p167 = por %p165, %p166
      %p168 = scmp.ne.s32.totalorder %s156, %s157
      %p169 = scmp.eq.s32.totalorder %s37, 1
      %p170 = por %p168, %p169
      %p172 = scmp.ne.s32.totalorder %s157, %s171
      %p173 = scmp.eq.s32.totalorder %s37, 0
      %p174 = por %p172, %p173
      %s176 = sadd.s32 %s175, 1
      %p179 = scmp.eq.s32.totalorder %s31, 1
      %p180 = scmp.ne.s32.totalorder %s175, %s177
      %p181 = scmp.eq.s32.totalorder %s31, 0
      %p182 = por %p180, %p181
      %p183 = scmp.ne.s32.totalorder %s175, %s177
      %p184 = scmp.eq.s32.totalorder %s36, 1
      %p185 = por %p183, %p184
      %p186 = scmp.ne.s32.totalorder %s177, %s178
      %p187 = scmp.eq.s32.totalorder %s36, 0
      %p188 = por %p186, %p187
      %p189 = scmp.ne.s32.totalorder %s177, %s178
      %p190 = scmp.eq.s32.totalorder %s37, 1
      %p191 = por %p189, %p190
      %p193 = scmp.ne.s32.totalorder %s178, %s192
      %p194 = scmp.eq.s32.totalorder %s37, 0
      %p195 = por %p193, %p194
      %s197 = sadd.s32 %s196, 1
      %p200 = scmp.eq.s32.totalorder %s31, 1
      %p201 = scmp.ne.s32.totalorder %s196, %s198
      %p202 = scmp.eq.s32.totalorder %s31, 0
      %p203 = por %p201, %p202
      %p204 = scmp.ne.s32.totalorder %s196, %s198
      %p205 = scmp.eq.s32.totalorder %s36, 1
      %p206 = por %p204, %p205
      %p207 = scmp.ne.s32.totalorder %s198, %s199
      %p208 = scmp.eq.s32.totalorder %s36, 0
      %p209 = por %p207, %p208
      %p210 = scmp.ne.s32.totalorder %s198, %s199
      %p211 = scmp.eq.s32.totalorder %s37, 1
      %p212 = por %p210, %p211
      %p214 = scmp.ne.s32.totalorder %s199, %s213
      %p215 = scmp.eq.s32.totalorder %s37, 0
      %p216 = por %p214, %p215
      %s218 = sadd.s32 %s217, 1
      %p221 = scmp.eq.s32.totalorder %s31, 1
      %p222 = scmp.ne.s32.totalorder %s217, %s219
      %p223 = scmp.eq.s32.totalorder %s31, 0
      %p224 = por %p222, %p223
      %p225 = scmp.ne.s32.totalorder %s217, %s219
      %p226 = scmp.eq.s32.totalorder %s36, 1
      %p227 = por %p225, %p226
      %p228 = scmp.ne.s32.totalorder %s219, %s220
      %p229 = scmp.eq.s32.totalorder %s36, 0
      %p230 = por %p228, %p229
      %p231 = scmp.ne.s32.totalorder %s219, %s220
      %p232 = scmp.eq.s32.totalorder %s37, 1
      %p233 = por %p231, %p232
      %p235 = scmp.ne.s32.totalorder %s220, %s234
      %p236 = scmp.eq.s32.totalorder %s37, 0
      %p237 = por %p235, %p236
      %s239 = sadd.s32 %s238, 1
      %p242 = scmp.eq.s32.totalorder %s31, 1
      %p243 = scmp.ne.s32.totalorder %s238, %s240
      %p244 = scmp.eq.s32.totalorder %s31, 0
      %p245 = por %p243, %p244
      %p246 = scmp.ne.s32.totalorder %s238, %s240
      %p247 = scmp.eq.s32.totalorder %s36, 1
      %p248 = por %p246, %p247
      %p249 = scmp.ne.s32.totalorder %s240, %s241
      %p250 = scmp.eq.s32.totalorder %s36, 0
      %p251 = por %p249, %p250
      %p252 = scmp.ne.s32.totalorder %s240, %s241
      %p253 = scmp.eq.s32.totalorder %s37, 1
      %p254 = por %p252, %p253
      %p256 = scmp.ne.s32.totalorder %s241, %s255
      %p257 = scmp.eq.s32.totalorder %s37, 0
      %p258 = por %p256, %p257
      %s260 = sadd.s32 %s259, 1
      %p263 = scmp.eq.s32.totalorder %s31, 1
      %p264 = scmp.ne.s32.totalorder %s259, %s261
      %p265 = scmp.eq.s32.totalorder %s31, 0
      %p266 = por %p264, %p265
      %p267 = scmp.ne.s32.totalorder %s259, %s261
      %p268 = scmp.eq.s32.totalorder %s36, 1
      %p269 = por %p267, %p268
      %p270 = scmp.ne.s32.totalorder %s261, %s262
      %p271 = scmp.eq.s32.totalorder %s36, 0
      %p272 = por %p270, %p271
      %p273 = scmp.ne.s32.totalorder %s261, %s262
      %p274 = scmp.eq.s32.totalorder %s37, 1
      %p275 = por %p273, %p274
      %p277 = scmp.ne.s32.totalorder %s262, %s276
      %p278 = scmp.eq.s32.totalorder %s37, 0
      %p279 = por %p277, %p278
      %s281 = sadd.s32 %s280, 1
      %p284 = scmp.eq.s32.totalorder %s31, 1
      %p285 = scmp.ne.s32.totalorder %s280, %s282
      %p286 = scmp.eq.s32.totalorder %s31, 0
      %p287 = por %p285, %p286
      %p288 = scmp.ne.s32.totalorder %s280, %s282
      %p289 = scmp.eq.s32.totalorder %s36, 1
      %p290 = por %p288, %p289
      %p291 = scmp.ne.s32.totalorder %s282, %s283
      %p292 = scmp.eq.s32.totalorder %s36, 0
      %p293 = por %p291, %p292
      %p294 = scmp.ne.s32.totalorder %s282, %s283
      %p295 = scmp.eq.s32.totalorder %s37, 1
      %p296 = por %p294, %p295
      %p298 = scmp.ne.s32.totalorder %s283, %s297
      %p299 = scmp.eq.s32.totalorder %s37, 0
      %p300 = por %p298, %p299
      %s302 = sadd.s32 %s301, 1
      %p305 = scmp.eq.s32.totalorder %s31, 1
      %p306 = scmp.ne.s32.totalorder %s301, %s303
      %p307 = scmp.eq.s32.totalorder %s31, 0
      %p308 = por %p306, %p307
      %p309 = scmp.ne.s32.totalorder %s301, %s303
      %p310 = scmp.eq.s32.totalorder %s36, 1
      %p311 = por %p309, %p310
      %p312 = scmp.ne.s32.totalorder %s303, %s304
      %p313 = scmp.eq.s32.totalorder %s36, 0
      %p314 = por %p312, %p313
      %p315 = scmp.ne.s32.totalorder %s303, %s304
      %p316 = scmp.eq.s32.totalorder %s37, 1
      %p317 = por %p315, %p316
      %p319 = scmp.ne.s32.totalorder %s304, %s318
      %p320 = scmp.eq.s32.totalorder %s37, 0
      %p321 = por %p319, %p320
      %s323 = sadd.s32 %s322, 1
      %p326 = scmp.eq.s32.totalorder %s31, 1
      %p327 = scmp.ne.s32.totalorder %s322, %s324
      %p328 = scmp.eq.s32.totalorder %s31, 0
      %p329 = por %p327, %p328
      %p330 = scmp.ne.s32.totalorder %s322, %s324
      %p331 = scmp.eq.s32.totalorder %s36, 1
      %p332 = por %p330, %p331
      %p333 = scmp.ne.s32.totalorder %s324, %s325
      %p334 = scmp.eq.s32.totalorder %s36, 0
      %p335 = por %p333, %p334
      %p336 = scmp.ne.s32.totalorder %s324, %s325
      %p337 = scmp.eq.s32.totalorder %s37, 1
      %p338 = por %p336, %p337
      %p340 = scmp.ne.s32.totalorder %s325, %s339
      %p341 = scmp.eq.s32.totalorder %s37, 0
      %p342 = por %p340, %p341
      %s344 = sadd.s32 %s343, 1
      %p347 = scmp.eq.s32.totalorder %s31, 1
      %p348 = scmp.ne.s32.totalorder %s343, %s345
      %p349 = scmp.eq.s32.totalorder %s31, 0
      %p350 = por %p348, %p349
      %p351 = scmp.ne.s32.totalorder %s343, %s345
      %p352 = scmp.eq.s32.totalorder %s36, 1
      %p353 = por %p351, %p352
      %p354 = scmp.ne.s32.totalorder %s345, %s346
      %p355 = scmp.eq.s32.totalorder %s36, 0
      %p356 = por %p354, %p355
      %p357 = scmp.ne.s32.totalorder %s345, %s346
      %p358 = scmp.eq.s32.totalorder %s37, 1
      %p359 = por %p357, %p358
      %p361 = scmp.ne.s32.totalorder %s346, %s360
      %p362 = scmp.eq.s32.totalorder %s37, 0
      %p363 = por %p361, %p362
      %s365 = sadd.s32 %s364, 1
      %p368 = scmp.eq.s32.totalorder %s31, 1
      %p369 = scmp.ne.s32.totalorder %s364, %s366
      %p370 = scmp.eq.s32.totalorder %s31, 0
      %p371 = por %p369, %p370
      %p372 = scmp.ne.s32.totalorder %s364, %s366
      %p373 = scmp.eq.s32.totalorder %s36, 1
      %p374 = por %p372, %p373
      %p375 = scmp.ne.s32.totalorder %s366, %s367
      %p376 = scmp.eq.s32.totalorder %s36, 0
      %p377 = por %p375, %p376
      %p378 = scmp.ne.s32.totalorder %s366, %s367
      %p379 = scmp.eq.s32.totalorder %s37, 1
      %p380 = por %p378, %p379
      %p382 = scmp.ne.s32.totalorder %s367, %s381
      %p383 = scmp.eq.s32.totalorder %s37, 0
      %p384 = por %p382, %p383
      %s386 = sadd.s32 %s385, 1
      %p389 = scmp.eq.s32.totalorder %s31, 1
      %p390 = scmp.ne.s32.totalorder %s385, %s387
      %p391 = scmp.eq.s32.totalorder %s31, 0
      %p392 = por %p390, %p391
      %p393 = scmp.ne.s32.totalorder %s385, %s387
      %p394 = scmp.eq.s32.totalorder %s36, 1
      %p395 = por %p393, %p394
      %p396 = scmp.ne.s32.totalorder %s387, %s388
      %p397 = scmp.eq.s32.totalorder %s36, 0
      %p398 = por %p396, %p397
      %p399 = scmp.ne.s32.totalorder %s387, %s388
      %p400 = scmp.eq.s32.totalorder %s37, 1
      %p401 = por %p399, %p400
      %p403 = scmp.ne.s32.totalorder %s388, %s402
      %p404 = scmp.eq.s32.totalorder %s37, 0
      %p405 = por %p403, %p404
      %s407 = sadd.s32 %s406, 1
      %p410 = scmp.eq.s32.totalorder %s31, 1
      %p411 = scmp.ne.s32.totalorder %s406, %s408
      %p412 = scmp.eq.s32.totalorder %s31, 0
      %p413 = por %p411, %p412
      %p414 = scmp.ne.s32.totalorder %s406, %s408
      %p415 = scmp.eq.s32.totalorder %s36, 1
      %p416 = por %p414, %p415
      %p417 = scmp.ne.s32.totalorder %s408, %s409
      %p418 = scmp.eq.s32.totalorder %s36, 0
      %p419 = por %p417, %p418
      %p420 = scmp.ne.s32.totalorder %s408, %s409
      %p421 = scmp.eq.s32.totalorder %s37, 1
      %p422 = por %p420, %p421
      %p424 = scmp.ne.s32.totalorder %s409, %s423
      %p425 = scmp.eq.s32.totalorder %s37, 0
      %p426 = por %p424, %p425
      %s428 = sadd.s32 %s427, 1
      %p431 = scmp.eq.s32.totalorder %s31, 1
      %p432 = scmp.ne.s32.totalorder %s427, %s429
      %p433 = scmp.eq.s32.totalorder %s31, 0
      %p434 = por %p432, %p433
      %p435 = scmp.ne.s32.totalorder %s427, %s429
      %p436 = scmp.eq.s32.totalorder %s36, 1
      %p437 = por %p435, %p436
      %p438 = scmp.ne.s32.totalorder %s429, %s430
      %p439 = scmp.eq.s32.totalorder %s36, 0
      %p440 = por %p438, %p439
      %p441 = scmp.ne.s32.totalorder %s429, %s430
      %p442 = scmp.eq.s32.totalorder %s37, 1
      %p443 = por %p441, %p442
      %p445 = scmp.ne.s32.totalorder %s430, %s444
      %p446 = scmp.eq.s32.totalorder %s37, 0
      %p447 = por %p445, %p446
      %s449 = sadd.s32 %s448, 1
      %p452 = scmp.eq.s32.totalorder %s31, 1
      %p453 = scmp.ne.s32.totalorder %s448, %s450
      %p454 = scmp.eq.s32.totalorder %s31, 0
      %p455 = por %p453, %p454
      %p456 = scmp.ne.s32.totalorder %s448, %s450
      %p457 = scmp.eq.s32.totalorder %s36, 1
      %p458 = por %p456, %p457
      %p459 = scmp.ne.s32.totalorder %s450, %s451
      %p460 = scmp.eq.s32.totalorder %s36, 0
      %p461 = por %p459, %p460
      %p462 = scmp.ne.s32.totalorder %s450, %s451
      %p463 = scmp.eq.s32.totalorder %s37, 1
      %p464 = por %p462, %p463
      %p466 = scmp.ne.s32.totalorder %s451, %s465
      %p467 = scmp.eq.s32.totalorder %s37, 0
      %p468 = por %p466, %p467
      %s469 = ssub.s32 %s31, %s38
      %p470 = scmp.eq.s32.totalorder %s469, 0
      %s472 = sadd.s32 %s471, 1
      %s473 = scalar_select %p470, %s471, %s472
      %p476 = pneg %p470
      %p477 = scmp.eq.s32.totalorder %s31, 1
      %p478 = por %p476, %p477
      %p479 = scmp.ne.s32.totalorder %s471, %s474
      %p480 = scmp.eq.s32.totalorder %s31, 0
      %p481 = por %p479, %p480
      %p482 = scmp.ne.s32.totalorder %s471, %s474
      %p483 = scmp.eq.s32.totalorder %s36, 1
      %p484 = por %p482, %p483
      %p485 = scmp.ne.s32.totalorder %s474, %s475
      %p486 = scmp.eq.s32.totalorder %s36, 0
      %p487 = por %p485, %p486
      %p488 = scmp.ne.s32.totalorder %s474, %s475
      %p489 = scmp.eq.s32.totalorder %s37, 1
      %p490 = por %p488, %p489
      %p492 = scmp.ne.s32.totalorder %s475, %s491
      %p493 = scmp.eq.s32.totalorder %s37, 0
      %p494 = por %p492, %p493
      %s495 = ssub.s32 %s31, %s38
      %p496 = scmp.eq.s32.totalorder %s495, 0
      %s498 = sadd.s32 %s497, 1
      %s499 = scalar_select %p496, %s497, %s498
      %p502 = pneg %p496
      %p503 = scmp.eq.s32.totalorder %s31, 1
      %p504 = por %p502, %p503
      %p505 = scmp.ne.s32.totalorder %s497, %s500
      %p506 = scmp.eq.s32.totalorder %s31, 0
      %p507 = por %p505, %p506
      %p508 = scmp.ne.s32.totalorder %s497, %s500
      %p509 = scmp.eq.s32.totalorder %s36, 1
      %p510 = por %p508, %p509
      %p511 = scmp.ne.s32.totalorder %s500, %s501
      %p512 = scmp.eq.s32.totalorder %s36, 0
      %p513 = por %p511, %p512
      %p514 = scmp.ne.s32.totalorder %s500, %s501
      %p515 = scmp.eq.s32.totalorder %s37, 1
      %p516 = por %p514, %p515
      %p518 = scmp.ne.s32.totalorder %s501, %s517
      %p519 = scmp.eq.s32.totalorder %s37, 0
      %p520 = por %p518, %p519
      %p521 = scmp.le.s32.totalorder 1, %s31
      %p522 = scmp.lt.s32.totalorder %s31, 3
      %p523 = pnand %p521, %p522
      %p524 = pneg %p523
      // Predicated region
      $region9: #{forward.1} parent=5 // pred_check
        _
      $region10: #{forward.1} parent=5 // pred_check_branch
        %526 = sbr.rel (%p523) target = $region12
      $region11: #{forward.1} parent=5 // pred_region
        %s527 = ssub.s32 %s31, 1
        // Predicated region
        $region13: #{forward.1} parent=11 // pred_check
          %p528 = pneg %p104
        $region14: #{forward.1} parent=11 // pred_check_branch
          %530 = sbr.rel (%p528) target = $region16
        $region15: #{forward.1} parent=11 // pred_region
          _
        $region16: #{forward.1} parent=11 // pred_fallthru
          _
        // Predicated region
        $region17: #{forward.1} parent=11 // pred_check
          %p531 = pneg %p125
        $region18: #{forward.1} parent=11 // pred_check_branch
          %533 = sbr.rel (%p531) target = $region20
        $region19: #{forward.1} parent=11 // pred_region
          _
        $region20: #{forward.1} parent=11 // pred_fallthru
          _
        // Predicated region
        $region21: #{forward.1} parent=11 // pred_check
          %p534 = pneg %p146
        $region22: #{forward.1} parent=11 // pred_check_branch
          %536 = sbr.rel (%p534) target = $region24
        $region23: #{forward.1} parent=11 // pred_region
          _
        $region24: #{forward.1} parent=11 // pred_fallthru
          _
        // Predicated region
        $region25: #{forward.1} parent=11 // pred_check
          %p537 = pneg %p167
        $region26: #{forward.1} parent=11 // pred_check_branch
          %539 = sbr.rel (%p537) target = $region28
        $region27: #{forward.1} parent=11 // pred_region
          _
        $region28: #{forward.1} parent=11 // pred_fallthru
          _
        // Predicated region
        $region29: #{forward.1} parent=11 // pred_check
          %p540 = pneg %p188
        $region30: #{forward.1} parent=11 // pred_check_branch
          %542 = sbr.rel (%p540) target = $region32
        $region31: #{forward.1} parent=11 // pred_region
          _
        $region32: #{forward.1} parent=11 // pred_fallthru
          _
        // Predicated region
        $region33: #{forward.1} parent=11 // pred_check
          %p543 = pneg %p209
        $region34: #{forward.1} parent=11 // pred_check_branch
          %545 = sbr.rel (%p543) target = $region36
        $region35: #{forward.1} parent=11 // pred_region
          _
        $region36: #{forward.1} parent=11 // pred_fallthru
          _
        // Predicated region
        $region37: #{forward.1} parent=11 // pred_check
          %p546 = pneg %p230
        $region38: #{forward.1} parent=11 // pred_check_branch
          %548 = sbr.rel (%p546) target = $region40
        $region39: #{forward.1} parent=11 // pred_region
          _
        $region40: #{forward.1} parent=11 // pred_fallthru
          _
        // Predicated region
        $region41: #{forward.1} parent=11 // pred_check
          %p549 = pneg %p251
        $region42: #{forward.1} parent=11 // pred_check_branch
          %551 = sbr.rel (%p549) target = $region44
        $region43: #{forward.1} parent=11 // pred_region
          _
        $region44: #{forward.1} parent=11 // pred_fallthru
          _
        // Predicated region
        $region45: #{forward.1} parent=11 // pred_check
          %p552 = pneg %p272
        $region46: #{forward.1} parent=11 // pred_check_branch
          %554 = sbr.rel (%p552) target = $region48
        $region47: #{forward.1} parent=11 // pred_region
          _
        $region48: #{forward.1} parent=11 // pred_fallthru
          _
        // Predicated region
        $region49: #{forward.1} parent=11 // pred_check
          %p555 = pneg %p293
        $region50: #{forward.1} parent=11 // pred_check_branch
          %557 = sbr.rel (%p555) target = $region52
        $region51: #{forward.1} parent=11 // pred_region
          _
        $region52: #{forward.1} parent=11 // pred_fallthru
          _
        // Predicated region
        $region53: #{forward.1} parent=11 // pred_check
          %p558 = pneg %p314
        $region54: #{forward.1} parent=11 // pred_check_branch
          %560 = sbr.rel (%p558) target = $region56
        $region55: #{forward.1} parent=11 // pred_region
          _
        $region56: #{forward.1} parent=11 // pred_fallthru
          _
        // Predicated region
        $region57: #{forward.1} parent=11 // pred_check
          %p561 = pneg %p335
        $region58: #{forward.1} parent=11 // pred_check_branch
          %563 = sbr.rel (%p561) target = $region60
        $region59: #{forward.1} parent=11 // pred_region
          _
        $region60: #{forward.1} parent=11 // pred_fallthru
          _
        // Predicated region
        $region61: #{forward.1} parent=11 // pred_check
          %p564 = pneg %p356
        $region62: #{forward.1} parent=11 // pred_check_branch
          %566 = sbr.rel (%p564) target = $region64
        $region63: #{forward.1} parent=11 // pred_region
          _
        $region64: #{forward.1} parent=11 // pred_fallthru
          _
        // Predicated region
        $region65: #{forward.1} parent=11 // pred_check
          %p567 = pneg %p377
        $region66: #{forward.1} parent=11 // pred_check_branch
          %569 = sbr.rel (%p567) target = $region68
        $region67: #{forward.1} parent=11 // pred_region
          _
        $region68: #{forward.1} parent=11 // pred_fallthru
          _
        // Predicated region
        $region69: #{forward.1} parent=11 // pred_check
          %p570 = pneg %p398
        $region70: #{forward.1} parent=11 // pred_check_branch
          %572 = sbr.rel (%p570) target = $region72
        $region71: #{forward.1} parent=11 // pred_region
          _
        $region72: #{forward.1} parent=11 // pred_fallthru
          _
        // Predicated region
        $region73: #{forward.1} parent=11 // pred_check
          %p573 = pneg %p419
        $region74: #{forward.1} parent=11 // pred_check_branch
          %575 = sbr.rel (%p573) target = $region76
        $region75: #{forward.1} parent=11 // pred_region
          _
        $region76: #{forward.1} parent=11 // pred_fallthru
          _
        // Predicated region
        $region77: #{forward.1} parent=11 // pred_check
          %p576 = pneg %p440
        $region78: #{forward.1} parent=11 // pred_check_branch
          %578 = sbr.rel (%p576) target = $region80
        $region79: #{forward.1} parent=11 // pred_region
          _
        $region80: #{forward.1} parent=11 // pred_fallthru
          _
        // Predicated region
        $region81: #{forward.1} parent=11 // pred_check
          %p579 = pneg %p461
        $region82: #{forward.1} parent=11 // pred_check_branch
          %581 = sbr.rel (%p579) target = $region84
        $region83: #{forward.1} parent=11 // pred_region
          _
        $region84: #{forward.1} parent=11 // pred_fallthru
          _
      $region12: #{forward.1} parent=5 // pred_fallthru
        _
      %p582 = scmp.lt.s32.totalorder %s31, 2
      // Predicated region
      $region85: #{forward.1} parent=5 // pred_check
        %p583 = pneg %p582
      $region86: #{forward.1} parent=5 // pred_check_branch
        %585 = sbr.rel (%p583) target = $region88
      $region87: #{forward.1} parent=5 // pred_region
        // Predicated region
        $region89: #{forward.1} parent=87 // pred_check
          %p586 = pneg %p51
        $region90: #{forward.1} parent=87 // pred_check_branch
          %588 = sbr.rel (%p586) target = $region92
        $region91: #{forward.1} parent=87 // pred_region
          %p589 = scmp.lt.s32.totalorder %s31, 1
          %s590 = scalar_select %p589, %s31, 1
          %s591 = smul.addr %s590, 2
          %s592 = smul.addr %s591, 8
          %s593 = scalar_lea.vmem %s0, %s592
        $region92: #{forward.1} parent=87 // pred_fallthru
          _
        // Predicated region
        $region93: #{forward.1} parent=87 // pred_check
          %p594 = pneg %p77
        $region94: #{forward.1} parent=87 // pred_check_branch
          %596 = sbr.rel (%p594) target = $region96
        $region95: #{forward.1} parent=87 // pred_region
          %p597 = scmp.lt.s32.totalorder %s31, 1
          %s598 = scalar_select %p597, %s31, 1
          %s599 = scalar_lea.vmem %s1, %s598
        $region96: #{forward.1} parent=87 // pred_fallthru
          _
      $region88: #{forward.1} parent=5 // pred_fallthru
        _
      %p600 = scmp.le.s32.totalorder 1, %s31
      %p601 = scmp.lt.s32.totalorder %s31, 3
      %p602 = pnand %p600, %p601
      %p603 = pneg %p602
      // Predicated region
      $region97: #{forward.1} parent=5 // pred_check
        _
      $region98: #{forward.1} parent=5 // pred_check_branch
        %605 = sbr.rel (%p602) target = $region100
      $region99: #{forward.1} parent=5 // pred_region
        %s606 = ssub.s32 %s31, 1
        %p607 = scmp.lt.s32.totalorder %s36, 1
        %s608 = scalar_select %p607, %s36, 1
        %s609 = smul.addr %s608, 2
        %s610 = smul.addr %s609, 8
        %s611 = scalar_lea.vmem %s0, %s610
        %p612 = pneg %p57
        %p613 = pneg %p54
        %p614 = scmp.lt.s32.totalorder %s36, 1
        %s615 = scalar_select %p614, %s36, 1
        %s616 = scalar_lea.vmem %s1, %s615
        %p617 = pneg %p83
        %p618 = pneg %p80
        %p619 = pneg %p104
        %p620 = pneg %p101
        %p621 = pneg %p125
        %p622 = pneg %p122
        %p623 = pneg %p146
        %p624 = pneg %p143
        %p625 = pneg %p167
        %p626 = pneg %p164
        %p627 = pneg %p188
        %p628 = pneg %p185
        %p629 = pneg %p209
        %p630 = pneg %p206
        %p631 = pneg %p230
        %p632 = pneg %p227
        %p633 = pneg %p251
        %p634 = pneg %p248
        %p635 = pneg %p272
        %p636 = pneg %p269
        %p637 = pneg %p293
        %p638 = pneg %p290
        %p639 = pneg %p314
        %p640 = pneg %p311
        %p641 = pneg %p335
        %p642 = pneg %p332
        %p643 = pneg %p356
        %p644 = pneg %p353
        %p645 = pneg %p377
        %p646 = pneg %p374
        %p647 = pneg %p398
        %p648 = pneg %p395
        %p649 = pneg %p419
        %p650 = pneg %p416
        %p651 = pneg %p440
        %p652 = pneg %p437
        %p653 = pneg %p461
        %p654 = pneg %p458
        %p655 = pneg %p487
        %p656 = pneg %p484
        %p657 = scmp.lt.s32.totalorder %s36, 1
        %s658 = scalar_select %p657, %s36, 1
        %s659 = smul.addr %s658, 8
        %s660 = scalar_lea.vmem %s20, %s659
        %p661 = pneg %p513
        %p662 = pneg %p510
        %s663 = sand.u32 %s500, 1
        %s664 = scalar_lea.sflag [#allocation3], %s663
        %s665 = sand.u32 %s500, 1
        %s666 = scalar_lea.vmem [#allocation2], %s665
        %p667 = scmp.lt.s32.totalorder %s36, 1
        %s668 = scalar_select %p667, %s36, 1
        %s669 = smul.addr %s668, 2
        %s670 = smul.addr %s669, 8
        %s671 = scalar_lea.vmem %s0, %s670
        %p672 = scmp.lt.s32.totalorder %s36, 1
        %s673 = scalar_select %p672, %s36, 1
        %s674 = scalar_lea.vmem %s1, %s673
        %p675 = scmp.lt.s32.totalorder %s36, 1
        %s676 = scalar_select %p675, %s36, 1
        %s677 = smul.addr %s676, 8
        %s678 = scalar_lea.vmem %s20, %s677
        %v680 = vld [vmem:[%s671] sm:$0xff]
        %v681 = vld [vmem:[%s671 + $0x8] sm:$0xff]
        %v682 = vld [vmem:[%s2] sm:$0x3]
        %v683 = vld [vmem:[%s3] sm:$0x3]
        %v684 = vadd.f32 %v680, %v681
        %685 = vadd.xlane.f32.xlu0 %v684
        %v686 = vpop.xlane.xlu0 %685
        %v687 = vrcp.pop 256.0
        %v688 = vmul.f32 %v686, %v687
        %v689 = vsub.f32 %v680, %v688
        %v690 = vsub.f32 %v681, %v688
        %v691 = vmul.f32 %v689, %v689
        %v692 = vmul.f32 %v690, %v690
        %v693 = vadd.f32 %v691, %v692
        %694 = vadd.xlane.f32.xlu0 %v693
        %v695 = vpop.xlane.xlu0 %694
        %v696 = vmul.f32 %v695, %v687
        %v697 = vadd.f32 %v696, 1e-12
        %v698 = vrsqrt.pop %v697
        %v699 = vmul.f32 %v689, %v698
        %v700 = vmul.f32 %v690, %v698
        %v702 = vlaneseq
        %v703 = vshrl.u32 %v702, 7
        %v704 = vsub.s32 0, %v703
        %v705 = vrot.slane %v682, %v704
        %v706 = vlaneseq
        %v707 = vshrl.u32 %v706, 7
        %v708 = vsub.s32 1, %v707
        %v709 = vrot.slane %v682, %v708
        %v712 = vmul.f32 %v699, %v705
        %v713 = vmul.f32 %v700, %v709
        %v715 = vlaneseq
        %v716 = vshrl.u32 %v715, 7
        %v717 = vsub.s32 0, %v716
        %v718 = vrot.slane %v683, %v717
        %v719 = vlaneseq
        %v720 = vshrl.u32 %v719, 7
        %v721 = vsub.s32 1, %v720
        %v722 = vrot.slane %v683, %v721
        %v725 = vadd.f32 %v712, %v718
        %v726 = vadd.f32 %v713, %v722
        %v727 = vld [vmem:[%s674] sm:$0x1]
        %v728 = vsub.f32 1.0, %v727
        %v729 = vmul.f32 %v728, -1e+09
        %v730 = vpack.c.bf16 %v725, %v725
        %v731 = vpack.c.bf16 %v726, %v726
        %v732 = vld [vmem:[%s4] sm:$0xff]
        %v733 = vld [vmem:[%s4 + $0x8] sm:$0xff]
        %v734 = vld [vmem:[%s4 + $0x10] sm:$0xff]
        %v735 = vld [vmem:[%s4 + $0x18] sm:$0xff]
        %v736 = vld [vmem:[%s4 + $0x20] sm:$0xff]
        %v737 = vld [vmem:[%s4 + $0x28] sm:$0xff]
        %v738 = vld [vmem:[%s4 + $0x30] sm:$0xff]
        %v739 = vld [vmem:[%s4 + $0x38] sm:$0xff]
        %v740 = vld [vmem:[%s4 + $0x40] sm:$0xff]
        %v741 = vld [vmem:[%s4 + $0x48] sm:$0xff]
        %v742 = vld [vmem:[%s4 + $0x50] sm:$0xff]
        %v743 = vld [vmem:[%s4 + $0x58] sm:$0xff]
        %v744 = vld [vmem:[%s4 + $0x60] sm:$0xff]
        %v745 = vld [vmem:[%s4 + $0x68] sm:$0xff]
        %v746 = vld [vmem:[%s4 + $0x70] sm:$0xff]
        %v747 = vld [vmem:[%s4 + $0x78] sm:$0xff]
        %v748 = vld [vmem:[%s4 + $0x80] sm:$0xff]
        %v749 = vld [vmem:[%s4 + $0x88] sm:$0xff]
        %v750 = vld [vmem:[%s4 + $0x90] sm:$0xff]
        %v751 = vld [vmem:[%s4 + $0x98] sm:$0xff]
        %v752 = vld [vmem:[%s4 + $0xa0] sm:$0xff]
        %v753 = vld [vmem:[%s4 + $0xa8] sm:$0xff]
        %v754 = vld [vmem:[%s4 + $0xb0] sm:$0xff]
        %v755 = vld [vmem:[%s4 + $0xb8] sm:$0xff]
        %v756 = vld [vmem:[%s4 + $0xc0] sm:$0xff]
        %v757 = vld [vmem:[%s4 + $0xc8] sm:$0xff]
        %v758 = vld [vmem:[%s4 + $0xd0] sm:$0xff]
        %v759 = vld [vmem:[%s4 + $0xd8] sm:$0xff]
        %v760 = vld [vmem:[%s4 + $0xe0] sm:$0xff]
        %v761 = vld [vmem:[%s4 + $0xe8] sm:$0xff]
        %v762 = vld [vmem:[%s4 + $0xf0] sm:$0xff]
        %v763 = vld [vmem:[%s4 + $0xf8] sm:$0xff]
        %v764 = vld [vmem:[%s4 + $0x100] sm:$0xff]
        %v765 = vld [vmem:[%s4 + $0x108] sm:$0xff]
        %v766 = vld [vmem:[%s4 + $0x110] sm:$0xff]
        %v767 = vld [vmem:[%s4 + $0x118] sm:$0xff]
        %v768 = vld [vmem:[%s4 + $0x120] sm:$0xff]
        %v769 = vld [vmem:[%s4 + $0x128] sm:$0xff]
        %v770 = vld [vmem:[%s4 + $0x130] sm:$0xff]
        %v771 = vld [vmem:[%s4 + $0x138] sm:$0xff]
        %v772 = vld [vmem:[%s4 + $0x140] sm:$0xff]
        %v773 = vld [vmem:[%s4 + $0x148] sm:$0xff]
        %v774 = vld [vmem:[%s4 + $0x150] sm:$0xff]
        %v775 = vld [vmem:[%s4 + $0x158] sm:$0xff]
        %v776 = vld [vmem:[%s4 + $0x160] sm:$0xff]
        %v777 = vld [vmem:[%s4 + $0x168] sm:$0xff]
        %v778 = vld [vmem:[%s4 + $0x170] sm:$0xff]
        %v779 = vld [vmem:[%s4 + $0x178] sm:$0xff]
        %v780 = vld [vmem:[%s4 + $0x180] sm:$0xff]
        %v781 = vld [vmem:[%s4 + $0x188] sm:$0xff]
        %v782 = vld [vmem:[%s4 + $0x190] sm:$0xff]
        %v783 = vld [vmem:[%s4 + $0x198] sm:$0xff]
        %v784 = vld [vmem:[%s4 + $0x1a0] sm:$0xff]
        %v785 = vld [vmem:[%s4 + $0x1a8] sm:$0xff]
        %v786 = vld [vmem:[%s4 + $0x1b0] sm:$0xff]
        %v787 = vld [vmem:[%s4 + $0x1b8] sm:$0xff]
        %v788 = vld [vmem:[%s4 + $0x1c0] sm:$0xff]
        %v789 = vld [vmem:[%s4 + $0x1c8] sm:$0xff]
        %v790 = vld [vmem:[%s4 + $0x1d0] sm:$0xff]
        %v791 = vld [vmem:[%s4 + $0x1d8] sm:$0xff]
        %v792 = vld [vmem:[%s4 + $0x1e0] sm:$0xff]
        %v793 = vld [vmem:[%s4 + $0x1e8] sm:$0xff]
        %v794 = vld [vmem:[%s4 + $0x1f0] sm:$0xff]
        %v795 = vld [vmem:[%s4 + $0x1f8] sm:$0xff]
        %v796 = vld [vmem:[%s4 + $0x200] sm:$0xff]
        %v797 = vld [vmem:[%s4 + $0x208] sm:$0xff]
        %v798 = vld [vmem:[%s4 + $0x210] sm:$0xff]
        %v799 = vld [vmem:[%s4 + $0x218] sm:$0xff]
        %v800 = vld [vmem:[%s4 + $0x220] sm:$0xff]
        %v801 = vld [vmem:[%s4 + $0x228] sm:$0xff]
        %v802 = vld [vmem:[%s4 + $0x230] sm:$0xff]
        %v803 = vld [vmem:[%s4 + $0x238] sm:$0xff]
        %v804 = vld [vmem:[%s4 + $0x240] sm:$0xff]
        %v805 = vld [vmem:[%s4 + $0x248] sm:$0xff]
        %v806 = vld [vmem:[%s4 + $0x250] sm:$0xff]
        %v807 = vld [vmem:[%s4 + $0x258] sm:$0xff]
        %v808 = vld [vmem:[%s4 + $0x260] sm:$0xff]
        %v809 = vld [vmem:[%s4 + $0x268] sm:$0xff]
        %v810 = vld [vmem:[%s4 + $0x270] sm:$0xff]
        %v811 = vld [vmem:[%s4 + $0x278] sm:$0xff]
        %v812 = vld [vmem:[%s4 + $0x280] sm:$0xff]
        %v813 = vld [vmem:[%s4 + $0x288] sm:$0xff]
        %v814 = vld [vmem:[%s4 + $0x290] sm:$0xff]
        %v815 = vld [vmem:[%s4 + $0x298] sm:$0xff]
        %v816 = vld [vmem:[%s4 + $0x2a0] sm:$0xff]
        %v817 = vld [vmem:[%s4 + $0x2a8] sm:$0xff]
        %v818 = vld [vmem:[%s4 + $0x2b0] sm:$0xff]
        %v819 = vld [vmem:[%s4 + $0x2b8] sm:$0xff]
        %v820 = vld [vmem:[%s4 + $0x2c0] sm:$0xff]
        %v821 = vld [vmem:[%s4 + $0x2c8] sm:$0xff]
        %v822 = vld [vmem:[%s4 + $0x2d0] sm:$0xff]
        %v823 = vld [vmem:[%s4 + $0x2d8] sm:$0xff]
        %v824 = vld [vmem:[%s4 + $0x2e0] sm:$0xff]
        %v825 = vld [vmem:[%s4 + $0x2e8] sm:$0xff]
        %v826 = vld [vmem:[%s4 + $0x2f0] sm:$0xff]
        %v827 = vld [vmem:[%s4 + $0x2f8] sm:$0xff]
        %v828 = vld [vmem:[%s5] sm:$0x3f]
        %v830 = vlaneseq
        %v831 = vshrl.u32 %v830, 7
        %v832 = vsub.s32 0, %v831
        %v833 = vrot.slane %v828, %v832
        %v834 = vlaneseq
        %v835 = vshrl.u32 %v834, 7
        %v836 = vsub.s32 1, %v835
        %v837 = vrot.slane %v828, %v836
        %v838 = vlaneseq
        %v839 = vshrl.u32 %v838, 7
        %v840 = vsub.s32 2, %v839
        %v841 = vrot.slane %v828, %v840
        %v842 = vlaneseq
        %v843 = vshrl.u32 %v842, 7
        %v844 = vsub.s32 3, %v843
        %v845 = vrot.slane %v828, %v844
        %v846 = vlaneseq
        %v847 = vshrl.u32 %v846, 7
        %v848 = vsub.s32 4, %v847
        %v849 = vrot.slane %v828, %v848
        %v850 = vlaneseq
        %v851 = vshrl.u32 %v850, 7
        %v852 = vsub.s32 5, %v851
        %v853 = vrot.slane %v828, %v852
        %v956 = vunpack.c.l.b16 %v732
        %v957 = vunpack.c.h.b16 %v732
        %v958 = vunpack.c.l.b16 %v733
        %v959 = vunpack.c.h.b16 %v733
        %v960 = vunpack.c.l.b16 %v734
        %v961 = vunpack.c.h.b16 %v734
        %v962 = vunpack.c.l.b16 %v735
        %v963 = vunpack.c.h.b16 %v735
        %v964 = vunpack.c.l.b16 %v736
        %v965 = vunpack.c.h.b16 %v736
        %v966 = vunpack.c.l.b16 %v737
        %v967 = vunpack.c.h.b16 %v737
        %v968 = vunpack.c.l.b16 %v738
        %v969 = vunpack.c.h.b16 %v738
        %v970 = vunpack.c.l.b16 %v739
        %v971 = vunpack.c.h.b16 %v739
        %v972 = vunpack.c.l.b16 %v740
        %v973 = vunpack.c.h.b16 %v740
        %v974 = vunpack.c.l.b16 %v741
        %v975 = vunpack.c.h.b16 %v741
        %v976 = vunpack.c.l.b16 %v742
        %v977 = vunpack.c.h.b16 %v742
        %v978 = vunpack.c.l.b16 %v743
        %v979 = vunpack.c.h.b16 %v743
        %v980 = vunpack.c.l.b16 %v744
        %v981 = vunpack.c.h.b16 %v744
        %v982 = vunpack.c.l.b16 %v745
        %v983 = vunpack.c.h.b16 %v745
        %v984 = vunpack.c.l.b16 %v746
        %v985 = vunpack.c.h.b16 %v746
        %v986 = vunpack.c.l.b16 %v747
        %v987 = vunpack.c.h.b16 %v747
        %v988 = vunpack.c.l.b16 %v748
        %v989 = vunpack.c.h.b16 %v748
        %v990 = vunpack.c.l.b16 %v749
        %v991 = vunpack.c.h.b16 %v749
        %v992 = vunpack.c.l.b16 %v750
        %v993 = vunpack.c.h.b16 %v750
        %v994 = vunpack.c.l.b16 %v751
        %v995 = vunpack.c.h.b16 %v751
        %v996 = vunpack.c.l.b16 %v752
        %v997 = vunpack.c.h.b16 %v752
        %v998 = vunpack.c.l.b16 %v753
        %v999 = vunpack.c.h.b16 %v753
        %v1000 = vunpack.c.l.b16 %v754
        %v1001 = vunpack.c.h.b16 %v754
        %v1002 = vunpack.c.l.b16 %v755
        %v1003 = vunpack.c.h.b16 %v755
        %v1004 = vunpack.c.l.b16 %v756
        %v1005 = vunpack.c.h.b16 %v756
        %v1006 = vunpack.c.l.b16 %v757
        %v1007 = vunpack.c.h.b16 %v757
        %v1008 = vunpack.c.l.b16 %v758
        %v1009 = vunpack.c.h.b16 %v758
        %v1010 = vunpack.c.l.b16 %v759
        %v1011 = vunpack.c.h.b16 %v759
        %v1012 = vunpack.c.l.b16 %v760
        %v1013 = vunpack.c.h.b16 %v760
        %v1014 = vunpack.c.l.b16 %v761
        %v1015 = vunpack.c.h.b16 %v761
        %v1016 = vunpack.c.l.b16 %v762
        %v1017 = vunpack.c.h.b16 %v762
        %v1018 = vunpack.c.l.b16 %v763
        %v1019 = vunpack.c.h.b16 %v763
        %v1020 = vunpack.c.l.b16 %v764
        %v1021 = vunpack.c.h.b16 %v764
        %v1022 = vunpack.c.l.b16 %v765
        %v1023 = vunpack.c.h.b16 %v765
        %v1024 = vunpack.c.l.b16 %v766
        %v1025 = vunpack.c.h.b16 %v766
        %v1026 = vunpack.c.l.b16 %v767
        %v1027 = vunpack.c.h.b16 %v767
        %v1028 = vunpack.c.l.b16 %v768
        %v1029 = vunpack.c.h.b16 %v768
        %v1030 = vunpack.c.l.b16 %v769
        %v1031 = vunpack.c.h.b16 %v769
        %v1032 = vunpack.c.l.b16 %v770
        %v1033 = vunpack.c.h.b16 %v770
        %v1034 = vunpack.c.l.b16 %v771
        %v1035 = vunpack.c.h.b16 %v771
        %v1036 = vunpack.c.l.b16 %v772
        %v1037 = vunpack.c.h.b16 %v772
        %v1038 = vunpack.c.l.b16 %v773
        %v1039 = vunpack.c.h.b16 %v773
        %v1040 = vunpack.c.l.b16 %v774
        %v1041 = vunpack.c.h.b16 %v774
        %v1042 = vunpack.c.l.b16 %v775
        %v1043 = vunpack.c.h.b16 %v775
        %v1044 = vunpack.c.l.b16 %v776
        %v1045 = vunpack.c.h.b16 %v776
        %v1046 = vunpack.c.l.b16 %v777
        %v1047 = vunpack.c.h.b16 %v777
        %v1048 = vunpack.c.l.b16 %v778
        %v1049 = vunpack.c.h.b16 %v778
        %v1050 = vunpack.c.l.b16 %v779
        %v1051 = vunpack.c.h.b16 %v779
        %v1052 = vunpack.c.l.b16 %v780
        %v1053 = vunpack.c.h.b16 %v780
        %v1054 = vunpack.c.l.b16 %v781
        %v1055 = vunpack.c.h.b16 %v781
        %v1056 = vunpack.c.l.b16 %v782
        %v1057 = vunpack.c.h.b16 %v782
        %v1058 = vunpack.c.l.b16 %v783
        %v1059 = vunpack.c.h.b16 %v783
        %v1060 = vunpack.c.l.b16 %v784
        %v1061 = vunpack.c.h.b16 %v784
        %v1062 = vunpack.c.l.b16 %v785
        %v1063 = vunpack.c.h.b16 %v785
        %v1064 = vunpack.c.l.b16 %v786
        %v1065 = vunpack.c.h.b16 %v786
        %v1066 = vunpack.c.l.b16 %v787
        %v1067 = vunpack.c.h.b16 %v787
        %v1068 = vunpack.c.l.b16 %v788
        %v1069 = vunpack.c.h.b16 %v788
        %v1070 = vunpack.c.l.b16 %v789
        %v1071 = vunpack.c.h.b16 %v789
        %v1072 = vunpack.c.l.b16 %v790
        %v1073 = vunpack.c.h.b16 %v790
        %v1074 = vunpack.c.l.b16 %v791
        %v1075 = vunpack.c.h.b16 %v791
        %v1076 = vunpack.c.l.b16 %v792
        %v1077 = vunpack.c.h.b16 %v792
        %v1078 = vunpack.c.l.b16 %v793
        %v1079 = vunpack.c.h.b16 %v793
        %v1080 = vunpack.c.l.b16 %v794
        %v1081 = vunpack.c.h.b16 %v794
        %v1082 = vunpack.c.l.b16 %v795
        %v1083 = vunpack.c.h.b16 %v795
        %v1084 = vunpack.c.l.b16 %v796
        %v1085 = vunpack.c.h.b16 %v796
        %v1086 = vunpack.c.l.b16 %v797
        %v1087 = vunpack.c.h.b16 %v797
        %v1088 = vunpack.c.l.b16 %v798
        %v1089 = vunpack.c.h.b16 %v798
        %v1090 = vunpack.c.l.b16 %v799
        %v1091 = vunpack.c.h.b16 %v799
        %v1092 = vunpack.c.l.b16 %v800
        %v1093 = vunpack.c.h.b16 %v800
        %v1094 = vunpack.c.l.b16 %v801
        %v1095 = vunpack.c.h.b16 %v801
        %v1096 = vunpack.c.l.b16 %v802
        %v1097 = vunpack.c.h.b16 %v802
        %v1098 = vunpack.c.l.b16 %v803
        %v1099 = vunpack.c.h.b16 %v803
        %v1100 = vunpack.c.l.b16 %v804
        %v1101 = vunpack.c.h.b16 %v804
        %v1102 = vunpack.c.l.b16 %v805
        %v1103 = vunpack.c.h.b16 %v805
        %v1104 = vunpack.c.l.b16 %v806
        %v1105 = vunpack.c.h.b16 %v806
        %v1106 = vunpack.c.l.b16 %v807
        %v1107 = vunpack.c.h.b16 %v807
        %v1108 = vunpack.c.l.b16 %v808
        %v1109 = vunpack.c.h.b16 %v808
        %v1110 = vunpack.c.l.b16 %v809
        %v1111 = vunpack.c.h.b16 %v809
        %v1112 = vunpack.c.l.b16 %v810
        %v1113 = vunpack.c.h.b16 %v810
        %v1114 = vunpack.c.l.b16 %v811
        %v1115 = vunpack.c.h.b16 %v811
        %v1116 = vunpack.c.l.b16 %v812
        %v1117 = vunpack.c.h.b16 %v812
        %v1118 = vunpack.c.l.b16 %v813
        %v1119 = vunpack.c.h.b16 %v813
        %v1120 = vunpack.c.l.b16 %v814
        %v1121 = vunpack.c.h.b16 %v814
        %v1122 = vunpack.c.l.b16 %v815
        %v1123 = vunpack.c.h.b16 %v815
        %v1124 = vunpack.c.l.b16 %v816
        %v1125 = vunpack.c.h.b16 %v816
        %v1126 = vunpack.c.l.b16 %v817
        %v1127 = vunpack.c.h.b16 %v817
        %v1128 = vunpack.c.l.b16 %v818
        %v1129 = vunpack.c.h.b16 %v818
        %v1130 = vunpack.c.l.b16 %v819
        %v1131 = vunpack.c.h.b16 %v819
        %v1132 = vunpack.c.l.b16 %v820
        %v1133 = vunpack.c.h.b16 %v820
        %v1134 = vunpack.c.l.b16 %v821
        %v1135 = vunpack.c.h.b16 %v821
        %v1136 = vunpack.c.l.b16 %v822
        %v1137 = vunpack.c.h.b16 %v822
        %v1138 = vunpack.c.l.b16 %v823
        %v1139 = vunpack.c.h.b16 %v823
        %v1140 = vunpack.c.l.b16 %v824
        %v1141 = vunpack.c.h.b16 %v824
        %v1142 = vunpack.c.l.b16 %v825
        %v1143 = vunpack.c.h.b16 %v825
        %v1144 = vunpack.c.l.b16 %v826
        %v1145 = vunpack.c.h.b16 %v826
        %v1146 = vunpack.c.l.b16 %v827
        %v1147 = vunpack.c.h.b16 %v827
        %v1148 = vpack.c.b16 %v962, %v956
        %v1149 = vpack.c.b16 %v963, %v957
        %v1150 = vpack.c.b16 %v964, %v958
        %v1151 = vpack.c.b16 %v965, %v959
        %v1152 = vpack.c.b16 %v966, %v960
        %v1153 = vpack.c.b16 %v967, %v961
        %v1154 = vpack.c.b16 %v974, %v968
        %v1155 = vpack.c.b16 %v975, %v969
        %v1156 = vpack.c.b16 %v976, %v970
        %v1157 = vpack.c.b16 %v977, %v971
        %v1158 = vpack.c.b16 %v978, %v972
        %v1159 = vpack.c.b16 %v979, %v973
        %v1160 = vpack.c.b16 %v986, %v980
        %v1161 = vpack.c.b16 %v987, %v981
        %v1162 = vpack.c.b16 %v988, %v982
        %v1163 = vpack.c.b16 %v989, %v983
        %v1164 = vpack.c.b16 %v990, %v984
        %v1165 = vpack.c.b16 %v991, %v985
        %v1166 = vpack.c.b16 %v998, %v992
        %v1167 = vpack.c.b16 %v999, %v993
        %v1168 = vpack.c.b16 %v1000, %v994
        %v1169 = vpack.c.b16 %v1001, %v995
        %v1170 = vpack.c.b16 %v1002, %v996
        %v1171 = vpack.c.b16 %v1003, %v997
        %v1172 = vpack.c.b16 %v1010, %v1004
        %v1173 = vpack.c.b16 %v1011, %v1005
        %v1174 = vpack.c.b16 %v1012, %v1006
        %v1175 = vpack.c.b16 %v1013, %v1007
        %v1176 = vpack.c.b16 %v1014, %v1008
        %v1177 = vpack.c.b16 %v1015, %v1009
        %v1178 = vpack.c.b16 %v1022, %v1016
        %v1179 = vpack.c.b16 %v1023, %v1017
        %v1180 = vpack.c.b16 %v1024, %v1018
        %v1181 = vpack.c.b16 %v1025, %v1019
        %v1182 = vpack.c.b16 %v1026, %v1020
        %v1183 = vpack.c.b16 %v1027, %v1021
        %v1184 = vpack.c.b16 %v1034, %v1028
        %v1185 = vpack.c.b16 %v1035, %v1029
        %v1186 = vpack.c.b16 %v1036, %v1030
        %v1187 = vpack.c.b16 %v1037, %v1031
        %v1188 = vpack.c.b16 %v1038, %v1032
        %v1189 = vpack.c.b16 %v1039, %v1033
        %v1190 = vpack.c.b16 %v1046, %v1040
        %v1191 = vpack.c.b16 %v1047, %v1041
        %v1192 = vpack.c.b16 %v1048, %v1042
        %v1193 = vpack.c.b16 %v1049, %v1043
        %v1194 = vpack.c.b16 %v1050, %v1044
        %v1195 = vpack.c.b16 %v1051, %v1045
        %v1196 = vpack.c.b16 %v1058, %v1052
        %v1197 = vpack.c.b16 %v1059, %v1053
        %v1198 = vpack.c.b16 %v1060, %v1054
        %v1199 = vpack.c.b16 %v1061, %v1055
        %v1200 = vpack.c.b16 %v1062, %v1056
        %v1201 = vpack.c.b16 %v1063, %v1057
        %v1202 = vpack.c.b16 %v1070, %v1064
        %v1203 = vpack.c.b16 %v1071, %v1065
        %v1204 = vpack.c.b16 %v1072, %v1066
        %v1205 = vpack.c.b16 %v1073, %v1067
        %v1206 = vpack.c.b16 %v1074, %v1068
        %v1207 = vpack.c.b16 %v1075, %v1069
        %v1208 = vpack.c.b16 %v1082, %v1076
        %v1209 = vpack.c.b16 %v1083, %v1077
        %v1210 = vpack.c.b16 %v1084, %v1078
        %v1211 = vpack.c.b16 %v1085, %v1079
        %v1212 = vpack.c.b16 %v1086, %v1080
        %v1213 = vpack.c.b16 %v1087, %v1081
        %v1214 = vpack.c.b16 %v1094, %v1088
        %v1215 = vpack.c.b16 %v1095, %v1089
        %v1216 = vpack.c.b16 %v1096, %v1090
        %v1217 = vpack.c.b16 %v1097, %v1091
        %v1218 = vpack.c.b16 %v1098, %v1092
        %v1219 = vpack.c.b16 %v1099, %v1093
        %v1220 = vpack.c.b16 %v1106, %v1100
        %v1221 = vpack.c.b16 %v1107, %v1101
        %v1222 = vpack.c.b16 %v1108, %v1102
        %v1223 = vpack.c.b16 %v1109, %v1103
        %v1224 = vpack.c.b16 %v1110, %v1104
        %v1225 = vpack.c.b16 %v1111, %v1105
        %v1226 = vpack.c.b16 %v1118, %v1112
        %v1227 = vpack.c.b16 %v1119, %v1113
        %v1228 = vpack.c.b16 %v1120, %v1114
        %v1229 = vpack.c.b16 %v1121, %v1115
        %v1230 = vpack.c.b16 %v1122, %v1116
        %v1231 = vpack.c.b16 %v1123, %v1117
        %v1232 = vpack.c.b16 %v1130, %v1124
        %v1233 = vpack.c.b16 %v1131, %v1125
        %v1234 = vpack.c.b16 %v1132, %v1126
        %v1235 = vpack.c.b16 %v1133, %v1127
        %v1236 = vpack.c.b16 %v1134, %v1128
        %v1237 = vpack.c.b16 %v1135, %v1129
        %v1238 = vpack.c.b16 %v1142, %v1136
        %v1239 = vpack.c.b16 %v1143, %v1137
        %v1240 = vpack.c.b16 %v1144, %v1138
        %v1241 = vpack.c.b16 %v1145, %v1139
        %v1242 = vpack.c.b16 %v1146, %v1140
        %v1243 = vpack.c.b16 %v1147, %v1141
        %1340 = vmatprep.subr.bf16.mxu0 %v1149
        %1341 = vmatpush1.bf16.msra.mxu0 %v1148
        %1342 = vmatprep.subr.bf16.mxu0 %v1155
        %1343 = vmatpush1.bf16.msra.mxu0 %v1154
        %1344 = vmatprep.subr.bf16.mxu0 %v1161
        %1345 = vmatpush1.bf16.msra.mxu0 %v1160
        %1346 = vmatprep.subr.bf16.mxu0 %v1167
        %1347 = vmatpush1.bf16.msra.mxu0 %v1166
        %1348 = vmatprep.subr.bf16.mxu0 %v1173
        %1349 = vmatpush1.bf16.msra.mxu0 %v1172
        %1350 = vmatprep.subr.bf16.mxu0 %v1179
        %1351 = vmatpush1.bf16.msra.mxu0 %v1178
        %1352 = vmatprep.subr.bf16.mxu0 %v1185
        %1353 = vmatpush1.bf16.msra.mxu0 %v1184
        %1354 = vmatprep.subr.bf16.mxu0 %v1191
        %1355 = vmatpush1.bf16.msra.mxu0 %v1190
        %1356 = vmatprep.subr.bf16.mxu0 %v1197
        %1357 = vmatpush1.bf16.msra.mxu0 %v1196
        %1358 = vmatprep.subr.bf16.mxu0 %v1203
        %1359 = vmatpush1.bf16.msra.mxu0 %v1202
        %1360 = vmatprep.subr.bf16.mxu0 %v1209
        %1361 = vmatpush1.bf16.msra.mxu0 %v1208
        %1362 = vmatprep.subr.bf16.mxu0 %v1215
        %1363 = vmatpush1.bf16.msra.mxu0 %v1214
        %1364 = vmatprep.subr.bf16.mxu0 %v1221
        %1365 = vmatpush1.bf16.msra.mxu0 %v1220
        %1366 = vmatprep.subr.bf16.mxu0 %v1227
        %1367 = vmatpush1.bf16.msra.mxu0 %v1226
        %1368 = vmatprep.subr.bf16.mxu0 %v1233
        %1369 = vmatpush1.bf16.msra.mxu0 %v1232
        %1370 = vmatprep.subr.bf16.mxu0 %v1239
        %1371 = vmatpush1.bf16.msra.mxu0 %v1238
        %1372 = vmatprep.mubr.bf16.mxu0 %v731
        %1373 = vmatmul.mubr.bf16.gmra.mrb[0].mxu0 %v730
        %v1374 = vpop.f32.mrb[0].mxu0
        %v1375 = vadd.f32 %v833, %v1374
        %v1376 = vpop.f32.mrb[0].mxu0
        %v1377 = vadd.f32 %v837, %v1376
        %v1378 = vpop.f32.mrb[0].mxu0
        %v1379 = vpop.f32.mrb[0].mxu0
        %1380 = vdwg.mxu0
        %1381 = vmatprep.subr.bf16.mxu0 %v1151
        %1382 = vmatpush1.bf16.msra.mxu0 %v1150
        %1383 = vmatprep.subr.bf16.mxu0 %v1157
        %1384 = vmatpush1.bf16.msra.mxu0 %v1156
        %1385 = vmatprep.subr.bf16.mxu0 %v1163
        %1386 = vmatpush1.bf16.msra.mxu0 %v1162
        %1387 = vmatprep.subr.bf16.mxu0 %v1169
        %1388 = vmatpush1.bf16.msra.mxu0 %v1168
        %1389 = vmatprep.subr.bf16.mxu0 %v1175
        %1390 = vmatpush1.bf16.msra.mxu0 %v1174
        %1391 = vmatprep.subr.bf16.mxu0 %v1181
        %1392 = vmatpush1.bf16.msra.mxu0 %v1180
        %1393 = vmatprep.subr.bf16.mxu0 %v1187
        %1394 = vmatpush1.bf16.msra.mxu0 %v1186
        %1395 = vmatprep.subr.bf16.mxu0 %v1193
        %1396 = vmatpush1.bf16.msra.mxu0 %v1192
        %1397 = vmatprep.subr.bf16.mxu0 %v1199
        %1398 = vmatpush1.bf16.msra.mxu0 %v1198
        %1399 = vmatprep.subr.bf16.mxu0 %v1205
        %1400 = vmatpush1.bf16.msra.mxu0 %v1204
        %1401 = vmatprep.subr.bf16.mxu0 %v1211
        %1402 = vmatpush1.bf16.msra.mxu0 %v1210
        %1403 = vmatprep.subr.bf16.mxu0 %v1217
        %1404 = vmatpush1.bf16.msra.mxu0 %v1216
        %1405 = vmatprep.subr.bf16.mxu0 %v1223
        %1406 = vmatpush1.bf16.msra.mxu0 %v1222
        %1407 = vmatprep.subr.bf16.mxu0 %v1229
        %1408 = vmatpush1.bf16.msra.mxu0 %v1228
        %1409 = vmatprep.subr.bf16.mxu0 %v1235
        %1410 = vmatpush1.bf16.msra.mxu0 %v1234
        %1411 = vmatprep.subr.bf16.mxu0 %v1241
        %1412 = vmatpush1.bf16.msra.mxu0 %v1240
        %1413 = vmatprep.mubr.bf16.mxu0 %v731
        %1414 = vmatmul.mubr.bf16.gmra.mrb[0].mxu0 %v730
        %v1415 = vpop.f32.mrb[0].mxu0
        %v1416 = vadd.f32 %v841, %v1415
        %v1417 = vpop.f32.mrb[0].mxu0
        %v1418 = vadd.f32 %v845, %v1417
        %v1419 = vpop.f32.mrb[0].mxu0
        %v1420 = vpop.f32.mrb[0].mxu0
        %1421 = vdwg.mxu0
        %1422 = vmatprep.subr.bf16.mxu0 %v1153
        %1423 = vmatpush1.bf16.msra.mxu0 %v1152
        %1424 = vmatprep.subr.bf16.mxu0 %v1159
        %1425 = vmatpush1.bf16.msra.mxu0 %v1158
        %1426 = vmatprep.subr.bf16.mxu0 %v1165
        %1427 = vmatpush1.bf16.msra.mxu0 %v1164
        %1428 = vmatprep.subr.bf16.mxu0 %v1171
        %1429 = vmatpush1.bf16.msra.mxu0 %v1170
        %1430 = vmatprep.subr.bf16.mxu0 %v1177
        %1431 = vmatpush1.bf16.msra.mxu0 %v1176
        %1432 = vmatprep.subr.bf16.mxu0 %v1183
        %1433 = vmatpush1.bf16.msra.mxu0 %v1182
        %1434 = vmatprep.subr.bf16.mxu0 %v1189
        %1435 = vmatpush1.bf16.msra.mxu0 %v1188
        %1436 = vmatprep.subr.bf16.mxu0 %v1195
        %1437 = vmatpush1.bf16.msra.mxu0 %v1194
        %1438 = vmatprep.subr.bf16.mxu0 %v1201
        %1439 = vmatpush1.bf16.msra.mxu0 %v1200
        %1440 = vmatprep.subr.bf16.mxu0 %v1207
        %1441 = vmatpush1.bf16.msra.mxu0 %v1206
        %1442 = vmatprep.subr.bf16.mxu0 %v1213
        %1443 = vmatpush1.bf16.msra.mxu0 %v1212
        %1444 = vmatprep.subr.bf16.mxu0 %v1219
        %1445 = vmatpush1.bf16.msra.mxu0 %v1218
        %1446 = vmatprep.subr.bf16.mxu0 %v1225
        %1447 = vmatpush1.bf16.msra.mxu0 %v1224
        %1448 = vmatprep.subr.bf16.mxu0 %v1231
        %1449 = vmatpush1.bf16.msra.mxu0 %v1230
        %1450 = vmatprep.subr.bf16.mxu0 %v1237
        %1451 = vmatpush1.bf16.msra.mxu0 %v1236
        %1452 = vmatprep.subr.bf16.mxu0 %v1243
        %1453 = vmatpush1.bf16.msra.mxu0 %v1242
        %1454 = vmatprep.mubr.bf16.mxu0 %v731
        %1455 = vmatmul.mubr.bf16.gmra.mrb[0].mxu0 %v730
        %v1456 = vpop.f32.mrb[0].mxu0
        %v1457 = vadd.f32 %v849, %v1456
        %v1458 = vpop.f32.mrb[0].mxu0
        %v1459 = vadd.f32 %v853, %v1458
        %v1460 = vpop.f32.mrb[0].mxu0
        %v1461 = vpop.f32.mrb[0].mxu0
        %1462 = vdwg.mxu0
        %vm1463 = vcmask 523264
        %v1465 = vsel %vm1463, %v1375, 0
        %v1468 = vsel %vm1463, %v1416, 0
        %1470 = vmatprep.subr.mxu0 0.0
        %1471 = vmatpush1.xpose.msra.mxu0 %v1468
        %1472 = vmatprep.subr.mxu0 0.0
        %1473 = vmatpush1.xpose.msra.mxu0 0.0
        %1474 = vmatprep.subr.mxu0 0.0
        %1475 = vmatpush1.xpose.msra.mxu0 0.0
        %1476 = vmatprep.subr.mxu0 0.0
        %1477 = vmatpush1.xpose.msra.mxu0 0.0
        %1478 = vmatprep.subr.mxu0 0.0
        %1479 = vmatpush1.xpose.msra.mxu0 0.0
        %1480 = vmatprep.subr.mxu0 0.0
        %1481 = vmatpush1.xpose.msra.mxu0 0.0
        %1482 = vmatprep.subr.mxu0 0.0
        %1483 = vmatpush1.xpose.msra.mxu0 0.0
        %1484 = vmatprep.subr.mxu0 0.0
        %1485 = vmatpush1.xpose.msra.mxu0 0.0
        %1486 = vmatprep.subr.mxu0 0.0
        %1487 = vmatpush1.xpose.msra.mxu0 0.0
        %1488 = vmatprep.subr.mxu0 0.0
        %1489 = vmatpush1.xpose.msra.mxu0 0.0
        %1490 = vmatprep.subr.mxu0 0.0
        %1491 = vmatpush1.xpose.msra.mxu0 0.0
        %1492 = vmatprep.subr.mxu0 0.0
        %1493 = vmatpush1.xpose.msra.mxu0 0.0
        %1494 = vmatprep.subr.mxu0 0.0
        %1495 = vmatpush1.xpose.msra.mxu0 0.0
        %1496 = vmatprep.subr.mxu0 0.0
        %1497 = vmatpush1.xpose.msra.mxu0 0.0
        %1498 = vmatprep.subr.mxu0 0.0
        %1499 = vmatpush1.xpose.msra.mxu0 0.0
        %1500 = vmatprep.subr.mxu0 0.0
        %1501 = vmatpush1.xpose.msra.mxu0 0.0
        %1502 = vmatprep.subr.mxu0 0.0
        %1503 = vmatpush1.xpose.msra.mxu0 0.0
        %1504 = vmatprep.subr.mxu0 0.0
        %1505 = vmatpush1.xpose.msra.mxu0 0.0
        %1506 = vmatprep.subr.mxu0 0.0
        %1507 = vmatpush1.xpose.msra.mxu0 0.0
        %1508 = vmatprep.subr.mxu0 0.0
        %1509 = vmatpush1.xpose.msra.mxu0 0.0
        %1510 = vmatprep.subr.mxu0 0.0
        %1511 = vmatpush1.xpose.msra.mxu0 0.0
        %1512 = vmatprep.subr.mxu0 0.0
        %1513 = vmatpush1.xpose.msra.mxu0 0.0
        %1514 = vmatprep.subr.mxu0 0.0
        %1515 = vmatpush1.xpose.msra.mxu0 0.0
        %1516 = vmatprep.subr.mxu0 0.0
        %1517 = vmatpush1.xpose.msra.mxu0 0.0
        %1518 = vmatprep.subr.mxu0 0.0
        %1519 = vmatpush1.xpose.msra.mxu0 0.0
        %1520 = vmatprep.subr.mxu0 0.0
        %1521 = vmatpush1.xpose.msra.mxu0 0.0
        %1522 = vmatprep.subr.mxu0 0.0
        %1523 = vmatpush1.xpose.msra.mxu0 0.0
        %1524 = vmatprep.subr.mxu0 0.0
        %1525 = vmatpush1.xpose.msra.mxu0 0.0
        %1526 = vmatprep.subr.mxu0 0.0
        %1527 = vmatpush1.xpose.msra.mxu0 0.0
        %1528 = vmatprep.subr.mxu0 0.0
        %1529 = vmatpush1.xpose.msra.mxu0 0.0
        %1530 = vmatprep.subr.mxu0 0.0
        %1531 = vmatpush1.xpose.msra.mxu0 0.0
        %1532 = vmatprep.subr.mxu0 0.0
        %1533 = vmatpush1.xpose.msra.mxu0 0.0
        %1534 = vmatprep.mubr.f32.mxu0 0.0
        %1535 = vmatmul.mubr.f32.gmra.mrb[0].mxu0 %v1465
        %v1536 = vpop.f32.mrb[0].mxu0
        %v1537 = vadd.f32 0.0, %v1536
        %v1538 = vpop.f32.mrb[0].mxu0
        %1539 = vdwg.mxu0
        %v1540 = vmul.f32 %v1537, 0.125
        %v1542 = vlaneseq
        %v1543 = vshrl.u32 %v1542, 7
        %v1544 = vsub.s32 0, %v1543
        %v1545 = vrot.slane %v729, %v1544
        %v1547 = vadd.f32 %v1540, %v1545
        %vm1548 = vcmask 64512
        %v1549 = vsel %vm1548, %v1547, -inf
        %1550 = vmax.xlane.f32.xlu0 %v1549
        %v1551 = vpop.xlane.xlu0 %1550
        %v1552 = vsub.f32 %v1547, %v1551
        %v1553 = vmul.f32 %v1552, 1.442695
        %v1554 = vpow.pop %v1553
        %v1555 = vsel %vm1548, %v1554, 0.0
        %1556 = vadd.xlane.f32.xlu0 %v1555
        %v1557 = vpop.xlane.xlu0 %1556
        %v1558 = vrcp.pop %v1557
        %v1559 = vmul.f32 %v1554, %v1558
        %v1561 = vsel %vm1548, %v1559, 0
        %1563 = vmatprep.subr.mxu0 0.0
        %1564 = vmatpush1.msra.mxu0 %v1457
        %1565 = vmatprep.subr.mxu0 0.0
        %1566 = vmatpush1.msra.mxu0 0.0
        %1567 = vmatprep.subr.mxu0 0.0
        %1568 = vmatpush1.msra.mxu0 0.0
        %1569 = vmatprep.subr.mxu0 0.0
        %1570 = vmatpush1.msra.mxu0 0.0
        %1571 = vmatprep.subr.mxu0 0.0
        %1572 = vmatpush1.msra.mxu0 0.0
        %1573 = vmatprep.subr.mxu0 0.0
        %1574 = vmatpush1.msra.mxu0 0.0
        %1575 = vmatprep.subr.mxu0 0.0
        %1576 = vmatpush1.msra.mxu0 0.0
        %1577 = vmatprep.subr.mxu0 0.0
        %1578 = vmatpush1.msra.mxu0 0.0
        %1579 = vmatprep.subr.mxu0 0.0
        %1580 = vmatpush1.msra.mxu0 0.0
        %1581 = vmatprep.subr.mxu0 0.0
        %1582 = vmatpush1.msra.mxu0 0.0
        %1583 = vmatprep.subr.mxu0 0.0
        %1584 = vmatpush1.msra.mxu0 0.0
        %1585 = vmatprep.subr.mxu0 0.0
        %1586 = vmatpush1.msra.mxu0 0.0
        %1587 = vmatprep.subr.mxu0 0.0
        %1588 = vmatpush1.msra.mxu0 0.0
        %1589 = vmatprep.subr.mxu0 0.0
        %1590 = vmatpush1.msra.mxu0 0.0
        %1591 = vmatprep.subr.mxu0 0.0
        %1592 = vmatpush1.msra.mxu0 0.0
        %1593 = vmatprep.subr.mxu0 0.0
        %1594 = vmatpush1.msra.mxu0 0.0
        %1595 = vmatprep.subr.mxu0 0.0
        %1596 = vmatpush1.msra.mxu0 0.0
        %1597 = vmatprep.subr.mxu0 0.0
        %1598 = vmatpush1.msra.mxu0 0.0
        %1599 = vmatprep.subr.mxu0 0.0
        %1600 = vmatpush1.msra.mxu0 0.0
        %1601 = vmatprep.subr.mxu0 0.0
        %1602 = vmatpush1.msra.mxu0 0.0
        %1603 = vmatprep.subr.mxu0 0.0
        %1604 = vmatpush1.msra.mxu0 0.0
        %1605 = vmatprep.subr.mxu0 0.0
        %1606 = vmatpush1.msra.mxu0 0.0
        %1607 = vmatprep.subr.mxu0 0.0
        %1608 = vmatpush1.msra.mxu0 0.0
        %1609 = vmatprep.subr.mxu0 0.0
        %1610 = vmatpush1.msra.mxu0 0.0
        %1611 = vmatprep.subr.mxu0 0.0
        %1612 = vmatpush1.msra.mxu0 0.0
        %1613 = vmatprep.subr.mxu0 0.0
        %1614 = vmatpush1.msra.mxu0 0.0
        %1615 = vmatprep.subr.mxu0 0.0
        %1616 = vmatpush1.msra.mxu0 0.0
        %1617 = vmatprep.subr.mxu0 0.0
        %1618 = vmatpush1.msra.mxu0 0.0
        %1619 = vmatprep.subr.mxu0 0.0
        %1620 = vmatpush1.msra.mxu0 0.0
        %1621 = vmatprep.subr.mxu0 0.0
        %1622 = vmatpush1.msra.mxu0 0.0
        %1623 = vmatprep.subr.mxu0 0.0
        %1624 = vmatpush1.msra.mxu0 0.0
        %1625 = vmatprep.subr.mxu0 0.0
        %1626 = vmatpush1.msra.mxu0 0.0
        %1627 = vmatprep.mubr.f32.mxu0 0.0
        %1628 = vmatmul.mubr.f32.gmra.mrb[0].mxu0 %v1561
        %v1629 = vpop.f32.mrb[0].mxu0
        %v1630 = vadd.f32 0.0, %v1629
        %v1631 = vpop.f32.mrb[0].mxu0
        %1632 = vdwg.mxu0
        %1633 = vrot.lane.b32.xlu0 %v1375, 64
        %v1634 = vpop.permute.xlu0 %1633
        %1635 = vrot.lane.b32.xlu0 %v1416, 64
        %v1636 = vpop.permute.xlu0 %1635
        %v1637 = vsel %vm1463, %v1634, 0
        %v1639 = vsel %vm1463, %v1636, 0
        %1641 = vmatprep.subr.mxu0 0.0
        %1642 = vmatpush1.xpose.msra.mxu0 %v1639
        %1643 = vmatprep.subr.mxu0 0.0
        %1644 = vmatpush1.xpose.msra.mxu0 0.0
        %1645 = vmatprep.subr.mxu0 0.0
        %1646 = vmatpush1.xpose.msra.mxu0 0.0
        %1647 = vmatprep.subr.mxu0 0.0
        %1648 = vmatpush1.xpose.msra.mxu0 0.0
        %1649 = vmatprep.subr.mxu0 0.0
        %1650 = vmatpush1.xpose.msra.mxu0 0.0
        %1651 = vmatprep.subr.mxu0 0.0
        %1652 = vmatpush1.xpose.msra.mxu0 0.0
        %1653 = vmatprep.subr.mxu0 0.0
        %1654 = vmatpush1.xpose.msra.mxu0 0.0
        %1655 = vmatprep.subr.mxu0 0.0
        %1656 = vmatpush1.xpose.msra.mxu0 0.0
        %1657 = vmatprep.subr.mxu0 0.0
        %1658 = vmatpush1.xpose.msra.mxu0 0.0
        %1659 = vmatprep.subr.mxu0 0.0
        %1660 = vmatpush1.xpose.msra.mxu0 0.0
        %1661 = vmatprep.subr.mxu0 0.0
        %1662 = vmatpush1.xpose.msra.mxu0 0.0
        %1663 = vmatprep.subr.mxu0 0.0
        %1664 = vmatpush1.xpose.msra.mxu0 0.0
        %1665 = vmatprep.subr.mxu0 0.0
        %1666 = vmatpush1.xpose.msra.mxu0 0.0
        %1667 = vmatprep.subr.mxu0 0.0
        %1668 = vmatpush1.xpose.msra.mxu0 0.0
        %1669 = vmatprep.subr.mxu0 0.0
        %1670 = vmatpush1.xpose.msra.mxu0 0.0
        %1671 = vmatprep.subr.mxu0 0.0
        %1672 = vmatpush1.xpose.msra.mxu0 0.0
        %1673 = vmatprep.subr.mxu0 0.0
        %1674 = vmatpush1.xpose.msra.mxu0 0.0
        %1675 = vmatprep.subr.mxu0 0.0
        %1676 = vmatpush1.xpose.msra.mxu0 0.0
        %1677 = vmatprep.subr.mxu0 0.0
        %1678 = vmatpush1.xpose.msra.mxu0 0.0
        %1679 = vmatprep.subr.mxu0 0.0
        %1680 = vmatpush1.xpose.msra.mxu0 0.0
        %1681 = vmatprep.subr.mxu0 0.0
        %1682 = vmatpush1.xpose.msra.mxu0 0.0
        %1683 = vmatprep.subr.mxu0 0.0
        %1684 = vmatpush1.xpose.msra.mxu0 0.0
        %1685 = vmatprep.subr.mxu0 0.0
        %1686 = vmatpush1.xpose.msra.mxu0 0.0
        %1687 = vmatprep.subr.mxu0 0.0
        %1688 = vmatpush1.xpose.msra.mxu0 0.0
        %1689 = vmatprep.subr.mxu0 0.0
        %1690 = vmatpush1.xpose.msra.mxu0 0.0
        %1691 = vmatprep.subr.mxu0 0.0
        %1692 = vmatpush1.xpose.msra.mxu0 0.0
        %1693 = vmatprep.subr.mxu0 0.0
        %1694 = vmatpush1.xpose.msra.mxu0 0.0
        %1695 = vmatprep.subr.mxu0 0.0
        %1696 = vmatpush1.xpose.msra.mxu0 0.0
        %1697 = vmatprep.subr.mxu0 0.0
        %1698 = vmatpush1.xpose.msra.mxu0 0.0
        %1699 = vmatprep.subr.mxu0 0.0
        %1700 = vmatpush1.xpose.msra.mxu0 0.0
        %1701 = vmatprep.subr.mxu0 0.0
        %1702 = vmatpush1.xpose.msra.mxu0 0.0
        %1703 = vmatprep.subr.mxu0 0.0
        %1704 = vmatpush1.xpose.msra.mxu0 0.0
        %1705 = vmatprep.mubr.f32.mxu0 0.0
        %1706 = vmatmul.mubr.f32.gmra.mrb[0].mxu0 %v1637
        %v1707 = vpop.f32.mrb[0].mxu0
        %v1708 = vadd.f32 0.0, %v1707
        %v1709 = vpop.f32.mrb[0].mxu0
        %1710 = vdwg.mxu0
        %v1711 = vmul.f32 %v1708, 0.125
        %v1712 = vadd.f32 %v1711, %v1545
        %v1713 = vsel %vm1548, %v1712, -inf
        %1714 = vmax.xlane.f32.xlu0 %v1713
        %v1715 = vpop.xlane.xlu0 %1714
        %v1716 = vsub.f32 %v1712, %v1715
        %v1717 = vmul.f32 %v1716, 1.442695
        %v1718 = vpow.pop %v1717
        %v1719 = vsel %vm1548, %v1718, 0.0
        %1720 = vadd.xlane.f32.xlu0 %v1719
        %v1721 = vpop.xlane.xlu0 %1720
        %v1722 = vrcp.pop %v1721
        %v1723 = vmul.f32 %v1718, %v1722
        %1725 = vrot.lane.b32.xlu0 %v1457, 64
        %v1726 = vpop.permute.xlu0 %1725
        %v1729 = vsel %vm1548, %v1723, 0
        %1731 = vmatprep.subr.mxu0 0.0
        %1732 = vmatpush1.msra.mxu0 %v1726
        %1733 = vmatprep.subr.mxu0 0.0
        %1734 = vmatpush1.msra.mxu0 0.0
        %1735 = vmatprep.subr.mxu0 0.0
        %1736 = vmatpush1.msra.mxu0 0.0
        %1737 = vmatprep.subr.mxu0 0.0
        %1738 = vmatpush1.msra.mxu0 0.0
        %1739 = vmatprep.subr.mxu0 0.0
        %1740 = vmatpush1.msra.mxu0 0.0
        %1741 = vmatprep.subr.mxu0 0.0
        %1742 = vmatpush1.msra.mxu0 0.0
        %1743 = vmatprep.subr.mxu0 0.0
        %1744 = vmatpush1.msra.mxu0 0.0
        %1745 = vmatprep.subr.mxu0 0.0
        %1746 = vmatpush1.msra.mxu0 0.0
        %1747 = vmatprep.subr.mxu0 0.0
        %1748 = vmatpush1.msra.mxu0 0.0
        %1749 = vmatprep.subr.mxu0 0.0
        %1750 = vmatpush1.msra.mxu0 0.0
        %1751 = vmatprep.subr.mxu0 0.0
        %1752 = vmatpush1.msra.mxu0 0.0
        %1753 = vmatprep.subr.mxu0 0.0
        %1754 = vmatpush1.msra.mxu0 0.0
        %1755 = vmatprep.subr.mxu0 0.0
        %1756 = vmatpush1.msra.mxu0 0.0
        %1757 = vmatprep.subr.mxu0 0.0
        %1758 = vmatpush1.msra.mxu0 0.0
        %1759 = vmatprep.subr.mxu0 0.0
        %1760 = vmatpush1.msra.mxu0 0.0
        %1761 = vmatprep.subr.mxu0 0.0
        %1762 = vmatpush1.msra.mxu0 0.0
        %1763 = vmatprep.subr.mxu0 0.0
        %1764 = vmatpush1.msra.mxu0 0.0
        %1765 = vmatprep.subr.mxu0 0.0
        %1766 = vmatpush1.msra.mxu0 0.0
        %1767 = vmatprep.subr.mxu0 0.0
        %1768 = vmatpush1.msra.mxu0 0.0
        %1769 = vmatprep.subr.mxu0 0.0
        %1770 = vmatpush1.msra.mxu0 0.0
        %1771 = vmatprep.subr.mxu0 0.0
        %1772 = vmatpush1.msra.mxu0 0.0
        %1773 = vmatprep.subr.mxu0 0.0
        %1774 = vmatpush1.msra.mxu0 0.0
        %1775 = vmatprep.subr.mxu0 0.0
        %1776 = vmatpush1.msra.mxu0 0.0
        %1777 = vmatprep.subr.mxu0 0.0
        %1778 = vmatpush1.msra.mxu0 0.0
        %1779 = vmatprep.subr.mxu0 0.0
        %1780 = vmatpush1.msra.mxu0 0.0
        %1781 = vmatprep.subr.mxu0 0.0
        %1782 = vmatpush1.msra.mxu0 0.0
        %1783 = vmatprep.subr.mxu0 0.0
        %1784 = vmatpush1.msra.mxu0 0.0
        %1785 = vmatprep.subr.mxu0 0.0
        %1786 = vmatpush1.msra.mxu0 0.0
        %1787 = vmatprep.subr.mxu0 0.0
        %1788 = vmatpush1.msra.mxu0 0.0
        %1789 = vmatprep.subr.mxu0 0.0
        %1790 = vmatpush1.msra.mxu0 0.0
        %1791 = vmatprep.subr.mxu0 0.0
        %1792 = vmatpush1.msra.mxu0 0.0
        %1793 = vmatprep.subr.mxu0 0.0
        %1794 = vmatpush1.msra.mxu0 0.0
        %1795 = vmatprep.mubr.f32.mxu0 0.0
        %1796 = vmatmul.mubr.f32.gmra.mrb[0].mxu0 %v1729
        %v1797 = vpop.f32.mrb[0].mxu0
        %v1798 = vadd.f32 0.0, %v1797
        %v1799 = vpop.f32.mrb[0].mxu0
        %1800 = vdwg.mxu0
        %v1802 = vsel %vm1463, %v1377, 0
        %v1805 = vsel %vm1463, %v1418, 0
        %1807 = vmatprep.subr.mxu0 0.0
        %1808 = vmatpush1.xpose.msra.mxu0 %v1805
        %1809 = vmatprep.subr.mxu0 0.0
        %1810 = vmatpush1.xpose.msra.mxu0 0.0
        %1811 = vmatprep.subr.mxu0 0.0
        %1812 = vmatpush1.xpose.msra.mxu0 0.0
        %1813 = vmatprep.subr.mxu0 0.0
        %1814 = vmatpush1.xpose.msra.mxu0 0.0
        %1815 = vmatprep.subr.mxu0 0.0
        %1816 = vmatpush1.xpose.msra.mxu0 0.0
        %1817 = vmatprep.subr.mxu0 0.0
        %1818 = vmatpush1.xpose.msra.mxu0 0.0
        %1819 = vmatprep.subr.mxu0 0.0
        %1820 = vmatpush1.xpose.msra.mxu0 0.0
        %1821 = vmatprep.subr.mxu0 0.0
        %1822 = vmatpush1.xpose.msra.mxu0 0.0
        %1823 = vmatprep.subr.mxu0 0.0
        %1824 = vmatpush1.xpose.msra.mxu0 0.0
        %1825 = vmatprep.subr.mxu0 0.0
        %1826 = vmatpush1.xpose.msra.mxu0 0.0
        %1827 = vmatprep.subr.mxu0 0.0
        %1828 = vmatpush1.xpose.msra.mxu0 0.0
        %1829 = vmatprep.subr.mxu0 0.0
        %1830 = vmatpush1.xpose.msra.mxu0 0.0
        %1831 = vmatprep.subr.mxu0 0.0
        %1832 = vmatpush1.xpose.msra.mxu0 0.0
        %1833 = vmatprep.subr.mxu0 0.0
        %1834 = vmatpush1.xpose.msra.mxu0 0.0
        %1835 = vmatprep.subr.mxu0 0.0
        %1836 = vmatpush1.xpose.msra.mxu0 0.0
        %1837 = vmatprep.subr.mxu0 0.0
        %1838 = vmatpush1.xpose.msra.mxu0 0.0
        %1839 = vmatprep.subr.mxu0 0.0
        %1840 = vmatpush1.xpose.msra.mxu0 0.0
        %1841 = vmatprep.subr.mxu0 0.0
        %1842 = vmatpush1.xpose.msra.mxu0 0.0
        %1843 = vmatprep.subr.mxu0 0.0
        %1844 = vmatpush1.xpose.msra.mxu0 0.0
        %1845 = vmatprep.subr.mxu0 0.0
        %1846 = vmatpush1.xpose.msra.mxu0 0.0
        %1847 = vmatprep.subr.mxu0 0.0
        %1848 = vmatpush1.xpose.msra.mxu0 0.0
        %1849 = vmatprep.subr.mxu0 0.0
        %1850 = vmatpush1.xpose.msra.mxu0 0.0
        %1851 = vmatprep.subr.mxu0 0.0
        %1852 = vmatpush1.xpose.msra.mxu0 0.0
        %1853 = vmatprep.subr.mxu0 0.0
        %1854 = vmatpush1.xpose.msra.mxu0 0.0
        %1855 = vmatprep.subr.mxu0 0.0
        %1856 = vmatpush1.xpose.msra.mxu0 0.0
        %1857 = vmatprep.subr.mxu0 0.0
        %1858 = vmatpush1.xpose.msra.mxu0 0.0
        %1859 = vmatprep.subr.mxu0 0.0
        %1860 = vmatpush1.xpose.msra.mxu0 0.0
        %1861 = vmatprep.subr.mxu0 0.0
        %1862 = vmatpush1.xpose.msra.mxu0 0.0
        %1863 = vmatprep.subr.mxu0 0.0
        %1864 = vmatpush1.xpose.msra.mxu0 0.0
        %1865 = vmatprep.subr.mxu0 0.0
        %1866 = vmatpush1.xpose.msra.mxu0 0.0
        %1867 = vmatprep.subr.mxu0 0.0
        %1868 = vmatpush1.xpose.msra.mxu0 0.0
        %1869 = vmatprep.subr.mxu0 0.0
        %1870 = vmatpush1.xpose.msra.mxu0 0.0
        %1871 = vmatprep.mubr.f32.mxu0 0.0
        %1872 = vmatmul.mubr.f32.gmra.mrb[0].mxu0 %v1802
        %v1873 = vpop.f32.mrb[0].mxu0
        %v1874 = vadd.f32 0.0, %v1873
        %v1875 = vpop.f32.mrb[0].mxu0
        %1876 = vdwg.mxu0
        %v1877 = vmul.f32 %v1874, 0.125
        %v1878 = vadd.f32 %v1877, %v1545
        %v1879 = vsel %vm1548, %v1878, -inf
        %1880 = vmax.xlane.f32.xlu0 %v1879
        %v1881 = vpop.xlane.xlu0 %1880
        %v1882 = vsub.f32 %v1878, %v1881
        %v1883 = vmul.f32 %v1882, 1.442695
        %v1884 = vpow.pop %v1883
        %v1885 = vsel %vm1548, %v1884, 0.0
        %1886 = vadd.xlane.f32.xlu0 %v1885
        %v1887 = vpop.xlane.xlu0 %1886
        %v1888 = vrcp.pop %v1887
        %v1889 = vmul.f32 %v1884, %v1888
        %v1891 = vsel %vm1548, %v1889, 0
        %1893 = vmatprep.subr.mxu0 0.0
        %1894 = vmatpush1.msra.mxu0 %v1459
        %1895 = vmatprep.subr.mxu0 0.0
        %1896 = vmatpush1.msra.mxu0 0.0
        %1897 = vmatprep.subr.mxu0 0.0
        %1898 = vmatpush1.msra.mxu0 0.0
        %1899 = vmatprep.subr.mxu0 0.0
        %1900 = vmatpush1.msra.mxu0 0.0
        %1901 = vmatprep.subr.mxu0 0.0
        %1902 = vmatpush1.msra.mxu0 0.0
        %1903 = vmatprep.subr.mxu0 0.0
        %1904 = vmatpush1.msra.mxu0 0.0
        %1905 = vmatprep.subr.mxu0 0.0
        %1906 = vmatpush1.msra.mxu0 0.0
        %1907 = vmatprep.subr.mxu0 0.0
        %1908 = vmatpush1.msra.mxu0 0.0
        %1909 = vmatprep.subr.mxu0 0.0
        %1910 = vmatpush1.msra.mxu0 0.0
        %1911 = vmatprep.subr.mxu0 0.0
        %1912 = vmatpush1.msra.mxu0 0.0
        %1913 = vmatprep.subr.mxu0 0.0
        %1914 = vmatpush1.msra.mxu0 0.0
        %1915 = vmatprep.subr.mxu0 0.0
        %1916 = vmatpush1.msra.mxu0 0.0
        %1917 = vmatprep.subr.mxu0 0.0
        %1918 = vmatpush1.msra.mxu0 0.0
        %1919 = vmatprep.subr.mxu0 0.0
        %1920 = vmatpush1.msra.mxu0 0.0
        %1921 = vmatprep.subr.mxu0 0.0
        %1922 = vmatpush1.msra.mxu0 0.0
        %1923 = vmatprep.subr.mxu0 0.0
        %1924 = vmatpush1.msra.mxu0 0.0
        %1925 = vmatprep.subr.mxu0 0.0
        %1926 = vmatpush1.msra.mxu0 0.0
        %1927 = vmatprep.subr.mxu0 0.0
        %1928 = vmatpush1.msra.mxu0 0.0
        %1929 = vmatprep.subr.mxu0 0.0
        %1930 = vmatpush1.msra.mxu0 0.0
        %1931 = vmatprep.subr.mxu0 0.0
        %1932 = vmatpush1.msra.mxu0 0.0
        %1933 = vmatprep.subr.mxu0 0.0
        %1934 = vmatpush1.msra.mxu0 0.0
        %1935 = vmatprep.subr.mxu0 0.0
        %1936 = vmatpush1.msra.mxu0 0.0
        %1937 = vmatprep.subr.mxu0 0.0
        %1938 = vmatpush1.msra.mxu0 0.0
        %1939 = vmatprep.subr.mxu0 0.0
        %1940 = vmatpush1.msra.mxu0 0.0
        %1941 = vmatprep.subr.mxu0 0.0
        %1942 = vmatpush1.msra.mxu0 0.0
        %1943 = vmatprep.subr.mxu0 0.0
        %1944 = vmatpush1.msra.mxu0 0.0
        %1945 = vmatprep.subr.mxu0 0.0
        %1946 = vmatpush1.msra.mxu0 0.0
        %1947 = vmatprep.subr.mxu0 0.0
        %1948 = vmatpush1.msra.mxu0 0.0
        %1949 = vmatprep.subr.mxu0 0.0
        %1950 = vmatpush1.msra.mxu0 0.0
        %1951 = vmatprep.subr.mxu0 0.0
        %1952 = vmatpush1.msra.mxu0 0.0
        %1953 = vmatprep.subr.mxu0 0.0
        %1954 = vmatpush1.msra.mxu0 0.0
        %1955 = vmatprep.subr.mxu0 0.0
        %1956 = vmatpush1.msra.mxu0 0.0
        %1957 = vmatprep.mubr.f32.mxu0 0.0
        %1958 = vmatmul.mubr.f32.gmra.mrb[0].mxu0 %v1891
        %v1959 = vpop.f32.mrb[0].mxu0
        %v1960 = vadd.f32 0.0, %v1959
        %v1961 = vpop.f32.mrb[0].mxu0
        %1962 = vdwg.mxu0
        %1963 = vrot.lane.b32.xlu0 %v1377, 64
        %v1964 = vpop.permute.xlu0 %1963
        %1965 = vrot.lane.b32.xlu0 %v1418, 64
        %v1966 = vpop.permute.xlu0 %1965
        %v1967 = vsel %vm1463, %v1964, 0
        %v1969 = vsel %vm1463, %v1966, 0
        %1971 = vmatprep.subr.mxu0 0.0
        %1972 = vmatpush1.xpose.msra.mxu0 %v1969
        %1973 = vmatprep.subr.mxu0 0.0
        %1974 = vmatpush1.xpose.msra.mxu0 0.0
        %1975 = vmatprep.subr.mxu0 0.0
        %1976 = vmatpush1.xpose.msra.mxu0 0.0
        %1977 = vmatprep.subr.mxu0 0.0
        %1978 = vmatpush1.xpose.msra.mxu0 0.0
        %1979 = vmatprep.subr.mxu0 0.0
        %1980 = vmatpush1.xpose.msra.mxu0 0.0
        %1981 = vmatprep.subr.mxu0 0.0
        %1982 = vmatpush1.xpose.msra.mxu0 0.0
        %1983 = vmatprep.subr.mxu0 0.0
        %1984 = vmatpush1.xpose.msra.mxu0 0.0
        %1985 = vmatprep.subr.mxu0 0.0
        %1986 = vmatpush1.xpose.msra.mxu0 0.0
        %1987 = vmatprep.subr.mxu0 0.0
        %1988 = vmatpush1.xpose.msra.mxu0 0.0
        %1989 = vmatprep.subr.mxu0 0.0
        %1990 = vmatpush1.xpose.msra.mxu0 0.0
        %1991 = vmatprep.subr.mxu0 0.0
        %1992 = vmatpush1.xpose.msra.mxu0 0.0
        %1993 = vmatprep.subr.mxu0 0.0
        %1994 = vmatpush1.xpose.msra.mxu0 0.0
        %1995 = vmatprep.subr.mxu0 0.0
        %1996 = vmatpush1.xpose.msra.mxu0 0.0
        %1997 = vmatprep.subr.mxu0 0.0
        %1998 = vmatpush1.xpose.msra.mxu0 0.0
        %1999 = vmatprep.subr.mxu0 0.0
        %2000 = vmatpush1.xpose.msra.mxu0 0.0
        %2001 = vmatprep.subr.mxu0 0.0
        %2002 = vmatpush1.xpose.msra.mxu0 0.0
        %2003 = vmatprep.subr.mxu0 0.0
        %2004 = vmatpush1.xpose.msra.mxu0 0.0
        %2005 = vmatprep.subr.mxu0 0.0
        %2006 = vmatpush1.xpose.msra.mxu0 0.0
        %2007 = vmatprep.subr.mxu0 0.0
        %2008 = vmatpush1.xpose.msra.mxu0 0.0
        %2009 = vmatprep.subr.mxu0 0.0
        %2010 = vmatpush1.xpose.msra.mxu0 0.0
        %2011 = vmatprep.subr.mxu0 0.0
        %2012 = vmatpush1.xpose.msra.mxu0 0.0
        %2013 = vmatprep.subr.mxu0 0.0
        %2014 = vmatpush1.xpose.msra.mxu0 0.0
        %2015 = vmatprep.subr.mxu0 0.0
        %2016 = vmatpush1.xpose.msra.mxu0 0.0
        %2017 = vmatprep.subr.mxu0 0.0
        %2018 = vmatpush1.xpose.msra.mxu0 0.0
        %2019 = vmatprep.subr.mxu0 0.0
        %2020 = vmatpush1.xpose.msra.mxu0 0.0
        %2021 = vmatprep.subr.mxu0 0.0
        %2022 = vmatpush1.xpose.msra.mxu0 0.0
        %2023 = vmatprep.subr.mxu0 0.0
        %2024 = vmatpush1.xpose.msra.mxu0 0.0
        %2025 = vmatprep.subr.mxu0 0.0
        %2026 = vmatpush1.xpose.msra.mxu0 0.0
        %2027 = vmatprep.subr.mxu0 0.0
        %2028 = vmatpush1.xpose.msra.mxu0 0.0
        %2029 = vmatprep.subr.mxu0 0.0
        %2030 = vmatpush1.xpose.msra.mxu0 0.0
        %2031 = vmatprep.subr.mxu0 0.0
        %2032 = vmatpush1.xpose.msra.mxu0 0.0
        %2033 = vmatprep.subr.mxu0 0.0
        %2034 = vmatpush1.xpose.msra.mxu0 0.0
        %2035 = vmatprep.mubr.f32.mxu0 0.0
        %2036 = vmatmul.mubr.f32.gmra.mrb[0].mxu0 %v1967
        %v2037 = vpop.f32.mrb[0].mxu0
        %v2038 = vadd.f32 0.0, %v2037
        %v2039 = vpop.f32.mrb[0].mxu0
        %2040 = vdwg.mxu0
        %v2041 = vmul.f32 %v2038, 0.125
        %v2042 = vadd.f32 %v2041, %v1545
        %v2043 = vsel %vm1548, %v2042, -inf
        %2044 = vmax.xlane.f32.xlu0 %v2043
        %v2045 = vpop.xlane.xlu0 %2044
        %v2046 = vsub.f32 %v2042, %v2045
        %v2047 = vmul.f32 %v2046, 1.442695
        %v2048 = vpow.pop %v2047
        %v2049 = vsel %vm1548, %v2048, 0.0
        %2050 = vadd.xlane.f32.xlu0 %v2049
        %v2051 = vpop.xlane.xlu0 %2050
        %v2052 = vrcp.pop %v2051
        %v2053 = vmul.f32 %v2048, %v2052
        %2055 = vrot.lane.b32.xlu0 %v1459, 64
        %v2056 = vpop.permute.xlu0 %2055
        %v2059 = vsel %vm1548, %v2053, 0
        %2061 = vmatprep.subr.mxu0 0.0
        %2062 = vmatpush1.msra.mxu0 %v2056
        %2063 = vmatprep.subr.mxu0 0.0
        %2064 = vmatpush1.msra.mxu0 0.0
        %2065 = vmatprep.subr.mxu0 0.0
        %2066 = vmatpush1.msra.mxu0 0.0
        %2067 = vmatprep.subr.mxu0 0.0
        %2068 = vmatpush1.msra.mxu0 0.0
        %2069 = vmatprep.subr.mxu0 0.0
        %2070 = vmatpush1.msra.mxu0 0.0
        %2071 = vmatprep.subr.mxu0 0.0
        %2072 = vmatpush1.msra.mxu0 0.0
        %2073 = vmatprep.subr.mxu0 0.0
        %2074 = vmatpush1.msra.mxu0 0.0
        %2075 = vmatprep.subr.mxu0 0.0
        %2076 = vmatpush1.msra.mxu0 0.0
        %2077 = vmatprep.subr.mxu0 0.0
        %2078 = vmatpush1.msra.mxu0 0.0
        %2079 = vmatprep.subr.mxu0 0.0
        %2080 = vmatpush1.msra.mxu0 0.0
        %2081 = vmatprep.subr.mxu0 0.0
        %2082 = vmatpush1.msra.mxu0 0.0
        %2083 = vmatprep.subr.mxu0 0.0
        %2084 = vmatpush1.msra.mxu0 0.0
        %2085 = vmatprep.subr.mxu0 0.0
        %2086 = vmatpush1.msra.mxu0 0.0
        %2087 = vmatprep.subr.mxu0 0.0
        %2088 = vmatpush1.msra.mxu0 0.0
        %2089 = vmatprep.subr.mxu0 0.0
        %2090 = vmatpush1.msra.mxu0 0.0
        %2091 = vmatprep.subr.mxu0 0.0
        %2092 = vmatpush1.msra.mxu0 0.0
        %2093 = vmatprep.subr.mxu0 0.0
        %2094 = vmatpush1.msra.mxu0 0.0
        %2095 = vmatprep.subr.mxu0 0.0
        %2096 = vmatpush1.msra.mxu0 0.0
        %2097 = vmatprep.subr.mxu0 0.0
        %2098 = vmatpush1.msra.mxu0 0.0
        %2099 = vmatprep.subr.mxu0 0.0
        %2100 = vmatpush1.msra.mxu0 0.0
        %2101 = vmatprep.subr.mxu0 0.0
        %2102 = vmatpush1.msra.mxu0 0.0
        %2103 = vmatprep.subr.mxu0 0.0
        %2104 = vmatpush1.msra.mxu0 0.0
        %2105 = vmatprep.subr.mxu0 0.0
        %2106 = vmatpush1.msra.mxu0 0.0
        %2107 = vmatprep.subr.mxu0 0.0
        %2108 = vmatpush1.msra.mxu0 0.0
        %2109 = vmatprep.subr.mxu0 0.0
        %2110 = vmatpush1.msra.mxu0 0.0
        %2111 = vmatprep.subr.mxu0 0.0
        %2112 = vmatpush1.msra.mxu0 0.0
        %2113 = vmatprep.subr.mxu0 0.0
        %2114 = vmatpush1.msra.mxu0 0.0
        %2115 = vmatprep.subr.mxu0 0.0
        %2116 = vmatpush1.msra.mxu0 0.0
        %2117 = vmatprep.subr.mxu0 0.0
        %2118 = vmatpush1.msra.mxu0 0.0
        %2119 = vmatprep.subr.mxu0 0.0
        %2120 = vmatpush1.msra.mxu0 0.0
        %2121 = vmatprep.subr.mxu0 0.0
        %2122 = vmatpush1.msra.mxu0 0.0
        %2123 = vmatprep.subr.mxu0 0.0
        %2124 = vmatpush1.msra.mxu0 0.0
        %2125 = vmatprep.mubr.f32.mxu0 0.0
        %2126 = vmatmul.mubr.f32.gmra.mrb[0].mxu0 %v2059
        %v2127 = vpop.f32.mrb[0].mxu0
        %v2128 = vadd.f32 0.0, %v2127
        %v2129 = vpop.f32.mrb[0].mxu0
        %2130 = vdwg.mxu0
        %2132 = vrot.lane.b32.xlu0 %v1798, 64
        %v2133 = vpop.permute.xlu0 %2132
        %2136 = vrot.lane.b32.xlu0 %v2128, 64
        %v2137 = vpop.permute.xlu0 %2136
        %v2139 = vsel %vm1463, %v1630, %v2133
        %v2140 = vsel %vm1463, %v1960, %v2137
        %v2141 = vpack.c.bf16 %v2139, %v2139
        %v2142 = vpack.c.bf16 %v2140, %v2140
        %v2143 = vld [vmem:[%s6] sm:$0xff]
        %v2144 = vld [vmem:[%s6 + $0x8] sm:$0xff]
        %v2145 = vld [vmem:[%s6 + $0x10] sm:$0xff]
        %v2146 = vld [vmem:[%s6 + $0x18] sm:$0xff]
        %v2147 = vld [vmem:[%s6 + $0x20] sm:$0xff]
        %v2148 = vld [vmem:[%s6 + $0x28] sm:$0xff]
        %v2149 = vld [vmem:[%s6 + $0x30] sm:$0xff]
        %v2150 = vld [vmem:[%s6 + $0x38] sm:$0xff]
        %v2151 = vld [vmem:[%s6 + $0x40] sm:$0xff]
        %v2152 = vld [vmem:[%s6 + $0x48] sm:$0xff]
        %v2153 = vld [vmem:[%s6 + $0x50] sm:$0xff]
        %v2154 = vld [vmem:[%s6 + $0x58] sm:$0xff]
        %v2155 = vld [vmem:[%s6 + $0x60] sm:$0xff]
        %v2156 = vld [vmem:[%s6 + $0x68] sm:$0xff]
        %v2157 = vld [vmem:[%s6 + $0x70] sm:$0xff]
        %v2158 = vld [vmem:[%s6 + $0x78] sm:$0xff]
        %v2159 = vld [vmem:[%s6 + $0x80] sm:$0xff]
        %v2160 = vld [vmem:[%s6 + $0x88] sm:$0xff]
        %v2161 = vld [vmem:[%s6 + $0x90] sm:$0xff]
        %v2162 = vld [vmem:[%s6 + $0x98] sm:$0xff]
        %v2163 = vld [vmem:[%s6 + $0xa0] sm:$0xff]
        %v2164 = vld [vmem:[%s6 + $0xa8] sm:$0xff]
        %v2165 = vld [vmem:[%s6 + $0xb0] sm:$0xff]
        %v2166 = vld [vmem:[%s6 + $0xb8] sm:$0xff]
        %v2167 = vld [vmem:[%s6 + $0xc0] sm:$0xff]
        %v2168 = vld [vmem:[%s6 + $0xc8] sm:$0xff]
        %v2169 = vld [vmem:[%s6 + $0xd0] sm:$0xff]
        %v2170 = vld [vmem:[%s6 + $0xd8] sm:$0xff]
        %v2171 = vld [vmem:[%s6 + $0xe0] sm:$0xff]
        %v2172 = vld [vmem:[%s6 + $0xe8] sm:$0xff]
        %v2173 = vld [vmem:[%s6 + $0xf0] sm:$0xff]
        %v2174 = vld [vmem:[%s6 + $0xf8] sm:$0xff]
        %v2175 = vld [vmem:[%s7] sm:$0x3]
        %v2177 = vlaneseq
        %v2178 = vshrl.u32 %v2177, 7
        %v2179 = vsub.s32 0, %v2178
        %v2180 = vrot.slane %v2175, %v2179
        %v2181 = vlaneseq
        %v2182 = vshrl.u32 %v2181, 7
        %v2183 = vsub.s32 1, %v2182
        %v2184 = vrot.slane %v2175, %v2183
        %v2219 = vunpack.c.l.b16 %v2143
        %v2220 = vunpack.c.h.b16 %v2143
        %v2221 = vunpack.c.l.b16 %v2144
        %v2222 = vunpack.c.h.b16 %v2144
        %v2223 = vunpack.c.l.b16 %v2145
        %v2224 = vunpack.c.h.b16 %v2145
        %v2225 = vunpack.c.l.b16 %v2146
        %v2226 = vunpack.c.h.b16 %v2146
        %v2227 = vunpack.c.l.b16 %v2147
        %v2228 = vunpack.c.h.b16 %v2147
        %v2229 = vunpack.c.l.b16 %v2148
        %v2230 = vunpack.c.h.b16 %v2148
        %v2231 = vunpack.c.l.b16 %v2149
        %v2232 = vunpack.c.h.b16 %v2149
        %v2233 = vunpack.c.l.b16 %v2150
        %v2234 = vunpack.c.h.b16 %v2150
        %v2235 = vunpack.c.l.b16 %v2151
        %v2236 = vunpack.c.h.b16 %v2151
        %v2237 = vunpack.c.l.b16 %v2152
        %v2238 = vunpack.c.h.b16 %v2152
        %v2239 = vunpack.c.l.b16 %v2153
        %v2240 = vunpack.c.h.b16 %v2153
        %v2241 = vunpack.c.l.b16 %v2154
        %v2242 = vunpack.c.h.b16 %v2154
        %v2243 = vunpack.c.l.b16 %v2155
        %v2244 = vunpack.c.h.b16 %v2155
        %v2245 = vunpack.c.l.b16 %v2156
        %v2246 = vunpack.c.h.b16 %v2156
        %v2247 = vunpack.c.l.b16 %v2157
        %v2248 = vunpack.c.h.b16 %v2157
        %v2249 = vunpack.c.l.b16 %v2158
        %v2250 = vunpack.c.h.b16 %v2158
        %v2251 = vunpack.c.l.b16 %v2159
        %v2252 = vunpack.c.h.b16 %v2159
        %v2253 = vunpack.c.l.b16 %v2160
        %v2254 = vunpack.c.h.b16 %v2160
        %v2255 = vunpack.c.l.b16 %v2161
        %v2256 = vunpack.c.h.b16 %v2161
        %v2257 = vunpack.c.l.b16 %v2162
        %v2258 = vunpack.c.h.b16 %v2162
        %v2259 = vunpack.c.l.b16 %v2163
        %v2260 = vunpack.c.h.b16 %v2163
        %v2261 = vunpack.c.l.b16 %v2164
        %v2262 = vunpack.c.h.b16 %v2164
        %v2263 = vunpack.c.l.b16 %v2165
        %v2264 = vunpack.c.h.b16 %v2165
        %v2265 = vunpack.c.l.b16 %v2166
        %v2266 = vunpack.c.h.b16 %v2166
        %v2267 = vunpack.c.l.b16 %v2167
        %v2268 = vunpack.c.h.b16 %v2167
        %v2269 = vunpack.c.l.b16 %v2168
        %v2270 = vunpack.c.h.b16 %v2168
        %v2271 = vunpack.c.l.b16 %v2169
        %v2272 = vunpack.c.h.b16 %v2169
        %v2273 = vunpack.c.l.b16 %v2170
        %v2274 = vunpack.c.h.b16 %v2170
        %v2275 = vunpack.c.l.b16 %v2171
        %v2276 = vunpack.c.h.b16 %v2171
        %v2277 = vunpack.c.l.b16 %v2172
        %v2278 = vunpack.c.h.b16 %v2172
        %v2279 = vunpack.c.l.b16 %v2173
        %v2280 = vunpack.c.h.b16 %v2173
        %v2281 = vunpack.c.l.b16 %v2174
        %v2282 = vunpack.c.h.b16 %v2174
        %v2283 = vpack.c.b16 %v2221, %v2219
        %v2284 = vpack.c.b16 %v2222, %v2220
        %v2285 = vpack.c.b16 %v2225, %v2223
        %v2286 = vpack.c.b16 %v2226, %v2224
        %v2287 = vpack.c.b16 %v2229, %v2227
        %v2288 = vpack.c.b16 %v2230, %v2228
        %v2289 = vpack.c.b16 %v2233, %v2231
        %v2290 = vpack.c.b16 %v2234, %v2232
        %v2291 = vpack.c.b16 %v2237, %v2235
        %v2292 = vpack.c.b16 %v2238, %v2236
        %v2293 = vpack.c.b16 %v2241, %v2239
        %v2294 = vpack.c.b16 %v2242, %v2240
        %v2295 = vpack.c.b16 %v2245, %v2243
        %v2296 = vpack.c.b16 %v2246, %v2244
        %v2297 = vpack.c.b16 %v2249, %v2247
        %v2298 = vpack.c.b16 %v2250, %v2248
        %v2299 = vpack.c.b16 %v2253, %v2251
        %v2300 = vpack.c.b16 %v2254, %v2252
        %v2301 = vpack.c.b16 %v2257, %v2255
        %v2302 = vpack.c.b16 %v2258, %v2256
        %v2303 = vpack.c.b16 %v2261, %v2259
        %v2304 = vpack.c.b16 %v2262, %v2260
        %v2305 = vpack.c.b16 %v2265, %v2263
        %v2306 = vpack.c.b16 %v2266, %v2264
        %v2307 = vpack.c.b16 %v2269, %v2267
        %v2308 = vpack.c.b16 %v2270, %v2268
        %v2309 = vpack.c.b16 %v2273, %v2271
        %v2310 = vpack.c.b16 %v2274, %v2272
        %v2311 = vpack.c.b16 %v2277, %v2275
        %v2312 = vpack.c.b16 %v2278, %v2276
        %v2313 = vpack.c.b16 %v2281, %v2279
        %v2314 = vpack.c.b16 %v2282, %v2280
        %2347 = vmatprep.subr.bf16.mxu0 %v2284
        %2348 = vmatpush1.bf16.msra.mxu0 %v2283
        %2349 = vmatprep.subr.bf16.mxu0 %v2286
        %2350 = vmatpush1.bf16.msra.mxu0 %v2285
        %2351 = vmatprep.subr.bf16.mxu0 %v2288
        %2352 = vmatpush1.bf16.msra.mxu0 %v2287
        %2353 = vmatprep.subr.bf16.mxu0 %v2290
        %2354 = vmatpush1.bf16.msra.mxu0 %v2289
        %2355 = vmatprep.subr.bf16.mxu0 %v2292
        %2356 = vmatpush1.bf16.msra.mxu0 %v2291
        %2357 = vmatprep.subr.bf16.mxu0 %v2294
        %2358 = vmatpush1.bf16.msra.mxu0 %v2293
        %2359 = vmatprep.subr.bf16.mxu0 %v2296
        %2360 = vmatpush1.bf16.msra.mxu0 %v2295
        %2361 = vmatprep.subr.bf16.mxu0 %v2298
        %2362 = vmatpush1.bf16.msra.mxu0 %v2297
        %2363 = vmatprep.subr.bf16.mxu0 %v2300
        %2364 = vmatpush1.bf16.msra.mxu0 %v2299
        %2365 = vmatprep.subr.bf16.mxu0 %v2302
        %2366 = vmatpush1.bf16.msra.mxu0 %v2301
        %2367 = vmatprep.subr.bf16.mxu0 %v2304
        %2368 = vmatpush1.bf16.msra.mxu0 %v2303
        %2369 = vmatprep.subr.bf16.mxu0 %v2306
        %2370 = vmatpush1.bf16.msra.mxu0 %v2305
        %2371 = vmatprep.subr.bf16.mxu0 %v2308
        %2372 = vmatpush1.bf16.msra.mxu0 %v2307
        %2373 = vmatprep.subr.bf16.mxu0 %v2310
        %2374 = vmatpush1.bf16.msra.mxu0 %v2309
        %2375 = vmatprep.subr.bf16.mxu0 %v2312
        %2376 = vmatpush1.bf16.msra.mxu0 %v2311
        %2377 = vmatprep.subr.bf16.mxu0 %v2314
        %2378 = vmatpush1.bf16.msra.mxu0 %v2313
        %2379 = vmatprep.mubr.bf16.mxu0 %v2142
        %2380 = vmatmul.mubr.bf16.gmra.mrb[0].mxu0 %v2141
        %v2381 = vpop.f32.mrb[0].mxu0
        %v2382 = vadd.f32 %v2180, %v2381
        %v2383 = vpop.f32.mrb[0].mxu0
        %v2384 = vadd.f32 %v2184, %v2383
        %v2385 = vpop.f32.mrb[0].mxu0
        %v2386 = vpop.f32.mrb[0].mxu0
        %2387 = vdwg.mxu0
        %v2388 = vadd.f32 %v2382, %v725
        %v2389 = vadd.f32 %v2384, %v726
        %v2390 = vld [vmem:[%s8] sm:$0x3]
        %v2391 = vld [vmem:[%s9] sm:$0x3]
        %v2392 = vadd.f32 %v2388, %v2389
        %2393 = vadd.xlane.f32.xlu0 %v2392
        %v2394 = vpop.xlane.xlu0 %2393
        %v2395 = vmul.f32 %v2394, %v687
        %v2396 = vsub.f32 %v2388, %v2395
        %v2397 = vsub.f32 %v2389, %v2395
        %v2398 = vmul.f32 %v2396, %v2396
        %v2399 = vmul.f32 %v2397, %v2397
        %v2400 = vadd.f32 %v2398, %v2399
        %2401 = vadd.xlane.f32.xlu0 %v2400
        %v2402 = vpop.xlane.xlu0 %2401
        %v2403 = vmul.f32 %v2402, %v687
        %v2404 = vadd.f32 %v2403, 1e-12
        %v2405 = vrsqrt.pop %v2404
        %v2406 = vmul.f32 %v2396, %v2405
        %v2407 = vmul.f32 %v2397, %v2405
        %v2409 = vlaneseq
        %v2410 = vshrl.u32 %v2409, 7
        %v2411 = vsub.s32 0, %v2410
        %v2412 = vrot.slane %v2390, %v2411
        %v2413 = vlaneseq
        %v2414 = vshrl.u32 %v2413, 7
        %v2415 = vsub.s32 1, %v2414
        %v2416 = vrot.slane %v2390, %v2415
        %v2419 = vmul.f32 %v2406, %v2412
        %v2420 = vmul.f32 %v2407, %v2416
        %v2422 = vlaneseq
        %v2423 = vshrl.u32 %v2422, 7
        %v2424 = vsub.s32 0, %v2423
        %v2425 = vrot.slane %v2391, %v2424
        %v2426 = vlaneseq
        %v2427 = vshrl.u32 %v2426, 7
        %v2428 = vsub.s32 1, %v2427
        %v2429 = vrot.slane %v2391, %v2428
        %v2432 = vadd.f32 %v2419, %v2425
        %v2433 = vadd.f32 %v2420, %v2429
        %v2434 = vpack.c.bf16 %v2432, %v2432
        %v2435 = vpack.c.bf16 %v2433, %v2433
        %v2436 = vld [vmem:[%s10] sm:$0xff]
        %v2437 = vld [vmem:[%s10 + $0x8] sm:$0xff]
        %v2438 = vld [vmem:[%s10 + $0x10] sm:$0xff]
        %v2439 = vld [vmem:[%s10 + $0x18] sm:$0xff]
        %v2440 = vld [vmem:[%s10 + $0x20] sm:$0xff]
        %v2441 = vld [vmem:[%s10 + $0x28] sm:$0xff]
        %v2442 = vld [vmem:[%s10 + $0x30] sm:$0xff]
        %v2443 = vld [vmem:[%s10 + $0x38] sm:$0xff]
        %v2444 = vld [vmem:[%s10 + $0x40] sm:$0xff]
        %v2445 = vld [vmem:[%s10 + $0x48] sm:$0xff]
        %v2446 = vld [vmem:[%s10 + $0x50] sm:$0xff]
        %v2447 = vld [vmem:[%s10 + $0x58] sm:$0xff]
        %v2448 = vld [vmem:[%s10 + $0x60] sm:$0xff]
        %v2449 = vld [vmem:[%s10 + $0x68] sm:$0xff]
        %v2450 = vld [vmem:[%s10 + $0x70] sm:$0xff]
        %v2451 = vld [vmem:[%s10 + $0x78] sm:$0xff]
        %v2452 = vld [vmem:[%s10 + $0x80] sm:$0xff]
        %v2453 = vld [vmem:[%s10 + $0x88] sm:$0xff]
        %v2454 = vld [vmem:[%s10 + $0x90] sm:$0xff]
        %v2455 = vld [vmem:[%s10 + $0x98] sm:$0xff]
        %v2456 = vld [vmem:[%s10 + $0xa0] sm:$0xff]
        %v2457 = vld [vmem:[%s10 + $0xa8] sm:$0xff]
        %v2458 = vld [vmem:[%s10 + $0xb0] sm:$0xff]
        %v2459 = vld [vmem:[%s10 + $0xb8] sm:$0xff]
        %v2460 = vld [vmem:[%s10 + $0xc0] sm:$0xff]
        %v2461 = vld [vmem:[%s10 + $0xc8] sm:$0xff]
        %v2462 = vld [vmem:[%s10 + $0xd0] sm:$0xff]
        %v2463 = vld [vmem:[%s10 + $0xd8] sm:$0xff]
        %v2464 = vld [vmem:[%s10 + $0xe0] sm:$0xff]
        %v2465 = vld [vmem:[%s10 + $0xe8] sm:$0xff]
        %v2466 = vld [vmem:[%s10 + $0xf0] sm:$0xff]
        %v2467 = vld [vmem:[%s10 + $0xf8] sm:$0xff]
        %v2468 = vld [vmem:[%s10 + $0x100] sm:$0xff]
        %v2469 = vld [vmem:[%s10 + $0x108] sm:$0xff]
        %v2470 = vld [vmem:[%s10 + $0x110] sm:$0xff]
        %v2471 = vld [vmem:[%s10 + $0x118] sm:$0xff]
        %v2472 = vld [vmem:[%s10 + $0x120] sm:$0xff]
        %v2473 = vld [vmem:[%s10 + $0x128] sm:$0xff]
        %v2474 = vld [vmem:[%s10 + $0x130] sm:$0xff]
        %v2475 = vld [vmem:[%s10 + $0x138] sm:$0xff]
        %v2476 = vld [vmem:[%s10 + $0x140] sm:$0xff]
        %v2477 = vld [vmem:[%s10 + $0x148] sm:$0xff]
        %v2478 = vld [vmem:[%s10 + $0x150] sm:$0xff]
        %v2479 = vld [vmem:[%s10 + $0x158] sm:$0xff]
        %v2480 = vld [vmem:[%s10 + $0x160] sm:$0xff]
        %v2481 = vld [vmem:[%s10 + $0x168] sm:$0xff]
        %v2482 = vld [vmem:[%s10 + $0x170] sm:$0xff]
        %v2483 = vld [vmem:[%s10 + $0x178] sm:$0xff]
        %v2484 = vld [vmem:[%s10 + $0x180] sm:$0xff]
        %v2485 = vld [vmem:[%s10 + $0x188] sm:$0xff]
        %v2486 = vld [vmem:[%s10 + $0x190] sm:$0xff]
        %v2487 = vld [vmem:[%s10 + $0x198] sm:$0xff]
        %v2488 = vld [vmem:[%s10 + $0x1a0] sm:$0xff]
        %v2489 = vld [vmem:[%s10 + $0x1a8] sm:$0xff]
        %v2490 = vld [vmem:[%s10 + $0x1b0] sm:$0xff]
        %v2491 = vld [vmem:[%s10 + $0x1b8] sm:$0xff]
        %v2492 = vld [vmem:[%s10 + $0x1c0] sm:$0xff]
        %v2493 = vld [vmem:[%s10 + $0x1c8] sm:$0xff]
        %v2494 = vld [vmem:[%s10 + $0x1d0] sm:$0xff]
        %v2495 = vld [vmem:[%s10 + $0x1d8] sm:$0xff]
        %v2496 = vld [vmem:[%s10 + $0x1e0] sm:$0xff]
        %v2497 = vld [vmem:[%s10 + $0x1e8] sm:$0xff]
        %v2498 = vld [vmem:[%s10 + $0x1f0] sm:$0xff]
        %v2499 = vld [vmem:[%s10 + $0x1f8] sm:$0xff]
        %v2500 = vld [vmem:[%s11] sm:$0xf]
        %v2502 = vlaneseq
        %v2503 = vshrl.u32 %v2502, 7
        %v2504 = vsub.s32 0, %v2503
        %v2505 = vrot.slane %v2500, %v2504
        %v2506 = vlaneseq
        %v2507 = vshrl.u32 %v2506, 7
        %v2508 = vsub.s32 1, %v2507
        %v2509 = vrot.slane %v2500, %v2508
        %v2510 = vlaneseq
        %v2511 = vshrl.u32 %v2510, 7
        %v2512 = vsub.s32 2, %v2511
        %v2513 = vrot.slane %v2500, %v2512
        %v2514 = vlaneseq
        %v2515 = vshrl.u32 %v2514, 7
        %v2516 = vsub.s32 3, %v2515
        %v2517 = vrot.slane %v2500, %v2516
        %v2586 = vunpack.c.l.b16 %v2436
        %v2587 = vunpack.c.h.b16 %v2436
        %v2588 = vunpack.c.l.b16 %v2437
        %v2589 = vunpack.c.h.b16 %v2437
        %v2590 = vunpack.c.l.b16 %v2438
        %v2591 = vunpack.c.h.b16 %v2438
        %v2592 = vunpack.c.l.b16 %v2439
        %v2593 = vunpack.c.h.b16 %v2439
        %v2594 = vunpack.c.l.b16 %v2440
        %v2595 = vunpack.c.h.b16 %v2440
        %v2596 = vunpack.c.l.b16 %v2441
        %v2597 = vunpack.c.h.b16 %v2441
        %v2598 = vunpack.c.l.b16 %v2442
        %v2599 = vunpack.c.h.b16 %v2442
        %v2600 = vunpack.c.l.b16 %v2443
        %v2601 = vunpack.c.h.b16 %v2443
        %v2602 = vunpack.c.l.b16 %v2444
        %v2603 = vunpack.c.h.b16 %v2444
        %v2604 = vunpack.c.l.b16 %v2445
        %v2605 = vunpack.c.h.b16 %v2445
        %v2606 = vunpack.c.l.b16 %v2446
        %v2607 = vunpack.c.h.b16 %v2446
        %v2608 = vunpack.c.l.b16 %v2447
        %v2609 = vunpack.c.h.b16 %v2447
        %v2610 = vunpack.c.l.b16 %v2448
        %v2611 = vunpack.c.h.b16 %v2448
        %v2612 = vunpack.c.l.b16 %v2449
        %v2613 = vunpack.c.h.b16 %v2449
        %v2614 = vunpack.c.l.b16 %v2450
        %v2615 = vunpack.c.h.b16 %v2450
        %v2616 = vunpack.c.l.b16 %v2451
        %v2617 = vunpack.c.h.b16 %v2451
        %v2618 = vunpack.c.l.b16 %v2452
        %v2619 = vunpack.c.h.b16 %v2452
        %v2620 = vunpack.c.l.b16 %v2453
        %v2621 = vunpack.c.h.b16 %v2453
        %v2622 = vunpack.c.l.b16 %v2454
        %v2623 = vunpack.c.h.b16 %v2454
        %v2624 = vunpack.c.l.b16 %v2455
        %v2625 = vunpack.c.h.b16 %v2455
        %v2626 = vunpack.c.l.b16 %v2456
        %v2627 = vunpack.c.h.b16 %v2456
        %v2628 = vunpack.c.l.b16 %v2457
        %v2629 = vunpack.c.h.b16 %v2457
        %v2630 = vunpack.c.l.b16 %v2458
        %v2631 = vunpack.c.h.b16 %v2458
        %v2632 = vunpack.c.l.b16 %v2459
        %v2633 = vunpack.c.h.b16 %v2459
        %v2634 = vunpack.c.l.b16 %v2460
        %v2635 = vunpack.c.h.b16 %v2460
        %v2636 = vunpack.c.l.b16 %v2461
        %v2637 = vunpack.c.h.b16 %v2461
        %v2638 = vunpack.c.l.b16 %v2462
        %v2639 = vunpack.c.h.b16 %v2462
        %v2640 = vunpack.c.l.b16 %v2463
        %v2641 = vunpack.c.h.b16 %v2463
        %v2642 = vunpack.c.l.b16 %v2464
        %v2643 = vunpack.c.h.b16 %v2464
        %v2644 = vunpack.c.l.b16 %v2465
        %v2645 = vunpack.c.h.b16 %v2465
        %v2646 = vunpack.c.l.b16 %v2466
        %v2647 = vunpack.c.h.b16 %v2466
        %v2648 = vunpack.c.l.b16 %v2467
        %v2649 = vunpack.c.h.b16 %v2467
        %v2650 = vunpack.c.l.b16 %v2468
        %v2651 = vunpack.c.h.b16 %v2468
        %v2652 = vunpack.c.l.b16 %v2469
        %v2653 = vunpack.c.h.b16 %v2469
        %v2654 = vunpack.c.l.b16 %v2470
        %v2655 = vunpack.c.h.b16 %v2470
        %v2656 = vunpack.c.l.b16 %v2471
        %v2657 = vunpack.c.h.b16 %v2471
        %v2658 = vunpack.c.l.b16 %v2472
        %v2659 = vunpack.c.h.b16 %v2472
        %v2660 = vunpack.c.l.b16 %v2473
        %v2661 = vunpack.c.h.b16 %v2473
        %v2662 = vunpack.c.l.b16 %v2474
        %v2663 = vunpack.c.h.b16 %v2474
        %v2664 = vunpack.c.l.b16 %v2475
        %v2665 = vunpack.c.h.b16 %v2475
        %v2666 = vunpack.c.l.b16 %v2476
        %v2667 = vunpack.c.h.b16 %v2476
        %v2668 = vunpack.c.l.b16 %v2477
        %v2669 = vunpack.c.h.b16 %v2477
        %v2670 = vunpack.c.l.b16 %v2478
        %v2671 = vunpack.c.h.b16 %v2478
        %v2672 = vunpack.c.l.b16 %v2479
        %v2673 = vunpack.c.h.b16 %v2479
        %v2674 = vunpack.c.l.b16 %v2480
        %v2675 = vunpack.c.h.b16 %v2480
        %v2676 = vunpack.c.l.b16 %v2481
        %v2677 = vunpack.c.h.b16 %v2481
        %v2678 = vunpack.c.l.b16 %v2482
        %v2679 = vunpack.c.h.b16 %v2482
        %v2680 = vunpack.c.l.b16 %v2483
        %v2681 = vunpack.c.h.b16 %v2483
        %v2682 = vunpack.c.l.b16 %v2484
        %v2683 = vunpack.c.h.b16 %v2484
        %v2684 = vunpack.c.l.b16 %v2485
        %v2685 = vunpack.c.h.b16 %v2485
        %v2686 = vunpack.c.l.b16 %v2486
        %v2687 = vunpack.c.h.b16 %v2486
        %v2688 = vunpack.c.l.b16 %v2487
        %v2689 = vunpack.c.h.b16 %v2487
        %v2690 = vunpack.c.l.b16 %v2488
        %v2691 = vunpack.c.h.b16 %v2488
        %v2692 = vunpack.c.l.b16 %v2489
        %v2693 = vunpack.c.h.b16 %v2489
        %v2694 = vunpack.c.l.b16 %v2490
        %v2695 = vunpack.c.h.b16 %v2490
        %v2696 = vunpack.c.l.b16 %v2491
        %v2697 = vunpack.c.h.b16 %v2491
        %v2698 = vunpack.c.l.b16 %v2492
        %v2699 = vunpack.c.h.b16 %v2492
        %v2700 = vunpack.c.l.b16 %v2493
        %v2701 = vunpack.c.h.b16 %v2493
        %v2702 = vunpack.c.l.b16 %v2494
        %v2703 = vunpack.c.h.b16 %v2494
        %v2704 = vunpack.c.l.b16 %v2495
        %v2705 = vunpack.c.h.b16 %v2495
        %v2706 = vunpack.c.l.b16 %v2496
        %v2707 = vunpack.c.h.b16 %v2496
        %v2708 = vunpack.c.l.b16 %v2497
        %v2709 = vunpack.c.h.b16 %v2497
        %v2710 = vunpack.c.l.b16 %v2498
        %v2711 = vunpack.c.h.b16 %v2498
        %v2712 = vunpack.c.l.b16 %v2499
        %v2713 = vunpack.c.h.b16 %v2499
        %v2714 = vpack.c.b16 %v2590, %v2586
        %v2715 = vpack.c.b16 %v2591, %v2587
        %v2716 = vpack.c.b16 %v2592, %v2588
        %v2717 = vpack.c.b16 %v2593, %v2589
        %v2718 = vpack.c.b16 %v2598, %v2594
        %v2719 = vpack.c.b16 %v2599, %v2595
        %v2720 = vpack.c.b16 %v2600, %v2596
        %v2721 = vpack.c.b16 %v2601, %v2597
        %v2722 = vpack.c.b16 %v2606, %v2602
        %v2723 = vpack.c.b16 %v2607, %v2603
        %v2724 = vpack.c.b16 %v2608, %v2604
        %v2725 = vpack.c.b16 %v2609, %v2605
        %v2726 = vpack.c.b16 %v2614, %v2610
        %v2727 = vpack.c.b16 %v2615, %v2611
        %v2728 = vpack.c.b16 %v2616, %v2612
        %v2729 = vpack.c.b16 %v2617, %v2613
        %v2730 = vpack.c.b16 %v2622, %v2618
        %v2731 = vpack.c.b16 %v2623, %v2619
        %v2732 = vpack.c.b16 %v2624, %v2620
        %v2733 = vpack.c.b16 %v2625, %v2621
        %v2734 = vpack.c.b16 %v2630, %v2626
        %v2735 = vpack.c.b16 %v2631, %v2627
        %v2736 = vpack.c.b16 %v2632, %v2628
        %v2737 = vpack.c.b16 %v2633, %v2629
        %v2738 = vpack.c.b16 %v2638, %v2634
        %v2739 = vpack.c.b16 %v2639, %v2635
        %v2740 = vpack.c.b16 %v2640, %v2636
        %v2741 = vpack.c.b16 %v2641, %v2637
        %v2742 = vpack.c.b16 %v2646, %v2642
        %v2743 = vpack.c.b16 %v2647, %v2643
        %v2744 = vpack.c.b16 %v2648, %v2644
        %v2745 = vpack.c.b16 %v2649, %v2645
        %v2746 = vpack.c.b16 %v2654, %v2650
        %v2747 = vpack.c.b16 %v2655, %v2651
        %v2748 = vpack.c.b16 %v2656, %v2652
        %v2749 = vpack.c.b16 %v2657, %v2653
        %v2750 = vpack.c.b16 %v2662, %v2658
        %v2751 = vpack.c.b16 %v2663, %v2659
        %v2752 = vpack.c.b16 %v2664, %v2660
        %v2753 = vpack.c.b16 %v2665, %v2661
        %v2754 = vpack.c.b16 %v2670, %v2666
        %v2755 = vpack.c.b16 %v2671, %v2667
        %v2756 = vpack.c.b16 %v2672, %v2668
        %v2757 = vpack.c.b16 %v2673, %v2669
        %v2758 = vpack.c.b16 %v2678, %v2674
        %v2759 = vpack.c.b16 %v2679, %v2675
        %v2760 = vpack.c.b16 %v2680, %v2676
        %v2761 = vpack.c.b16 %v2681, %v2677
        %v2762 = vpack.c.b16 %v2686, %v2682
        %v2763 = vpack.c.b16 %v2687, %v2683
        %v2764 = vpack.c.b16 %v2688, %v2684
        %v2765 = vpack.c.b16 %v2689, %v2685
        %v2766 = vpack.c.b16 %v2694, %v2690
        %v2767 = vpack.c.b16 %v2695, %v2691
        %v2768 = vpack.c.b16 %v2696, %v2692
        %v2769 = vpack.c.b16 %v2697, %v2693
        %v2770 = vpack.c.b16 %v2702, %v2698
        %v2771 = vpack.c.b16 %v2703, %v2699
        %v2772 = vpack.c.b16 %v2704, %v2700
        %v2773 = vpack.c.b16 %v2705, %v2701
        %v2774 = vpack.c.b16 %v2710, %v2706
        %v2775 = vpack.c.b16 %v2711, %v2707
        %v2776 = vpack.c.b16 %v2712, %v2708
        %v2777 = vpack.c.b16 %v2713, %v2709
        %2842 = vmatprep.subr.bf16.mxu0 %v2715
        %2843 = vmatpush1.bf16.msra.mxu0 %v2714
        %2844 = vmatprep.subr.bf16.mxu0 %v2719
        %2845 = vmatpush1.bf16.msra.mxu0 %v2718
        %2846 = vmatprep.subr.bf16.mxu0 %v2723
        %2847 = vmatpush1.bf16.msra.mxu0 %v2722
        %2848 = vmatprep.subr.bf16.mxu0 %v2727
        %2849 = vmatpush1.bf16.msra.mxu0 %v2726
        %2850 = vmatprep.subr.bf16.mxu0 %v2731
        %2851 = vmatpush1.bf16.msra.mxu0 %v2730
        %2852 = vmatprep.subr.bf16.mxu0 %v2735
        %2853 = vmatpush1.bf16.msra.mxu0 %v2734
        %2854 = vmatprep.subr.bf16.mxu0 %v2739
        %2855 = vmatpush1.bf16.msra.mxu0 %v2738
        %2856 = vmatprep.subr.bf16.mxu0 %v2743
        %2857 = vmatpush1.bf16.msra.mxu0 %v2742
        %2858 = vmatprep.subr.bf16.mxu0 %v2747
        %2859 = vmatpush1.bf16.msra.mxu0 %v2746
        %2860 = vmatprep.subr.bf16.mxu0 %v2751
        %2861 = vmatpush1.bf16.msra.mxu0 %v2750
        %2862 = vmatprep.subr.bf16.mxu0 %v2755
        %2863 = vmatpush1.bf16.msra.mxu0 %v2754
        %2864 = vmatprep.subr.bf16.mxu0 %v2759
        %2865 = vmatpush1.bf16.msra.mxu0 %v2758
        %2866 = vmatprep.subr.bf16.mxu0 %v2763
        %2867 = vmatpush1.bf16.msra.mxu0 %v2762
        %2868 = vmatprep.subr.bf16.mxu0 %v2767
        %2869 = vmatpush1.bf16.msra.mxu0 %v2766
        %2870 = vmatprep.subr.bf16.mxu0 %v2771
        %2871 = vmatpush1.bf16.msra.mxu0 %v2770
        %2872 = vmatprep.subr.bf16.mxu0 %v2775
        %2873 = vmatpush1.bf16.msra.mxu0 %v2774
        %2874 = vmatprep.mubr.bf16.mxu0 %v2435
        %2875 = vmatmul.mubr.bf16.gmra.mrb[0].mxu0 %v2434
        %v2876 = vpop.f32.mrb[0].mxu0
        %v2877 = vadd.f32 %v2505, %v2876
        %v2878 = vpop.f32.mrb[0].mxu0
        %v2879 = vadd.f32 %v2509, %v2878
        %v2880 = vpop.f32.mrb[0].mxu0
        %v2881 = vpop.f32.mrb[0].mxu0
        %2882 = vdwg.mxu0
        %2883 = vmatprep.subr.bf16.mxu0 %v2717
        %2884 = vmatpush1.bf16.msra.mxu0 %v2716
        %2885 = vmatprep.subr.bf16.mxu0 %v2721
        %2886 = vmatpush1.bf16.msra.mxu0 %v2720
        %2887 = vmatprep.subr.bf16.mxu0 %v2725
        %2888 = vmatpush1.bf16.msra.mxu0 %v2724
        %2889 = vmatprep.subr.bf16.mxu0 %v2729
        %2890 = vmatpush1.bf16.msra.mxu0 %v2728
        %2891 = vmatprep.subr.bf16.mxu0 %v2733
        %2892 = vmatpush1.bf16.msra.mxu0 %v2732
        %2893 = vmatprep.subr.bf16.mxu0 %v2737
        %2894 = vmatpush1.bf16.msra.mxu0 %v2736
        %2895 = vmatprep.subr.bf16.mxu0 %v2741
        %2896 = vmatpush1.bf16.msra.mxu0 %v2740
        %2897 = vmatprep.subr.bf16.mxu0 %v2745
        %2898 = vmatpush1.bf16.msra.mxu0 %v2744
        %2899 = vmatprep.subr.bf16.mxu0 %v2749
        %2900 = vmatpush1.bf16.msra.mxu0 %v2748
        %2901 = vmatprep.subr.bf16.mxu0 %v2753
        %2902 = vmatpush1.bf16.msra.mxu0 %v2752
        %2903 = vmatprep.subr.bf16.mxu0 %v2757
        %2904 = vmatpush1.bf16.msra.mxu0 %v2756
        %2905 = vmatprep.subr.bf16.mxu0 %v2761
        %2906 = vmatpush1.bf16.msra.mxu0 %v2760
        %2907 = vmatprep.subr.bf16.mxu0 %v2765
        %2908 = vmatpush1.bf16.msra.mxu0 %v2764
        %2909 = vmatprep.subr.bf16.mxu0 %v2769
        %2910 = vmatpush1.bf16.msra.mxu0 %v2768
        %2911 = vmatprep.subr.bf16.mxu0 %v2773
        %2912 = vmatpush1.bf16.msra.mxu0 %v2772
        %2913 = vmatprep.subr.bf16.mxu0 %v2777
        %2914 = vmatpush1.bf16.msra.mxu0 %v2776
        %2915 = vmatprep.mubr.bf16.mxu0 %v2435
        %2916 = vmatmul.mubr.bf16.gmra.mrb[0].mxu0 %v2434
        %v2917 = vpop.f32.mrb[0].mxu0
        %v2918 = vadd.f32 %v2513, %v2917
        %v2919 = vpop.f32.mrb[0].mxu0
        %v2920 = vadd.f32 %v2517, %v2919
        %v2921 = vpop.f32.mrb[0].mxu0
        %v2922 = vpop.f32.mrb[0].mxu0
        %2923 = vdwg.mxu0
        %v2924 = vmul.f32 %v2877, %v2877
        %v2925 = vmul.f32 %v2879, %v2879
        %v2926 = vmul.f32 %v2918, %v2918
        %v2927 = vmul.f32 %v2920, %v2920
        %v2928 = vmul.f32 %v2877, %v2924
        %v2929 = vmul.f32 %v2879, %v2925
        %v2930 = vmul.f32 %v2918, %v2926
        %v2931 = vmul.f32 %v2920, %v2927
        %v2932 = vmul.f32 %v2928, 0.044715
        %v2933 = vmul.f32 %v2929, 0.044715
        %v2934 = vmul.f32 %v2930, 0.044715
        %v2935 = vmul.f32 %v2931, 0.044715
        %v2936 = vadd.f32 %v2877, %v2932
        %v2937 = vadd.f32 %v2879, %v2933
        %v2938 = vadd.f32 %v2918, %v2934
        %v2939 = vadd.f32 %v2920, %v2935
        %v2940 = vmul.f32 %v2936, 0.7978846
        %v2941 = vmul.f32 %v2937, 0.7978846
        %v2942 = vmul.f32 %v2938, 0.7978846
        %v2943 = vmul.f32 %v2939, 0.7978846
        %v2944 = vtanh.pop %v2940
        %v2945 = vtanh.pop %v2941
        %v2946 = vtanh.pop %v2942
        %v2947 = vtanh.pop %v2943
        %v2948 = vadd.f32 %v2944, 1.0
        %v2949 = vadd.f32 %v2945, 1.0
        %v2950 = vadd.f32 %v2946, 1.0
        %v2951 = vadd.f32 %v2947, 1.0
        %v2952 = vmul.f32 %v2948, 0.5
        %v2953 = vmul.f32 %v2949, 0.5
        %v2954 = vmul.f32 %v2950, 0.5
        %v2955 = vmul.f32 %v2951, 0.5
        %v2956 = vmul.f32 %v2877, %v2952
        %v2957 = vmul.f32 %v2879, %v2953
        %v2958 = vmul.f32 %v2918, %v2954
        %v2959 = vmul.f32 %v2920, %v2955
        %v2960 = vpack.c.bf16 %v2956, %v2956
        %v2961 = vpack.c.bf16 %v2957, %v2957
        %v2962 = vpack.c.bf16 %v2958, %v2958
        %v2963 = vpack.c.bf16 %v2959, %v2959
        %v2964 = vld [vmem:[%s12] sm:$0xff]
        %v2965 = vld [vmem:[%s12 + $0x8] sm:$0xff]
        %v2966 = vld [vmem:[%s12 + $0x10] sm:$0xff]
        %v2967 = vld [vmem:[%s12 + $0x18] sm:$0xff]
        %v2968 = vld [vmem:[%s12 + $0x20] sm:$0xff]
        %v2969 = vld [vmem:[%s12 + $0x28] sm:$0xff]
        %v2970 = vld [vmem:[%s12 + $0x30] sm:$0xff]
        %v2971 = vld [vmem:[%s12 + $0x38] sm:$0xff]
        %v2972 = vld [vmem:[%s12 + $0x40] sm:$0xff]
        %v2973 = vld [vmem:[%s12 + $0x48] sm:$0xff]
        %v2974 = vld [vmem:[%s12 + $0x50] sm:$0xff]
        %v2975 = vld [vmem:[%s12 + $0x58] sm:$0xff]
        %v2976 = vld [vmem:[%s12 + $0x60] sm:$0xff]
        %v2977 = vld [vmem:[%s12 + $0x68] sm:$0xff]
        %v2978 = vld [vmem:[%s12 + $0x70] sm:$0xff]
        %v2979 = vld [vmem:[%s12 + $0x78] sm:$0xff]
        %v2980 = vld [vmem:[%s12 + $0x80] sm:$0xff]
        %v2981 = vld [vmem:[%s12 + $0x88] sm:$0xff]
        %v2982 = vld [vmem:[%s12 + $0x90] sm:$0xff]
        %v2983 = vld [vmem:[%s12 + $0x98] sm:$0xff]
        %v2984 = vld [vmem:[%s12 + $0xa0] sm:$0xff]
        %v2985 = vld [vmem:[%s12 + $0xa8] sm:$0xff]
        %v2986 = vld [vmem:[%s12 + $0xb0] sm:$0xff]
        %v2987 = vld [vmem:[%s12 + $0xb8] sm:$0xff]
        %v2988 = vld [vmem:[%s12 + $0xc0] sm:$0xff]
        %v2989 = vld [vmem:[%s12 + $0xc8] sm:$0xff]
        %v2990 = vld [vmem:[%s12 + $0xd0] sm:$0xff]
        %v2991 = vld [vmem:[%s12 + $0xd8] sm:$0xff]
        %v2992 = vld [vmem:[%s12 + $0xe0] sm:$0xff]
        %v2993 = vld [vmem:[%s12 + $0xe8] sm:$0xff]
        %v2994 = vld [vmem:[%s12 + $0xf0] sm:$0xff]
        %v2995 = vld [vmem:[%s12 + $0xf8] sm:$0xff]
        %v2996 = vld [vmem:[%s12 + $0x100] sm:$0xff]
        %v2997 = vld [vmem:[%s12 + $0x108] sm:$0xff]
        %v2998 = vld [vmem:[%s12 + $0x110] sm:$0xff]
        %v2999 = vld [vmem:[%s12 + $0x118] sm:$0xff]
        %v3000 = vld [vmem:[%s12 + $0x120] sm:$0xff]
        %v3001 = vld [vmem:[%s12 + $0x128] sm:$0xff]
        %v3002 = vld [vmem:[%s12 + $0x130] sm:$0xff]
        %v3003 = vld [vmem:[%s12 + $0x138] sm:$0xff]
        %v3004 = vld [vmem:[%s12 + $0x140] sm:$0xff]
        %v3005 = vld [vmem:[%s12 + $0x148] sm:$0xff]
        %v3006 = vld [vmem:[%s12 + $0x150] sm:$0xff]
        %v3007 = vld [vmem:[%s12 + $0x158] sm:$0xff]
        %v3008 = vld [vmem:[%s12 + $0x160] sm:$0xff]
        %v3009 = vld [vmem:[%s12 + $0x168] sm:$0xff]
        %v3010 = vld [vmem:[%s12 + $0x170] sm:$0xff]
        %v3011 = vld [vmem:[%s12 + $0x178] sm:$0xff]
        %v3012 = vld [vmem:[%s12 + $0x180] sm:$0xff]
        %v3013 = vld [vmem:[%s12 + $0x188] sm:$0xff]
        %v3014 = vld [vmem:[%s12 + $0x190] sm:$0xff]
        %v3015 = vld [vmem:[%s12 + $0x198] sm:$0xff]
        %v3016 = vld [vmem:[%s12 + $0x1a0] sm:$0xff]
        %v3017 = vld [vmem:[%s12 + $0x1a8] sm:$0xff]
        %v3018 = vld [vmem:[%s12 + $0x1b0] sm:$0xff]
        %v3019 = vld [vmem:[%s12 + $0x1b8] sm:$0xff]
        %v3020 = vld [vmem:[%s12 + $0x1c0] sm:$0xff]
        %v3021 = vld [vmem:[%s12 + $0x1c8] sm:$0xff]
        %v3022 = vld [vmem:[%s12 + $0x1d0] sm:$0xff]
        %v3023 = vld [vmem:[%s12 + $0x1d8] sm:$0xff]
        %v3024 = vld [vmem:[%s12 + $0x1e0] sm:$0xff]
        %v3025 = vld [vmem:[%s12 + $0x1e8] sm:$0xff]
        %v3026 = vld [vmem:[%s12 + $0x1f0] sm:$0xff]
        %v3027 = vld [vmem:[%s12 + $0x1f8] sm:$0xff]
        %v3028 = vld [vmem:[%s13] sm:$0x3]
        %v3030 = vlaneseq
        %v3031 = vshrl.u32 %v3030, 7
        %v3032 = vsub.s32 0, %v3031
        %v3033 = vrot.slane %v3028, %v3032
        %v3034 = vlaneseq
        %v3035 = vshrl.u32 %v3034, 7
        %v3036 = vsub.s32 1, %v3035
        %v3037 = vrot.slane %v3028, %v3036
        %v3104 = vunpack.c.l.b16 %v2964
        %v3105 = vunpack.c.h.b16 %v2964
        %v3106 = vunpack.c.l.b16 %v2965
        %v3107 = vunpack.c.h.b16 %v2965
        %v3108 = vunpack.c.l.b16 %v2966
        %v3109 = vunpack.c.h.b16 %v2966
        %v3110 = vunpack.c.l.b16 %v2967
        %v3111 = vunpack.c.h.b16 %v2967
        %v3112 = vunpack.c.l.b16 %v2968
        %v3113 = vunpack.c.h.b16 %v2968
        %v3114 = vunpack.c.l.b16 %v2969
        %v3115 = vunpack.c.h.b16 %v2969
        %v3116 = vunpack.c.l.b16 %v2970
        %v3117 = vunpack.c.h.b16 %v2970
        %v3118 = vunpack.c.l.b16 %v2971
        %v3119 = vunpack.c.h.b16 %v2971
        %v3120 = vunpack.c.l.b16 %v2972
        %v3121 = vunpack.c.h.b16 %v2972
        %v3122 = vunpack.c.l.b16 %v2973
        %v3123 = vunpack.c.h.b16 %v2973
        %v3124 = vunpack.c.l.b16 %v2974
        %v3125 = vunpack.c.h.b16 %v2974
        %v3126 = vunpack.c.l.b16 %v2975
        %v3127 = vunpack.c.h.b16 %v2975
        %v3128 = vunpack.c.l.b16 %v2976
        %v3129 = vunpack.c.h.b16 %v2976
        %v3130 = vunpack.c.l.b16 %v2977
        %v3131 = vunpack.c.h.b16 %v2977
        %v3132 = vunpack.c.l.b16 %v2978
        %v3133 = vunpack.c.h.b16 %v2978
        %v3134 = vunpack.c.l.b16 %v2979
        %v3135 = vunpack.c.h.b16 %v2979
        %v3136 = vunpack.c.l.b16 %v2980
        %v3137 = vunpack.c.h.b16 %v2980
        %v3138 = vunpack.c.l.b16 %v2981
        %v3139 = vunpack.c.h.b16 %v2981
        %v3140 = vunpack.c.l.b16 %v2982
        %v3141 = vunpack.c.h.b16 %v2982
        %v3142 = vunpack.c.l.b16 %v2983
        %v3143 = vunpack.c.h.b16 %v2983
        %v3144 = vunpack.c.l.b16 %v2984
        %v3145 = vunpack.c.h.b16 %v2984
        %v3146 = vunpack.c.l.b16 %v2985
        %v3147 = vunpack.c.h.b16 %v2985
        %v3148 = vunpack.c.l.b16 %v2986
        %v3149 = vunpack.c.h.b16 %v2986
        %v3150 = vunpack.c.l.b16 %v2987
        %v3151 = vunpack.c.h.b16 %v2987
        %v3152 = vunpack.c.l.b16 %v2988
        %v3153 = vunpack.c.h.b16 %v2988
        %v3154 = vunpack.c.l.b16 %v2989
        %v3155 = vunpack.c.h.b16 %v2989
        %v3156 = vunpack.c.l.b16 %v2990
        %v3157 = vunpack.c.h.b16 %v2990
        %v3158 = vunpack.c.l.b16 %v2991
        %v3159 = vunpack.c.h.b16 %v2991
        %v3160 = vunpack.c.l.b16 %v2992
        %v3161 = vunpack.c.h.b16 %v2992
        %v3162 = vunpack.c.l.b16 %v2993
        %v3163 = vunpack.c.h.b16 %v2993
        %v3164 = vunpack.c.l.b16 %v2994
        %v3165 = vunpack.c.h.b16 %v2994
        %v3166 = vunpack.c.l.b16 %v2995
        %v3167 = vunpack.c.h.b16 %v2995
        %v3168 = vunpack.c.l.b16 %v2996
        %v3169 = vunpack.c.h.b16 %v2996
        %v3170 = vunpack.c.l.b16 %v2997
        %v3171 = vunpack.c.h.b16 %v2997
        %v3172 = vunpack.c.l.b16 %v2998
        %v3173 = vunpack.c.h.b16 %v2998
        %v3174 = vunpack.c.l.b16 %v2999
        %v3175 = vunpack.c.h.b16 %v2999
        %v3176 = vunpack.c.l.b16 %v3000
        %v3177 = vunpack.c.h.b16 %v3000
        %v3178 = vunpack.c.l.b16 %v3001
        %v3179 = vunpack.c.h.b16 %v3001
        %v3180 = vunpack.c.l.b16 %v3002
        %v3181 = vunpack.c.h.b16 %v3002
        %v3182 = vunpack.c.l.b16 %v3003
        %v3183 = vunpack.c.h.b16 %v3003
        %v3184 = vunpack.c.l.b16 %v3004
        %v3185 = vunpack.c.h.b16 %v3004
        %v3186 = vunpack.c.l.b16 %v3005
        %v3187 = vunpack.c.h.b16 %v3005
        %v3188 = vunpack.c.l.b16 %v3006
        %v3189 = vunpack.c.h.b16 %v3006
        %v3190 = vunpack.c.l.b16 %v3007
        %v3191 = vunpack.c.h.b16 %v3007
        %v3192 = vunpack.c.l.b16 %v3008
        %v3193 = vunpack.c.h.b16 %v3008
        %v3194 = vunpack.c.l.b16 %v3009
        %v3195 = vunpack.c.h.b16 %v3009
        %v3196 = vunpack.c.l.b16 %v3010
        %v3197 = vunpack.c.h.b16 %v3010
        %v3198 = vunpack.c.l.b16 %v3011
        %v3199 = vunpack.c.h.b16 %v3011
        %v3200 = vunpack.c.l.b16 %v3012
        %v3201 = vunpack.c.h.b16 %v3012
        %v3202 = vunpack.c.l.b16 %v3013
        %v3203 = vunpack.c.h.b16 %v3013
        %v3204 = vunpack.c.l.b16 %v3014
        %v3205 = vunpack.c.h.b16 %v3014
        %v3206 = vunpack.c.l.b16 %v3015
        %v3207 = vunpack.c.h.b16 %v3015
        %v3208 = vunpack.c.l.b16 %v3016
        %v3209 = vunpack.c.h.b16 %v3016
        %v3210 = vunpack.c.l.b16 %v3017
        %v3211 = vunpack.c.h.b16 %v3017
        %v3212 = vunpack.c.l.b16 %v3018
        %v3213 = vunpack.c.h.b16 %v3018
        %v3214 = vunpack.c.l.b16 %v3019
        %v3215 = vunpack.c.h.b16 %v3019
        %v3216 = vunpack.c.l.b16 %v3020
        %v3217 = vunpack.c.h.b16 %v3020
        %v3218 = vunpack.c.l.b16 %v3021
        %v3219 = vunpack.c.h.b16 %v3021
        %v3220 = vunpack.c.l.b16 %v3022
        %v3221 = vunpack.c.h.b16 %v3022
        %v3222 = vunpack.c.l.b16 %v3023
        %v3223 = vunpack.c.h.b16 %v3023
        %v3224 = vunpack.c.l.b16 %v3024
        %v3225 = vunpack.c.h.b16 %v3024
        %v3226 = vunpack.c.l.b16 %v3025
        %v3227 = vunpack.c.h.b16 %v3025
        %v3228 = vunpack.c.l.b16 %v3026
        %v3229 = vunpack.c.h.b16 %v3026
        %v3230 = vunpack.c.l.b16 %v3027
        %v3231 = vunpack.c.h.b16 %v3027
        %v3232 = vpack.c.b16 %v3106, %v3104
        %v3233 = vpack.c.b16 %v3107, %v3105
        %v3234 = vpack.c.b16 %v3110, %v3108
        %v3235 = vpack.c.b16 %v3111, %v3109
        %v3236 = vpack.c.b16 %v3114, %v3112
        %v3237 = vpack.c.b16 %v3115, %v3113
        %v3238 = vpack.c.b16 %v3118, %v3116
        %v3239 = vpack.c.b16 %v3119, %v3117
        %v3240 = vpack.c.b16 %v3122, %v3120
        %v3241 = vpack.c.b16 %v3123, %v3121
        %v3242 = vpack.c.b16 %v3126, %v3124
        %v3243 = vpack.c.b16 %v3127, %v3125
        %v3244 = vpack.c.b16 %v3130, %v3128
        %v3245 = vpack.c.b16 %v3131, %v3129
        %v3246 = vpack.c.b16 %v3134, %v3132
        %v3247 = vpack.c.b16 %v3135, %v3133
        %v3248 = vpack.c.b16 %v3138, %v3136
        %v3249 = vpack.c.b16 %v3139, %v3137
        %v3250 = vpack.c.b16 %v3142, %v3140
        %v3251 = vpack.c.b16 %v3143, %v3141
        %v3252 = vpack.c.b16 %v3146, %v3144
        %v3253 = vpack.c.b16 %v3147, %v3145
        %v3254 = vpack.c.b16 %v3150, %v3148
        %v3255 = vpack.c.b16 %v3151, %v3149
        %v3256 = vpack.c.b16 %v3154, %v3152
        %v3257 = vpack.c.b16 %v3155, %v3153
        %v3258 = vpack.c.b16 %v3158, %v3156
        %v3259 = vpack.c.b16 %v3159, %v3157
        %v3260 = vpack.c.b16 %v3162, %v3160
        %v3261 = vpack.c.b16 %v3163, %v3161
        %v3262 = vpack.c.b16 %v3166, %v3164
        %v3263 = vpack.c.b16 %v3167, %v3165
        %v3264 = vpack.c.b16 %v3170, %v3168
        %v3265 = vpack.c.b16 %v3171, %v3169
        %v3266 = vpack.c.b16 %v3174, %v3172
        %v3267 = vpack.c.b16 %v3175, %v3173
        %v3268 = vpack.c.b16 %v3178, %v3176
        %v3269 = vpack.c.b16 %v3179, %v3177
        %v3270 = vpack.c.b16 %v3182, %v3180
        %v3271 = vpack.c.b16 %v3183, %v3181
        %v3272 = vpack.c.b16 %v3186, %v3184
        %v3273 = vpack.c.b16 %v3187, %v3185
        %v3274 = vpack.c.b16 %v3190, %v3188
        %v3275 = vpack.c.b16 %v3191, %v3189
        %v3276 = vpack.c.b16 %v3194, %v3192
        %v3277 = vpack.c.b16 %v3195, %v3193
        %v3278 = vpack.c.b16 %v3198, %v3196
        %v3279 = vpack.c.b16 %v3199, %v3197
        %v3280 = vpack.c.b16 %v3202, %v3200
        %v3281 = vpack.c.b16 %v3203, %v3201
        %v3282 = vpack.c.b16 %v3206, %v3204
        %v3283 = vpack.c.b16 %v3207, %v3205
        %v3284 = vpack.c.b16 %v3210, %v3208
        %v3285 = vpack.c.b16 %v3211, %v3209
        %v3286 = vpack.c.b16 %v3214, %v3212
        %v3287 = vpack.c.b16 %v3215, %v3213
        %v3288 = vpack.c.b16 %v3218, %v3216
        %v3289 = vpack.c.b16 %v3219, %v3217
        %v3290 = vpack.c.b16 %v3222, %v3220
        %v3291 = vpack.c.b16 %v3223, %v3221
        %v3292 = vpack.c.b16 %v3226, %v3224
        %v3293 = vpack.c.b16 %v3227, %v3225
        %v3294 = vpack.c.b16 %v3230, %v3228
        %v3295 = vpack.c.b16 %v3231, %v3229
        %3360 = vmatprep.subr.bf16.mxu0 %v3233
        %3361 = vmatpush1.bf16.msra.mxu0 %v3232
        %3362 = vmatprep.subr.bf16.mxu0 %v3235
        %3363 = vmatpush1.bf16.msra.mxu0 %v3234
        %3364 = vmatprep.subr.bf16.mxu0 %v3237
        %3365 = vmatpush1.bf16.msra.mxu0 %v3236
        %3366 = vmatprep.subr.bf16.mxu0 %v3239
        %3367 = vmatpush1.bf16.msra.mxu0 %v3238
        %3368 = vmatprep.subr.bf16.mxu0 %v3241
        %3369 = vmatpush1.bf16.msra.mxu0 %v3240
        %3370 = vmatprep.subr.bf16.mxu0 %v3243
        %3371 = vmatpush1.bf16.msra.mxu0 %v3242
        %3372 = vmatprep.subr.bf16.mxu0 %v3245
        %3373 = vmatpush1.bf16.msra.mxu0 %v3244
        %3374 = vmatprep.subr.bf16.mxu0 %v3247
        %3375 = vmatpush1.bf16.msra.mxu0 %v3246
        %3376 = vmatprep.subr.bf16.mxu0 %v3249
        %3377 = vmatpush1.bf16.msra.mxu0 %v3248
        %3378 = vmatprep.subr.bf16.mxu0 %v3251
        %3379 = vmatpush1.bf16.msra.mxu0 %v3250
        %3380 = vmatprep.subr.bf16.mxu0 %v3253
        %3381 = vmatpush1.bf16.msra.mxu0 %v3252
        %3382 = vmatprep.subr.bf16.mxu0 %v3255
        %3383 = vmatpush1.bf16.msra.mxu0 %v3254
        %3384 = vmatprep.subr.bf16.mxu0 %v3257
        %3385 = vmatpush1.bf16.msra.mxu0 %v3256
        %3386 = vmatprep.subr.bf16.mxu0 %v3259
        %3387 = vmatpush1.bf16.msra.mxu0 %v3258
        %3388 = vmatprep.subr.bf16.mxu0 %v3261
        %3389 = vmatpush1.bf16.msra.mxu0 %v3260
        %3390 = vmatprep.subr.bf16.mxu0 %v3263
        %3391 = vmatpush1.bf16.msra.mxu0 %v3262
        %3392 = vmatprep.mubr.bf16.mxu0 %v2961
        %3393 = vmatmul.mubr.bf16.gmra.mrb[0].mxu0 %v2960
        %v3394 = vpop.f32.mrb[0].mxu0
        %v3395 = vadd.f32 %v3033, %v3394
        %v3396 = vpop.f32.mrb[0].mxu0
        %v3397 = vadd.f32 %v3037, %v3396
        %v3398 = vpop.f32.mrb[0].mxu0
        %v3399 = vpop.f32.mrb[0].mxu0
        %3400 = vdwg.mxu0
        %3401 = vmatprep.subr.bf16.mxu0 %v3265
        %3402 = vmatpush1.bf16.msra.mxu0 %v3264
        %3403 = vmatprep.subr.bf16.mxu0 %v3267
        %3404 = vmatpush1.bf16.msra.mxu0 %v3266
        %3405 = vmatprep.subr.bf16.mxu0 %v3269
        %3406 = vmatpush1.bf16.msra.mxu0 %v3268
        %3407 = vmatprep.subr.bf16.mxu0 %v3271
        %3408 = vmatpush1.bf16.msra.mxu0 %v3270
        %3409 = vmatprep.subr.bf16.mxu0 %v3273
        %3410 = vmatpush1.bf16.msra.mxu0 %v3272
        %3411 = vmatprep.subr.bf16.mxu0 %v3275
        %3412 = vmatpush1.bf16.msra.mxu0 %v3274
        %3413 = vmatprep.subr.bf16.mxu0 %v3277
        %3414 = vmatpush1.bf16.msra.mxu0 %v3276
        %3415 = vmatprep.subr.bf16.mxu0 %v3279
        %3416 = vmatpush1.bf16.msra.mxu0 %v3278
        %3417 = vmatprep.subr.bf16.mxu0 %v3281
        %3418 = vmatpush1.bf16.msra.mxu0 %v3280
        %3419 = vmatprep.subr.bf16.mxu0 %v3283
        %3420 = vmatpush1.bf16.msra.mxu0 %v3282
        %3421 = vmatprep.subr.bf16.mxu0 %v3285
        %3422 = vmatpush1.bf16.msra.mxu0 %v3284
        %3423 = vmatprep.subr.bf16.mxu0 %v3287
        %3424 = vmatpush1.bf16.msra.mxu0 %v3286
        %3425 = vmatprep.subr.bf16.mxu0 %v3289
        %3426 = vmatpush1.bf16.msra.mxu0 %v3288
        %3427 = vmatprep.subr.bf16.mxu0 %v3291
        %3428 = vmatpush1.bf16.msra.mxu0 %v3290
        %3429 = vmatprep.subr.bf16.mxu0 %v3293
        %3430 = vmatpush1.bf16.msra.mxu0 %v3292
        %3431 = vmatprep.subr.bf16.mxu0 %v3295
        %3432 = vmatpush1.bf16.msra.mxu0 %v3294
        %3433 = vmatprep.mubr.bf16.mxu0 %v2963
        %3434 = vmatmul.mubr.bf16.gmra.mrb[0].mxu0 %v2962
        %v3435 = vpop.f32.mrb[0].mxu0
        %v3436 = vadd.f32 %v3395, %v3435
        %v3437 = vpop.f32.mrb[0].mxu0
        %v3438 = vadd.f32 %v3397, %v3437
        %v3439 = vpop.f32.mrb[0].mxu0
        %v3440 = vpop.f32.mrb[0].mxu0
        %3441 = vdwg.mxu0
        %v3442 = vadd.f32 %v3436, %v2432
        %v3443 = vadd.f32 %v3438, %v2433
        %v3444 = vld [vmem:[%s14] sm:$0x3]
        %v3445 = vld [vmem:[%s15] sm:$0x3]
        %v3446 = vadd.f32 %v3442, %v3443
        %3447 = vadd.xlane.f32.xlu0 %v3446
        %v3448 = vpop.xlane.xlu0 %3447
        %v3449 = vmul.f32 %v3448, %v687
        %v3450 = vsub.f32 %v3442, %v3449
        %v3451 = vsub.f32 %v3443, %v3449
        %v3452 = vmul.f32 %v3450, %v3450
        %v3453 = vmul.f32 %v3451, %v3451
        %v3454 = vadd.f32 %v3452, %v3453
        %3455 = vadd.xlane.f32.xlu0 %v3454
        %v3456 = vpop.xlane.xlu0 %3455
        %v3457 = vmul.f32 %v3456, %v687
        %v3458 = vadd.f32 %v3457, 1e-12
        %v3459 = vrsqrt.pop %v3458
        %v3460 = vmul.f32 %v3450, %v3459
        %v3461 = vmul.f32 %v3451, %v3459
        %v3463 = vlaneseq
        %v3464 = vshrl.u32 %v3463, 7
        %v3465 = vsub.s32 0, %v3464
        %v3466 = vrot.slane %v3444, %v3465
        %v3467 = vlaneseq
        %v3468 = vshrl.u32 %v3467, 7
        %v3469 = vsub.s32 1, %v3468
        %v3470 = vrot.slane %v3444, %v3469
        %v3473 = vmul.f32 %v3460, %v3466
        %v3474 = vmul.f32 %v3461, %v3470
        %v3476 = vlaneseq
        %v3477 = vshrl.u32 %v3476, 7
        %v3478 = vsub.s32 0, %v3477
        %v3479 = vrot.slane %v3445, %v3478
        %v3480 = vlaneseq
        %v3481 = vshrl.u32 %v3480, 7
        %v3482 = vsub.s32 1, %v3481
        %v3483 = vrot.slane %v3445, %v3482
        %v3486 = vadd.f32 %v3473, %v3479
        %v3487 = vadd.f32 %v3474, %v3483
        %v3488 = vpack.c.bf16 %v3486, %v3486
        %v3489 = vpack.c.bf16 %v3487, %v3487
        %s3490 = scalar_lea.vmem %s4, 768
        %v3491 = vld [vmem:[%s3490] sm:$0xff]
        %v3492 = vld [vmem:[%s3490 + $0x8] sm:$0xff]
        %v3493 = vld [vmem:[%s3490 + $0x10] sm:$0xff]
        %v3494 = vld [vmem:[%s3490 + $0x18] sm:$0xff]
        %v3495 = vld [vmem:[%s3490 + $0x20] sm:$0xff]
        %v3496 = vld [vmem:[%s3490 + $0x28] sm:$0xff]
        %v3497 = vld [vmem:[%s3490 + $0x30] sm:$0xff]
        %v3498 = vld [vmem:[%s3490 + $0x38] sm:$0xff]
        %v3499 = vld [vmem:[%s3490 + $0x40] sm:$0xff]
        %v3500 = vld [vmem:[%s3490 + $0x48] sm:$0xff]
        %v3501 = vld [vmem:[%s3490 + $0x50] sm:$0xff]
        %v3502 = vld [vmem:[%s3490 + $0x58] sm:$0xff]
        %v3503 = vld [vmem:[%s3490 + $0x60] sm:$0xff]
        %v3504 = vld [vmem:[%s3490 + $0x68] sm:$0xff]
        %v3505 = vld [vmem:[%s3490 + $0x70] sm:$0xff]
        %v3506 = vld [vmem:[%s3490 + $0x78] sm:$0xff]
        %v3507 = vld [vmem:[%s3490 + $0x80] sm:$0xff]
        %v3508 = vld [vmem:[%s3490 + $0x88] sm:$0xff]
        %v3509 = vld [vmem:[%s3490 + $0x90] sm:$0xff]
        %v3510 = vld [vmem:[%s3490 + $0x98] sm:$0xff]
        %v3511 = vld [vmem:[%s3490 + $0xa0] sm:$0xff]
        %v3512 = vld [vmem:[%s3490 + $0xa8] sm:$0xff]
        %v3513 = vld [vmem:[%s3490 + $0xb0] sm:$0xff]
        %v3514 = vld [vmem:[%s3490 + $0xb8] sm:$0xff]
        %v3515 = vld [vmem:[%s3490 + $0xc0] sm:$0xff]
        %v3516 = vld [vmem:[%s3490 + $0xc8] sm:$0xff]
        %v3517 = vld [vmem:[%s3490 + $0xd0] sm:$0xff]
        %v3518 = vld [vmem:[%s3490 + $0xd8] sm:$0xff]
        %v3519 = vld [vmem:[%s3490 + $0xe0] sm:$0xff]
        %v3520 = vld [vmem:[%s3490 + $0xe8] sm:$0xff]
        %v3521 = vld [vmem:[%s3490 + $0xf0] sm:$0xff]
        %v3522 = vld [vmem:[%s3490 + $0xf8] sm:$0xff]
        %v3523 = vld [vmem:[%s3490 + $0x100] sm:$0xff]
        %v3524 = vld [vmem:[%s3490 + $0x108] sm:$0xff]
        %v3525 = vld [vmem:[%s3490 + $0x110] sm:$0xff]
        %v3526 = vld [vmem:[%s3490 + $0x118] sm:$0xff]
        %v3527 = vld [vmem:[%s3490 + $0x120] sm:$0xff]
        %v3528 = vld [vmem:[%s3490 + $0x128] sm:$0xff]
        %v3529 = vld [vmem:[%s3490 + $0x130] sm:$0xff]
        %v3530 = vld [vmem:[%s3490 + $0x138] sm:$0xff]
        %v3531 = vld [vmem:[%s3490 + $0x140] sm:$0xff]
        %v3532 = vld [vmem:[%s3490 + $0x148] sm:$0xff]
        %v3533 = vld [vmem:[%s3490 + $0x150] sm:$0xff]
        %v3534 = vld [vmem:[%s3490 + $0x158] sm:$0xff]
        %v3535 = vld [vmem:[%s3490 + $0x160] sm:$0xff]
        %v3536 = vld [vmem:[%s3490 + $0x168] sm:$0xff]
        %v3537 = vld [vmem:[%s3490 + $0x170] sm:$0xff]
        %v3538 = vld [vmem:[%s3490 + $0x178] sm:$0xff]
        %v3539 = vld [vmem:[%s3490 + $0x180] sm:$0xff]
        %v3540 = vld [vmem:[%s3490 + $0x188] sm:$0xff]
        %v3541 = vld [vmem:[%s3490 + $0x190] sm:$0xff]
        %v3542 = vld [vmem:[%s3490 + $0x198] sm:$0xff]
        %v3543 = vld [vmem:[%s3490 + $0x1a0] sm:$0xff]
        %v3544 = vld [vmem:[%s3490 + $0x1a8] sm:$0xff]
        %v3545 = vld [vmem:[%s3490 + $0x1b0] sm:$0xff]
        %v3546 = vld [vmem:[%s3490 + $0x1b8] sm:$0xff]
        %v3547 = vld [vmem:[%s3490 + $0x1c0] sm:$0xff]
        %v3548 = vld [vmem:[%s3490 + $0x1c8] sm:$0xff]
        %v3549 = vld [vmem:[%s3490 + $0x1d0] sm:$0xff]
        %v3550 = vld [vmem:[%s3490 + $0x1d8] sm:$0xff]
        %v3551 = vld [vmem:[%s3490 + $0x1e0] sm:$0xff]
        %v3552 = vld [vmem:[%s3490 + $0x1e8] sm:$0xff]
        %v3553 = vld [vmem:[%s3490 + $0x1f0] sm:$0xff]
        %v3554 = vld [vmem:[%s3490 + $0x1f8] sm:$0xff]
        %v3555 = vld [vmem:[%s3490 + $0x200] sm:$0xff]
        %v3556 = vld [vmem:[%s3490 + $0x208] sm:$0xff]
        %v3557 = vld [vmem:[%s3490 + $0x210] sm:$0xff]
        %v3558 = vld [vmem:[%s3490 + $0x218] sm:$0xff]
        %v3559 = vld [vmem:[%s3490 + $0x220] sm:$0xff]
        %v3560 = vld [vmem:[%s3490 + $0x228] sm:$0xff]
        %v3561 = vld [vmem:[%s3490 + $0x230] sm:$0xff]
        %v3562 = vld [vmem:[%s3490 + $0x238] sm:$0xff]
        %v3563 = vld [vmem:[%s3490 + $0x240] sm:$0xff]
        %v3564 = vld [vmem:[%s3490 + $0x248] sm:$0xff]
        %v3565 = vld [vmem:[%s3490 + $0x250] sm:$0xff]
        %v3566 = vld [vmem:[%s3490 + $0x258] sm:$0xff]
        %v3567 = vld [vmem:[%s3490 + $0x260] sm:$0xff]
        %v3568 = vld [vmem:[%s3490 + $0x268] sm:$0xff]
        %v3569 = vld [vmem:[%s3490 + $0x270] sm:$0xff]
        %v3570 = vld [vmem:[%s3490 + $0x278] sm:$0xff]
        %v3571 = vld [vmem:[%s3490 + $0x280] sm:$0xff]
        %v3572 = vld [vmem:[%s3490 + $0x288] sm:$0xff]
        %v3573 = vld [vmem:[%s3490 + $0x290] sm:$0xff]
        %v3574 = vld [vmem:[%s3490 + $0x298] sm:$0xff]
        %v3575 = vld [vmem:[%s3490 + $0x2a0] sm:$0xff]
        %v3576 = vld [vmem:[%s3490 + $0x2a8] sm:$0xff]
        %v3577 = vld [vmem:[%s3490 + $0x2b0] sm:$0xff]
        %v3578 = vld [vmem:[%s3490 + $0x2b8] sm:$0xff]
        %v3579 = vld [vmem:[%s3490 + $0x2c0] sm:$0xff]
        %v3580 = vld [vmem:[%s3490 + $0x2c8] sm:$0xff]
        %v3581 = vld [vmem:[%s3490 + $0x2d0] sm:$0xff]
        %v3582 = vld [vmem:[%s3490 + $0x2d8] sm:$0xff]
        %v3583 = vld [vmem:[%s3490 + $0x2e0] sm:$0xff]
        %v3584 = vld [vmem:[%s3490 + $0x2e8] sm:$0xff]
        %v3585 = vld [vmem:[%s3490 + $0x2f0] sm:$0xff]
        %v3586 = vld [vmem:[%s3490 + $0x2f8] sm:$0xff]
        %s3587 = scalar_lea.vmem %s5, 6
        %v3588 = vld [vmem:[%s3587] sm:$0x3f]
        %v3590 = vlaneseq
        %v3591 = vshrl.u32 %v3590, 7
        %v3592 = vsub.s32 0, %v3591
        %v3593 = vrot.slane %v3588, %v3592
        %v3594 = vlaneseq
        %v3595 = vshrl.u32 %v3594, 7
        %v3596 = vsub.s32 1, %v3595
        %v3597 = vrot.slane %v3588, %v3596
        %v3598 = vlaneseq
        %v3599 = vshrl.u32 %v3598, 7
        %v3600 = vsub.s32 2, %v3599
        %v3601 = vrot.slane %v3588, %v3600
        %v3602 = vlaneseq
        %v3603 = vshrl.u32 %v3602, 7
        %v3604 = vsub.s32 3, %v3603
        %v3605 = vrot.slane %v3588, %v3604
        %v3606 = vlaneseq
        %v3607 = vshrl.u32 %v3606, 7
        %v3608 = vsub.s32 4, %v3607
        %v3609 = vrot.slane %v3588, %v3608
        %v3610 = vlaneseq
        %v3611 = vshrl.u32 %v3610, 7
        %v3612 = vsub.s32 5, %v3611
        %v3613 = vrot.slane %v3588, %v3612
        %v3716 = vunpack.c.l.b16 %v3491
        %v3717 = vunpack.c.h.b16 %v3491
        %v3718 = vunpack.c.l.b16 %v3492
        %v3719 = vunpack.c.h.b16 %v3492
        %v3720 = vunpack.c.l.b16 %v3493
        %v3721 = vunpack.c.h.b16 %v3493
        %v3722 = vunpack.c.l.b16 %v3494
        %v3723 = vunpack.c.h.b16 %v3494
        %v3724 = vunpack.c.l.b16 %v3495
        %v3725 = vunpack.c.h.b16 %v3495
        %v3726 = vunpack.c.l.b16 %v3496
        %v3727 = vunpack.c.h.b16 %v3496
        %v3728 = vunpack.c.l.b16 %v3497
        %v3729 = vunpack.c.h.b16 %v3497
        %v3730 = vunpack.c.l.b16 %v3498
        %v3731 = vunpack.c.h.b16 %v3498
        %v3732 = vunpack.c.l.b16 %v3499
        %v3733 = vunpack.c.h.b16 %v3499
        %v3734 = vunpack.c.l.b16 %v3500
        %v3735 = vunpack.c.h.b16 %v3500
        %v3736 = vunpack.c.l.b16 %v3501
        %v3737 = vunpack.c.h.b16 %v3501
        %v3738 = vunpack.c.l.b16 %v3502
        %v3739 = vunpack.c.h.b16 %v3502
        %v3740 = vunpack.c.l.b16 %v3503
        %v3741 = vunpack.c.h.b16 %v3503
        %v3742 = vunpack.c.l.b16 %v3504
        %v3743 = vunpack.c.h.b16 %v3504
        %v3744 = vunpack.c.l.b16 %v3505
        %v3745 = vunpack.c.h.b16 %v3505
        %v3746 = vunpack.c.l.b16 %v3506
        %v3747 = vunpack.c.h.b16 %v3506
        %v3748 = vunpack.c.l.b16 %v3507
        %v3749 = vunpack.c.h.b16 %v3507
        %v3750 = vunpack.c.l.b16 %v3508
        %v3751 = vunpack.c.h.b16 %v3508
        %v3752 = vunpack.c.l.b16 %v3509
        %v3753 = vunpack.c.h.b16 %v3509
        %v3754 = vunpack.c.l.b16 %v3510
        %v3755 = vunpack.c.h.b16 %v3510
        %v3756 = vunpack.c.l.b16 %v3511
        %v3757 = vunpack.c.h.b16 %v3511
        %v3758 = vunpack.c.l.b16 %v3512
        %v3759 = vunpack.c.h.b16 %v3512
        %v3760 = vunpack.c.l.b16 %v3513
        %v3761 = vunpack.c.h.b16 %v3513
        %v3762 = vunpack.c.l.b16 %v3514
        %v3763 = vunpack.c.h.b16 %v3514
        %v3764 = vunpack.c.l.b16 %v3515
        %v3765 = vunpack.c.h.b16 %v3515
        %v3766 = vunpack.c.l.b16 %v3516
        %v3767 = vunpack.c.h.b16 %v3516
        %v3768 = vunpack.c.l.b16 %v3517
        %v3769 = vunpack.c.h.b16 %v3517
        %v3770 = vunpack.c.l.b16 %v3518
        %v3771 = vunpack.c.h.b16 %v3518
        %v3772 = vunpack.c.l.b16 %v3519
        %v3773 = vunpack.c.h.b16 %v3519
        %v3774 = vunpack.c.l.b16 %v3520
        %v3775 = vunpack.c.h.b16 %v3520
        %v3776 = vunpack.c.l.b16 %v3521
        %v3777 = vunpack.c.h.b16 %v3521
        %v3778 = vunpack.c.l.b16 %v3522
        %v3779 = vunpack.c.h.b16 %v3522
        %v3780 = vunpack.c.l.b16 %v3523
        %v3781 = vunpack.c.h.b16 %v3523
        %v3782 = vunpack.c.l.b16 %v3524
        %v3783 = vunpack.c.h.b16 %v3524
        %v3784 = vunpack.c.l.b16 %v3525
        %v3785 = vunpack.c.h.b16 %v3525
        %v3786 = vunpack.c.l.b16 %v3526
        %v3787 = vunpack.c.h.b16 %v3526
        %v3788 = vunpack.c.l.b16 %v3527
        %v3789 = vunpack.c.h.b16 %v3527
        %v3790 = vunpack.c.l.b16 %v3528
        %v3791 = vunpack.c.h.b16 %v3528
        %v3792 = vunpack.c.l.b16 %v3529
        %v3793 = vunpack.c.h.b16 %v3529
        %v3794 = vunpack.c.l.b16 %v3530
        %v3795 = vunpack.c.h.b16 %v3530
        %v3796 = vunpack.c.l.b16 %v3531
        %v3797 = vunpack.c.h.b16 %v3531
        %v3798 = vunpack.c.l.b16 %v3532
        %v3799 = vunpack.c.h.b16 %v3532
        %v3800 = vunpack.c.l.b16 %v3533
        %v3801 = vunpack.c.h.b16 %v3533
        %v3802 = vunpack.c.l.b16 %v3534
        %v3803 = vunpack.c.h.b16 %v3534
        %v3804 = vunpack.c.l.b16 %v3535
        %v3805 = vunpack.c.h.b16 %v3535
        %v3806 = vunpack.c.l.b16 %v3536
        %v3807 = vunpack.c.h.b16 %v3536
        %v3808 = vunpack.c.l.b16 %v3537
        %v3809 = vunpack.c.h.b16 %v3537
        %v3810 = vunpack.c.l.b16 %v3538
        %v3811 = vunpack.c.h.b16 %v3538
        %v3812 = vunpack.c.l.b16 %v3539
        %v3813 = vunpack.c.h.b16 %v3539
        %v3814 = vunpack.c.l.b16 %v3540
        %v3815 = vunpack.c.h.b16 %v3540
        %v3816 = vunpack.c.l.b16 %v3541
        %v3817 = vunpack.c.h.b16 %v3541
        %v3818 = vunpack.c.l.b16 %v3542
        %v3819 = vunpack.c.h.b16 %v3542
        %v3820 = vunpack.c.l.b16 %v3543
        %v3821 = vunpack.c.h.b16 %v3543
        %v3822 = vunpack.c.l.b16 %v3544
        %v3823 = vunpack.c.h.b16 %v3544
        %v3824 = vunpack.c.l.b16 %v3545
        %v3825 = vunpack.c.h.b16 %v3545
        %v3826 = vunpack.c.l.b16 %v3546
        %v3827 = vunpack.c.h.b16 %v3546
        %v3828 = vunpack.c.l.b16 %v3547
        %v3829 = vunpack.c.h.b16 %v3547
        %v3830 = vunpack.c.l.b16 %v3548
        %v3831 = vunpack.c.h.b16 %v3548
        %v3832 = vunpack.c.l.b16 %v3549
        %v3833 = vunpack.c.h.b16 %v3549
        %v3834 = vunpack.c.l.b16 %v3550
        %v3835 = vunpack.c.h.b16 %v3550
        %v3836 = vunpack.c.l.b16 %v3551
        %v3837 = vunpack.c.h.b16 %v3551
        %v3838 = vunpack.c.l.b16 %v3552
        %v3839 = vunpack.c.h.b16 %v3552
        %v3840 = vunpack.c.l.b16 %v3553
        %v3841 = vunpack.c.h.b16 %v3553
        %v3842 = vunpack.c.l.b16 %v3554
        %v3843 = vunpack.c.h.b16 %v3554
        %v3844 = vunpack.c.l.b16 %v3555
        %v3845 = vunpack.c.h.b16 %v3555
        %v3846 = vunpack.c.l.b16 %v3556
        %v3847 = vunpack.c.h.b16 %v3556
        %v3848 = vunpack.c.l.b16 %v3557
        %v3849 = vunpack.c.h.b16 %v3557
        %v3850 = vunpack.c.l.b16 %v3558
        %v3851 = vunpack.c.h.b16 %v3558
        %v3852 = vunpack.c.l.b16 %v3559
        %v3853 = vunpack.c.h.b16 %v3559
        %v3854 = vunpack.c.l.b16 %v3560
        %v3855 = vunpack.c.h.b16 %v3560
        %v3856 = vunpack.c.l.b16 %v3561
        %v3857 = vunpack.c.h.b16 %v3561
        %v3858 = vunpack.c.l.b16 %v3562
        %v3859 = vunpack.c.h.b16 %v3562
        %v3860 = vunpack.c.l.b16 %v3563
        %v3861 = vunpack.c.h.b16 %v3563
        %v3862 = vunpack.c.l.b16 %v3564
        %v3863 = vunpack.c.h.b16 %v3564
        %v3864 = vunpack.c.l.b16 %v3565
        %v3865 = vunpack.c.h.b16 %v3565
        %v3866 = vunpack.c.l.b16 %v3566
        %v3867 = vunpack.c.h.b16 %v3566
        %v3868 = vunpack.c.l.b16 %v3567
        %v3869 = vunpack.c.h.b16 %v3567
        %v3870 = vunpack.c.l.b16 %v3568
        %v3871 = vunpack.c.h.b16 %v3568
        %v3872 = vunpack.c.l.b16 %v3569
        %v3873 = vunpack.c.h.b16 %v3569
        %v3874 = vunpack.c.l.b16 %v3570
        %v3875 = vunpack.c.h.b16 %v3570
        %v3876 = vunpack.c.l.b16 %v3571
        %v3877 = vunpack.c.h.b16 %v3571
        %v3878 = vunpack.c.l.b16 %v3572
        %v3879 = vunpack.c.h.b16 %v3572
        %v3880 = vunpack.c.l.b16 %v3573
        %v3881 = vunpack.c.h.b16 %v3573
        %v3882 = vunpack.c.l.b16 %v3574
        %v3883 = vunpack.c.h.b16 %v3574
        %v3884 = vunpack.c.l.b16 %v3575
        %v3885 = vunpack.c.h.b16 %v3575
        %v3886 = vunpack.c.l.b16 %v3576
        %v3887 = vunpack.c.h.b16 %v3576
        %v3888 = vunpack.c.l.b16 %v3577
        %v3889 = vunpack.c.h.b16 %v3577
        %v3890 = vunpack.c.l.b16 %v3578
        %v3891 = vunpack.c.h.b16 %v3578
        %v3892 = vunpack.c.l.b16 %v3579
        %v3893 = vunpack.c.h.b16 %v3579
        %v3894 = vunpack.c.l.b16 %v3580
        %v3895 = vunpack.c.h.b16 %v3580
        %v3896 = vunpack.c.l.b16 %v3581
        %v3897 = vunpack.c.h.b16 %v3581
        %v3898 = vunpack.c.l.b16 %v3582
        %v3899 = vunpack.c.h.b16 %v3582
        %v3900 = vunpack.c.l.b16 %v3583
        %v3901 = vunpack.c.h.b16 %v3583
        %v3902 = vunpack.c.l.b16 %v3584
        %v3903 = vunpack.c.h.b16 %v3584
        %v3904 = vunpack.c.l.b16 %v3585
        %v3905 = vunpack.c.h.b16 %v3585
        %v3906 = vunpack.c.l.b16 %v3586
        %v3907 = vunpack.c.h.b16 %v3586
        %v3908 = vpack.c.b16 %v3722, %v3716
        %v3909 = vpack.c.b16 %v3723, %v3717
        %v3910 = vpack.c.b16 %v3724, %v3718
        %v3911 = vpack.c.b16 %v3725, %v3719
        %v3912 = vpack.c.b16 %v3726, %v3720
        %v3913 = vpack.c.b16 %v3727, %v3721
        %v3914 = vpack.c.b16 %v3734, %v3728
        %v3915 = vpack.c.b16 %v3735, %v3729
        %v3916 = vpack.c.b16 %v3736, %v3730
        %v3917 = vpack.c.b16 %v3737, %v3731
        %v3918 = vpack.c.b16 %v3738, %v3732
        %v3919 = vpack.c.b16 %v3739, %v3733
        %v3920 = vpack.c.b16 %v3746, %v3740
        %v3921 = vpack.c.b16 %v3747, %v3741
        %v3922 = vpack.c.b16 %v3748, %v3742
        %v3923 = vpack.c.b16 %v3749, %v3743
        %v3924 = vpack.c.b16 %v3750, %v3744
        %v3925 = vpack.c.b16 %v3751, %v3745
        %v3926 = vpack.c.b16 %v3758, %v3752
        %v3927 = vpack.c.b16 %v3759, %v3753
        %v3928 = vpack.c.b16 %v3760, %v3754
        %v3929 = vpack.c.b16 %v3761, %v3755
        %v3930 = vpack.c.b16 %v3762, %v3756
        %v3931 = vpack.c.b16 %v3763, %v3757
        %v3932 = vpack.c.b16 %v3770, %v3764
        %v3933 = vpack.c.b16 %v3771, %v3765
        %v3934 = vpack.c.b16 %v3772, %v3766
        %v3935 = vpack.c.b16 %v3773, %v3767
        %v3936 = vpack.c.b16 %v3774, %v3768
        %v3937 = vpack.c.b16 %v3775, %v3769
        %v3938 = vpack.c.b16 %v3782, %v3776
        %v3939 = vpack.c.b16 %v3783, %v3777
        %v3940 = vpack.c.b16 %v3784, %v3778
        %v3941 = vpack.c.b16 %v3785, %v3779
        %v3942 = vpack.c.b16 %v3786, %v3780
        %v3943 = vpack.c.b16 %v3787, %v3781
        %v3944 = vpack.c.b16 %v3794, %v3788
        %v3945 = vpack.c.b16 %v3795, %v3789
        %v3946 = vpack.c.b16 %v3796, %v3790
        %v3947 = vpack.c.b16 %v3797, %v3791
        %v3948 = vpack.c.b16 %v3798, %v3792
        %v3949 = vpack.c.b16 %v3799, %v3793
        %v3950 = vpack.c.b16 %v3806, %v3800
        %v3951 = vpack.c.b16 %v3807, %v3801
        %v3952 = vpack.c.b16 %v3808, %v3802
        %v3953 = vpack.c.b16 %v3809, %v3803
        %v3954 = vpack.c.b16 %v3810, %v3804
        %v3955 = vpack.c.b16 %v3811, %v3805
        %v3956 = vpack.c.b16 %v3818, %v3812
        %v3957 = vpack.c.b16 %v3819, %v3813
        %v3958 = vpack.c.b16 %v3820, %v3814
        %v3959 = vpack.c.b16 %v3821, %v3815
        %v3960 = vpack.c.b16 %v3822, %v3816
        %v3961 = vpack.c.b16 %v3823, %v3817
        %v3962 = vpack.c.b16 %v3830, %v3824
        %v3963 = vpack.c.b16 %v3831, %v3825
        %v3964 = vpack.c.b16 %v3832, %v3826
        %v3965 = vpack.c.b16 %v3833, %v3827
        %v3966 = vpack.c.b16 %v3834, %v3828
        %v3967 = vpack.c.b16 %v3835, %v3829
        %v3968 = vpack.c.b16 %v3842, %v3836
        %v3969 = vpack.c.b16 %v3843, %v3837
        %v3970 = vpack.c.b16 %v3844, %v3838
        %v3971 = vpack.c.b16 %v3845, %v3839
        %v3972 = vpack.c.b16 %v3846, %v3840
        %v3973 = vpack.c.b16 %v3847, %v3841
        %v3974 = vpack.c.b16 %v3854, %v3848
        %v3975 = vpack.c.b16 %v3855, %v3849
        %v3976 = vpack.c.b16 %v3856, %v3850
        %v3977 = vpack.c.b16 %v3857, %v3851
        %v3978 = vpack.c.b16 %v3858, %v3852
        %v3979 = vpack.c.b16 %v3859, %v3853
        %v3980 = vpack.c.b16 %v3866, %v3860
        %v3981 = vpack.c.b16 %v3867, %v3861
        %v3982 = vpack.c.b16 %v3868, %v3862
        %v3983 = vpack.c.b16 %v3869, %v3863
        %v3984 = vpack.c.b16 %v3870, %v3864
        %v3985 = vpack.c.b16 %v3871, %v3865
        %v3986 = vpack.c.b16 %v3878, %v3872
        %v3987 = vpack.c.b16 %v3879, %v3873
        %v3988 = vpack.c.b16 %v3880, %v3874
        %v3989 = vpack.c.b16 %v3881, %v3875
        %v3990 = vpack.c.b16 %v3882, %v3876
        %v3991 = vpack.c.b16 %v3883, %v3877
        %v3992 = vpack.c.b16 %v3890, %v3884
        %v3993 = vpack.c.b16 %v3891, %v3885
        %v3994 = vpack.c.b16 %v3892, %v3886
        %v3995 = vpack.c.b16 %v3893, %v3887
        %v3996 = vpack.c.b16 %v3894, %v3888
        %v3997 = vpack.c.b16 %v3895, %v3889
        %v3998 = vpack.c.b16 %v3902, %v3896
        %v3999 = vpack.c.b16 %v3903, %v3897
        %v4000 = vpack.c.b16 %v3904, %v3898
        %v4001 = vpack.c.b16 %v3905, %v3899
        %v4002 = vpack.c.b16 %v3906, %v3900
        %v4003 = vpack.c.b16 %v3907, %v3901
        %4100 = vmatprep.subr.bf16.mxu0 %v3909
        %4101 = vmatpush1.bf16.msra.mxu0 %v3908
        %4102 = vmatprep.subr.bf16.mxu0 %v3915
        %4103 = vmatpush1.bf16.msra.mxu0 %v3914
        %4104 = vmatprep.subr.bf16.mxu0 %v3921
        %4105 = vmatpush1.bf16.msra.mxu0 %v3920
        %4106 = vmatprep.subr.bf16.mxu0 %v3927
        %4107 = vmatpush1.bf16.msra.mxu0 %v3926
        %4108 = vmatprep.subr.bf16.mxu0 %v3933
        %4109 = vmatpush1.bf16.msra.mxu0 %v3932
        %4110 = vmatprep.subr.bf16.mxu0 %v3939
        %4111 = vmatpush1.bf16.msra.mxu0 %v3938
        %4112 = vmatprep.subr.bf16.mxu0 %v3945
        %4113 = vmatpush1.bf16.msra.mxu0 %v3944
        %4114 = vmatprep.subr.bf16.mxu0 %v3951
        %4115 = vmatpush1.bf16.msra.mxu0 %v3950
        %4116 = vmatprep.subr.bf16.mxu0 %v3957
        %4117 = vmatpush1.bf16.msra.mxu0 %v3956
        %4118 = vmatprep.subr.bf16.mxu0 %v3963
        %4119 = vmatpush1.bf16.msra.mxu0 %v3962
        %4120 = vmatprep.subr.bf16.mxu0 %v3969
        %4121 = vmatpush1.bf16.msra.mxu0 %v3968
        %4122 = vmatprep.subr.bf16.mxu0 %v3975
        %4123 = vmatpush1.bf16.msra.mxu0 %v3974
        %4124 = vmatprep.subr.bf16.mxu0 %v3981
        %4125 = vmatpush1.bf16.msra.mxu0 %v3980
        %4126 = vmatprep.subr.bf16.mxu0 %v3987
        %4127 = vmatpush1.bf16.msra.mxu0 %v3986
        %4128 = vmatprep.subr.bf16.mxu0 %v3993
        %4129 = vmatpush1.bf16.msra.mxu0 %v3992
        %4130 = vmatprep.subr.bf16.mxu0 %v3999
        %4131 = vmatpush1.bf16.msra.mxu0 %v3998
        %4132 = vmatprep.mubr.bf16.mxu0 %v3489
        %4133 = vmatmul.mubr.bf16.gmra.mrb[0].mxu0 %v3488
        %v4134 = vpop.f32.mrb[0].mxu0
        %v4135 = vadd.f32 %v3593, %v4134
        %v4136 = vpop.f32.mrb[0].mxu0
        %v4137 = vadd.f32 %v3597, %v4136
        %v4138 = vpop.f32.mrb[0].mxu0
        %v4139 = vpop.f32.mrb[0].mxu0
        %4140 = vdwg.mxu0
        %4141 = vmatprep.subr.bf16.mxu0 %v3911
        %4142 = vmatpush1.bf16.msra.mxu0 %v3910
        %4143 = vmatprep.subr.bf16.mxu0 %v3917
        %4144 = vmatpush1.bf16.msra.mxu0 %v3916
        %4145 = vmatprep.subr.bf16.mxu0 %v3923
        %4146 = vmatpush1.bf16.msra.mxu0 %v3922
        %4147 = vmatprep.subr.bf16.mxu0 %v3929
        %4148 = vmatpush1.bf16.msra.mxu0 %v3928
        %4149 = vmatprep.subr.bf16.mxu0 %v3935
        %4150 = vmatpush1.bf16.msra.mxu0 %v3934
        %4151 = vmatprep.subr.bf16.mxu0 %v3941
        %4152 = vmatpush1.bf16.msra.mxu0 %v3940
        %4153 = vmatprep.subr.bf16.mxu0 %v3947
        %4154 = vmatpush1.bf16.msra.mxu0 %v3946
        %4155 = vmatprep.subr.bf16.mxu0 %v3953
        %4156 = vmatpush1.bf16.msra.mxu0 %v3952
        %4157 = vmatprep.subr.bf16.mxu0 %v3959
        %4158 = vmatpush1.bf16.msra.mxu0 %v3958
        %4159 = vmatprep.subr.bf16.mxu0 %v3965
        %4160 = vmatpush1.bf16.msra.mxu0 %v3964
        %4161 = vmatprep.subr.bf16.mxu0 %v3971
        %4162 = vmatpush1.bf16.msra.mxu0 %v3970
        %4163 = vmatprep.subr.bf16.mxu0 %v3977
        %4164 = vmatpush1.bf16.msra.mxu0 %v3976
        %4165 = vmatprep.subr.bf16.mxu0 %v3983
        %4166 = vmatpush1.bf16.msra.mxu0 %v3982
        %4167 = vmatprep.subr.bf16.mxu0 %v3989
        %4168 = vmatpush1.bf16.msra.mxu0 %v3988
        %4169 = vmatprep.subr.bf16.mxu0 %v3995
        %4170 = vmatpush1.bf16.msra.mxu0 %v3994
        %4171 = vmatprep.subr.bf16.mxu0 %v4001
        %4172 = vmatpush1.bf16.msra.mxu0 %v4000
        %4173 = vmatprep.mubr.bf16.mxu0 %v3489
        %4174 = vmatmul.mubr.bf16.gmra.mrb[0].mxu0 %v3488
        %v4175 = vpop.f32.mrb[0].mxu0
        %v4176 = vadd.f32 %v3601, %v4175
        %v4177 = vpop.f32.mrb[0].mxu0
        %v4178 = vadd.f32 %v3605, %v4177
        %v4179 = vpop.f32.mrb[0].mxu0
        %v4180 = vpop.f32.mrb[0].mxu0
        %4181 = vdwg.mxu0
        %4182 = vmatprep.subr.bf16.mxu0 %v3913
        %4183 = vmatpush1.bf16.msra.mxu0 %v3912
        %4184 = vmatprep.subr.bf16.mxu0 %v3919
        %4185 = vmatpush1.bf16.msra.mxu0 %v3918
        %4186 = vmatprep.subr.bf16.mxu0 %v3925
        %4187 = vmatpush1.bf16.msra.mxu0 %v3924
        %4188 = vmatprep.subr.bf16.mxu0 %v3931
        %4189 = vmatpush1.bf16.msra.mxu0 %v3930
        %4190 = vmatprep.subr.bf16.mxu0 %v3937
        %4191 = vmatpush1.bf16.msra.mxu0 %v3936
        %4192 = vmatprep.subr.bf16.mxu0 %v3943
        %4193 = vmatpush1.bf16.msra.mxu0 %v3942
        %4194 = vmatprep.subr.bf16.mxu0 %v3949
        %4195 = vmatpush1.bf16.msra.mxu0 %v3948
        %4196 = vmatprep.subr.bf16.mxu0 %v3955
        %4197 = vmatpush1.bf16.msra.mxu0 %v3954
        %4198 = vmatprep.subr.bf16.mxu0 %v3961
        %4199 = vmatpush1.bf16.msra.mxu0 %v3960
        %4200 = vmatprep.subr.bf16.mxu0 %v3967
        %4201 = vmatpush1.bf16.msra.mxu0 %v3966
        %4202 = vmatprep.subr.bf16.mxu0 %v3973
        %4203 = vmatpush1.bf16.msra.mxu0 %v3972
        %4204 = vmatprep.subr.bf16.mxu0 %v3979
        %4205 = vmatpush1.bf16.msra.mxu0 %v3978
        %4206 = vmatprep.subr.bf16.mxu0 %v3985
        %4207 = vmatpush1.bf16.msra.mxu0 %v3984
        %4208 = vmatprep.subr.bf16.mxu0 %v3991
        %4209 = vmatpush1.bf16.msra.mxu0 %v3990
        %4210 = vmatprep.subr.bf16.mxu0 %v3997
        %4211 = vmatpush1.bf16.msra.mxu0 %v3996
        %4212 = vmatprep.subr.bf16.mxu0 %v4003
        %4213 = vmatpush1.bf16.msra.mxu0 %v4002
        %4214 = vmatprep.mubr.bf16.mxu0 %v3489
        %4215 = vmatmul.mubr.bf16.gmra.mrb[0].mxu0 %v3488
        %v4216 = vpop.f32.mrb[0].mxu0
        %v4217 = vadd.f32 %v3609, %v4216
        %v4218 = vpop.f32.mrb[0].mxu0
        %v4219 = vadd.f32 %v3613, %v4218
        %v4220 = vpop.f32.mrb[0].mxu0
        %v4221 = vpop.f32.mrb[0].mxu0
        %4222 = vdwg.mxu0
        %v4224 = vsel %vm1463, %v4135, 0
        %v4227 = vsel %vm1463, %v4176, 0
        %4229 = vmatprep.subr.mxu0 0.0
        %4230 = vmatpush1.xpose.msra.mxu0 %v4227
        %4231 = vmatprep.subr.mxu0 0.0
        %4232 = vmatpush1.xpose.msra.mxu0 0.0
        %4233 = vmatprep.subr.mxu0 0.0
        %4234 = vmatpush1.xpose.msra.mxu0 0.0
        %4235 = vmatprep.subr.mxu0 0.0
        %4236 = vmatpush1.xpose.msra.mxu0 0.0
        %4237 = vmatprep.subr.mxu0 0.0
        %4238 = vmatpush1.xpose.msra.mxu0 0.0
        %4239 = vmatprep.subr.mxu0 0.0
        %4240 = vmatpush1.xpose.msra.mxu0 0.0
        %4241 = vmatprep.subr.mxu0 0.0
        %4242 = vmatpush1.xpose.msra.mxu0 0.0
        %4243 = vmatprep.subr.mxu0 0.0
        %4244 = vmatpush1.xpose.msra.mxu0 0.0
        %4245 = vmatprep.subr.mxu0 0.0
        %4246 = vmatpush1.xpose.msra.mxu0 0.0
        %4247 = vmatprep.subr.mxu0 0.0
        %4248 = vmatpush1.xpose.msra.mxu0 0.0
        %4249 = vmatprep.subr.mxu0 0.0
        %4250 = vmatpush1.xpose.msra.mxu0 0.0
        %4251 = vmatprep.subr.mxu0 0.0
        %4252 = vmatpush1.xpose.msra.mxu0 0.0
        %4253 = vmatprep.subr.mxu0 0.0
        %4254 = vmatpush1.xpose.msra.mxu0 0.0
        %4255 = vmatprep.subr.mxu0 0.0
        %4256 = vmatpush1.xpose.msra.mxu0 0.0
        %4257 = vmatprep.subr.mxu0 0.0
        %4258 = vmatpush1.xpose.msra.mxu0 0.0
        %4259 = vmatprep.subr.mxu0 0.0
        %4260 = vmatpush1.xpose.msra.mxu0 0.0
        %4261 = vmatprep.subr.mxu0 0.0
        %4262 = vmatpush1.xpose.msra.mxu0 0.0
        %4263 = vmatprep.subr.mxu0 0.0
        %4264 = vmatpush1.xpose.msra.mxu0 0.0
        %4265 = vmatprep.subr.mxu0 0.0
        %4266 = vmatpush1.xpose.msra.mxu0 0.0
        %4267 = vmatprep.subr.mxu0 0.0
        %4268 = vmatpush1.xpose.msra.mxu0 0.0
        %4269 = vmatprep.subr.mxu0 0.0
        %4270 = vmatpush1.xpose.msra.mxu0 0.0
        %4271 = vmatprep.subr.mxu0 0.0
        %4272 = vmatpush1.xpose.msra.mxu0 0.0
        %4273 = vmatprep.subr.mxu0 0.0
        %4274 = vmatpush1.xpose.msra.mxu0 0.0
        %4275 = vmatprep.subr.mxu0 0.0
        %4276 = vmatpush1.xpose.msra.mxu0 0.0
        %4277 = vmatprep.subr.mxu0 0.0
        %4278 = vmatpush1.xpose.msra.mxu0 0.0
        %4279 = vmatprep.subr.mxu0 0.0
        %4280 = vmatpush1.xpose.msra.mxu0 0.0
        %4281 = vmatprep.subr.mxu0 0.0
        %4282 = vmatpush1.xpose.msra.mxu0 0.0
        %4283 = vmatprep.subr.mxu0 0.0
        %4284 = vmatpush1.xpose.msra.mxu0 0.0
        %4285 = vmatprep.subr.mxu0 0.0
        %4286 = vmatpush1.xpose.msra.mxu0 0.0
        %4287 = vmatprep.subr.mxu0 0.0
        %4288 = vmatpush1.xpose.msra.mxu0 0.0
        %4289 = vmatprep.subr.mxu0 0.0
        %4290 = vmatpush1.xpose.msra.mxu0 0.0
        %4291 = vmatprep.subr.mxu0 0.0
        %4292 = vmatpush1.xpose.msra.mxu0 0.0
        %4293 = vmatprep.mubr.f32.mxu0 0.0
        %4294 = vmatmul.mubr.f32.gmra.mrb[0].mxu0 %v4224
        %v4295 = vpop.f32.mrb[0].mxu0
        %v4296 = vadd.f32 0.0, %v4295
        %v4297 = vpop.f32.mrb[0].mxu0
        %4298 = vdwg.mxu0
        %v4299 = vmul.f32 %v4296, 0.125
        %v4300 = vadd.f32 %v4299, %v1545
        %v4301 = vsel %vm1548, %v4300, -inf
        %4302 = vmax.xlane.f32.xlu0 %v4301
        %v4303 = vpop.xlane.xlu0 %4302
        %v4304 = vsub.f32 %v4300, %v4303
        %v4305 = vmul.f32 %v4304, 1.442695
        %v4306 = vpow.pop %v4305
        %v4307 = vsel %vm1548, %v4306, 0.0
        %4308 = vadd.xlane.f32.xlu0 %v4307
        %v4309 = vpop.xlane.xlu0 %4308
        %v4310 = vrcp.pop %v4309
        %v4311 = vmul.f32 %v4306, %v4310
        %v4313 = vsel %vm1548, %v4311, 0
        %4315 = vmatprep.subr.mxu0 0.0
        %4316 = vmatpush1.msra.mxu0 %v4217
        %4317 = vmatprep.subr.mxu0 0.0
        %4318 = vmatpush1.msra.mxu0 0.0
        %4319 = vmatprep.subr.mxu0 0.0
        %4320 = vmatpush1.msra.mxu0 0.0
        %4321 = vmatprep.subr.mxu0 0.0
        %4322 = vmatpush1.msra.mxu0 0.0
        %4323 = vmatprep.subr.mxu0 0.0
        %4324 = vmatpush1.msra.mxu0 0.0
        %4325 = vmatprep.subr.mxu0 0.0
        %4326 = vmatpush1.msra.mxu0 0.0
        %4327 = vmatprep.subr.mxu0 0.0
        %4328 = vmatpush1.msra.mxu0 0.0
        %4329 = vmatprep.subr.mxu0 0.0
        %4330 = vmatpush1.msra.mxu0 0.0
        %4331 = vmatprep.subr.mxu0 0.0
        %4332 = vmatpush1.msra.mxu0 0.0
        %4333 = vmatprep.subr.mxu0 0.0
        %4334 = vmatpush1.msra.mxu0 0.0
        %4335 = vmatprep.subr.mxu0 0.0
        %4336 = vmatpush1.msra.mxu0 0.0
        %4337 = vmatprep.subr.mxu0 0.0
        %4338 = vmatpush1.msra.mxu0 0.0
        %4339 = vmatprep.subr.mxu0 0.0
        %4340 = vmatpush1.msra.mxu0 0.0
        %4341 = vmatprep.subr.mxu0 0.0
        %4342 = vmatpush1.msra.mxu0 0.0
        %4343 = vmatprep.subr.mxu0 0.0
        %4344 = vmatpush1.msra.mxu0 0.0
        %4345 = vmatprep.subr.mxu0 0.0
        %4346 = vmatpush1.msra.mxu0 0.0
        %4347 = vmatprep.subr.mxu0 0.0
        %4348 = vmatpush1.msra.mxu0 0.0
        %4349 = vmatprep.subr.mxu0 0.0
        %4350 = vmatpush1.msra.mxu0 0.0
        %4351 = vmatprep.subr.mxu0 0.0
        %4352 = vmatpush1.msra.mxu0 0.0
        %4353 = vmatprep.subr.mxu0 0.0
        %4354 = vmatpush1.msra.mxu0 0.0
        %4355 = vmatprep.subr.mxu0 0.0
        %4356 = vmatpush1.msra.mxu0 0.0
        %4357 = vmatprep.subr.mxu0 0.0
        %4358 = vmatpush1.msra.mxu0 0.0
        %4359 = vmatprep.subr.mxu0 0.0
        %4360 = vmatpush1.msra.mxu0 0.0
        %4361 = vmatprep.subr.mxu0 0.0
        %4362 = vmatpush1.msra.mxu0 0.0
        %4363 = vmatprep.subr.mxu0 0.0
        %4364 = vmatpush1.msra.mxu0 0.0
        %4365 = vmatprep.subr.mxu0 0.0
        %4366 = vmatpush1.msra.mxu0 0.0
        %4367 = vmatprep.subr.mxu0 0.0
        %4368 = vmatpush1.msra.mxu0 0.0
        %4369 = vmatprep.subr.mxu0 0.0
        %4370 = vmatpush1.msra.mxu0 0.0
        %4371 = vmatprep.subr.mxu0 0.0
        %4372 = vmatpush1.msra.mxu0 0.0
        %4373 = vmatprep.subr.mxu0 0.0
        %4374 = vmatpush1.msra.mxu0 0.0
        %4375 = vmatprep.subr.mxu0 0.0
        %4376 = vmatpush1.msra.mxu0 0.0
        %4377 = vmatprep.subr.mxu0 0.0
        %4378 = vmatpush1.msra.mxu0 0.0
        %4379 = vmatprep.mubr.f32.mxu0 0.0
        %4380 = vmatmul.mubr.f32.gmra.mrb[0].mxu0 %v4313
        %v4381 = vpop.f32.mrb[0].mxu0
        %v4382 = vadd.f32 0.0, %v4381
        %v4383 = vpop.f32.mrb[0].mxu0
        %4384 = vdwg.mxu0
        %4385 = vrot.lane.b32.xlu0 %v4135, 64
        %v4386 = vpop.permute.xlu0 %4385
        %4387 = vrot.lane.b32.xlu0 %v4176, 64
        %v4388 = vpop.permute.xlu0 %4387
        %v4389 = vsel %vm1463, %v4386, 0
        %v4391 = vsel %vm1463, %v4388, 0
        %4393 = vmatprep.subr.mxu0 0.0
        %4394 = vmatpush1.xpose.msra.mxu0 %v4391
        %4395 = vmatprep.subr.mxu0 0.0
        %4396 = vmatpush1.xpose.msra.mxu0 0.0
        %4397 = vmatprep.subr.mxu0 0.0
        %4398 = vmatpush1.xpose.msra.mxu0 0.0
        %4399 = vmatprep.subr.mxu0 0.0
        %4400 = vmatpush1.xpose.msra.mxu0 0.0
        %4401 = vmatprep.subr.mxu0 0.0
        %4402 = vmatpush1.xpose.msra.mxu0 0.0
        %4403 = vmatprep.subr.mxu0 0.0
        %4404 = vmatpush1.xpose.msra.mxu0 0.0
        %4405 = vmatprep.subr.mxu0 0.0
        %4406 = vmatpush1.xpose.msra.mxu0 0.0
        %4407 = vmatprep.subr.mxu0 0.0
        %4408 = vmatpush1.xpose.msra.mxu0 0.0
        %4409 = vmatprep.subr.mxu0 0.0
        %4410 = vmatpush1.xpose.msra.mxu0 0.0
        %4411 = vmatprep.subr.mxu0 0.0
        %4412 = vmatpush1.xpose.msra.mxu0 0.0
        %4413 = vmatprep.subr.mxu0 0.0
        %4414 = vmatpush1.xpose.msra.mxu0 0.0
        %4415 = vmatprep.subr.mxu0 0.0
        %4416 = vmatpush1.xpose.msra.mxu0 0.0
        %4417 = vmatprep.subr.mxu0 0.0
        %4418 = vmatpush1.xpose.msra.mxu0 0.0
        %4419 = vmatprep.subr.mxu0 0.0
        %4420 = vmatpush1.xpose.msra.mxu0 0.0
        %4421 = vmatprep.subr.mxu0 0.0
        %4422 = vmatpush1.xpose.msra.mxu0 0.0
        %4423 = vmatprep.subr.mxu0 0.0
        %4424 = vmatpush1.xpose.msra.mxu0 0.0
        %4425 = vmatprep.subr.mxu0 0.0
        %4426 = vmatpush1.xpose.msra.mxu0 0.0
        %4427 = vmatprep.subr.mxu0 0.0
        %4428 = vmatpush1.xpose.msra.mxu0 0.0
        %4429 = vmatprep.subr.mxu0 0.0
        %4430 = vmatpush1.xpose.msra.mxu0 0.0
        %4431 = vmatprep.subr.mxu0 0.0
        %4432 = vmatpush1.xpose.msra.mxu0 0.0
        %4433 = vmatprep.subr.mxu0 0.0
        %4434 = vmatpush1.xpose.msra.mxu0 0.0
        %4435 = vmatprep.subr.mxu0 0.0
        %4436 = vmatpush1.xpose.msra.mxu0 0.0
        %4437 = vmatprep.subr.mxu0 0.0
        %4438 = vmatpush1.xpose.msra.mxu0 0.0
        %4439 = vmatprep.subr.mxu0 0.0
        %4440 = vmatpush1.xpose.msra.mxu0 0.0
        %4441 = vmatprep.subr.mxu0 0.0
        %4442 = vmatpush1.xpose.msra.mxu0 0.0
        %4443 = vmatprep.subr.mxu0 0.0
        %4444 = vmatpush1.xpose.msra.mxu0 0.0
        %4445 = vmatprep.subr.mxu0 0.0
        %4446 = vmatpush1.xpose.msra.mxu0 0.0
        %4447 = vmatprep.subr.mxu0 0.0
        %4448 = vmatpush1.xpose.msra.mxu0 0.0
        %4449 = vmatprep.subr.mxu0 0.0
        %4450 = vmatpush1.xpose.msra.mxu0 0.0
        %4451 = vmatprep.subr.mxu0 0.0
        %4452 = vmatpush1.xpose.msra.mxu0 0.0
        %4453 = vmatprep.subr.mxu0 0.0
        %4454 = vmatpush1.xpose.msra.mxu0 0.0
        %4455 = vmatprep.subr.mxu0 0.0
        %4456 = vmatpush1.xpose.msra.mxu0 0.0
        %4457 = vmatprep.mubr.f32.mxu0 0.0
        %4458 = vmatmul.mubr.f32.gmra.mrb[0].mxu0 %v4389
        %v4459 = vpop.f32.mrb[0].mxu0
        %v4460 = vadd.f32 0.0, %v4459
        %v4461 = vpop.f32.mrb[0].mxu0
        %4462 = vdwg.mxu0
        %v4463 = vmul.f32 %v4460, 0.125
        %v4464 = vadd.f32 %v4463, %v1545
        %v4465 = vsel %vm1548, %v4464, -inf
        %4466 = vmax.xlane.f32.xlu0 %v4465
        %v4467 = vpop.xlane.xlu0 %4466
        %v4468 = vsub.f32 %v4464, %v4467
        %v4469 = vmul.f32 %v4468, 1.442695
        %v4470 = vpow.pop %v4469
        %v4471 = vsel %vm1548, %v4470, 0.0
        %4472 = vadd.xlane.f32.xlu0 %v4471
        %v4473 = vpop.xlane.xlu0 %4472
        %v4474 = vrcp.pop %v4473
        %v4475 = vmul.f32 %v4470, %v4474
        %4477 = vrot.lane.b32.xlu0 %v4217, 64
        %v4478 = vpop.permute.xlu0 %4477
        %v4481 = vsel %vm1548, %v4475, 0
        %4483 = vmatprep.subr.mxu0 0.0
        %4484 = vmatpush1.msra.mxu0 %v4478
        %4485 = vmatprep.subr.mxu0 0.0
        %4486 = vmatpush1.msra.mxu0 0.0
        %4487 = vmatprep.subr.mxu0 0.0
        %4488 = vmatpush1.msra.mxu0 0.0
        %4489 = vmatprep.subr.mxu0 0.0
        %4490 = vmatpush1.msra.mxu0 0.0
        %4491 = vmatprep.subr.mxu0 0.0
        %4492 = vmatpush1.msra.mxu0 0.0
        %4493 = vmatprep.subr.mxu0 0.0
        %4494 = vmatpush1.msra.mxu0 0.0
        %4495 = vmatprep.subr.mxu0 0.0
        %4496 = vmatpush1.msra.mxu0 0.0
        %4497 = vmatprep.subr.mxu0 0.0
        %4498 = vmatpush1.msra.mxu0 0.0
        %4499 = vmatprep.subr.mxu0 0.0
        %4500 = vmatpush1.msra.mxu0 0.0
        %4501 = vmatprep.subr.mxu0 0.0
        %4502 = vmatpush1.msra.mxu0 0.0
        %4503 = vmatprep.subr.mxu0 0.0
        %4504 = vmatpush1.msra.mxu0 0.0
        %4505 = vmatprep.subr.mxu0 0.0
        %4506 = vmatpush1.msra.mxu0 0.0
        %4507 = vmatprep.subr.mxu0 0.0
        %4508 = vmatpush1.msra.mxu0 0.0
        %4509 = vmatprep.subr.mxu0 0.0
        %4510 = vmatpush1.msra.mxu0 0.0
        %4511 = vmatprep.subr.mxu0 0.0
        %4512 = vmatpush1.msra.mxu0 0.0
        %4513 = vmatprep.subr.mxu0 0.0
        %4514 = vmatpush1.msra.mxu0 0.0
        %4515 = vmatprep.subr.mxu0 0.0
        %4516 = vmatpush1.msra.mxu0 0.0
        %4517 = vmatprep.subr.mxu0 0.0
        %4518 = vmatpush1.msra.mxu0 0.0
        %4519 = vmatprep.subr.mxu0 0.0
        %4520 = vmatpush1.msra.mxu0 0.0
        %4521 = vmatprep.subr.mxu0 0.0
        %4522 = vmatpush1.msra.mxu0 0.0
        %4523 = vmatprep.subr.mxu0 0.0
        %4524 = vmatpush1.msra.mxu0 0.0
        %4525 = vmatprep.subr.mxu0 0.0
        %4526 = vmatpush1.msra.mxu0 0.0
        %4527 = vmatprep.subr.mxu0 0.0
        %4528 = vmatpush1.msra.mxu0 0.0
        %4529 = vmatprep.subr.mxu0 0.0
        %4530 = vmatpush1.msra.mxu0 0.0
        %4531 = vmatprep.subr.mxu0 0.0
        %4532 = vmatpush1.msra.mxu0 0.0
        %4533 = vmatprep.subr.mxu0 0.0
        %4534 = vmatpush1.msra.mxu0 0.0
        %4535 = vmatprep.subr.mxu0 0.0
        %4536 = vmatpush1.msra.mxu0 0.0
        %4537 = vmatprep.subr.mxu0 0.0
        %4538 = vmatpush1.msra.mxu0 0.0
        %4539 = vmatprep.subr.mxu0 0.0
        %4540 = vmatpush1.msra.mxu0 0.0
        %4541 = vmatprep.subr.mxu0 0.0
        %4542 = vmatpush1.msra.mxu0 0.0
        %4543 = vmatprep.subr.mxu0 0.0
        %4544 = vmatpush1.msra.mxu0 0.0
        %4545 = vmatprep.subr.mxu0 0.0
        %4546 = vmatpush1.msra.mxu0 0.0
        %4547 = vmatprep.mubr.f32.mxu0 0.0
        %4548 = vmatmul.mubr.f32.gmra.mrb[0].mxu0 %v4481
        %v4549 = vpop.f32.mrb[0].mxu0
        %v4550 = vadd.f32 0.0, %v4549
        %v4551 = vpop.f32.mrb[0].mxu0
        %4552 = vdwg.mxu0
        %v4554 = vsel %vm1463, %v4137, 0
        %v4557 = vsel %vm1463, %v4178, 0
        %4559 = vmatprep.subr.mxu0 0.0
        %4560 = vmatpush1.xpose.msra.mxu0 %v4557
        %4561 = vmatprep.subr.mxu0 0.0
        %4562 = vmatpush1.xpose.msra.mxu0 0.0
        %4563 = vmatprep.subr.mxu0 0.0
        %4564 = vmatpush1.xpose.msra.mxu0 0.0
        %4565 = vmatprep.subr.mxu0 0.0
        %4566 = vmatpush1.xpose.msra.mxu0 0.0
        %4567 = vmatprep.subr.mxu0 0.0
        %4568 = vmatpush1.xpose.msra.mxu0 0.0
        %4569 = vmatprep.subr.mxu0 0.0
        %4570 = vmatpush1.xpose.msra.mxu0 0.0
        %4571 = vmatprep.subr.mxu0 0.0
        %4572 = vmatpush1.xpose.msra.mxu0 0.0
        %4573 = vmatprep.subr.mxu0 0.0
        %4574 = vmatpush1.xpose.msra.mxu0 0.0
        %4575 = vmatprep.subr.mxu0 0.0
        %4576 = vmatpush1.xpose.msra.mxu0 0.0
        %4577 = vmatprep.subr.mxu0 0.0
        %4578 = vmatpush1.xpose.msra.mxu0 0.0
        %4579 = vmatprep.subr.mxu0 0.0
        %4580 = vmatpush1.xpose.msra.mxu0 0.0
        %4581 = vmatprep.subr.mxu0 0.0
        %4582 = vmatpush1.xpose.msra.mxu0 0.0
        %4583 = vmatprep.subr.mxu0 0.0
        %4584 = vmatpush1.xpose.msra.mxu0 0.0
        %4585 = vmatprep.subr.mxu0 0.0
        %4586 = vmatpush1.xpose.msra.mxu0 0.0
        %4587 = vmatprep.subr.mxu0 0.0
        %4588 = vmatpush1.xpose.msra.mxu0 0.0
        %4589 = vmatprep.subr.mxu0 0.0
        %4590 = vmatpush1.xpose.msra.mxu0 0.0
        %4591 = vmatprep.subr.mxu0 0.0
        %4592 = vmatpush1.xpose.msra.mxu0 0.0
        %4593 = vmatprep.subr.mxu0 0.0
        %4594 = vmatpush1.xpose.msra.mxu0 0.0
        %4595 = vmatprep.subr.mxu0 0.0
        %4596 = vmatpush1.xpose.msra.mxu0 0.0
        %4597 = vmatprep.subr.mxu0 0.0
        %4598 = vmatpush1.xpose.msra.mxu0 0.0
        %4599 = vmatprep.subr.mxu0 0.0
        %4600 = vmatpush1.xpose.msra.mxu0 0.0
        %4601 = vmatprep.subr.mxu0 0.0
        %4602 = vmatpush1.xpose.msra.mxu0 0.0
        %4603 = vmatprep.subr.mxu0 0.0
        %4604 = vmatpush1.xpose.msra.mxu0 0.0
        %4605 = vmatprep.subr.mxu0 0.0
        %4606 = vmatpush1.xpose.msra.mxu0 0.0
        %4607 = vmatprep.subr.mxu0 0.0
        %4608 = vmatpush1.xpose.msra.mxu0 0.0
        %4609 = vmatprep.subr.mxu0 0.0
        %4610 = vmatpush1.xpose.msra.mxu0 0.0
        %4611 = vmatprep.subr.mxu0 0.0
        %4612 = vmatpush1.xpose.msra.mxu0 0.0
        %4613 = vmatprep.subr.mxu0 0.0
        %4614 = vmatpush1.xpose.msra.mxu0 0.0
        %4615 = vmatprep.subr.mxu0 0.0
        %4616 = vmatpush1.xpose.msra.mxu0 0.0
        %4617 = vmatprep.subr.mxu0 0.0
        %4618 = vmatpush1.xpose.msra.mxu0 0.0
        %4619 = vmatprep.subr.mxu0 0.0
        %4620 = vmatpush1.xpose.msra.mxu0 0.0
        %4621 = vmatprep.subr.mxu0 0.0
        %4622 = vmatpush1.xpose.msra.mxu0 0.0
        %4623 = vmatprep.mubr.f32.mxu0 0.0
        %4624 = vmatmul.mubr.f32.gmra.mrb[0].mxu0 %v4554
        %v4625 = vpop.f32.mrb[0].mxu0
        %v4626 = vadd.f32 0.0, %v4625
        %v4627 = vpop.f32.mrb[0].mxu0
        %4628 = vdwg.mxu0
        %v4629 = vmul.f32 %v4626, 0.125
        %v4630 = vadd.f32 %v4629, %v1545
        %v4631 = vsel %vm1548, %v4630, -inf
        %4632 = vmax.xlane.f32.xlu0 %v4631
        %v4633 = vpop.xlane.xlu0 %4632
        %v4634 = vsub.f32 %v4630, %v4633
        %v4635 = vmul.f32 %v4634, 1.442695
        %v4636 = vpow.pop %v4635
        %v4637 = vsel %vm1548, %v4636, 0.0
        %4638 = vadd.xlane.f32.xlu0 %v4637
        %v4639 = vpop.xlane.xlu0 %4638
        %v4640 = vrcp.pop %v4639
        %v4641 = vmul.f32 %v4636, %v4640
        %v4643 = vsel %vm1548, %v4641, 0
        %4645 = vmatprep.subr.mxu0 0.0
        %4646 = vmatpush1.msra.mxu0 %v4219
        %4647 = vmatprep.subr.mxu0 0.0
        %4648 = vmatpush1.msra.mxu0 0.0
        %4649 = vmatprep.subr.mxu0 0.0
        %4650 = vmatpush1.msra.mxu0 0.0
        %4651 = vmatprep.subr.mxu0 0.0
        %4652 = vmatpush1.msra.mxu0 0.0
        %4653 = vmatprep.subr.mxu0 0.0
        %4654 = vmatpush1.msra.mxu0 0.0
        %4655 = vmatprep.subr.mxu0 0.0
        %4656 = vmatpush1.msra.mxu0 0.0
        %4657 = vmatprep.subr.mxu0 0.0
        %4658 = vmatpush1.msra.mxu0 0.0
        %4659 = vmatprep.subr.mxu0 0.0
        %4660 = vmatpush1.msra.mxu0 0.0
        %4661 = vmatprep.subr.mxu0 0.0
        %4662 = vmatpush1.msra.mxu0 0.0
        %4663 = vmatprep.subr.mxu0 0.0
        %4664 = vmatpush1.msra.mxu0 0.0
        %4665 = vmatprep.subr.mxu0 0.0
        %4666 = vmatpush1.msra.mxu0 0.0
        %4667 = vmatprep.subr.mxu0 0.0
        %4668 = vmatpush1.msra.mxu0 0.0
        %4669 = vmatprep.subr.mxu0 0.0
        %4670 = vmatpush1.msra.mxu0 0.0
        %4671 = vmatprep.subr.mxu0 0.0
        %4672 = vmatpush1.msra.mxu0 0.0
        %4673 = vmatprep.subr.mxu0 0.0
        %4674 = vmatpush1.msra.mxu0 0.0
        %4675 = vmatprep.subr.mxu0 0.0
        %4676 = vmatpush1.msra.mxu0 0.0
        %4677 = vmatprep.subr.mxu0 0.0
        %4678 = vmatpush1.msra.mxu0 0.0
        %4679 = vmatprep.subr.mxu0 0.0
        %4680 = vmatpush1.msra.mxu0 0.0
        %4681 = vmatprep.subr.mxu0 0.0
        %4682 = vmatpush1.msra.mxu0 0.0
        %4683 = vmatprep.subr.mxu0 0.0
        %4684 = vmatpush1.msra.mxu0 0.0
        %4685 = vmatprep.subr.mxu0 0.0
        %4686 = vmatpush1.msra.mxu0 0.0
        %4687 = vmatprep.subr.mxu0 0.0
        %4688 = vmatpush1.msra.mxu0 0.0
        %4689 = vmatprep.subr.mxu0 0.0
        %4690 = vmatpush1.msra.mxu0 0.0
        %4691 = vmatprep.subr.mxu0 0.0
        %4692 = vmatpush1.msra.mxu0 0.0
        %4693 = vmatprep.subr.mxu0 0.0
        %4694 = vmatpush1.msra.mxu0 0.0
        %4695 = vmatprep.subr.mxu0 0.0
        %4696 = vmatpush1.msra.mxu0 0.0
        %4697 = vmatprep.subr.mxu0 0.0
        %4698 = vmatpush1.msra.mxu0 0.0
        %4699 = vmatprep.subr.mxu0 0.0
        %4700 = vmatpush1.msra.mxu0 0.0
        %4701 = vmatprep.subr.mxu0 0.0
        %4702 = vmatpush1.msra.mxu0 0.0
        %4703 = vmatprep.subr.mxu0 0.0
        %4704 = vmatpush1.msra.mxu0 0.0
        %4705 = vmatprep.subr.mxu0 0.0
        %4706 = vmatpush1.msra.mxu0 0.0
        %4707 = vmatprep.subr.mxu0 0.0
        %4708 = vmatpush1.msra.mxu0 0.0
        %4709 = vmatprep.mubr.f32.mxu0 0.0
        %4710 = vmatmul.mubr.f32.gmra.mrb[0].mxu0 %v4643
        %v4711 = vpop.f32.mrb[0].mxu0
        %v4712 = vadd.f32 0.0, %v4711
        %v4713 = vpop.f32.mrb[0].mxu0
        %4714 = vdwg.mxu0
        %4715 = vrot.lane.b32.xlu0 %v4137, 64
        %v4716 = vpop.permute.xlu0 %4715
        %4717 = vrot.lane.b32.xlu0 %v4178, 64
        %v4718 = vpop.permute.xlu0 %4717
        %v4719 = vsel %vm1463, %v4716, 0
        %v4721 = vsel %vm1463, %v4718, 0
        %4723 = vmatprep.subr.mxu0 0.0
        %4724 = vmatpush1.xpose.msra.mxu0 %v4721
        %4725 = vmatprep.subr.mxu0 0.0
        %4726 = vmatpush1.xpose.msra.mxu0 0.0
        %4727 = vmatprep.subr.mxu0 0.0
        %4728 = vmatpush1.xpose.msra.mxu0 0.0
        %4729 = vmatprep.subr.mxu0 0.0
        %4730 = vmatpush1.xpose.msra.mxu0 0.0
        %4731 = vmatprep.subr.mxu0 0.0
        %4732 = vmatpush1.xpose.msra.mxu0 0.0
        %4733 = vmatprep.subr.mxu0 0.0
        %4734 = vmatpush1.xpose.msra.mxu0 0.0
        %4735 = vmatprep.subr.mxu0 0.0
        %4736 = vmatpush1.xpose.msra.mxu0 0.0
        %4737 = vmatprep.subr.mxu0 0.0
        %4738 = vmatpush1.xpose.msra.mxu0 0.0
        %4739 = vmatprep.subr.mxu0 0.0
        %4740 = vmatpush1.xpose.msra.mxu0 0.0
        %4741 = vmatprep.subr.mxu0 0.0
        %4742 = vmatpush1.xpose.msra.mxu0 0.0
        %4743 = vmatprep.subr.mxu0 0.0
        %4744 = vmatpush1.xpose.msra.mxu0 0.0
        %4745 = vmatprep.subr.mxu0 0.0
        %4746 = vmatpush1.xpose.msra.mxu0 0.0
        %4747 = vmatprep.subr.mxu0 0.0
        %4748 = vmatpush1.xpose.msra.mxu0 0.0
        %4749 = vmatprep.subr.mxu0 0.0
        %4750 = vmatpush1.xpose.msra.mxu0 0.0
        %4751 = vmatprep.subr.mxu0 0.0
        %4752 = vmatpush1.xpose.msra.mxu0 0.0
        %4753 = vmatprep.subr.mxu0 0.0
        %4754 = vmatpush1.xpose.msra.mxu0 0.0
        %4755 = vmatprep.subr.mxu0 0.0
        %4756 = vmatpush1.xpose.msra.mxu0 0.0
        %4757 = vmatprep.subr.mxu0 0.0
        %4758 = vmatpush1.xpose.msra.mxu0 0.0
        %4759 = vmatprep.subr.mxu0 0.0
        %4760 = vmatpush1.xpose.msra.mxu0 0.0
        %4761 = vmatprep.subr.mxu0 0.0
        %4762 = vmatpush1.xpose.msra.mxu0 0.0
        %4763 = vmatprep.subr.mxu0 0.0
        %4764 = vmatpush1.xpose.msra.mxu0 0.0
        %4765 = vmatprep.subr.mxu0 0.0
        %4766 = vmatpush1.xpose.msra.mxu0 0.0
        %4767 = vmatprep.subr.mxu0 0.0
        %4768 = vmatpush1.xpose.msra.mxu0 0.0
        %4769 = vmatprep.subr.mxu0 0.0
        %4770 = vmatpush1.xpose.msra.mxu0 0.0
        %4771 = vmatprep.subr.mxu0 0.0
        %4772 = vmatpush1.xpose.msra.mxu0 0.0
        %4773 = vmatprep.subr.mxu0 0.0
        %4774 = vmatpush1.xpose.msra.mxu0 0.0
        %4775 = vmatprep.subr.mxu0 0.0
        %4776 = vmatpush1.xpose.msra.mxu0 0.0
        %4777 = vmatprep.subr.mxu0 0.0
        %4778 = vmatpush1.xpose.msra.mxu0 0.0
        %4779 = vmatprep.subr.mxu0 0.0
        %4780 = vmatpush1.xpose.msra.mxu0 0.0
        %4781 = vmatprep.subr.mxu0 0.0
        %4782 = vmatpush1.xpose.msra.mxu0 0.0
        %4783 = vmatprep.subr.mxu0 0.0
        %4784 = vmatpush1.xpose.msra.mxu0 0.0
        %4785 = vmatprep.subr.mxu0 0.0
        %4786 = vmatpush1.xpose.msra.mxu0 0.0
        %4787 = vmatprep.mubr.f32.mxu0 0.0
        %4788 = vmatmul.mubr.f32.gmra.mrb[0].mxu0 %v4719
        %v4789 = vpop.f32.mrb[0].mxu0
        %v4790 = vadd.f32 0.0, %v4789
        %v4791 = vpop.f32.mrb[0].mxu0
        %4792 = vdwg.mxu0
        %v4793 = vmul.f32 %v4790, 0.125
        %v4794 = vadd.f32 %v4793, %v1545
        %v4795 = vsel %vm1548, %v4794, -inf
        %4796 = vmax.xlane.f32.xlu0 %v4795
        %v4797 = vpop.xlane.xlu0 %4796
        %v4798 = vsub.f32 %v4794, %v4797
        %v4799 = vmul.f32 %v4798, 1.442695
        %v4800 = vpow.pop %v4799
        %v4801 = vsel %vm1548, %v4800, 0.0
        %4802 = vadd.xlane.f32.xlu0 %v4801
        %v4803 = vpop.xlane.xlu0 %4802
        %v4804 = vrcp.pop %v4803
        %v4805 = vmul.f32 %v4800, %v4804
        %4807 = vrot.lane.b32.xlu0 %v4219, 64
        %v4808 = vpop.permute.xlu0 %4807
        %v4811 = vsel %vm1548, %v4805, 0
        %4813 = vmatprep.subr.mxu0 0.0
        %4814 = vmatpush1.msra.mxu0 %v4808
        %4815 = vmatprep.subr.mxu0 0.0
        %4816 = vmatpush1.msra.mxu0 0.0
        %4817 = vmatprep.subr.mxu0 0.0
        %4818 = vmatpush1.msra.mxu0 0.0
        %4819 = vmatprep.subr.mxu0 0.0
        %4820 = vmatpush1.msra.mxu0 0.0
        %4821 = vmatprep.subr.mxu0 0.0
        %4822 = vmatpush1.msra.mxu0 0.0
        %4823 = vmatprep.subr.mxu0 0.0
        %4824 = vmatpush1.msra.mxu0 0.0
        %4825 = vmatprep.subr.mxu0 0.0
        %4826 = vmatpush1.msra.mxu0 0.0
        %4827 = vmatprep.subr.mxu0 0.0
        %4828 = vmatpush1.msra.mxu0 0.0
        %4829 = vmatprep.subr.mxu0 0.0
        %4830 = vmatpush1.msra.mxu0 0.0
        %4831 = vmatprep.subr.mxu0 0.0
        %4832 = vmatpush1.msra.mxu0 0.0
        %4833 = vmatprep.subr.mxu0 0.0
        %4834 = vmatpush1.msra.mxu0 0.0
        %4835 = vmatprep.subr.mxu0 0.0
        %4836 = vmatpush1.msra.mxu0 0.0
        %4837 = vmatprep.subr.mxu0 0.0
        %4838 = vmatpush1.msra.mxu0 0.0
        %4839 = vmatprep.subr.mxu0 0.0
        %4840 = vmatpush1.msra.mxu0 0.0
        %4841 = vmatprep.subr.mxu0 0.0
        %4842 = vmatpush1.msra.mxu0 0.0
        %4843 = vmatprep.subr.mxu0 0.0
        %4844 = vmatpush1.msra.mxu0 0.0
        %4845 = vmatprep.subr.mxu0 0.0
        %4846 = vmatpush1.msra.mxu0 0.0
        %4847 = vmatprep.subr.mxu0 0.0
        %4848 = vmatpush1.msra.mxu0 0.0
        %4849 = vmatprep.subr.mxu0 0.0
        %4850 = vmatpush1.msra.mxu0 0.0
        %4851 = vmatprep.subr.mxu0 0.0
        %4852 = vmatpush1.msra.mxu0 0.0
        %4853 = vmatprep.subr.mxu0 0.0
        %4854 = vmatpush1.msra.mxu0 0.0
        %4855 = vmatprep.subr.mxu0 0.0
        %4856 = vmatpush1.msra.mxu0 0.0
        %4857 = vmatprep.subr.mxu0 0.0
        %4858 = vmatpush1.msra.mxu0 0.0
        %4859 = vmatprep.subr.mxu0 0.0
        %4860 = vmatpush1.msra.mxu0 0.0
        %4861 = vmatprep.subr.mxu0 0.0
        %4862 = vmatpush1.msra.mxu0 0.0
        %4863 = vmatprep.subr.mxu0 0.0
        %4864 = vmatpush1.msra.mxu0 0.0
        %4865 = vmatprep.subr.mxu0 0.0
        %4866 = vmatpush1.msra.mxu0 0.0
        %4867 = vmatprep.subr.mxu0 0.0
        %4868 = vmatpush1.msra.mxu0 0.0
        %4869 = vmatprep.subr.mxu0 0.0
        %4870 = vmatpush1.msra.mxu0 0.0
        %4871 = vmatprep.subr.mxu0 0.0
        %4872 = vmatpush1.msra.mxu0 0.0
        %4873 = vmatprep.subr.mxu0 0.0
        %4874 = vmatpush1.msra.mxu0 0.0
        %4875 = vmatprep.subr.mxu0 0.0
        %4876 = vmatpush1.msra.mxu0 0.0
        %4877 = vmatprep.mubr.f32.mxu0 0.0
        %4878 = vmatmul.mubr.f32.gmra.mrb[0].mxu0 %v4811
        %v4879 = vpop.f32.mrb[0].mxu0
        %v4880 = vadd.f32 0.0, %v4879
        %v4881 = vpop.f32.mrb[0].mxu0
        %4882 = vdwg.mxu0
        %4884 = vrot.lane.b32.xlu0 %v4550, 64
        %v4885 = vpop.permute.xlu0 %4884
        %4888 = vrot.lane.b32.xlu0 %v4880, 64
        %v4889 = vpop.permute.xlu0 %4888
        %v4891 = vsel %vm1463, %v4382, %v4885
        %v4892 = vsel %vm1463, %v4712, %v4889
        %v4893 = vpack.c.bf16 %v4891, %v4891
        %v4894 = vpack.c.bf16 %v4892, %v4892
        %s4895 = scalar_lea.vmem %s6, 256
        %v4896 = vld [vmem:[%s4895] sm:$0xff]
        %v4897 = vld [vmem:[%s4895 + $0x8] sm:$0xff]
        %v4898 = vld [vmem:[%s4895 + $0x10] sm:$0xff]
        %v4899 = vld [vmem:[%s4895 + $0x18] sm:$0xff]
        %v4900 = vld [vmem:[%s4895 + $0x20] sm:$0xff]
        %v4901 = vld [vmem:[%s4895 + $0x28] sm:$0xff]
        %v4902 = vld [vmem:[%s4895 + $0x30] sm:$0xff]
        %v4903 = vld [vmem:[%s4895 + $0x38] sm:$0xff]
        %v4904 = vld [vmem:[%s4895 + $0x40] sm:$0xff]
        %v4905 = vld [vmem:[%s4895 + $0x48] sm:$0xff]
        %v4906 = vld [vmem:[%s4895 + $0x50] sm:$0xff]
        %v4907 = vld [vmem:[%s4895 + $0x58] sm:$0xff]
        %v4908 = vld [vmem:[%s4895 + $0x60] sm:$0xff]
        %v4909 = vld [vmem:[%s4895 + $0x68] sm:$0xff]
        %v4910 = vld [vmem:[%s4895 + $0x70] sm:$0xff]
        %v4911 = vld [vmem:[%s4895 + $0x78] sm:$0xff]
        %v4912 = vld [vmem:[%s4895 + $0x80] sm:$0xff]
        %v4913 = vld [vmem:[%s4895 + $0x88] sm:$0xff]
        %v4914 = vld [vmem:[%s4895 + $0x90] sm:$0xff]
        %v4915 = vld [vmem:[%s4895 + $0x98] sm:$0xff]
        %v4916 = vld [vmem:[%s4895 + $0xa0] sm:$0xff]
        %v4917 = vld [vmem:[%s4895 + $0xa8] sm:$0xff]
        %v4918 = vld [vmem:[%s4895 + $0xb0] sm:$0xff]
        %v4919 = vld [vmem:[%s4895 + $0xb8] sm:$0xff]
        %v4920 = vld [vmem:[%s4895 + $0xc0] sm:$0xff]
        %v4921 = vld [vmem:[%s4895 + $0xc8] sm:$0xff]
        %v4922 = vld [vmem:[%s4895 + $0xd0] sm:$0xff]
        %v4923 = vld [vmem:[%s4895 + $0xd8] sm:$0xff]
        %v4924 = vld [vmem:[%s4895 + $0xe0] sm:$0xff]
        %v4925 = vld [vmem:[%s4895 + $0xe8] sm:$0xff]
        %v4926 = vld [vmem:[%s4895 + $0xf0] sm:$0xff]
        %v4927 = vld [vmem:[%s4895 + $0xf8] sm:$0xff]
        %s4928 = scalar_lea.vmem %s7, 2
        %v4929 = vld [vmem:[%s4928] sm:$0x3]
        %v4931 = vlaneseq
        %v4932 = vshrl.u32 %v4931, 7
        %v4933 = vsub.s32 0, %v4932
        %v4934 = vrot.slane %v4929, %v4933
        %v4935 = vlaneseq
        %v4936 = vshrl.u32 %v4935, 7
        %v4937 = vsub.s32 1, %v4936
        %v4938 = vrot.slane %v4929, %v4937
        %v4973 = vunpack.c.l.b16 %v4896
        %v4974 = vunpack.c.h.b16 %v4896
        %v4975 = vunpack.c.l.b16 %v4897
        %v4976 = vunpack.c.h.b16 %v4897
        %v4977 = vunpack.c.l.b16 %v4898
        %v4978 = vunpack.c.h.b16 %v4898
        %v4979 = vunpack.c.l.b16 %v4899
        %v4980 = vunpack.c.h.b16 %v4899
        %v4981 = vunpack.c.l.b16 %v4900
        %v4982 = vunpack.c.h.b16 %v4900
        %v4983 = vunpack.c.l.b16 %v4901
        %v4984 = vunpack.c.h.b16 %v4901
        %v4985 = vunpack.c.l.b16 %v4902
        %v4986 = vunpack.c.h.b16 %v4902
        %v4987 = vunpack.c.l.b16 %v4903
        %v4988 = vunpack.c.h.b16 %v4903
        %v4989 = vunpack.c.l.b16 %v4904
        %v4990 = vunpack.c.h.b16 %v4904
        %v4991 = vunpack.c.l.b16 %v4905
        %v4992 = vunpack.c.h.b16 %v4905
        %v4993 = vunpack.c.l.b16 %v4906
        %v4994 = vunpack.c.h.b16 %v4906
        %v4995 = vunpack.c.l.b16 %v4907
        %v4996 = vunpack.c.h.b16 %v4907
        %v4997 = vunpack.c.l.b16 %v4908
        %v4998 = vunpack.c.h.b16 %v4908
        %v4999 = vunpack.c.l.b16 %v4909
        %v5000 = vunpack.c.h.b16 %v4909
        %v5001 = vunpack.c.l.b16 %v4910
        %v5002 = vunpack.c.h.b16 %v4910
        %v5003 = vunpack.c.l.b16 %v4911
        %v5004 = vunpack.c.h.b16 %v4911
        %v5005 = vunpack.c.l.b16 %v4912
        %v5006 = vunpack.c.h.b16 %v4912
        %v5007 = vunpack.c.l.b16 %v4913
        %v5008 = vunpack.c.h.b16 %v4913
        %v5009 = vunpack.c.l.b16 %v4914
        %v5010 = vunpack.c.h.b16 %v4914
        %v5011 = vunpack.c.l.b16 %v4915
        %v5012 = vunpack.c.h.b16 %v4915
        %v5013 = vunpack.c.l.b16 %v4916
        %v5014 = vunpack.c.h.b16 %v4916
        %v5015 = vunpack.c.l.b16 %v4917
        %v5016 = vunpack.c.h.b16 %v4917
        %v5017 = vunpack.c.l.b16 %v4918
        %v5018 = vunpack.c.h.b16 %v4918
        %v5019 = vunpack.c.l.b16 %v4919
        %v5020 = vunpack.c.h.b16 %v4919
        %v5021 = vunpack.c.l.b16 %v4920
        %v5022 = vunpack.c.h.b16 %v4920
        %v5023 = vunpack.c.l.b16 %v4921
        %v5024 = vunpack.c.h.b16 %v4921
        %v5025 = vunpack.c.l.b16 %v4922
        %v5026 = vunpack.c.h.b16 %v4922
        %v5027 = vunpack.c.l.b16 %v4923
        %v5028 = vunpack.c.h.b16 %v4923
        %v5029 = vunpack.c.l.b16 %v4924
        %v5030 = vunpack.c.h.b16 %v4924
        %v5031 = vunpack.c.l.b16 %v4925
        %v5032 = vunpack.c.h.b16 %v4925
        %v5033 = vunpack.c.l.b16 %v4926
        %v5034 = vunpack.c.h.b16 %v4926
        %v5035 = vunpack.c.l.b16 %v4927
        %v5036 = vunpack.c.h.b16 %v4927
        %v5037 = vpack.c.b16 %v4975, %v4973
        %v5038 = vpack.c.b16 %v4976, %v4974
        %v5039 = vpack.c.b16 %v4979, %v4977
        %v5040 = vpack.c.b16 %v4980, %v4978
        %v5041 = vpack.c.b16 %v4983, %v4981
        %v5042 = vpack.c.b16 %v4984, %v4982
        %v5043 = vpack.c.b16 %v4987, %v4985
        %v5044 = vpack.c.b16 %v4988, %v4986
        %v5045 = vpack.c.b16 %v4991, %v4989
        %v5046 = vpack.c.b16 %v4992, %v4990
        %v5047 = vpack.c.b16 %v4995, %v4993
        %v5048 = vpack.c.b16 %v4996, %v4994
        %v5049 = vpack.c.b16 %v4999, %v4997
        %v5050 = vpack.c.b16 %v5000, %v4998
        %v5051 = vpack.c.b16 %v5003, %v5001
        %v5052 = vpack.c.b16 %v5004, %v5002
        %v5053 = vpack.c.b16 %v5007, %v5005
        %v5054 = vpack.c.b16 %v5008, %v5006
        %v5055 = vpack.c.b16 %v5011, %v5009
        %v5056 = vpack.c.b16 %v5012, %v5010
        %v5057 = vpack.c.b16 %v5015, %v5013
        %v5058 = vpack.c.b16 %v5016, %v5014
        %v5059 = vpack.c.b16 %v5019, %v5017
        %v5060 = vpack.c.b16 %v5020, %v5018
        %v5061 = vpack.c.b16 %v5023, %v5021
        %v5062 = vpack.c.b16 %v5024, %v5022
        %v5063 = vpack.c.b16 %v5027, %v5025
        %v5064 = vpack.c.b16 %v5028, %v5026
        %v5065 = vpack.c.b16 %v5031, %v5029
        %v5066 = vpack.c.b16 %v5032, %v5030
        %v5067 = vpack.c.b16 %v5035, %v5033
        %v5068 = vpack.c.b16 %v5036, %v5034
        %5101 = vmatprep.subr.bf16.mxu0 %v5038
        %5102 = vmatpush1.bf16.msra.mxu0 %v5037
        %5103 = vmatprep.subr.bf16.mxu0 %v5040
        %5104 = vmatpush1.bf16.msra.mxu0 %v5039
        %5105 = vmatprep.subr.bf16.mxu0 %v5042
        %5106 = vmatpush1.bf16.msra.mxu0 %v5041
        %5107 = vmatprep.subr.bf16.mxu0 %v5044
        %5108 = vmatpush1.bf16.msra.mxu0 %v5043
        %5109 = vmatprep.subr.bf16.mxu0 %v5046
        %5110 = vmatpush1.bf16.msra.mxu0 %v5045
        %5111 = vmatprep.subr.bf16.mxu0 %v5048
        %5112 = vmatpush1.bf16.msra.mxu0 %v5047
        %5113 = vmatprep.subr.bf16.mxu0 %v5050
        %5114 = vmatpush1.bf16.msra.mxu0 %v5049
        %5115 = vmatprep.subr.bf16.mxu0 %v5052
        %5116 = vmatpush1.bf16.msra.mxu0 %v5051
        %5117 = vmatprep.subr.bf16.mxu0 %v5054
        %5118 = vmatpush1.bf16.msra.mxu0 %v5053
        %5119 = vmatprep.subr.bf16.mxu0 %v5056
        %5120 = vmatpush1.bf16.msra.mxu0 %v5055
        %5121 = vmatprep.subr.bf16.mxu0 %v5058
        %5122 = vmatpush1.bf16.msra.mxu0 %v5057
        %5123 = vmatprep.subr.bf16.mxu0 %v5060
        %5124 = vmatpush1.bf16.msra.mxu0 %v5059
        %5125 = vmatprep.subr.bf16.mxu0 %v5062
        %5126 = vmatpush1.bf16.msra.mxu0 %v5061
        %5127 = vmatprep.subr.bf16.mxu0 %v5064
        %5128 = vmatpush1.bf16.msra.mxu0 %v5063
        %5129 = vmatprep.subr.bf16.mxu0 %v5066
        %5130 = vmatpush1.bf16.msra.mxu0 %v5065
        %5131 = vmatprep.subr.bf16.mxu0 %v5068
        %5132 = vmatpush1.bf16.msra.mxu0 %v5067
        %5133 = vmatprep.mubr.bf16.mxu0 %v4894
        %5134 = vmatmul.mubr.bf16.gmra.mrb[0].mxu0 %v4893
        %v5135 = vpop.f32.mrb[0].mxu0
        %v5136 = vadd.f32 %v4934, %v5135
        %v5137 = vpop.f32.mrb[0].mxu0
        %v5138 = vadd.f32 %v4938, %v5137
        %v5139 = vpop.f32.mrb[0].mxu0
        %v5140 = vpop.f32.mrb[0].mxu0
        %5141 = vdwg.mxu0
        %v5142 = vadd.f32 %v5136, %v3486
        %v5143 = vadd.f32 %v5138, %v3487
        %s5144 = scalar_lea.vmem %s8, 2
        %v5145 = vld [vmem:[%s5144] sm:$0x3]
        %s5146 = scalar_lea.vmem %s9, 2
        %v5147 = vld [vmem:[%s5146] sm:$0x3]
        %v5148 = vadd.f32 %v5142, %v5143
        %5149 = vadd.xlane.f32.xlu0 %v5148
        %v5150 = vpop.xlane.xlu0 %5149
        %v5151 = vmul.f32 %v5150, %v687
        %v5152 = vsub.f32 %v5142, %v5151
        %v5153 = vsub.f32 %v5143, %v5151
        %v5154 = vmul.f32 %v5152, %v5152
        %v5155 = vmul.f32 %v5153, %v5153
        %v5156 = vadd.f32 %v5154, %v5155
        %5157 = vadd.xlane.f32.xlu0 %v5156
        %v5158 = vpop.xlane.xlu0 %5157
        %v5159 = vmul.f32 %v5158, %v687
        %v5160 = vadd.f32 %v5159, 1e-12
        %v5161 = vrsqrt.pop %v5160
        %v5162 = vmul.f32 %v5152, %v5161
        %v5163 = vmul.f32 %v5153, %v5161
        %v5165 = vlaneseq
        %v5166 = vshrl.u32 %v5165, 7
        %v5167 = vsub.s32 0, %v5166
        %v5168 = vrot.slane %v5145, %v5167
        %v5169 = vlaneseq
        %v5170 = vshrl.u32 %v5169, 7
        %v5171 = vsub.s32 1, %v5170
        %v5172 = vrot.slane %v5145, %v5171
        %v5175 = vmul.f32 %v5162, %v5168
        %v5176 = vmul.f32 %v5163, %v5172
        %v5178 = vlaneseq
        %v5179 = vshrl.u32 %v5178, 7
        %v5180 = vsub.s32 0, %v5179
        %v5181 = vrot.slane %v5147, %v5180
        %v5182 = vlaneseq
        %v5183 = vshrl.u32 %v5182, 7
        %v5184 = vsub.s32 1, %v5183
        %v5185 = vrot.slane %v5147, %v5184
        %v5188 = vadd.f32 %v5175, %v5181
        %v5189 = vadd.f32 %v5176, %v5185
        %v5190 = vpack.c.bf16 %v5188, %v5188
        %v5191 = vpack.c.bf16 %v5189, %v5189
        %s5192 = scalar_lea.vmem %s10, 512
        %v5193 = vld [vmem:[%s5192] sm:$0xff]
        %v5194 = vld [vmem:[%s5192 + $0x8] sm:$0xff]
        %v5195 = vld [vmem:[%s5192 + $0x10] sm:$0xff]
        %v5196 = vld [vmem:[%s5192 + $0x18] sm:$0xff]
        %v5197 = vld [vmem:[%s5192 + $0x20] sm:$0xff]
        %v5198 = vld [vmem:[%s5192 + $0x28] sm:$0xff]
        %v5199 = vld [vmem:[%s5192 + $0x30] sm:$0xff]
        %v5200 = vld [vmem:[%s5192 + $0x38] sm:$0xff]
        %v5201 = vld [vmem:[%s5192 + $0x40] sm:$0xff]
        %v5202 = vld [vmem:[%s5192 + $0x48] sm:$0xff]
        %v5203 = vld [vmem:[%s5192 + $0x50] sm:$0xff]
        %v5204 = vld [vmem:[%s5192 + $0x58] sm:$0xff]
        %v5205 = vld [vmem:[%s5192 + $0x60] sm:$0xff]
        %v5206 = vld [vmem:[%s5192 + $0x68] sm:$0xff]
        %v5207 = vld [vmem:[%s5192 + $0x70] sm:$0xff]
        %v5208 = vld [vmem:[%s5192 + $0x78] sm:$0xff]
        %v5209 = vld [vmem:[%s5192 + $0x80] sm:$0xff]
        %v5210 = vld [vmem:[%s5192 + $0x88] sm:$0xff]
        %v5211 = vld [vmem:[%s5192 + $0x90] sm:$0xff]
        %v5212 = vld [vmem:[%s5192 + $0x98] sm:$0xff]
        %v5213 = vld [vmem:[%s5192 + $0xa0] sm:$0xff]
        %v5214 = vld [vmem:[%s5192 + $0xa8] sm:$0xff]
        %v5215 = vld [vmem:[%s5192 + $0xb0] sm:$0xff]
        %v5216 = vld [vmem:[%s5192 + $0xb8] sm:$0xff]
        %v5217 = vld [vmem:[%s5192 + $0xc0] sm:$0xff]
        %v5218 = vld [vmem:[%s5192 + $0xc8] sm:$0xff]
        %v5219 = vld [vmem:[%s5192 + $0xd0] sm:$0xff]
        %v5220 = vld [vmem:[%s5192 + $0xd8] sm:$0xff]
        %v5221 = vld [vmem:[%s5192 + $0xe0] sm:$0xff]
        %v5222 = vld [vmem:[%s5192 + $0xe8] sm:$0xff]
        %v5223 = vld [vmem:[%s5192 + $0xf0] sm:$0xff]
        %v5224 = vld [vmem:[%s5192 + $0xf8] sm:$0xff]
        %v5225 = vld [vmem:[%s5192 + $0x100] sm:$0xff]
        %v5226 = vld [vmem:[%s5192 + $0x108] sm:$0xff]
        %v5227 = vld [vmem:[%s5192 + $0x110] sm:$0xff]
        %v5228 = vld [vmem:[%s5192 + $0x118] sm:$0xff]
        %v5229 = vld [vmem:[%s5192 + $0x120] sm:$0xff]
        %v5230 = vld [vmem:[%s5192 + $0x128] sm:$0xff]
        %v5231 = vld [vmem:[%s5192 + $0x130] sm:$0xff]
        %v5232 = vld [vmem:[%s5192 + $0x138] sm:$0xff]
        %v5233 = vld [vmem:[%s5192 + $0x140] sm:$0xff]
        %v5234 = vld [vmem:[%s5192 + $0x148] sm:$0xff]
        %v5235 = vld [vmem:[%s5192 + $0x150] sm:$0xff]
        %v5236 = vld [vmem:[%s5192 + $0x158] sm:$0xff]
        %v5237 = vld [vmem:[%s5192 + $0x160] sm:$0xff]
        %v5238 = vld [vmem:[%s5192 + $0x168] sm:$0xff]
        %v5239 = vld [vmem:[%s5192 + $0x170] sm:$0xff]
        %v5240 = vld [vmem:[%s5192 + $0x178] sm:$0xff]
        %v5241 = vld [vmem:[%s5192 + $0x180] sm:$0xff]
        %v5242 = vld [vmem:[%s5192 + $0x188] sm:$0xff]
        %v5243 = vld [vmem:[%s5192 + $0x190] sm:$0xff]
        %v5244 = vld [vmem:[%s5192 + $0x198] sm:$0xff]
        %v5245 = vld [vmem:[%s5192 + $0x1a0] sm:$0xff]
        %v5246 = vld [vmem:[%s5192 + $0x1a8] sm:$0xff]
        %v5247 = vld [vmem:[%s5192 + $0x1b0] sm:$0xff]
        %v5248 = vld [vmem:[%s5192 + $0x1b8] sm:$0xff]
        %v5249 = vld [vmem:[%s5192 + $0x1c0] sm:$0xff]
        %v5250 = vld [vmem:[%s5192 + $0x1c8] sm:$0xff]
        %v5251 = vld [vmem:[%s5192 + $0x1d0] sm:$0xff]
        %v5252 = vld [vmem:[%s5192 + $0x1d8] sm:$0xff]
        %v5253 = vld [vmem:[%s5192 + $0x1e0] sm:$0xff]
        %v5254 = vld [vmem:[%s5192 + $0x1e8] sm:$0xff]
        %v5255 = vld [vmem:[%s5192 + $0x1f0] sm:$0xff]
        %v5256 = vld [vmem:[%s5192 + $0x1f8] sm:$0xff]
        %s5257 = scalar_lea.vmem %s11, 4
        %v5258 = vld [vmem:[%s5257] sm:$0xf]
        %v5260 = vlaneseq
        %v5261 = vshrl.u32 %v5260, 7
        %v5262 = vsub.s32 0, %v5261
        %v5263 = vrot.slane %v5258, %v5262
        %v5264 = vlaneseq
        %v5265 = vshrl.u32 %v5264, 7
        %v5266 = vsub.s32 1, %v5265
        %v5267 = vrot.slane %v5258, %v5266
        %v5268 = vlaneseq
        %v5269 = vshrl.u32 %v5268, 7
        %v5270 = vsub.s32 2, %v5269
        %v5271 = vrot.slane %v5258, %v5270
        %v5272 = vlaneseq
        %v5273 = vshrl.u32 %v5272, 7
        %v5274 = vsub.s32 3, %v5273
        %v5275 = vrot.slane %v5258, %v5274
        %v5344 = vunpack.c.l.b16 %v5193
        %v5345 = vunpack.c.h.b16 %v5193
        %v5346 = vunpack.c.l.b16 %v5194
        %v5347 = vunpack.c.h.b16 %v5194
        %v5348 = vunpack.c.l.b16 %v5195
        %v5349 = vunpack.c.h.b16 %v5195
        %v5350 = vunpack.c.l.b16 %v5196
        %v5351 = vunpack.c.h.b16 %v5196
        %v5352 = vunpack.c.l.b16 %v5197
        %v5353 = vunpack.c.h.b16 %v5197
        %v5354 = vunpack.c.l.b16 %v5198
        %v5355 = vunpack.c.h.b16 %v5198
        %v5356 = vunpack.c.l.b16 %v5199
        %v5357 = vunpack.c.h.b16 %v5199
        %v5358 = vunpack.c.l.b16 %v5200
        %v5359 = vunpack.c.h.b16 %v5200
        %v5360 = vunpack.c.l.b16 %v5201
        %v5361 = vunpack.c.h.b16 %v5201
        %v5362 = vunpack.c.l.b16 %v5202
        %v5363 = vunpack.c.h.b16 %v5202
        %v5364 = vunpack.c.l.b16 %v5203
        %v5365 = vunpack.c.h.b16 %v5203
        %v5366 = vunpack.c.l.b16 %v5204
        %v5367 = vunpack.c.h.b16 %v5204
        %v5368 = vunpack.c.l.b16 %v5205
        %v5369 = vunpack.c.h.b16 %v5205
        %v5370 = vunpack.c.l.b16 %v5206
        %v5371 = vunpack.c.h.b16 %v5206
        %v5372 = vunpack.c.l.b16 %v5207
        %v5373 = vunpack.c.h.b16 %v5207
        %v5374 = vunpack.c.l.b16 %v5208
        %v5375 = vunpack.c.h.b16 %v5208
        %v5376 = vunpack.c.l.b16 %v5209
        %v5377 = vunpack.c.h.b16 %v5209
        %v5378 = vunpack.c.l.b16 %v5210
        %v5379 = vunpack.c.h.b16 %v5210
        %v5380 = vunpack.c.l.b16 %v5211
        %v5381 = vunpack.c.h.b16 %v5211
        %v5382 = vunpack.c.l.b16 %v5212
        %v5383 = vunpack.c.h.b16 %v5212
        %v5384 = vunpack.c.l.b16 %v5213
        %v5385 = vunpack.c.h.b16 %v5213
        %v5386 = vunpack.c.l.b16 %v5214
        %v5387 = vunpack.c.h.b16 %v5214
        %v5388 = vunpack.c.l.b16 %v5215
        %v5389 = vunpack.c.h.b16 %v5215
        %v5390 = vunpack.c.l.b16 %v5216
        %v5391 = vunpack.c.h.b16 %v5216
        %v5392 = vunpack.c.l.b16 %v5217
        %v5393 = vunpack.c.h.b16 %v5217
        %v5394 = vunpack.c.l.b16 %v5218
        %v5395 = vunpack.c.h.b16 %v5218
        %v5396 = vunpack.c.l.b16 %v5219
        %v5397 = vunpack.c.h.b16 %v5219
        %v5398 = vunpack.c.l.b16 %v5220
        %v5399 = vunpack.c.h.b16 %v5220
        %v5400 = vunpack.c.l.b16 %v5221
        %v5401 = vunpack.c.h.b16 %v5221
        %v5402 = vunpack.c.l.b16 %v5222
        %v5403 = vunpack.c.h.b16 %v5222
        %v5404 = vunpack.c.l.b16 %v5223
        %v5405 = vunpack.c.h.b16 %v5223
        %v5406 = vunpack.c.l.b16 %v5224
        %v5407 = vunpack.c.h.b16 %v5224
        %v5408 = vunpack.c.l.b16 %v5225
        %v5409 = vunpack.c.h.b16 %v5225
        %v5410 = vunpack.c.l.b16 %v5226
        %v5411 = vunpack.c.h.b16 %v5226
        %v5412 = vunpack.c.l.b16 %v5227
        %v5413 = vunpack.c.h.b16 %v5227
        %v5414 = vunpack.c.l.b16 %v5228
        %v5415 = vunpack.c.h.b16 %v5228
        %v5416 = vunpack.c.l.b16 %v5229
        %v5417 = vunpack.c.h.b16 %v5229
        %v5418 = vunpack.c.l.b16 %v5230
        %v5419 = vunpack.c.h.b16 %v5230
        %v5420 = vunpack.c.l.b16 %v5231
        %v5421 = vunpack.c.h.b16 %v5231
        %v5422 = vunpack.c.l.b16 %v5232
        %v5423 = vunpack.c.h.b16 %v5232
        %v5424 = vunpack.c.l.b16 %v5233
        %v5425 = vunpack.c.h.b16 %v5233
        %v5426 = vunpack.c.l.b16 %v5234
        %v5427 = vunpack.c.h.b16 %v5234
        %v5428 = vunpack.c.l.b16 %v5235
        %v5429 = vunpack.c.h.b16 %v5235
        %v5430 = vunpack.c.l.b16 %v5236
        %v5431 = vunpack.c.h.b16 %v5236
        %v5432 = vunpack.c.l.b16 %v5237
        %v5433 = vunpack.c.h.b16 %v5237
        %v5434 = vunpack.c.l.b16 %v5238
        %v5435 = vunpack.c.h.b16 %v5238
        %v5436 = vunpack.c.l.b16 %v5239
        %v5437 = vunpack.c.h.b16 %v5239
        %v5438 = vunpack.c.l.b16 %v5240
        %v5439 = vunpack.c.h.b16 %v5240
        %v5440 = vunpack.c.l.b16 %v5241
        %v5441 = vunpack.c.h.b16 %v5241
        %v5442 = vunpack.c.l.b16 %v5242
        %v5443 = vunpack.c.h.b16 %v5242
        %v5444 = vunpack.c.l.b16 %v5243
        %v5445 = vunpack.c.h.b16 %v5243
        %v5446 = vunpack.c.l.b16 %v5244
        %v5447 = vunpack.c.h.b16 %v5244
        %v5448 = vunpack.c.l.b16 %v5245
        %v5449 = vunpack.c.h.b16 %v5245
        %v5450 = vunpack.c.l.b16 %v5246
        %v5451 = vunpack.c.h.b16 %v5246
        %v5452 = vunpack.c.l.b16 %v5247
        %v5453 = vunpack.c.h.b16 %v5247
        %v5454 = vunpack.c.l.b16 %v5248
        %v5455 = vunpack.c.h.b16 %v5248
        %v5456 = vunpack.c.l.b16 %v5249
        %v5457 = vunpack.c.h.b16 %v5249
        %v5458 = vunpack.c.l.b16 %v5250
        %v5459 = vunpack.c.h.b16 %v5250
        %v5460 = vunpack.c.l.b16 %v5251
        %v5461 = vunpack.c.h.b16 %v5251
        %v5462 = vunpack.c.l.b16 %v5252
        %v5463 = vunpack.c.h.b16 %v5252
        %v5464 = vunpack.c.l.b16 %v5253
        %v5465 = vunpack.c.h.b16 %v5253
        %v5466 = vunpack.c.l.b16 %v5254
        %v5467 = vunpack.c.h.b16 %v5254
        %v5468 = vunpack.c.l.b16 %v5255
        %v5469 = vunpack.c.h.b16 %v5255
        %v5470 = vunpack.c.l.b16 %v5256
        %v5471 = vunpack.c.h.b16 %v5256
        %v5472 = vpack.c.b16 %v5348, %v5344
        %v5473 = vpack.c.b16 %v5349, %v5345
        %v5474 = vpack.c.b16 %v5350, %v5346
        %v5475 = vpack.c.b16 %v5351, %v5347
        %v5476 = vpack.c.b16 %v5356, %v5352
        %v5477 = vpack.c.b16 %v5357, %v5353
        %v5478 = vpack.c.b16 %v5358, %v5354
        %v5479 = vpack.c.b16 %v5359, %v5355
        %v5480 = vpack.c.b16 %v5364, %v5360
        %v5481 = vpack.c.b16 %v5365, %v5361
        %v5482 = vpack.c.b16 %v5366, %v5362
        %v5483 = vpack.c.b16 %v5367, %v5363
        %v5484 = vpack.c.b16 %v5372, %v5368
        %v5485 = vpack.c.b16 %v5373, %v5369
        %v5486 = vpack.c.b16 %v5374, %v5370
        %v5487 = vpack.c.b16 %v5375, %v5371
        %v5488 = vpack.c.b16 %v5380, %v5376
        %v5489 = vpack.c.b16 %v5381, %v5377
        %v5490 = vpack.c.b16 %v5382, %v5378
        %v5491 = vpack.c.b16 %v5383, %v5379
        %v5492 = vpack.c.b16 %v5388, %v5384
        %v5493 = vpack.c.b16 %v5389, %v5385
        %v5494 = vpack.c.b16 %v5390, %v5386
        %v5495 = vpack.c.b16 %v5391, %v5387
        %v5496 = vpack.c.b16 %v5396, %v5392
        %v5497 = vpack.c.b16 %v5397, %v5393
        %v5498 = vpack.c.b16 %v5398, %v5394
        %v5499 = vpack.c.b16 %v5399, %v5395
        %v5500 = vpack.c.b16 %v5404, %v5400
        %v5501 = vpack.c.b16 %v5405, %v5401
        %v5502 = vpack.c.b16 %v5406, %v5402
        %v5503 = vpack.c.b16 %v5407, %v5403
        %v5504 = vpack.c.b16 %v5412, %v5408
        %v5505 = vpack.c.b16 %v5413, %v5409
        %v5506 = vpack.c.b16 %v5414, %v5410
        %v5507 = vpack.c.b16 %v5415, %v5411
        %v5508 = vpack.c.b16 %v5420, %v5416
        %v5509 = vpack.c.b16 %v5421, %v5417
        %v5510 = vpack.c.b16 %v5422, %v5418
        %v5511 = vpack.c.b16 %v5423, %v5419
        %v5512 = vpack.c.b16 %v5428, %v5424
        %v5513 = vpack.c.b16 %v5429, %v5425
        %v5514 = vpack.c.b16 %v5430, %v5426
        %v5515 = vpack.c.b16 %v5431, %v5427
        %v5516 = vpack.c.b16 %v5436, %v5432
        %v5517 = vpack.c.b16 %v5437, %v5433
        %v5518 = vpack.c.b16 %v5438, %v5434
        %v5519 = vpack.c.b16 %v5439, %v5435
        %v5520 = vpack.c.b16 %v5444, %v5440
        %v5521 = vpack.c.b16 %v5445, %v5441
        %v5522 = vpack.c.b16 %v5446, %v5442
        %v5523 = vpack.c.b16 %v5447, %v5443
        %v5524 = vpack.c.b16 %v5452, %v5448
        %v5525 = vpack.c.b16 %v5453, %v5449
        %v5526 = vpack.c.b16 %v5454, %v5450
        %v5527 = vpack.c.b16 %v5455, %v5451
        %v5528 = vpack.c.b16 %v5460, %v5456
        %v5529 = vpack.c.b16 %v5461, %v5457
        %v5530 = vpack.c.b16 %v5462, %v5458
        %v5531 = vpack.c.b16 %v5463, %v5459
        %v5532 = vpack.c.b16 %v5468, %v5464
        %v5533 = vpack.c.b16 %v5469, %v5465
        %v5534 = vpack.c.b16 %v5470, %v5466
        %v5535 = vpack.c.b16 %v5471, %v5467
        %5600 = vmatprep.subr.bf16.mxu0 %v5473
        %5601 = vmatpush1.bf16.msra.mxu0 %v5472
        %5602 = vmatprep.subr.bf16.mxu0 %v5477
        %5603 = vmatpush1.bf16.msra.mxu0 %v5476
        %5604 = vmatprep.subr.bf16.mxu0 %v5481
        %5605 = vmatpush1.bf16.msra.mxu0 %v5480
        %5606 = vmatprep.subr.bf16.mxu0 %v5485
        %5607 = vmatpush1.bf16.msra.mxu0 %v5484
        %5608 = vmatprep.subr.bf16.mxu0 %v5489
        %5609 = vmatpush1.bf16.msra.mxu0 %v5488
        %5610 = vmatprep.subr.bf16.mxu0 %v5493
        %5611 = vmatpush1.bf16.msra.mxu0 %v5492
        %5612 = vmatprep.subr.bf16.mxu0 %v5497
        %5613 = vmatpush1.bf16.msra.mxu0 %v5496
        %5614 = vmatprep.subr.bf16.mxu0 %v5501
        %5615 = vmatpush1.bf16.msra.mxu0 %v5500
        %5616 = vmatprep.subr.bf16.mxu0 %v5505
        %5617 = vmatpush1.bf16.msra.mxu0 %v5504
        %5618 = vmatprep.subr.bf16.mxu0 %v5509
        %5619 = vmatpush1.bf16.msra.mxu0 %v5508
        %5620 = vmatprep.subr.bf16.mxu0 %v5513
        %5621 = vmatpush1.bf16.msra.mxu0 %v5512
        %5622 = vmatprep.subr.bf16.mxu0 %v5517
        %5623 = vmatpush1.bf16.msra.mxu0 %v5516
        %5624 = vmatprep.subr.bf16.mxu0 %v5521
        %5625 = vmatpush1.bf16.msra.mxu0 %v5520
        %5626 = vmatprep.subr.bf16.mxu0 %v5525
        %5627 = vmatpush1.bf16.msra.mxu0 %v5524
        %5628 = vmatprep.subr.bf16.mxu0 %v5529
        %5629 = vmatpush1.bf16.msra.mxu0 %v5528
        %5630 = vmatprep.subr.bf16.mxu0 %v5533
        %5631 = vmatpush1.bf16.msra.mxu0 %v5532
        %5632 = vmatprep.mubr.bf16.mxu0 %v5191
        %5633 = vmatmul.mubr.bf16.gmra.mrb[0].mxu0 %v5190
        %v5634 = vpop.f32.mrb[0].mxu0
        %v5635 = vadd.f32 %v5263, %v5634
        %v5636 = vpop.f32.mrb[0].mxu0
        %v5637 = vadd.f32 %v5267, %v5636
        %v5638 = vpop.f32.mrb[0].mxu0
        %v5639 = vpop.f32.mrb[0].mxu0
        %5640 = vdwg.mxu0
        %5641 = vmatprep.subr.bf16.mxu0 %v5475
        %5642 = vmatpush1.bf16.msra.mxu0 %v5474
        %5643 = vmatprep.subr.bf16.mxu0 %v5479
        %5644 = vmatpush1.bf16.msra.mxu0 %v5478
        %5645 = vmatprep.subr.bf16.mxu0 %v5483
        %5646 = vmatpush1.bf16.msra.mxu0 %v5482
        %5647 = vmatprep.subr.bf16.mxu0 %v5487
        %5648 = vmatpush1.bf16.msra.mxu0 %v5486
        %5649 = vmatprep.subr.bf16.mxu0 %v5491
        %5650 = vmatpush1.bf16.msra.mxu0 %v5490
        %5651 = vmatprep.subr.bf16.mxu0 %v5495
        %5652 = vmatpush1.bf16.msra.mxu0 %v5494
        %5653 = vmatprep.subr.bf16.mxu0 %v5499
        %5654 = vmatpush1.bf16.msra.mxu0 %v5498
        %5655 = vmatprep.subr.bf16.mxu0 %v5503
        %5656 = vmatpush1.bf16.msra.mxu0 %v5502
        %5657 = vmatprep.subr.bf16.mxu0 %v5507
        %5658 = vmatpush1.bf16.msra.mxu0 %v5506
        %5659 = vmatprep.subr.bf16.mxu0 %v5511
        %5660 = vmatpush1.bf16.msra.mxu0 %v5510
        %5661 = vmatprep.subr.bf16.mxu0 %v5515
        %5662 = vmatpush1.bf16.msra.mxu0 %v5514
        %5663 = vmatprep.subr.bf16.mxu0 %v5519
        %5664 = vmatpush1.bf16.msra.mxu0 %v5518
        %5665 = vmatprep.subr.bf16.mxu0 %v5523
        %5666 = vmatpush1.bf16.msra.mxu0 %v5522
        %5667 = vmatprep.subr.bf16.mxu0 %v5527
        %5668 = vmatpush1.bf16.msra.mxu0 %v5526
        %5669 = vmatprep.subr.bf16.mxu0 %v5531
        %5670 = vmatpush1.bf16.msra.mxu0 %v5530
        %5671 = vmatprep.subr.bf16.mxu0 %v5535
        %5672 = vmatpush1.bf16.msra.mxu0 %v5534
        %5673 = vmatprep.mubr.bf16.mxu0 %v5191
        %5674 = vmatmul.mubr.bf16.gmra.mrb[0].mxu0 %v5190
        %v5675 = vpop.f32.mrb[0].mxu0
        %v5676 = vadd.f32 %v5271, %v5675
        %v5677 = vpop.f32.mrb[0].mxu0
        %v5678 = vadd.f32 %v5275, %v5677
        %v5679 = vpop.f32.mrb[0].mxu0
        %v5680 = vpop.f32.mrb[0].mxu0
        %5681 = vdwg.mxu0
        %v5682 = vmul.f32 %v5635, %v5635
        %v5683 = vmul.f32 %v5637, %v5637
        %v5684 = vmul.f32 %v5676, %v5676
        %v5685 = vmul.f32 %v5678, %v5678
        %v5686 = vmul.f32 %v5635, %v5682
        %v5687 = vmul.f32 %v5637, %v5683
        %v5688 = vmul.f32 %v5676, %v5684
        %v5689 = vmul.f32 %v5678, %v5685
        %v5690 = vmul.f32 %v5686, 0.044715
        %v5691 = vmul.f32 %v5687, 0.044715
        %v5692 = vmul.f32 %v5688, 0.044715
        %v5693 = vmul.f32 %v5689, 0.044715
        %v5694 = vadd.f32 %v5635, %v5690
        %v5695 = vadd.f32 %v5637, %v5691
        %v5696 = vadd.f32 %v5676, %v5692
        %v5697 = vadd.f32 %v5678, %v5693
        %v5698 = vmul.f32 %v5694, 0.7978846
        %v5699 = vmul.f32 %v5695, 0.7978846
        %v5700 = vmul.f32 %v5696, 0.7978846
        %v5701 = vmul.f32 %v5697, 0.7978846
        %v5702 = vtanh.pop %v5698
        %v5703 = vtanh.pop %v5699
        %v5704 = vtanh.pop %v5700
        %v5705 = vtanh.pop %v5701
        %v5706 = vadd.f32 %v5702, 1.0
        %v5707 = vadd.f32 %v5703, 1.0
        %v5708 = vadd.f32 %v5704, 1.0
        %v5709 = vadd.f32 %v5705, 1.0
        %v5710 = vmul.f32 %v5706, 0.5
        %v5711 = vmul.f32 %v5707, 0.5
        %v5712 = vmul.f32 %v5708, 0.5
        %v5713 = vmul.f32 %v5709, 0.5
        %v5714 = vmul.f32 %v5635, %v5710
        %v5715 = vmul.f32 %v5637, %v5711
        %v5716 = vmul.f32 %v5676, %v5712
        %v5717 = vmul.f32 %v5678, %v5713
        %v5718 = vpack.c.bf16 %v5714, %v5714
        %v5719 = vpack.c.bf16 %v5715, %v5715
        %v5720 = vpack.c.bf16 %v5716, %v5716
        %v5721 = vpack.c.bf16 %v5717, %v5717
        %s5722 = scalar_lea.vmem %s12, 512
        %v5723 = vld [vmem:[%s5722] sm:$0xff]
        %v5724 = vld [vmem:[%s5722 + $0x8] sm:$0xff]
        %v5725 = vld [vmem:[%s5722 + $0x10] sm:$0xff]
        %v5726 = vld [vmem:[%s5722 + $0x18] sm:$0xff]
        %v5727 = vld [vmem:[%s5722 + $0x20] sm:$0xff]
        %v5728 = vld [vmem:[%s5722 + $0x28] sm:$0xff]
        %v5729 = vld [vmem:[%s5722 + $0x30] sm:$0xff]
        %v5730 = vld [vmem:[%s5722 + $0x38] sm:$0xff]
        %v5731 = vld [vmem:[%s5722 + $0x40] sm:$0xff]
        %v5732 = vld [vmem:[%s5722 + $0x48] sm:$0xff]
        %v5733 = vld [vmem:[%s5722 + $0x50] sm:$0xff]
        %v5734 = vld [vmem:[%s5722 + $0x58] sm:$0xff]
        %v5735 = vld [vmem:[%s5722 + $0x60] sm:$0xff]
        %v5736 = vld [vmem:[%s5722 + $0x68] sm:$0xff]
        %v5737 = vld [vmem:[%s5722 + $0x70] sm:$0xff]
        %v5738 = vld [vmem:[%s5722 + $0x78] sm:$0xff]
        %v5739 = vld [vmem:[%s5722 + $0x80] sm:$0xff]
        %v5740 = vld [vmem:[%s5722 + $0x88] sm:$0xff]
        %v5741 = vld [vmem:[%s5722 + $0x90] sm:$0xff]
        %v5742 = vld [vmem:[%s5722 + $0x98] sm:$0xff]
        %v5743 = vld [vmem:[%s5722 + $0xa0] sm:$0xff]
        %v5744 = vld [vmem:[%s5722 + $0xa8] sm:$0xff]
        %v5745 = vld [vmem:[%s5722 + $0xb0] sm:$0xff]
        %v5746 = vld [vmem:[%s5722 + $0xb8] sm:$0xff]
        %v5747 = vld [vmem:[%s5722 + $0xc0] sm:$0xff]
        %v5748 = vld [vmem:[%s5722 + $0xc8] sm:$0xff]
        %v5749 = vld [vmem:[%s5722 + $0xd0] sm:$0xff]
        %v5750 = vld [vmem:[%s5722 + $0xd8] sm:$0xff]
        %v5751 = vld [vmem:[%s5722 + $0xe0] sm:$0xff]
        %v5752 = vld [vmem:[%s5722 + $0xe8] sm:$0xff]
        %v5753 = vld [vmem:[%s5722 + $0xf0] sm:$0xff]
        %v5754 = vld [vmem:[%s5722 + $0xf8] sm:$0xff]
        %v5755 = vld [vmem:[%s5722 + $0x100] sm:$0xff]
        %v5756 = vld [vmem:[%s5722 + $0x108] sm:$0xff]
        %v5757 = vld [vmem:[%s5722 + $0x110] sm:$0xff]
        %v5758 = vld [vmem:[%s5722 + $0x118] sm:$0xff]
        %v5759 = vld [vmem:[%s5722 + $0x120] sm:$0xff]
        %v5760 = vld [vmem:[%s5722 + $0x128] sm:$0xff]
        %v5761 = vld [vmem:[%s5722 + $0x130] sm:$0xff]
        %v5762 = vld [vmem:[%s5722 + $0x138] sm:$0xff]
        %v5763 = vld [vmem:[%s5722 + $0x140] sm:$0xff]
        %v5764 = vld [vmem:[%s5722 + $0x148] sm:$0xff]
        %v5765 = vld [vmem:[%s5722 + $0x150] sm:$0xff]
        %v5766 = vld [vmem:[%s5722 + $0x158] sm:$0xff]
        %v5767 = vld [vmem:[%s5722 + $0x160] sm:$0xff]
        %v5768 = vld [vmem:[%s5722 + $0x168] sm:$0xff]
        %v5769 = vld [vmem:[%s5722 + $0x170] sm:$0xff]
        %v5770 = vld [vmem:[%s5722 + $0x178] sm:$0xff]
        %v5771 = vld [vmem:[%s5722 + $0x180] sm:$0xff]
        %v5772 = vld [vmem:[%s5722 + $0x188] sm:$0xff]
        %v5773 = vld [vmem:[%s5722 + $0x190] sm:$0xff]
        %v5774 = vld [vmem:[%s5722 + $0x198] sm:$0xff]
        %v5775 = vld [vmem:[%s5722 + $0x1a0] sm:$0xff]
        %v5776 = vld [vmem:[%s5722 + $0x1a8] sm:$0xff]
        %v5777 = vld [vmem:[%s5722 + $0x1b0] sm:$0xff]
        %v5778 = vld [vmem:[%s5722 + $0x1b8] sm:$0xff]
        %v5779 = vld [vmem:[%s5722 + $0x1c0] sm:$0xff]
        %v5780 = vld [vmem:[%s5722 + $0x1c8] sm:$0xff]
        %v5781 = vld [vmem:[%s5722 + $0x1d0] sm:$0xff]
        %v5782 = vld [vmem:[%s5722 + $0x1d8] sm:$0xff]
        %v5783 = vld [vmem:[%s5722 + $0x1e0] sm:$0xff]
        %v5784 = vld [vmem:[%s5722 + $0x1e8] sm:$0xff]
        %v5785 = vld [vmem:[%s5722 + $0x1f0] sm:$0xff]
        %v5786 = vld [vmem:[%s5722 + $0x1f8] sm:$0xff]
        %s5787 = scalar_lea.vmem %s13, 2
        %v5788 = vld [vmem:[%s5787] sm:$0x3]
        %v5790 = vlaneseq
        %v5791 = vshrl.u32 %v5790, 7
        %v5792 = vsub.s32 0, %v5791
        %v5793 = vrot.slane %v5788, %v5792
        %v5794 = vlaneseq
        %v5795 = vshrl.u32 %v5794, 7
        %v5796 = vsub.s32 1, %v5795
        %v5797 = vrot.slane %v5788, %v5796
        %v5864 = vunpack.c.l.b16 %v5723
        %v5865 = vunpack.c.h.b16 %v5723
        %v5866 = vunpack.c.l.b16 %v5724
        %v5867 = vunpack.c.h.b16 %v5724
        %v5868 = vunpack.c.l.b16 %v5725
        %v5869 = vunpack.c.h.b16 %v5725
        %v5870 = vunpack.c.l.b16 %v5726
        %v5871 = vunpack.c.h.b16 %v5726
        %v5872 = vunpack.c.l.b16 %v5727
        %v5873 = vunpack.c.h.b16 %v5727
        %v5874 = vunpack.c.l.b16 %v5728
        %v5875 = vunpack.c.h.b16 %v5728
        %v5876 = vunpack.c.l.b16 %v5729
        %v5877 = vunpack.c.h.b16 %v5729
        %v5878 = vunpack.c.l.b16 %v5730
        %v5879 = vunpack.c.h.b16 %v5730
        %v5880 = vunpack.c.l.b16 %v5731
        %v5881 = vunpack.c.h.b16 %v5731
        %v5882 = vunpack.c.l.b16 %v5732
        %v5883 = vunpack.c.h.b16 %v5732
        %v5884 = vunpack.c.l.b16 %v5733
        %v5885 = vunpack.c.h.b16 %v5733
        %v5886 = vunpack.c.l.b16 %v5734
        %v5887 = vunpack.c.h.b16 %v5734
        %v5888 = vunpack.c.l.b16 %v5735
        %v5889 = vunpack.c.h.b16 %v5735
        %v5890 = vunpack.c.l.b16 %v5736
        %v5891 = vunpack.c.h.b16 %v5736
        %v5892 = vunpack.c.l.b16 %v5737
        %v5893 = vunpack.c.h.b16 %v5737
        %v5894 = vunpack.c.l.b16 %v5738
        %v5895 = vunpack.c.h.b16 %v5738
        %v5896 = vunpack.c.l.b16 %v5739
        %v5897 = vunpack.c.h.b16 %v5739
        %v5898 = vunpack.c.l.b16 %v5740
        %v5899 = vunpack.c.h.b16 %v5740
        %v5900 = vunpack.c.l.b16 %v5741
        %v5901 = vunpack.c.h.b16 %v5741
        %v5902 = vunpack.c.l.b16 %v5742
        %v5903 = vunpack.c.h.b16 %v5742
        %v5904 = vunpack.c.l.b16 %v5743
        %v5905 = vunpack.c.h.b16 %v5743
        %v5906 = vunpack.c.l.b16 %v5744
        %v5907 = vunpack.c.h.b16 %v5744
        %v5908 = vunpack.c.l.b16 %v5745
        %v5909 = vunpack.c.h.b16 %v5745
        %v5910 = vunpack.c.l.b16 %v5746
        %v5911 = vunpack.c.h.b16 %v5746
        %v5912 = vunpack.c.l.b16 %v5747
        %v5913 = vunpack.c.h.b16 %v5747
        %v5914 = vunpack.c.l.b16 %v5748
        %v5915 = vunpack.c.h.b16 %v5748
        %v5916 = vunpack.c.l.b16 %v5749
        %v5917 = vunpack.c.h.b16 %v5749
        %v5918 = vunpack.c.l.b16 %v5750
        %v5919 = vunpack.c.h.b16 %v5750
        %v5920 = vunpack.c.l.b16 %v5751
        %v5921 = vunpack.c.h.b16 %v5751
        %v5922 = vunpack.c.l.b16 %v5752
        %v5923 = vunpack.c.h.b16 %v5752
        %v5924 = vunpack.c.l.b16 %v5753
        %v5925 = vunpack.c.h.b16 %v5753
        %v5926 = vunpack.c.l.b16 %v5754
        %v5927 = vunpack.c.h.b16 %v5754
        %v5928 = vunpack.c.l.b16 %v5755
        %v5929 = vunpack.c.h.b16 %v5755
        %v5930 = vunpack.c.l.b16 %v5756
        %v5931 = vunpack.c.h.b16 %v5756
        %v5932 = vunpack.c.l.b16 %v5757
        %v5933 = vunpack.c.h.b16 %v5757
        %v5934 = vunpack.c.l.b16 %v5758
        %v5935 = vunpack.c.h.b16 %v5758
        %v5936 = vunpack.c.l.b16 %v5759
        %v5937 = vunpack.c.h.b16 %v5759
        %v5938 = vunpack.c.l.b16 %v5760
        %v5939 = vunpack.c.h.b16 %v5760
        %v5940 = vunpack.c.l.b16 %v5761
        %v5941 = vunpack.c.h.b16 %v5761
        %v5942 = vunpack.c.l.b16 %v5762
        %v5943 = vunpack.c.h.b16 %v5762
        %v5944 = vunpack.c.l.b16 %v5763
        %v5945 = vunpack.c.h.b16 %v5763
        %v5946 = vunpack.c.l.b16 %v5764
        %v5947 = vunpack.c.h.b16 %v5764
        %v5948 = vunpack.c.l.b16 %v5765
        %v5949 = vunpack.c.h.b16 %v5765
        %v5950 = vunpack.c.l.b16 %v5766
        %v5951 = vunpack.c.h.b16 %v5766
        %v5952 = vunpack.c.l.b16 %v5767
        %v5953 = vunpack.c.h.b16 %v5767
        %v5954 = vunpack.c.l.b16 %v5768
        %v5955 = vunpack.c.h.b16 %v5768
        %v5956 = vunpack.c.l.b16 %v5769
        %v5957 = vunpack.c.h.b16 %v5769
        %v5958 = vunpack.c.l.b16 %v5770
        %v5959 = vunpack.c.h.b16 %v5770
        %v5960 = vunpack.c.l.b16 %v5771
        %v5961 = vunpack.c.h.b16 %v5771
        %v5962 = vunpack.c.l.b16 %v5772
        %v5963 = vunpack.c.h.b16 %v5772
        %v5964 = vunpack.c.l.b16 %v5773
        %v5965 = vunpack.c.h.b16 %v5773
        %v5966 = vunpack.c.l.b16 %v5774
        %v5967 = vunpack.c.h.b16 %v5774
        %v5968 = vunpack.c.l.b16 %v5775
        %v5969 = vunpack.c.h.b16 %v5775
        %v5970 = vunpack.c.l.b16 %v5776
        %v5971 = vunpack.c.h.b16 %v5776
        %v5972 = vunpack.c.l.b16 %v5777
        %v5973 = vunpack.c.h.b16 %v5777
        %v5974 = vunpack.c.l.b16 %v5778
        %v5975 = vunpack.c.h.b16 %v5778
        %v5976 = vunpack.c.l.b16 %v5779
        %v5977 = vunpack.c.h.b16 %v5779
        %v5978 = vunpack.c.l.b16 %v5780
        %v5979 = vunpack.c.h.b16 %v5780
        %v5980 = vunpack.c.l.b16 %v5781
        %v5981 = vunpack.c.h.b16 %v5781
        %v5982 = vunpack.c.l.b16 %v5782
        %v5983 = vunpack.c.h.b16 %v5782
        %v5984 = vunpack.c.l.b16 %v5783
        %v5985 = vunpack.c.h.b16 %v5783
        %v5986 = vunpack.c.l.b16 %v5784
        %v5987 = vunpack.c.h.b16 %v5784
        %v5988 = vunpack.c.l.b16 %v5785
        %v5989 = vunpack.c.h.b16 %v5785
        %v5990 = vunpack.c.l.b16 %v5786
        %v5991 = vunpack.c.h.b16 %v5786
        %v5992 = vpack.c.b16 %v5866, %v5864
        %v5993 = vpack.c.b16 %v5867, %v5865
        %v5994 = vpack.c.b16 %v5870, %v5868
        %v5995 = vpack.c.b16 %v5871, %v5869
        %v5996 = vpack.c.b16 %v5874, %v5872
        %v5997 = vpack.c.b16 %v5875, %v5873
        %v5998 = vpack.c.b16 %v5878, %v5876
        %v5999 = vpack.c.b16 %v5879, %v5877
        %v6000 = vpack.c.b16 %v5882, %v5880
        %v6001 = vpack.c.b16 %v5883, %v5881
        %v6002 = vpack.c.b16 %v5886, %v5884
        %v6003 = vpack.c.b16 %v5887, %v5885
        %v6004 = vpack.c.b16 %v5890, %v5888
        %v6005 = vpack.c.b16 %v5891, %v5889
        %v6006 = vpack.c.b16 %v5894, %v5892
        %v6007 = vpack.c.b16 %v5895, %v5893
        %v6008 = vpack.c.b16 %v5898, %v5896
        %v6009 = vpack.c.b16 %v5899, %v5897
        %v6010 = vpack.c.b16 %v5902, %v5900
        %v6011 = vpack.c.b16 %v5903, %v5901
        %v6012 = vpack.c.b16 %v5906, %v5904
        %v6013 = vpack.c.b16 %v5907, %v5905
        %v6014 = vpack.c.b16 %v5910, %v5908
        %v6015 = vpack.c.b16 %v5911, %v5909
        %v6016 = vpack.c.b16 %v5914, %v5912
        %v6017 = vpack.c.b16 %v5915, %v5913
        %v6018 = vpack.c.b16 %v5918, %v5916
        %v6019 = vpack.c.b16 %v5919, %v5917
        %v6020 = vpack.c.b16 %v5922, %v5920
        %v6021 = vpack.c.b16 %v5923, %v5921
        %v6022 = vpack.c.b16 %v5926, %v5924
        %v6023 = vpack.c.b16 %v5927, %v5925
        %v6024 = vpack.c.b16 %v5930, %v5928
        %v6025 = vpack.c.b16 %v5931, %v5929
        %v6026 = vpack.c.b16 %v5934, %v5932
        %v6027 = vpack.c.b16 %v5935, %v5933
        %v6028 = vpack.c.b16 %v5938, %v5936
        %v6029 = vpack.c.b16 %v5939, %v5937
        %v6030 = vpack.c.b16 %v5942, %v5940
        %v6031 = vpack.c.b16 %v5943, %v5941
        %v6032 = vpack.c.b16 %v5946, %v5944
        %v6033 = vpack.c.b16 %v5947, %v5945
        %v6034 = vpack.c.b16 %v5950, %v5948
        %v6035 = vpack.c.b16 %v5951, %v5949
        %v6036 = vpack.c.b16 %v5954, %v5952
        %v6037 = vpack.c.b16 %v5955, %v5953
        %v6038 = vpack.c.b16 %v5958, %v5956
        %v6039 = vpack.c.b16 %v5959, %v5957
        %v6040 = vpack.c.b16 %v5962, %v5960
        %v6041 = vpack.c.b16 %v5963, %v5961
        %v6042 = vpack.c.b16 %v5966, %v5964
        %v6043 = vpack.c.b16 %v5967, %v5965
        %v6044 = vpack.c.b16 %v5970, %v5968
        %v6045 = vpack.c.b16 %v5971, %v5969
        %v6046 = vpack.c.b16 %v5974, %v5972
        %v6047 = vpack.c.b16 %v5975, %v5973
        %v6048 = vpack.c.b16 %v5978, %v5976
        %v6049 = vpack.c.b16 %v5979, %v5977
        %v6050 = vpack.c.b16 %v5982, %v5980
        %v6051 = vpack.c.b16 %v5983, %v5981
        %v6052 = vpack.c.b16 %v5986, %v5984
        %v6053 = vpack.c.b16 %v5987, %v5985
        %v6054 = vpack.c.b16 %v5990, %v5988
        %v6055 = vpack.c.b16 %v5991, %v5989
        %6120 = vmatprep.subr.bf16.mxu0 %v5993
        %6121 = vmatpush1.bf16.msra.mxu0 %v5992
        %6122 = vmatprep.subr.bf16.mxu0 %v5995
        %6123 = vmatpush1.bf16.msra.mxu0 %v5994
        %6124 = vmatprep.subr.bf16.mxu0 %v5997
        %6125 = vmatpush1.bf16.msra.mxu0 %v5996
        %6126 = vmatprep.subr.bf16.mxu0 %v5999
        %6127 = vmatpush1.bf16.msra.mxu0 %v5998
        %6128 = vmatprep.subr.bf16.mxu0 %v6001
        %6129 = vmatpush1.bf16.msra.mxu0 %v6000
        %6130 = vmatprep.subr.bf16.mxu0 %v6003
        %6131 = vmatpush1.bf16.msra.mxu0 %v6002
        %6132 = vmatprep.subr.bf16.mxu0 %v6005
        %6133 = vmatpush1.bf16.msra.mxu0 %v6004
        %6134 = vmatprep.subr.bf16.mxu0 %v6007
        %6135 = vmatpush1.bf16.msra.mxu0 %v6006
        %6136 = vmatprep.subr.bf16.mxu0 %v6009
        %6137 = vmatpush1.bf16.msra.mxu0 %v6008
        %6138 = vmatprep.subr.bf16.mxu0 %v6011
        %6139 = vmatpush1.bf16.msra.mxu0 %v6010
        %6140 = vmatprep.subr.bf16.mxu0 %v6013
        %6141 = vmatpush1.bf16.msra.mxu0 %v6012
        %6142 = vmatprep.subr.bf16.mxu0 %v6015
        %6143 = vmatpush1.bf16.msra.mxu0 %v6014
        %6144 = vmatprep.subr.bf16.mxu0 %v6017
        %6145 = vmatpush1.bf16.msra.mxu0 %v6016
        %6146 = vmatprep.subr.bf16.mxu0 %v6019
        %6147 = vmatpush1.bf16.msra.mxu0 %v6018
        %6148 = vmatprep.subr.bf16.mxu0 %v6021
        %6149 = vmatpush1.bf16.msra.mxu0 %v6020
        %6150 = vmatprep.subr.bf16.mxu0 %v6023
        %6151 = vmatpush1.bf16.msra.mxu0 %v6022
        %6152 = vmatprep.mubr.bf16.mxu0 %v5719
        %6153 = vmatmul.mubr.bf16.gmra.mrb[0].mxu0 %v5718
        %v6154 = vpop.f32.mrb[0].mxu0
        %v6155 = vadd.f32 %v5793, %v6154
        %v6156 = vpop.f32.mrb[0].mxu0
        %v6157 = vadd.f32 %v5797, %v6156
        %v6158 = vpop.f32.mrb[0].mxu0
        %v6159 = vpop.f32.mrb[0].mxu0
        %6160 = vdwg.mxu0
        %6161 = vmatprep.subr.bf16.mxu0 %v6025
        %6162 = vmatpush1.bf16.msra.mxu0 %v6024
        %6163 = vmatprep.subr.bf16.mxu0 %v6027
        %6164 = vmatpush1.bf16.msra.mxu0 %v6026
        %6165 = vmatprep.subr.bf16.mxu0 %v6029
        %6166 = vmatpush1.bf16.msra.mxu0 %v6028
        %6167 = vmatprep.subr.bf16.mxu0 %v6031
        %6168 = vmatpush1.bf16.msra.mxu0 %v6030
        %6169 = vmatprep.subr.bf16.mxu0 %v6033
        %6170 = vmatpush1.bf16.msra.mxu0 %v6032
        %6171 = vmatprep.subr.bf16.mxu0 %v6035
        %6172 = vmatpush1.bf16.msra.mxu0 %v6034
        %6173 = vmatprep.subr.bf16.mxu0 %v6037
        %6174 = vmatpush1.bf16.msra.mxu0 %v6036
        %6175 = vmatprep.subr.bf16.mxu0 %v6039
        %6176 = vmatpush1.bf16.msra.mxu0 %v6038
        %6177 = vmatprep.subr.bf16.mxu0 %v6041
        %6178 = vmatpush1.bf16.msra.mxu0 %v6040
        %6179 = vmatprep.subr.bf16.mxu0 %v6043
        %6180 = vmatpush1.bf16.msra.mxu0 %v6042
        %6181 = vmatprep.subr.bf16.mxu0 %v6045
        %6182 = vmatpush1.bf16.msra.mxu0 %v6044
        %6183 = vmatprep.subr.bf16.mxu0 %v6047
        %6184 = vmatpush1.bf16.msra.mxu0 %v6046
        %6185 = vmatprep.subr.bf16.mxu0 %v6049
        %6186 = vmatpush1.bf16.msra.mxu0 %v6048
        %6187 = vmatprep.subr.bf16.mxu0 %v6051
        %6188 = vmatpush1.bf16.msra.mxu0 %v6050
        %6189 = vmatprep.subr.bf16.mxu0 %v6053
        %6190 = vmatpush1.bf16.msra.mxu0 %v6052
        %6191 = vmatprep.subr.bf16.mxu0 %v6055
        %6192 = vmatpush1.bf16.msra.mxu0 %v6054
        %6193 = vmatprep.mubr.bf16.mxu0 %v5721
        %6194 = vmatmul.mubr.bf16.gmra.mrb[0].mxu0 %v5720
        %v6195 = vpop.f32.mrb[0].mxu0
        %v6196 = vadd.f32 %v6155, %v6195
        %v6197 = vpop.f32.mrb[0].mxu0
        %v6198 = vadd.f32 %v6157, %v6197
        %v6199 = vpop.f32.mrb[0].mxu0
        %v6200 = vpop.f32.mrb[0].mxu0
        %6201 = vdwg.mxu0
        %v6202 = vadd.f32 %v6196, %v5188
        %v6203 = vadd.f32 %v6198, %v5189
        %s6204 = scalar_lea.vmem %s14, 2
        %v6205 = vld [vmem:[%s6204] sm:$0x3]
        %s6206 = scalar_lea.vmem %s15, 2
        %v6207 = vld [vmem:[%s6206] sm:$0x3]
        %v6208 = vadd.f32 %v6202, %v6203
        %6209 = vadd.xlane.f32.xlu0 %v6208
        %v6210 = vpop.xlane.xlu0 %6209
        %v6211 = vmul.f32 %v6210, %v687
        %v6212 = vsub.f32 %v6202, %v6211
        %v6213 = vsub.f32 %v6203, %v6211
        %v6214 = vmul.f32 %v6212, %v6212
        %v6215 = vmul.f32 %v6213, %v6213
        %v6216 = vadd.f32 %v6214, %v6215
        %6217 = vadd.xlane.f32.xlu0 %v6216
        %v6218 = vpop.xlane.xlu0 %6217
        %v6219 = vmul.f32 %v6218, %v687
        %v6220 = vadd.f32 %v6219, 1e-12
        %v6221 = vrsqrt.pop %v6220
        %v6222 = vmul.f32 %v6212, %v6221
        %v6223 = vmul.f32 %v6213, %v6221
        %v6225 = vlaneseq
        %v6226 = vshrl.u32 %v6225, 7
        %v6227 = vsub.s32 0, %v6226
        %v6228 = vrot.slane %v6205, %v6227
        %v6229 = vlaneseq
        %v6230 = vshrl.u32 %v6229, 7
        %v6231 = vsub.s32 1, %v6230
        %v6232 = vrot.slane %v6205, %v6231
        %v6235 = vmul.f32 %v6222, %v6228
        %v6236 = vmul.f32 %v6223, %v6232
        %v6238 = vlaneseq
        %v6239 = vshrl.u32 %v6238, 7
        %v6240 = vsub.s32 0, %v6239
        %v6241 = vrot.slane %v6207, %v6240
        %v6242 = vlaneseq
        %v6243 = vshrl.u32 %v6242, 7
        %v6244 = vsub.s32 1, %v6243
        %v6245 = vrot.slane %v6207, %v6244
        %v6248 = vadd.f32 %v6235, %v6241
        %v6249 = vadd.f32 %v6236, %v6245
        %v6250 = vpack.c.bf16 %v6248, %v6248
        %v6251 = vpack.c.bf16 %v6249, %v6249
        %v6252 = vld [vmem:[%s16] sm:$0xf]
        %v6253 = vld [vmem:[%s16 + $0x4] sm:$0xf]
        %v6254 = vld [vmem:[%s16 + $0x8] sm:$0xf]
        %v6255 = vld [vmem:[%s16 + $0xc] sm:$0xf]
        %v6256 = vld [vmem:[%s16 + $0x10] sm:$0xf]
        %v6257 = vld [vmem:[%s16 + $0x14] sm:$0xf]
        %v6258 = vld [vmem:[%s16 + $0x18] sm:$0xf]
        %v6259 = vld [vmem:[%s16 + $0x1c] sm:$0xf]
        %v6260 = vld [vmem:[%s16 + $0x20] sm:$0xf]
        %v6261 = vld [vmem:[%s16 + $0x24] sm:$0xf]
        %v6262 = vld [vmem:[%s16 + $0x28] sm:$0xf]
        %v6263 = vld [vmem:[%s16 + $0x2c] sm:$0xf]
        %v6264 = vld [vmem:[%s16 + $0x30] sm:$0xf]
        %v6265 = vld [vmem:[%s16 + $0x34] sm:$0xf]
        %v6266 = vld [vmem:[%s16 + $0x38] sm:$0xf]
        %v6267 = vld [vmem:[%s16 + $0x3c] sm:$0xf]
        %v6268 = vld [vmem:[%s16 + $0x40] sm:$0xf]
        %v6269 = vld [vmem:[%s16 + $0x44] sm:$0xf]
        %v6270 = vld [vmem:[%s16 + $0x48] sm:$0xf]
        %v6271 = vld [vmem:[%s16 + $0x4c] sm:$0xf]
        %v6272 = vld [vmem:[%s16 + $0x50] sm:$0xf]
        %v6273 = vld [vmem:[%s16 + $0x54] sm:$0xf]
        %v6274 = vld [vmem:[%s16 + $0x58] sm:$0xf]
        %v6275 = vld [vmem:[%s16 + $0x5c] sm:$0xf]
        %v6276 = vld [vmem:[%s16 + $0x60] sm:$0xf]
        %v6277 = vld [vmem:[%s16 + $0x64] sm:$0xf]
        %v6278 = vld [vmem:[%s16 + $0x68] sm:$0xf]
        %v6279 = vld [vmem:[%s16 + $0x6c] sm:$0xf]
        %v6280 = vld [vmem:[%s16 + $0x70] sm:$0xf]
        %v6281 = vld [vmem:[%s16 + $0x74] sm:$0xf]
        %v6282 = vld [vmem:[%s16 + $0x78] sm:$0xf]
        %v6283 = vld [vmem:[%s16 + $0x7c] sm:$0xf]
        %v6284 = vld [vmem:[%s17] sm:$0x1]
        %v6286 = vlaneseq
        %v6287 = vshrl.u32 %v6286, 7
        %v6288 = vsub.s32 0, %v6287
        %v6289 = vrot.slane %v6284, %v6288
        %v6323 = vunpack.c.l.b16 %v6252
        %v6324 = vunpack.c.l.b16 %v6253
        %v6325 = vunpack.c.l.b16 %v6254
        %v6326 = vunpack.c.l.b16 %v6255
        %v6327 = vunpack.c.l.b16 %v6256
        %v6328 = vunpack.c.l.b16 %v6257
        %v6329 = vunpack.c.l.b16 %v6258
        %v6330 = vunpack.c.l.b16 %v6259
        %v6331 = vunpack.c.l.b16 %v6260
        %v6332 = vunpack.c.l.b16 %v6261
        %v6333 = vunpack.c.l.b16 %v6262
        %v6334 = vunpack.c.l.b16 %v6263
        %v6335 = vunpack.c.l.b16 %v6264
        %v6336 = vunpack.c.l.b16 %v6265
        %v6337 = vunpack.c.l.b16 %v6266
        %v6338 = vunpack.c.l.b16 %v6267
        %v6339 = vunpack.c.l.b16 %v6268
        %v6340 = vunpack.c.l.b16 %v6269
        %v6341 = vunpack.c.l.b16 %v6270
        %v6342 = vunpack.c.l.b16 %v6271
        %v6343 = vunpack.c.l.b16 %v6272
        %v6344 = vunpack.c.l.b16 %v6273
        %v6345 = vunpack.c.l.b16 %v6274
        %v6346 = vunpack.c.l.b16 %v6275
        %v6347 = vunpack.c.l.b16 %v6276
        %v6348 = vunpack.c.l.b16 %v6277
        %v6349 = vunpack.c.l.b16 %v6278
        %v6350 = vunpack.c.l.b16 %v6279
        %v6351 = vunpack.c.l.b16 %v6280
        %v6352 = vunpack.c.l.b16 %v6281
        %v6353 = vunpack.c.l.b16 %v6282
        %v6354 = vunpack.c.l.b16 %v6283
        %v6355 = vpack.c.b16 %v6324, %v6323
        %v6356 = vpack.c.b16 %v6326, %v6325
        %v6357 = vpack.c.b16 %v6328, %v6327
        %v6358 = vpack.c.b16 %v6330, %v6329
        %v6359 = vpack.c.b16 %v6332, %v6331
        %v6360 = vpack.c.b16 %v6334, %v6333
        %v6361 = vpack.c.b16 %v6336, %v6335
        %v6362 = vpack.c.b16 %v6338, %v6337
        %v6363 = vpack.c.b16 %v6340, %v6339
        %v6364 = vpack.c.b16 %v6342, %v6341
        %v6365 = vpack.c.b16 %v6344, %v6343
        %v6366 = vpack.c.b16 %v6346, %v6345
        %v6367 = vpack.c.b16 %v6348, %v6347
        %v6368 = vpack.c.b16 %v6350, %v6349
        %v6369 = vpack.c.b16 %v6352, %v6351
        %v6370 = vpack.c.b16 %v6354, %v6353
        %6387 = vmatprep.subr.bf16.mxu0 0
        %6388 = vmatpush1.bf16.msra.mxu0 %v6355
        %6389 = vmatprep.subr.bf16.mxu0 0
        %6390 = vmatpush1.bf16.msra.mxu0 %v6356
        %6391 = vmatprep.subr.bf16.mxu0 0
        %6392 = vmatpush1.bf16.msra.mxu0 %v6357
        %6393 = vmatprep.subr.bf16.mxu0 0
        %6394 = vmatpush1.bf16.msra.mxu0 %v6358
        %6395 = vmatprep.subr.bf16.mxu0 0
        %6396 = vmatpush1.bf16.msra.mxu0 %v6359
        %6397 = vmatprep.subr.bf16.mxu0 0
        %6398 = vmatpush1.bf16.msra.mxu0 %v6360
        %6399 = vmatprep.subr.bf16.mxu0 0
        %6400 = vmatpush1.bf16.msra.mxu0 %v6361
        %6401 = vmatprep.subr.bf16.mxu0 0
        %6402 = vmatpush1.bf16.msra.mxu0 %v6362
        %6403 = vmatprep.subr.bf16.mxu0 0
        %6404 = vmatpush1.bf16.msra.mxu0 %v6363
        %6405 = vmatprep.subr.bf16.mxu0 0
        %6406 = vmatpush1.bf16.msra.mxu0 %v6364
        %6407 = vmatprep.subr.bf16.mxu0 0
        %6408 = vmatpush1.bf16.msra.mxu0 %v6365
        %6409 = vmatprep.subr.bf16.mxu0 0
        %6410 = vmatpush1.bf16.msra.mxu0 %v6366
        %6411 = vmatprep.subr.bf16.mxu0 0
        %6412 = vmatpush1.bf16.msra.mxu0 %v6367
        %6413 = vmatprep.subr.bf16.mxu0 0
        %6414 = vmatpush1.bf16.msra.mxu0 %v6368
        %6415 = vmatprep.subr.bf16.mxu0 0
        %6416 = vmatpush1.bf16.msra.mxu0 %v6369
        %6417 = vmatprep.subr.bf16.mxu0 0
        %6418 = vmatpush1.bf16.msra.mxu0 %v6370
        %6419 = vmatprep.mubr.bf16.mxu0 %v6251
        %6420 = vmatmul.mubr.bf16.gmra.mrb[0].mxu0 %v6250
        %v6421 = vpop.f32.mrb[0].mxu0
        %v6422 = vadd.f32 %v6289, %v6421
        %v6423 = vpop.f32.mrb[0].mxu0
        %v6424 = vpop.f32.mrb[0].mxu0
        %v6425 = vpop.f32.mrb[0].mxu0
        %6426 = vdwg.mxu0
        %vm6427 = vcmask 15360
        %6428 = vst.msk [vmem:[%s678] sm:$0xff] %vm6427, %v6422
        %v6429 = vld [vmem:[%s18] sm:$0xf]
        %v6430 = vld [vmem:[%s18 + $0x4] sm:$0xf]
        %v6431 = vld [vmem:[%s18 + $0x8] sm:$0xf]
        %v6432 = vld [vmem:[%s18 + $0xc] sm:$0xf]
        %v6433 = vld [vmem:[%s18 + $0x10] sm:$0xf]
        %v6434 = vld [vmem:[%s18 + $0x14] sm:$0xf]
        %v6435 = vld [vmem:[%s18 + $0x18] sm:$0xf]
        %v6436 = vld [vmem:[%s18 + $0x1c] sm:$0xf]
        %v6437 = vld [vmem:[%s18 + $0x20] sm:$0xf]
        %v6438 = vld [vmem:[%s18 + $0x24] sm:$0xf]
        %v6439 = vld [vmem:[%s18 + $0x28] sm:$0xf]
        %v6440 = vld [vmem:[%s18 + $0x2c] sm:$0xf]
        %v6441 = vld [vmem:[%s18 + $0x30] sm:$0xf]
        %v6442 = vld [vmem:[%s18 + $0x34] sm:$0xf]
        %v6443 = vld [vmem:[%s18 + $0x38] sm:$0xf]
        %v6444 = vld [vmem:[%s18 + $0x3c] sm:$0xf]
        %v6445 = vld [vmem:[%s18 + $0x40] sm:$0xf]
        %v6446 = vld [vmem:[%s18 + $0x44] sm:$0xf]
        %v6447 = vld [vmem:[%s18 + $0x48] sm:$0xf]
        %v6448 = vld [vmem:[%s18 + $0x4c] sm:$0xf]
        %v6449 = vld [vmem:[%s18 + $0x50] sm:$0xf]
        %v6450 = vld [vmem:[%s18 + $0x54] sm:$0xf]
        %v6451 = vld [vmem:[%s18 + $0x58] sm:$0xf]
        %v6452 = vld [vmem:[%s18 + $0x5c] sm:$0xf]
        %v6453 = vld [vmem:[%s18 + $0x60] sm:$0xf]
        %v6454 = vld [vmem:[%s18 + $0x64] sm:$0xf]
        %v6455 = vld [vmem:[%s18 + $0x68] sm:$0xf]
        %v6456 = vld [vmem:[%s18 + $0x6c] sm:$0xf]
        %v6457 = vld [vmem:[%s18 + $0x70] sm:$0xf]
        %v6458 = vld [vmem:[%s18 + $0x74] sm:$0xf]
        %v6459 = vld [vmem:[%s18 + $0x78] sm:$0xf]
        %v6460 = vld [vmem:[%s18 + $0x7c] sm:$0xf]
        %v6461 = vld [vmem:[%s19] sm:$0x1]
        %v6494 = vunpack.c.l.b16 %v6429
        %v6495 = vunpack.c.l.b16 %v6430
        %v6496 = vunpack.c.l.b16 %v6431
        %v6497 = vunpack.c.l.b16 %v6432
        %v6498 = vunpack.c.l.b16 %v6433
        %v6499 = vunpack.c.l.b16 %v6434
        %v6500 = vunpack.c.l.b16 %v6435
        %v6501 = vunpack.c.l.b16 %v6436
        %v6502 = vunpack.c.l.b16 %v6437
        %v6503 = vunpack.c.l.b16 %v6438
        %v6504 = vunpack.c.l.b16 %v6439
        %v6505 = vunpack.c.l.b16 %v6440
        %v6506 = vunpack.c.l.b16 %v6441
        %v6507 = vunpack.c.l.b16 %v6442
        %v6508 = vunpack.c.l.b16 %v6443
        %v6509 = vunpack.c.l.b16 %v6444
        %v6510 = vunpack.c.l.b16 %v6445
        %v6511 = vunpack.c.l.b16 %v6446
        %v6512 = vunpack.c.l.b16 %v6447
        %v6513 = vunpack.c.l.b16 %v6448
        %v6514 = vunpack.c.l.b16 %v6449
        %v6515 = vunpack.c.l.b16 %v6450
        %v6516 = vunpack.c.l.b16 %v6451
        %v6517 = vunpack.c.l.b16 %v6452
        %v6518 = vunpack.c.l.b16 %v6453
        %v6519 = vunpack.c.l.b16 %v6454
        %v6520 = vunpack.c.l.b16 %v6455
        %v6521 = vunpack.c.l.b16 %v6456
        %v6522 = vunpack.c.l.b16 %v6457
        %v6523 = vunpack.c.l.b16 %v6458
        %v6524 = vunpack.c.l.b16 %v6459
        %v6525 = vunpack.c.l.b16 %v6460
        %v6526 = vpack.c.b16 %v6495, %v6494
        %v6527 = vpack.c.b16 %v6497, %v6496
        %v6528 = vpack.c.b16 %v6499, %v6498
        %v6529 = vpack.c.b16 %v6501, %v6500
        %v6530 = vpack.c.b16 %v6503, %v6502
        %v6531 = vpack.c.b16 %v6505, %v6504
        %v6532 = vpack.c.b16 %v6507, %v6506
        %v6533 = vpack.c.b16 %v6509, %v6508
        %v6534 = vpack.c.b16 %v6511, %v6510
        %v6535 = vpack.c.b16 %v6513, %v6512
        %v6536 = vpack.c.b16 %v6515, %v6514
        %v6537 = vpack.c.b16 %v6517, %v6516
        %v6538 = vpack.c.b16 %v6519, %v6518
        %v6539 = vpack.c.b16 %v6521, %v6520
        %v6540 = vpack.c.b16 %v6523, %v6522
        %v6541 = vpack.c.b16 %v6525, %v6524
        %6558 = vmatprep.subr.bf16.mxu0 0
        %6559 = vmatpush1.bf16.msra.mxu0 %v6526
        %6560 = vmatprep.subr.bf16.mxu0 0
        %6561 = vmatpush1.bf16.msra.mxu0 %v6527
        %6562 = vmatprep.subr.bf16.mxu0 0
        %6563 = vmatpush1.bf16.msra.mxu0 %v6528
        %6564 = vmatprep.subr.bf16.mxu0 0
        %6565 = vmatpush1.bf16.msra.mxu0 %v6529
        %6566 = vmatprep.subr.bf16.mxu0 0
        %6567 = vmatpush1.bf16.msra.mxu0 %v6530
        %6568 = vmatprep.subr.bf16.mxu0 0
        %6569 = vmatpush1.bf16.msra.mxu0 %v6531
        %6570 = vmatprep.subr.bf16.mxu0 0
        %6571 = vmatpush1.bf16.msra.mxu0 %v6532
        %6572 = vmatprep.subr.bf16.mxu0 0
        %6573 = vmatpush1.bf16.msra.mxu0 %v6533
        %6574 = vmatprep.subr.bf16.mxu0 0
        %6575 = vmatpush1.bf16.msra.mxu0 %v6534
        %6576 = vmatprep.subr.bf16.mxu0 0
        %6577 = vmatpush1.bf16.msra.mxu0 %v6535
        %6578 = vmatprep.subr.bf16.mxu0 0
        %6579 = vmatpush1.bf16.msra.mxu0 %v6536
        %6580 = vmatprep.subr.bf16.mxu0 0
        %6581 = vmatpush1.bf16.msra.mxu0 %v6537
        %6582 = vmatprep.subr.bf16.mxu0 0
        %6583 = vmatpush1.bf16.msra.mxu0 %v6538
        %6584 = vmatprep.subr.bf16.mxu0 0
        %6585 = vmatpush1.bf16.msra.mxu0 %v6539
        %6586 = vmatprep.subr.bf16.mxu0 0
        %6587 = vmatpush1.bf16.msra.mxu0 %v6540
        %6588 = vmatprep.subr.bf16.mxu0 0
        %6589 = vmatpush1.bf16.msra.mxu0 %v6541
        %6590 = vmatprep.mubr.bf16.mxu0 %v6251
        %6591 = vmatmul.mubr.bf16.gmra.mrb[0].mxu0 %v6250
        %v6592 = vpop.f32.mrb[0].mxu0
        %v6593 = vadd.f32 %v6461, %v6592
        %v6594 = vpop.f32.mrb[0].mxu0
        %v6595 = vpop.f32.mrb[0].mxu0
        %v6596 = vpop.f32.mrb[0].mxu0
        %6597 = vdwg.mxu0
        %vm6598 = vcmask 65536
        %6599 = vst.msk [vmem:[%s666] sm:$0x1] %vm6598, %v6593
        %p6600 = scmp.lt.s32.totalorder %s36, 1
        %s6601 = scalar_select %p6600, %s36, 1
        %s6602 = smul.addr %s6601, 8
        %s6603 = scalar_lea.vmem %s20, %s6602
        %s6604 = sand.u32 %s500, 1
        %s6605 = scalar_lea.sflag [#allocation3], %s6604
        %s6606 = sand.u32 %s500, 1
        %s6607 = scalar_lea.vmem [#allocation2], %s6606
        // Predicated region
        $region101: #{forward.1} parent=99 // pred_check
          %p6608 = pneg %p484
        $region102: #{forward.1} parent=99 // pred_check_branch
          %6610 = sbr.rel (%p6608) target = $region104
        $region103: #{forward.1} parent=99 // pred_region
          _
        $region104: #{forward.1} parent=99 // pred_fallthru
          _
        // Predicated region
        $region105: #{forward.1} parent=99 // pred_check
          %p6611 = pneg %p510
        $region106: #{forward.1} parent=99 // pred_check_branch
          %6613 = sbr.rel (%p6611) target = $region108
        $region107: #{forward.1} parent=99 // pred_region
          %s6615 = ssub.s32 16, 16
          %6616 = vsyncadd %s6605, %s6615
          %s6617 = smul.addr %s36, 16
          %s6618 = scalar_lea.hbm %s21, %s6617
          %s6620 = sshll.u32 %s6607, 4
          %s6621 = int_to_ptr.vmem [resolvable:$true] %s6620
          %6623 = dma.vmem_to_hbm [thread:$0]  %s6621, 16, %s6618, %s6605
        $region108: #{forward.1} parent=99 // pred_fallthru
          _
      $region100: #{forward.1} parent=5 // pred_fallthru
        _
      %p6624 = scmp.le.s32.totalorder 2, %s31
      // Predicated region
      $region109: #{forward.1} parent=5 // pred_check
        %p6625 = pneg %p6624
      $region110: #{forward.1} parent=5 // pred_check_branch
        %6627 = sbr.rel (%p6625) target = $region112
      $region111: #{forward.1} parent=5 // pred_region
        %s6628 = ssub.s32 %s31, 2
        // Predicated region
        $region113: #{forward.1} parent=111 // pred_check
          %p6629 = pneg %p490
        $region114: #{forward.1} parent=111 // pred_check_branch
          %6631 = sbr.rel (%p6629) target = $region116
        $region115: #{forward.1} parent=111 // pred_region
          %p6632 = scmp.lt.s32.totalorder %s37, 1
          %s6633 = scalar_select %p6632, %s37, 1
          %s6634 = smul.addr %s6633, 8
          %s6635 = scalar_lea.vmem %s20, %s6634
        $region116: #{forward.1} parent=111 // pred_fallthru
          _
        // Predicated region
        $region117: #{forward.1} parent=111 // pred_check
          %p6636 = pneg %p516
        $region118: #{forward.1} parent=111 // pred_check_branch
          %6638 = sbr.rel (%p6636) target = $region120
        $region119: #{forward.1} parent=111 // pred_region
          %s6639 = sand.u32 %s501, 1
          %s6640 = scalar_lea.sflag [#allocation3], %s6639
          %s6641 = sand.u32 %s501, 1
          %s6642 = scalar_lea.vmem [#allocation2], %s6641
          %6643 = dma.done %s6640, 16
        $region120: #{forward.1} parent=111 // pred_fallthru
          _
      $region112: #{forward.1} parent=5 // pred_fallthru
        _
    $region6: #{forward.1} parent=1 // loop_footer
      %s35 = sadd.s32 1, %s31
    $region7: #{forward.1} parent=1 // loop_footer_branch
      %30 = sbr.rel target = $region3
    $region8: #{forward.1} parent=1 // loop_exit
      _
    %6644 = vsyncpa [#allocation3], 1
    %s6645 = scalar_lea.sflag [#allocation3], 1
    %6646 = vsyncpa %s6645, 1

</llo_original>
